<compile_context>
chip_gen: v7x
topology: tpu7x:2x2x1
jax: 0.10.0
libtpu: 0.0.40
codegen_flags: <defaults>
</compile_context>

<pallas_src>
import jax
import jax.numpy as jnp
from jax.experimental import pallas as pl
from jax.experimental.pallas import tpu as pltpu

_IN, _HID, _OUT = 4, 8, 3
_LANES = 128
_INNER = 2048            # in-kernel lane chunk: (8, 2048) f32 == 16 vregs

# Packed-parameter column layout inside the (8, 128) f32 resident block:
#   cols 0..7  : w1.T zero-padded to 8 cols   (p[j, k] = w1[k, j], k < 4)
#   cols 8..15 : w2.T zero-padded to 8 rows   (p[c, 8 + j] = w2[j, c], c < 3)
#   col  16    : b1                           (p[j, 16] = b1[j])
#   col  17    : b2 zero-padded               (p[c, 17] = b2[c], c < 3)
_W1_COL, _W2_COL, _B1_COL, _B2_COL = 0, 8, 16, 17


def mlp_kernel(params_ref, xT_ref, oT_ref, x8_ref):
    inner = x8_ref.shape[1]                       # static (2048 or tb)
    n_inner = xT_ref.shape[1] // inner            # static trip count

    p = params_ref[...]                           # (8, 128), resident
    w1p = p[:, _W1_COL:_W1_COL + _HID]            # (8, 8), cols 4..7 zero
    w2p = p[:, _W2_COL:_W2_COL + _HID]            # (8, 8), rows 3..7 zero
    b1 = p[:, _B1_COL:_B1_COL + 1]                # (8, 1)
    b2 = p[:_OUT, _B2_COL:_B2_COL + 1]            # (3, 1)

    # Zero the padded feature rows of the staging buffer once per grid step
    # (rows 0..3 are overwritten every chunk; rows 4..7 must be exactly 0 so the
    #  padded contraction contributes nothing).
    x8_ref[_IN:, :] = jnp.zeros((_HID - _IN, inner), jnp.float32)

    def body(s, carry):
        off = pl.multiple_of(s * inner, inner)
        cols = pl.ds(off, inner)

        # Stage the 4-row input chunk into the 8-row, zero-padded scratch so the
        # matmul is a tile-aligned (8, 8) x (8, inner) MXU op.
        x8_ref[:_IN, :] = xT_ref[:, cols]
        x8 = x8_ref[...]                                          # (8, inner)

        h = jnp.dot(w1p, x8, preferred_element_type=jnp.float32,
                    precision=jax.lax.Precision.HIGHEST)          # (8, inner)
        h = jnp.maximum(h + b1, 0.0)                              # bias + ReLU on VPU
        out = jnp.dot(w2p, h, preferred_element_type=jnp.float32,
                      precision=jax.lax.Precision.HIGHEST)        # (8, inner)
        oT_ref[:, cols] = (out[:_OUT, :] + b2).astype(oT_ref.dtype)
        return carry

    jax.lax.fori_loop(0, n_inner, body, 0)


def _round_up(n, m):
    return ((n + m - 1) // m) * m


def _pack_params(w1, b1, w2, b2):
    # Convention: x @ w1 + b1 with w1: (4, 8), b1: (8,), w2: (8, 3), b2: (3,).
    p = jnp.zeros((_HID, _LANES), jnp.float32)
    p = p.at[:, _W1_COL:_W1_COL + _IN].set(jnp.asarray(w1, jnp.float32).T)
    p = p.at[:_OUT, _W2_COL:_W2_COL + _HID].set(jnp.asarray(w2, jnp.float32).T)
    p = p.at[:, _B1_COL].set(jnp.asarray(b1, jnp.float32))
    p = p.at[:_OUT, _B2_COL].set(jnp.asarray(b2, jnp.float32))
    return p


def multiclass_forward(x, w1, b1, w2, b2, *, max_tb=65536):
    if x.ndim != 2 or x.shape[1] != _IN:
        raise ValueError(f"expected x of shape (batch, {_IN}), got {x.shape}")
    batch = x.shape[0]

    # Batch tile: multiple of the in-kernel chunk, as large as possible (up to
    # max_tb) so the ~0.35us/step pipeline overhead is amortized.  VMEM budget at
    # tb=65536: 2x(8-padded x tile 2 MiB) + 2x(out tile 2 MiB) + small scratch
    # ~= 8.5 MiB, well under every generation's scoped limit.
    max_tb = max(_INNER, _round_up(max_tb, _INNER))
    tb = min(max_tb, _round_up(batch, _INNER))
    # Prefer >= 2 grid steps on large batches so v7x's two TensorCores can split
    # the "parallel" batch axis; v5e/v6e (single TC) are unaffected.
    if pl.cdiv(batch, tb) < 2 and batch > _INNER:
        tb = _round_up(pl.cdiv(batch, 2), _INNER)
    n_tiles = pl.cdiv(batch, tb)
    inner = min(_INNER, tb)

    params = _pack_params(w1, b1, w2, b2)            # (8, 128) f32
    # Feature-major (lane-dense batch) view; one XLA relayout pass over x.
    xT = x.astype(jnp.float32).T                     # (4, batch)

    outT = pl.pallas_call(
        mlp_kernel,
        out_shape=jax.ShapeDtypeStruct((_OUT, batch), jnp.float32),
        grid=(n_tiles,),
        in_specs=[
            # Packed params: constant index_map -> stays resident in VMEM.
            pl.BlockSpec((_HID, _LANES), lambda i: (0, 0)),
            # x^T tiled along the batch (lane) axis; ragged last block allowed.
            pl.BlockSpec((_IN, tb), lambda i: (0, i)),
        ],
        out_specs=pl.BlockSpec((_OUT, tb), lambda i: (0, i)),
        scratch_shapes=[pltpu.VMEM((_HID, inner), jnp.float32)],
        compiler_params=pltpu.CompilerParams(
            dimension_semantics=("parallel",),
            vmem_limit_bytes=32 * 1024 * 1024,
        ),
    )(params, xT)

    return outT.T                                    # (batch, 3)


def init_params(key):
    # nn.Linear default init: U(-1/sqrt(fan_in), +1/sqrt(fan_in)).
    k1, k2, k3, k4 = jax.random.split(key, 4)
    bound1 = 1.0 / jnp.sqrt(4.0)
    bound2 = 1.0 / jnp.sqrt(8.0)
    w1 = jax.random.uniform(k1, (4, 8), jnp.float32, -bound1, bound1)
    b1 = jax.random.uniform(k2, (8,), jnp.float32, -bound1, bound1)
    w2 = jax.random.uniform(k3, (8, 3), jnp.float32, -bound2, bound2)
    b2 = jax.random.uniform(k4, (3,), jnp.float32, -bound2, bound2)
    return w1, b1, w2, b2


if __name__ == "__main__":
    key = jax.random.PRNGKey(0)
    kx, kp = jax.random.split(key)
    w1, b1, w2, b2 = init_params(kp)

    def reference(xv):
        # Pure element-wise f32 reference (no matmul precision ambiguity).
        h = jnp.maximum(jnp.sum(xv[:, :, None] * w1[None, :, :], axis=1) + b1, 0.0)
        return jnp.sum(h[:, :, None] * w2[None, :, :], axis=1) + b2

    # Small shape (single partial block) + a multi-tile shape with a ragged last block.
    for batch in (8, 3000):
        xb = jax.random.normal(jax.random.fold_in(kx, batch), (batch, 4), jnp.float32)
        out = jax.block_until_ready(multiclass_forward(xb, w1, b1, w2, b2))
        ref = reference(xb)
        assert out.shape == (batch, 3)
        err = float(jnp.max(jnp.abs(out - ref)))
        assert jnp.allclose(out, ref, atol=1e-4, rtol=1e-4), f"max abs err {err}"

    print("KERNEL_OK")
</pallas_src>

<mosaic_0001>
module attributes {stable_mosaic.version = 11 : i64} {
  func.func @mlp_kernel(%arg0: i32, %arg1: memref<8x128xf32, #tpu.memory_space<vmem>>, %arg2: memref<4x2048xf32, #tpu.memory_space<vmem>>, %arg3: memref<3x2048xf32, #tpu.memory_space<vmem>>, %arg4: memref<8x2048xf32, #tpu.memory_space<vmem>>) attributes {dimension_semantics = [#tpu.dimension_semantics<parallel>], iteration_bounds = array<i64: 1>, scalar_prefetch = 0 : i64, scratch_operands = 1 : i64, tpu.core_type = #tpu.core_type<tc>, window_params = [{pipeline_mode = #tpu.pipeline_mode<synchronous>, transform_indices = @transform_0, window_bounds = array<i64: 8, 128>}, {transform_indices = @transform_1, window_bounds = array<i64: 4, 2048>}, {transform_indices = @transform_2, window_bounds = array<i64: 3, 2048>}]} {
    %c0 = arith.constant 0 : index
    %c0_0 = arith.constant 0 : index
    %0 = vector.load %arg1[%c0, %c0_0] : memref<8x128xf32, #tpu.memory_space<vmem>>, vector<8x128xf32>
    %1 = vector.extract_strided_slice %0 {offsets = [0, 0], sizes = [8, 8], strides = [1, 1]} : vector<8x128xf32> to vector<8x8xf32>
    %2 = vector.extract_strided_slice %0 {offsets = [0, 8], sizes = [8, 8], strides = [1, 1]} : vector<8x128xf32> to vector<8x8xf32>
    %3 = vector.extract_strided_slice %0 {offsets = [0, 16], sizes = [8, 1], strides = [1, 1]} : vector<8x128xf32> to vector<8x1xf32>
    %4 = vector.extract_strided_slice %0 {offsets = [0, 17], sizes = [3, 1], strides = [1, 1]} : vector<8x128xf32> to vector<3x1xf32>
    %cst = arith.constant 0.000000e+00 : f32
    %5 = vector.broadcast %cst : f32 to vector<4x2048xf32>
    %c4 = arith.constant 4 : index
    %c0_1 = arith.constant 0 : index
    %6 = vector.load %arg4[%c4, %c0_1] : memref<8x2048xf32, #tpu.memory_space<vmem>>, vector<4x2048xf32>
    tpu.vector_store %arg4[%c4, %c0_1], %5 {strides = array<i32>} : memref<8x2048xf32, #tpu.memory_space<vmem>>, vector<4x2048xf32>,
    %c0_i32 = arith.constant 0 : i32
    %c2048_i32 = arith.constant 2048 : i32
    %7 = arith.muli %c0_i32, %c2048_i32 : i32
    %8 = tpu.assume_multiple %7, 2048 : i32
    %c0_2 = arith.constant 0 : index
    %9 = arith.index_cast %8 : i32 to index
    %10 = vector.load %arg2[%c0_2, %9] : memref<4x2048xf32, #tpu.memory_space<vmem>>, vector<4x2048xf32>
    %c0_3 = arith.constant 0 : index
    %c0_4 = arith.constant 0 : index
    %11 = vector.load %arg4[%c0_3, %c0_4] : memref<8x2048xf32, #tpu.memory_space<vmem>>, vector<4x2048xf32>
    tpu.vector_store %arg4[%c0_3, %c0_4], %10 {strides = array<i32>} : memref<8x2048xf32, #tpu.memory_space<vmem>>, vector<4x2048xf32>,
    %c0_5 = arith.constant 0 : index
    %c0_6 = arith.constant 0 : index
    %12 = vector.load %arg4[%c0_5, %c0_6] : memref<8x2048xf32, #tpu.memory_space<vmem>>, vector<8x2048xf32>
    %cst_7 = arith.constant dense<0.000000e+00> : vector<8x2048xf32>
    %13 = tpu.matmul %1, %12, %cst_7 {dimension_numbers = #tpu.dot_dimension_numbers<[1], [0], [0], [1], [0, 0, 1, 1], [], []>, precision = #tpu.contract_precision<fp32>} : vector<8x8xf32>, vector<8x2048xf32>, vector<8x2048xf32> -> vector<8x2048xf32>
    %14 = vector.broadcast %3 : vector<8x1xf32> to vector<8x2048xf32>
    %15 = arith.addf %13, %14 : vector<8x2048xf32>
    %cst_8 = arith.constant 0.000000e+00 : f32
    %16 = vector.broadcast %cst_8 : f32 to vector<8x2048xf32>
    %17 = arith.maximumf %15, %16 : vector<8x2048xf32>
    %cst_9 = arith.constant dense<0.000000e+00> : vector<8x2048xf32>
    %18 = tpu.matmul %2, %17, %cst_9 {dimension_numbers = #tpu.dot_dimension_numbers<[1], [0], [0], [1], [0, 0, 1, 1], [], []>, precision = #tpu.contract_precision<fp32>} : vector<8x8xf32>, vector<8x2048xf32>, vector<8x2048xf32> -> vector<8x2048xf32>
    %19 = vector.extract_strided_slice %18 {offsets = [0, 0], sizes = [3, 2048], strides = [1, 1]} : vector<8x2048xf32> to vector<3x2048xf32>
    %20 = vector.broadcast %4 : vector<3x1xf32> to vector<3x2048xf32>
    %21 = arith.addf %19, %20 : vector<3x2048xf32>
    %c0_10 = arith.constant 0 : index
    %22 = arith.index_cast %8 : i32 to index
    %23 = vector.load %arg3[%c0_10, %22] : memref<3x2048xf32, #tpu.memory_space<vmem>>, vector<3x2048xf32>
    tpu.vector_store %arg3[%c0_10, %22], %21 {strides = array<i32>} : memref<3x2048xf32, #tpu.memory_space<vmem>>, vector<3x2048xf32>,
    %c1_i32 = arith.constant 1 : i32
    return
  }
  func.func @transform_0(%arg0: i32) -> (i32, i32) {
    %c0_i32 = arith.constant 0 : i32
    %c0_i32_0 = arith.constant 0 : i32
    %c0_i32_1 = arith.constant 0 : i32
    return %c0_i32, %c0_i32_0 : i32, i32
  }
  func.func @transform_1(%arg0: i32) -> (i32, i32) {
    %c0_i32 = arith.constant 0 : i32
    %c0_i32_0 = arith.constant 0 : i32
    return %c0_i32, %arg0 : i32, i32
  }
  func.func @transform_2(%arg0: i32) -> (i32, i32) {
    %c0_i32 = arith.constant 0 : i32
    %c0_i32_0 = arith.constant 0 : i32
    return %c0_i32, %arg0 : i32, i32
  }
}

</mosaic_0001>

<llo_original>
// kernel: tpu_custom_call.1
$region0: #{tpu_custom_call.1}
  #allocation0 [shape = 'u32[]', space=smem, size = 0x4, offset = 0x4, fixed_abs, tag = 'smem constant byte address 0x4 - core index']
  #allocation1 [shape = 'u32[144,128]{1,0:T(1,128)}', space=vmem, size = 0x12000, scoped, tag = 'internal scratch']
  #allocation2 [shape = 'f32[8,2048]{1,0:T(8,128)}', space=vmem, size = 0x10000, scoped, tag = 'scratch operand']
  %s0 = inlined_call_operand.hbm [shape: f32[8,128], index: 0, kind: input, shape index: {}]
  %s1 = inlined_call_operand.hbm [shape: f32[4,8], index: 1, kind: input, shape index: {}]
  %s2 = inlined_call_operand.hbm [shape: f32[3,8], index: 2, kind: output, shape index: {}]
  %s3 = sld [smem:[#allocation0]]
  $region26: #{tpu_custom_call.1} parent=0
    _
  %s5 = ssub.s32 1, %s3
  %s6 = scalar_select 0, %s5, %s3
  $region1: #{tpu_custom_call.1} parent=0
    #allocation3 [shape = 'u8[4096]{0}', space=vmem, size = 0x1000, scoped, tag = 'input window, operand 0, single buffered']
    #allocation4 [shape = 's32[1]{0}', space=sflag, size = 0x4, scoped, tag = 'scoped memory for tpu_custom_call.1']
    #allocation5 [shape = 's32[1]{0}', space=sflag, size = 0x4, scoped, tag = 'scoped memory for tpu_custom_call.1']
    #allocation6 [shape = 'u8[32768]{0}', space=vmem, size = 0x8000, scoped, tag = 'input window, operand 1, single buffered']
    #allocation7 [shape = 's32[1]{0}', space=sflag, size = 0x4, scoped, tag = 'scoped memory for tpu_custom_call.1']
    #allocation8 [shape = 'u8[32768]{0}', space=vmem, size = 0x8000, scoped, tag = 'output window, operand 0, single buffered']
    %7 = vsyncpa [#allocation4], 0
    %8 = vsyncpa [#allocation7], 0
    %9 = vsyncpa [#allocation5], 0
    // Predicated region
    $region2: #{tpu_custom_call.1} parent=1 // pred_check
      _
    $region3: #{tpu_custom_call.1} parent=1 // pred_check_branch
      %11 = sbr.rel (0) target = $region5
    $region4: #{tpu_custom_call.1} parent=1 // pred_region
      %s13 = ssub.s32 128, 128
      %14 = vsyncadd [#allocation4], %s13
      %s16 = sshll.u32 [#allocation3], 4
      %s17 = int_to_ptr.vmem [resolvable:$true] %s16
      %19 = dma.hbm_to_vmem [thread:$0]  %s0, 128, %s17, [#allocation4]
    $region5: #{tpu_custom_call.1} parent=1 // pred_fallthru
      _
    // Predicated region
    $region6: #{tpu_custom_call.1} parent=1 // pred_check
      _
    $region7: #{tpu_custom_call.1} parent=1 // pred_check_branch
      %21 = sbr.rel (0) target = $region9
    $region8: #{tpu_custom_call.1} parent=1 // pred_region
      %s23 = ssub.s32 1024, 64
      %24 = vsyncadd [#allocation7], %s23
      %s26 = sshll.u32 [#allocation6], 4
      %s27 = int_to_ptr.vmem [resolvable:$true] %s26
      %29 = dma.hbm_to_vmem [thread:$0]  %s1, 64, %s27, [#allocation7]
    $region9: #{tpu_custom_call.1} parent=1 // pred_fallthru
      _
    // Predicated region
    $region10: #{tpu_custom_call.1} parent=1 // pred_check
      _
    $region11: #{tpu_custom_call.1} parent=1 // pred_check_branch
      %31 = sbr.rel (0) target = $region13
    $region12: #{tpu_custom_call.1} parent=1 // pred_region
      %32 = dma.done [#allocation4], 128
    $region13: #{tpu_custom_call.1} parent=1 // pred_fallthru
      _
    // Predicated region
    $region14: #{tpu_custom_call.1} parent=1 // pred_check
      _
    $region15: #{tpu_custom_call.1} parent=1 // pred_check_branch
      %34 = sbr.rel (0) target = $region17
    $region16: #{tpu_custom_call.1} parent=1 // pred_region
      %35 = dma.done [#allocation7], 1024
    $region17: #{tpu_custom_call.1} parent=1 // pred_fallthru
      _
    %v36 = vld [vmem:[#allocation3] sm:$0xff]
    %37 = vst [vmem:[#allocation2] sm:$0xf0] 0.0
    %38 = vst [vmem:[#allocation2 + $0x8] sm:$0xf0] 0.0
    %39 = vst [vmem:[#allocation2 + $0x10] sm:$0xf0] 0.0
    %40 = vst [vmem:[#allocation2 + $0x18] sm:$0xf0] 0.0
    %41 = vst [vmem:[#allocation2 + $0x20] sm:$0xf0] 0.0
    %42 = vst [vmem:[#allocation2 + $0x28] sm:$0xf0] 0.0
    %43 = vst [vmem:[#allocation2 + $0x30] sm:$0xf0] 0.0
    %44 = vst [vmem:[#allocation2 + $0x38] sm:$0xf0] 0.0
    %45 = vst [vmem:[#allocation2 + $0x40] sm:$0xf0] 0.0
    %46 = vst [vmem:[#allocation2 + $0x48] sm:$0xf0] 0.0
    %47 = vst [vmem:[#allocation2 + $0x50] sm:$0xf0] 0.0
    %48 = vst [vmem:[#allocation2 + $0x58] sm:$0xf0] 0.0
    %49 = vst [vmem:[#allocation2 + $0x60] sm:$0xf0] 0.0
    %50 = vst [vmem:[#allocation2 + $0x68] sm:$0xf0] 0.0
    %51 = vst [vmem:[#allocation2 + $0x70] sm:$0xf0] 0.0
    %52 = vst [vmem:[#allocation2 + $0x78] sm:$0xf0] 0.0
    %v53 = vld [vmem:[#allocation6] sm:$0xff]
    %v54 = vld [vmem:[#allocation6 + $0x8] sm:$0xff]
    %v55 = vld [vmem:[#allocation6 + $0x10] sm:$0xff]
    %v56 = vld [vmem:[#allocation6 + $0x18] sm:$0xff]
    %v57 = vld [vmem:[#allocation6 + $0x20] sm:$0xff]
    %v58 = vld [vmem:[#allocation6 + $0x28] sm:$0xff]
    %v59 = vld [vmem:[#allocation6 + $0x30] sm:$0xff]
    %v60 = vld [vmem:[#allocation6 + $0x38] sm:$0xff]
    %v69 = vcombine.high %v53, %v53
    %v70 = vcombine.high %v54, %v54
    %v71 = vcombine.high %v55, %v55
    %v72 = vcombine.high %v56, %v56
    %v73 = vcombine.high %v57, %v57
    %v74 = vcombine.high %v58, %v58
    %v75 = vcombine.high %v59, %v59
    %v76 = vcombine.high %v60, %v60
    %85 = vst [vmem:[#allocation2] sm:$0xf] %v53
    %86 = vst [vmem:[#allocation2 + $0x8] sm:$0xf] %v69
    %87 = vst [vmem:[#allocation2 + $0x10] sm:$0xf] %v54
    %88 = vst [vmem:[#allocation2 + $0x18] sm:$0xf] %v70
    %89 = vst [vmem:[#allocation2 + $0x20] sm:$0xf] %v55
    %90 = vst [vmem:[#allocation2 + $0x28] sm:$0xf] %v71
    %91 = vst [vmem:[#allocation2 + $0x30] sm:$0xf] %v56
    %92 = vst [vmem:[#allocation2 + $0x38] sm:$0xf] %v72
    %93 = vst [vmem:[#allocation2 + $0x40] sm:$0xf] %v57
    %94 = vst [vmem:[#allocation2 + $0x48] sm:$0xf] %v73
    %95 = vst [vmem:[#allocation2 + $0x50] sm:$0xf] %v58
    %96 = vst [vmem:[#allocation2 + $0x58] sm:$0xf] %v74
    %97 = vst [vmem:[#allocation2 + $0x60] sm:$0xf] %v59
    %98 = vst [vmem:[#allocation2 + $0x68] sm:$0xf] %v75
    %99 = vst [vmem:[#allocation2 + $0x70] sm:$0xf] %v60
    %100 = vst [vmem:[#allocation2 + $0x78] sm:$0xf] %v76
    %v101 = vld [vmem:[#allocation2] sm:$0xff]
    %v102 = vld [vmem:[#allocation2 + $0x8] sm:$0xff]
    %v103 = vld [vmem:[#allocation2 + $0x10] sm:$0xff]
    %v104 = vld [vmem:[#allocation2 + $0x18] sm:$0xff]
    %v105 = vld [vmem:[#allocation2 + $0x20] sm:$0xff]
    %v106 = vld [vmem:[#allocation2 + $0x28] sm:$0xff]
    %v107 = vld [vmem:[#allocation2 + $0x30] sm:$0xff]
    %v108 = vld [vmem:[#allocation2 + $0x38] sm:$0xff]
    %v109 = vld [vmem:[#allocation2 + $0x40] sm:$0xff]
    %v110 = vld [vmem:[#allocation2 + $0x48] sm:$0xff]
    %v111 = vld [vmem:[#allocation2 + $0x50] sm:$0xff]
    %v112 = vld [vmem:[#allocation2 + $0x58] sm:$0xff]
    %v113 = vld [vmem:[#allocation2 + $0x60] sm:$0xff]
    %v114 = vld [vmem:[#allocation2 + $0x68] sm:$0xff]
    %v115 = vld [vmem:[#allocation2 + $0x70] sm:$0xff]
    %v116 = vld [vmem:[#allocation2 + $0x78] sm:$0xff]
    %118 = vset.pattern.permute.xlu0 16
    %119 = vperm.xlu0 %118, %v36
    %v120 = vpop.permute.xlu0 %119
    %vm122 = vcmask 64512
    %v123 = vsel %vm122, %v36, 0
    %v125 = vand.u32 %v102, 4294901760
    %126 = vmatprep.subr.mxu0 %v125
    %v127 = vand.u32 %v101, 4294901760
    %128 = vmatpush1.msra.mxu0 %v127
    %129 = vmatprep.subr.mxu0 0.0
    %130 = vmatpush1.msra.mxu0 0.0
    %131 = vmatprep.subr.mxu0 0.0
    %132 = vmatpush1.msra.mxu0 0.0
    %133 = vmatprep.subr.mxu0 0.0
    %134 = vmatpush1.msra.mxu0 0.0
    %135 = vmatprep.subr.mxu0 0.0
    %136 = vmatpush1.msra.mxu0 0.0
    %137 = vmatprep.subr.mxu0 0.0
    %138 = vmatpush1.msra.mxu0 0.0
    %139 = vmatprep.subr.mxu0 0.0
    %140 = vmatpush1.msra.mxu0 0.0
    %141 = vmatprep.subr.mxu0 0.0
    %142 = vmatpush1.msra.mxu0 0.0
    %143 = vmatprep.subr.mxu0 0.0
    %144 = vmatpush1.msra.mxu0 0.0
    %145 = vmatprep.subr.mxu0 0.0
    %146 = vmatpush1.msra.mxu0 0.0
    %147 = vmatprep.subr.mxu0 0.0
    %148 = vmatpush1.msra.mxu0 0.0
    %149 = vmatprep.subr.mxu0 0.0
    %150 = vmatpush1.msra.mxu0 0.0
    %151 = vmatprep.subr.mxu0 0.0
    %152 = vmatpush1.msra.mxu0 0.0
    %153 = vmatprep.subr.mxu0 0.0
    %154 = vmatpush1.msra.mxu0 0.0
    %155 = vmatprep.subr.mxu0 0.0
    %156 = vmatpush1.msra.mxu0 0.0
    %157 = vmatprep.subr.mxu0 0.0
    %158 = vmatpush1.msra.mxu0 0.0
    %159 = vmatprep.subr.mxu0 0.0
    %160 = vmatpush1.msra.mxu0 0.0
    %161 = vmatprep.subr.mxu0 0.0
    %162 = vmatpush1.msra.mxu0 0.0
    %163 = vmatprep.subr.mxu0 0.0
    %164 = vmatpush1.msra.mxu0 0.0
    %165 = vmatprep.subr.mxu0 0.0
    %166 = vmatpush1.msra.mxu0 0.0
    %167 = vmatprep.subr.mxu0 0.0
    %168 = vmatpush1.msra.mxu0 0.0
    %169 = vmatprep.subr.mxu0 0.0
    %170 = vmatpush1.msra.mxu0 0.0
    %171 = vmatprep.subr.mxu0 0.0
    %172 = vmatpush1.msra.mxu0 0.0
    %173 = vmatprep.subr.mxu0 0.0
    %174 = vmatpush1.msra.mxu0 0.0
    %175 = vmatprep.subr.mxu0 0.0
    %176 = vmatpush1.msra.mxu0 0.0
    %177 = vmatprep.subr.mxu0 0.0
    %178 = vmatpush1.msra.mxu0 0.0
    %179 = vmatprep.subr.mxu0 0.0
    %180 = vmatpush1.msra.mxu0 0.0
    %181 = vmatprep.subr.mxu0 0.0
    %182 = vmatpush1.msra.mxu0 0.0
    %183 = vmatprep.subr.mxu0 0.0
    %184 = vmatpush1.msra.mxu0 0.0
    %185 = vmatprep.subr.mxu0 0.0
    %186 = vmatpush1.msra.mxu0 0.0
    %187 = vmatprep.subr.mxu0 0.0
    %188 = vmatpush1.msra.mxu0 0.0
    %189 = vmatprep.subr.mxu0 0.0
    %190 = vmatpush1.msra.mxu0 0.0
    %191 = vmatprep.mubr.f32.mxu0 0.0
    %v192 = vand.u32 %v123, 4294901760
    %v193 = vsub.f32 %v123, %v192
    %v194 = vand.u32 %v193, 4294901760
    %v195 = vsub.f32 %v193, %v194
    %v196 = vand.u32 %v195, 4294901760
    %197 = vmatmul.mubr.f32.gmra.mrb[0].mxu0 %v196
    %v198 = vpop.f32.mrb[0].mxu0
    %v199 = vadd.f32 %v120, %v198
    %v200 = vpop.f32.mrb[0].mxu0
    %v201 = vadd.f32 %v120, %v200
    %202 = vdwg.mxu0
    %v203 = vand.u32 %v102, 4294901760
    %v204 = vsub.f32 %v102, %v203
    %v205 = vand.u32 %v204, 4294901760
    %v206 = vsub.f32 %v204, %v205
    %v207 = vand.u32 %v206, 4294901760
    %208 = vmatprep.subr.mxu0 %v207
    %v209 = vand.u32 %v101, 4294901760
    %v210 = vsub.f32 %v101, %v209
    %v211 = vand.u32 %v210, 4294901760
    %v212 = vsub.f32 %v210, %v211
    %v213 = vand.u32 %v212, 4294901760
    %214 = vmatpush1.msra.mxu0 %v213
    %215 = vmatprep.subr.mxu0 0.0
    %216 = vmatpush1.msra.mxu0 0.0
    %217 = vmatprep.subr.mxu0 0.0
    %218 = vmatpush1.msra.mxu0 0.0
    %219 = vmatprep.subr.mxu0 0.0
    %220 = vmatpush1.msra.mxu0 0.0
    %221 = vmatprep.subr.mxu0 0.0
    %222 = vmatpush1.msra.mxu0 0.0
    %223 = vmatprep.subr.mxu0 0.0
    %224 = vmatpush1.msra.mxu0 0.0
    %225 = vmatprep.subr.mxu0 0.0
    %226 = vmatpush1.msra.mxu0 0.0
    %227 = vmatprep.subr.mxu0 0.0
    %228 = vmatpush1.msra.mxu0 0.0
    %229 = vmatprep.subr.mxu0 0.0
    %230 = vmatpush1.msra.mxu0 0.0
    %231 = vmatprep.subr.mxu0 0.0
    %232 = vmatpush1.msra.mxu0 0.0
    %233 = vmatprep.subr.mxu0 0.0
    %234 = vmatpush1.msra.mxu0 0.0
    %235 = vmatprep.subr.mxu0 0.0
    %236 = vmatpush1.msra.mxu0 0.0
    %237 = vmatprep.subr.mxu0 0.0
    %238 = vmatpush1.msra.mxu0 0.0
    %239 = vmatprep.subr.mxu0 0.0
    %240 = vmatpush1.msra.mxu0 0.0
    %241 = vmatprep.subr.mxu0 0.0
    %242 = vmatpush1.msra.mxu0 0.0
    %243 = vmatprep.subr.mxu0 0.0
    %244 = vmatpush1.msra.mxu0 0.0
    %245 = vmatprep.subr.mxu0 0.0
    %246 = vmatpush1.msra.mxu0 0.0
    %247 = vmatprep.subr.mxu0 0.0
    %248 = vmatpush1.msra.mxu0 0.0
    %249 = vmatprep.subr.mxu0 0.0
    %250 = vmatpush1.msra.mxu0 0.0
    %251 = vmatprep.subr.mxu0 0.0
    %252 = vmatpush1.msra.mxu0 0.0
    %253 = vmatprep.subr.mxu0 0.0
    %254 = vmatpush1.msra.mxu0 0.0
    %255 = vmatprep.subr.mxu0 0.0
    %256 = vmatpush1.msra.mxu0 0.0
    %257 = vmatprep.subr.mxu0 0.0
    %258 = vmatpush1.msra.mxu0 0.0
    %259 = vmatprep.subr.mxu0 0.0
    %260 = vmatpush1.msra.mxu0 0.0
    %261 = vmatprep.subr.mxu0 0.0
    %262 = vmatpush1.msra.mxu0 0.0
    %263 = vmatprep.subr.mxu0 0.0
    %264 = vmatpush1.msra.mxu0 0.0
    %265 = vmatprep.subr.mxu0 0.0
    %266 = vmatpush1.msra.mxu0 0.0
    %267 = vmatprep.subr.mxu0 0.0
    %268 = vmatpush1.msra.mxu0 0.0
    %269 = vmatprep.subr.mxu0 0.0
    %270 = vmatpush1.msra.mxu0 0.0
    %271 = vmatprep.subr.mxu0 0.0
    %272 = vmatpush1.msra.mxu0 0.0
    %273 = vmatprep.subr.mxu0 0.0
    %274 = vmatpush1.msra.mxu0 0.0
    %275 = vmatprep.subr.mxu0 0.0
    %276 = vmatpush1.msra.mxu0 0.0
    %277 = vmatprep.mubr.f32.mxu0 0.0
    %v278 = vand.u32 %v123, 4294901760
    %279 = vmatmul.mubr.f32.gmra.mrb[0].mxu0 %v278
    %v280 = vpop.f32.mrb[0].mxu0
    %v281 = vadd.f32 %v199, %v280
    %v282 = vpop.f32.mrb[0].mxu0
    %v283 = vadd.f32 %v201, %v282
    %284 = vdwg.mxu0
    %v285 = vand.u32 %v102, 4294901760
    %v286 = vsub.f32 %v102, %v285
    %287 = vmatprep.subr.mxu0 %v286
    %v288 = vand.u32 %v101, 4294901760
    %v289 = vsub.f32 %v101, %v288
    %290 = vmatpush1.msra.mxu0 %v289
    %291 = vmatprep.subr.mxu0 0.0
    %292 = vmatpush1.msra.mxu0 0.0
    %293 = vmatprep.subr.mxu0 0.0
    %294 = vmatpush1.msra.mxu0 0.0
    %295 = vmatprep.subr.mxu0 0.0
    %296 = vmatpush1.msra.mxu0 0.0
    %297 = vmatprep.subr.mxu0 0.0
    %298 = vmatpush1.msra.mxu0 0.0
    %299 = vmatprep.subr.mxu0 0.0
    %300 = vmatpush1.msra.mxu0 0.0
    %301 = vmatprep.subr.mxu0 0.0
    %302 = vmatpush1.msra.mxu0 0.0
    %303 = vmatprep.subr.mxu0 0.0
    %304 = vmatpush1.msra.mxu0 0.0
    %305 = vmatprep.subr.mxu0 0.0
    %306 = vmatpush1.msra.mxu0 0.0
    %307 = vmatprep.subr.mxu0 0.0
    %308 = vmatpush1.msra.mxu0 0.0
    %309 = vmatprep.subr.mxu0 0.0
    %310 = vmatpush1.msra.mxu0 0.0
    %311 = vmatprep.subr.mxu0 0.0
    %312 = vmatpush1.msra.mxu0 0.0
    %313 = vmatprep.subr.mxu0 0.0
    %314 = vmatpush1.msra.mxu0 0.0
    %315 = vmatprep.subr.mxu0 0.0
    %316 = vmatpush1.msra.mxu0 0.0
    %317 = vmatprep.subr.mxu0 0.0
    %318 = vmatpush1.msra.mxu0 0.0
    %319 = vmatprep.subr.mxu0 0.0
    %320 = vmatpush1.msra.mxu0 0.0
    %321 = vmatprep.subr.mxu0 0.0
    %322 = vmatpush1.msra.mxu0 0.0
    %323 = vmatprep.subr.mxu0 0.0
    %324 = vmatpush1.msra.mxu0 0.0
    %325 = vmatprep.subr.mxu0 0.0
    %326 = vmatpush1.msra.mxu0 0.0
    %327 = vmatprep.subr.mxu0 0.0
    %328 = vmatpush1.msra.mxu0 0.0
    %329 = vmatprep.subr.mxu0 0.0
    %330 = vmatpush1.msra.mxu0 0.0
    %331 = vmatprep.subr.mxu0 0.0
    %332 = vmatpush1.msra.mxu0 0.0
    %333 = vmatprep.subr.mxu0 0.0
    %334 = vmatpush1.msra.mxu0 0.0
    %335 = vmatprep.subr.mxu0 0.0
    %336 = vmatpush1.msra.mxu0 0.0
    %337 = vmatprep.subr.mxu0 0.0
    %338 = vmatpush1.msra.mxu0 0.0
    %339 = vmatprep.subr.mxu0 0.0
    %340 = vmatpush1.msra.mxu0 0.0
    %341 = vmatprep.subr.mxu0 0.0
    %342 = vmatpush1.msra.mxu0 0.0
    %343 = vmatprep.subr.mxu0 0.0
    %344 = vmatpush1.msra.mxu0 0.0
    %345 = vmatprep.subr.mxu0 0.0
    %346 = vmatpush1.msra.mxu0 0.0
    %347 = vmatprep.subr.mxu0 0.0
    %348 = vmatpush1.msra.mxu0 0.0
    %349 = vmatprep.subr.mxu0 0.0
    %350 = vmatpush1.msra.mxu0 0.0
    %351 = vmatprep.subr.mxu0 0.0
    %352 = vmatpush1.msra.mxu0 0.0
    %353 = vmatprep.mubr.f32.mxu0 0.0
    %v354 = vand.u32 %v123, 4294901760
    %v355 = vsub.f32 %v123, %v354
    %356 = vmatmul.mubr.f32.gmra.mrb[0].mxu0 %v355
    %v357 = vpop.f32.mrb[0].mxu0
    %v358 = vadd.f32 %v281, %v357
    %v359 = vpop.f32.mrb[0].mxu0
    %v360 = vadd.f32 %v283, %v359
    %361 = vdwg.mxu0
    %v362 = vand.u32 %v102, 4294901760
    %363 = vmatprep.subr.mxu0 %v362
    %v364 = vand.u32 %v101, 4294901760
    %365 = vmatpush1.msra.mxu0 %v364
    %366 = vmatprep.subr.mxu0 0.0
    %367 = vmatpush1.msra.mxu0 0.0
    %368 = vmatprep.subr.mxu0 0.0
    %369 = vmatpush1.msra.mxu0 0.0
    %370 = vmatprep.subr.mxu0 0.0
    %371 = vmatpush1.msra.mxu0 0.0
    %372 = vmatprep.subr.mxu0 0.0
    %373 = vmatpush1.msra.mxu0 0.0
    %374 = vmatprep.subr.mxu0 0.0
    %375 = vmatpush1.msra.mxu0 0.0
    %376 = vmatprep.subr.mxu0 0.0
    %377 = vmatpush1.msra.mxu0 0.0
    %378 = vmatprep.subr.mxu0 0.0
    %379 = vmatpush1.msra.mxu0 0.0
    %380 = vmatprep.subr.mxu0 0.0
    %381 = vmatpush1.msra.mxu0 0.0
    %382 = vmatprep.subr.mxu0 0.0
    %383 = vmatpush1.msra.mxu0 0.0
    %384 = vmatprep.subr.mxu0 0.0
    %385 = vmatpush1.msra.mxu0 0.0
    %386 = vmatprep.subr.mxu0 0.0
    %387 = vmatpush1.msra.mxu0 0.0
    %388 = vmatprep.subr.mxu0 0.0
    %389 = vmatpush1.msra.mxu0 0.0
    %390 = vmatprep.subr.mxu0 0.0
    %391 = vmatpush1.msra.mxu0 0.0
    %392 = vmatprep.subr.mxu0 0.0
    %393 = vmatpush1.msra.mxu0 0.0
    %394 = vmatprep.subr.mxu0 0.0
    %395 = vmatpush1.msra.mxu0 0.0
    %396 = vmatprep.subr.mxu0 0.0
    %397 = vmatpush1.msra.mxu0 0.0
    %398 = vmatprep.subr.mxu0 0.0
    %399 = vmatpush1.msra.mxu0 0.0
    %400 = vmatprep.subr.mxu0 0.0
    %401 = vmatpush1.msra.mxu0 0.0
    %402 = vmatprep.subr.mxu0 0.0
    %403 = vmatpush1.msra.mxu0 0.0
    %404 = vmatprep.subr.mxu0 0.0
    %405 = vmatpush1.msra.mxu0 0.0
    %406 = vmatprep.subr.mxu0 0.0
    %407 = vmatpush1.msra.mxu0 0.0
    %408 = vmatprep.subr.mxu0 0.0
    %409 = vmatpush1.msra.mxu0 0.0
    %410 = vmatprep.subr.mxu0 0.0
    %411 = vmatpush1.msra.mxu0 0.0
    %412 = vmatprep.subr.mxu0 0.0
    %413 = vmatpush1.msra.mxu0 0.0
    %414 = vmatprep.subr.mxu0 0.0
    %415 = vmatpush1.msra.mxu0 0.0
    %416 = vmatprep.subr.mxu0 0.0
    %417 = vmatpush1.msra.mxu0 0.0
    %418 = vmatprep.subr.mxu0 0.0
    %419 = vmatpush1.msra.mxu0 0.0
    %420 = vmatprep.subr.mxu0 0.0
    %421 = vmatpush1.msra.mxu0 0.0
    %422 = vmatprep.subr.mxu0 0.0
    %423 = vmatpush1.msra.mxu0 0.0
    %424 = vmatprep.subr.mxu0 0.0
    %425 = vmatpush1.msra.mxu0 0.0
    %426 = vmatprep.subr.mxu0 0.0
    %427 = vmatpush1.msra.mxu0 0.0
    %428 = vmatprep.mubr.f32.mxu0 0.0
    %v429 = vand.u32 %v123, 4294901760
    %v430 = vsub.f32 %v123, %v429
    %v431 = vand.u32 %v430, 4294901760
    %432 = vmatmul.mubr.f32.gmra.mrb[0].mxu0 %v431
    %v433 = vpop.f32.mrb[0].mxu0
    %v434 = vadd.f32 %v358, %v433
    %v435 = vpop.f32.mrb[0].mxu0
    %v436 = vadd.f32 %v360, %v435
    %437 = vdwg.mxu0
    %v438 = vand.u32 %v102, 4294901760
    %v439 = vsub.f32 %v102, %v438
    %v440 = vand.u32 %v439, 4294901760
    %441 = vmatprep.subr.mxu0 %v440
    %v442 = vand.u32 %v101, 4294901760
    %v443 = vsub.f32 %v101, %v442
    %v444 = vand.u32 %v443, 4294901760
    %445 = vmatpush1.msra.mxu0 %v444
    %446 = vmatprep.subr.mxu0 0.0
    %447 = vmatpush1.msra.mxu0 0.0
    %448 = vmatprep.subr.mxu0 0.0
    %449 = vmatpush1.msra.mxu0 0.0
    %450 = vmatprep.subr.mxu0 0.0
    %451 = vmatpush1.msra.mxu0 0.0
    %452 = vmatprep.subr.mxu0 0.0
    %453 = vmatpush1.msra.mxu0 0.0
    %454 = vmatprep.subr.mxu0 0.0
    %455 = vmatpush1.msra.mxu0 0.0
    %456 = vmatprep.subr.mxu0 0.0
    %457 = vmatpush1.msra.mxu0 0.0
    %458 = vmatprep.subr.mxu0 0.0
    %459 = vmatpush1.msra.mxu0 0.0
    %460 = vmatprep.subr.mxu0 0.0
    %461 = vmatpush1.msra.mxu0 0.0
    %462 = vmatprep.subr.mxu0 0.0
    %463 = vmatpush1.msra.mxu0 0.0
    %464 = vmatprep.subr.mxu0 0.0
    %465 = vmatpush1.msra.mxu0 0.0
    %466 = vmatprep.subr.mxu0 0.0
    %467 = vmatpush1.msra.mxu0 0.0
    %468 = vmatprep.subr.mxu0 0.0
    %469 = vmatpush1.msra.mxu0 0.0
    %470 = vmatprep.subr.mxu0 0.0
    %471 = vmatpush1.msra.mxu0 0.0
    %472 = vmatprep.subr.mxu0 0.0
    %473 = vmatpush1.msra.mxu0 0.0
    %474 = vmatprep.subr.mxu0 0.0
    %475 = vmatpush1.msra.mxu0 0.0
    %476 = vmatprep.subr.mxu0 0.0
    %477 = vmatpush1.msra.mxu0 0.0
    %478 = vmatprep.subr.mxu0 0.0
    %479 = vmatpush1.msra.mxu0 0.0
    %480 = vmatprep.subr.mxu0 0.0
    %481 = vmatpush1.msra.mxu0 0.0
    %482 = vmatprep.subr.mxu0 0.0
    %483 = vmatpush1.msra.mxu0 0.0
    %484 = vmatprep.subr.mxu0 0.0
    %485 = vmatpush1.msra.mxu0 0.0
    %486 = vmatprep.subr.mxu0 0.0
    %487 = vmatpush1.msra.mxu0 0.0
    %488 = vmatprep.subr.mxu0 0.0
    %489 = vmatpush1.msra.mxu0 0.0
    %490 = vmatprep.subr.mxu0 0.0
    %491 = vmatpush1.msra.mxu0 0.0
    %492 = vmatprep.subr.mxu0 0.0
    %493 = vmatpush1.msra.mxu0 0.0
    %494 = vmatprep.subr.mxu0 0.0
    %495 = vmatpush1.msra.mxu0 0.0
    %496 = vmatprep.subr.mxu0 0.0
    %497 = vmatpush1.msra.mxu0 0.0
    %498 = vmatprep.subr.mxu0 0.0
    %499 = vmatpush1.msra.mxu0 0.0
    %500 = vmatprep.subr.mxu0 0.0
    %501 = vmatpush1.msra.mxu0 0.0
    %502 = vmatprep.subr.mxu0 0.0
    %503 = vmatpush1.msra.mxu0 0.0
    %504 = vmatprep.subr.mxu0 0.0
    %505 = vmatpush1.msra.mxu0 0.0
    %506 = vmatprep.subr.mxu0 0.0
    %507 = vmatpush1.msra.mxu0 0.0
    %508 = vmatprep.mubr.f32.mxu0 0.0
    %v509 = vand.u32 %v123, 4294901760
    %510 = vmatmul.mubr.f32.gmra.mrb[0].mxu0 %v509
    %v511 = vpop.f32.mrb[0].mxu0
    %v512 = vadd.f32 %v434, %v511
    %v513 = vpop.f32.mrb[0].mxu0
    %v514 = vadd.f32 %v436, %v513
    %515 = vdwg.mxu0
    %v516 = vand.u32 %v102, 4294901760
    %517 = vmatprep.subr.mxu0 %v516
    %v518 = vand.u32 %v101, 4294901760
    %519 = vmatpush1.msra.mxu0 %v518
    %520 = vmatprep.subr.mxu0 0.0
    %521 = vmatpush1.msra.mxu0 0.0
    %522 = vmatprep.subr.mxu0 0.0
    %523 = vmatpush1.msra.mxu0 0.0
    %524 = vmatprep.subr.mxu0 0.0
    %525 = vmatpush1.msra.mxu0 0.0
    %526 = vmatprep.subr.mxu0 0.0
    %527 = vmatpush1.msra.mxu0 0.0
    %528 = vmatprep.subr.mxu0 0.0
    %529 = vmatpush1.msra.mxu0 0.0
    %530 = vmatprep.subr.mxu0 0.0
    %531 = vmatpush1.msra.mxu0 0.0
    %532 = vmatprep.subr.mxu0 0.0
    %533 = vmatpush1.msra.mxu0 0.0
    %534 = vmatprep.subr.mxu0 0.0
    %535 = vmatpush1.msra.mxu0 0.0
    %536 = vmatprep.subr.mxu0 0.0
    %537 = vmatpush1.msra.mxu0 0.0
    %538 = vmatprep.subr.mxu0 0.0
    %539 = vmatpush1.msra.mxu0 0.0
    %540 = vmatprep.subr.mxu0 0.0
    %541 = vmatpush1.msra.mxu0 0.0
    %542 = vmatprep.subr.mxu0 0.0
    %543 = vmatpush1.msra.mxu0 0.0
    %544 = vmatprep.subr.mxu0 0.0
    %545 = vmatpush1.msra.mxu0 0.0
    %546 = vmatprep.subr.mxu0 0.0
    %547 = vmatpush1.msra.mxu0 0.0
    %548 = vmatprep.subr.mxu0 0.0
    %549 = vmatpush1.msra.mxu0 0.0
    %550 = vmatprep.subr.mxu0 0.0
    %551 = vmatpush1.msra.mxu0 0.0
    %552 = vmatprep.subr.mxu0 0.0
    %553 = vmatpush1.msra.mxu0 0.0
    %554 = vmatprep.subr.mxu0 0.0
    %555 = vmatpush1.msra.mxu0 0.0
    %556 = vmatprep.subr.mxu0 0.0
    %557 = vmatpush1.msra.mxu0 0.0
    %558 = vmatprep.subr.mxu0 0.0
    %559 = vmatpush1.msra.mxu0 0.0
    %560 = vmatprep.subr.mxu0 0.0
    %561 = vmatpush1.msra.mxu0 0.0
    %562 = vmatprep.subr.mxu0 0.0
    %563 = vmatpush1.msra.mxu0 0.0
    %564 = vmatprep.subr.mxu0 0.0
    %565 = vmatpush1.msra.mxu0 0.0
    %566 = vmatprep.subr.mxu0 0.0
    %567 = vmatpush1.msra.mxu0 0.0
    %568 = vmatprep.subr.mxu0 0.0
    %569 = vmatpush1.msra.mxu0 0.0
    %570 = vmatprep.subr.mxu0 0.0
    %571 = vmatpush1.msra.mxu0 0.0
    %572 = vmatprep.subr.mxu0 0.0
    %573 = vmatpush1.msra.mxu0 0.0
    %574 = vmatprep.subr.mxu0 0.0
    %575 = vmatpush1.msra.mxu0 0.0
    %576 = vmatprep.subr.mxu0 0.0
    %577 = vmatpush1.msra.mxu0 0.0
    %578 = vmatprep.subr.mxu0 0.0
    %579 = vmatpush1.msra.mxu0 0.0
    %580 = vmatprep.subr.mxu0 0.0
    %581 = vmatpush1.msra.mxu0 0.0
    %582 = vmatprep.mubr.f32.mxu0 0.0
    %v583 = vand.u32 %v123, 4294901760
    %584 = vmatmul.mubr.f32.gmra.mrb[0].mxu0 %v583
    %v585 = vpop.f32.mrb[0].mxu0
    %v586 = vadd.f32 %v512, %v585
    %v587 = vpop.f32.mrb[0].mxu0
    %v588 = vadd.f32 %v514, %v587
    %589 = vdwg.mxu0
    %v590 = vand.u32 %v104, 4294901760
    %591 = vmatprep.subr.mxu0 %v590
    %v592 = vand.u32 %v103, 4294901760
    %593 = vmatpush1.msra.mxu0 %v592
    %594 = vmatprep.subr.mxu0 0.0
    %595 = vmatpush1.msra.mxu0 0.0
    %596 = vmatprep.subr.mxu0 0.0
    %597 = vmatpush1.msra.mxu0 0.0
    %598 = vmatprep.subr.mxu0 0.0
    %599 = vmatpush1.msra.mxu0 0.0
    %600 = vmatprep.subr.mxu0 0.0
    %601 = vmatpush1.msra.mxu0 0.0
    %602 = vmatprep.subr.mxu0 0.0
    %603 = vmatpush1.msra.mxu0 0.0
    %604 = vmatprep.subr.mxu0 0.0
    %605 = vmatpush1.msra.mxu0 0.0
    %606 = vmatprep.subr.mxu0 0.0
    %607 = vmatpush1.msra.mxu0 0.0
    %608 = vmatprep.subr.mxu0 0.0
    %609 = vmatpush1.msra.mxu0 0.0
    %610 = vmatprep.subr.mxu0 0.0
    %611 = vmatpush1.msra.mxu0 0.0
    %612 = vmatprep.subr.mxu0 0.0
    %613 = vmatpush1.msra.mxu0 0.0
    %614 = vmatprep.subr.mxu0 0.0
    %615 = vmatpush1.msra.mxu0 0.0
    %616 = vmatprep.subr.mxu0 0.0
    %617 = vmatpush1.msra.mxu0 0.0
    %618 = vmatprep.subr.mxu0 0.0
    %619 = vmatpush1.msra.mxu0 0.0
    %620 = vmatprep.subr.mxu0 0.0
    %621 = vmatpush1.msra.mxu0 0.0
    %622 = vmatprep.subr.mxu0 0.0
    %623 = vmatpush1.msra.mxu0 0.0
    %624 = vmatprep.subr.mxu0 0.0
    %625 = vmatpush1.msra.mxu0 0.0
    %626 = vmatprep.subr.mxu0 0.0
    %627 = vmatpush1.msra.mxu0 0.0
    %628 = vmatprep.subr.mxu0 0.0
    %629 = vmatpush1.msra.mxu0 0.0
    %630 = vmatprep.subr.mxu0 0.0
    %631 = vmatpush1.msra.mxu0 0.0
    %632 = vmatprep.subr.mxu0 0.0
    %633 = vmatpush1.msra.mxu0 0.0
    %634 = vmatprep.subr.mxu0 0.0
    %635 = vmatpush1.msra.mxu0 0.0
    %636 = vmatprep.subr.mxu0 0.0
    %637 = vmatpush1.msra.mxu0 0.0
    %638 = vmatprep.subr.mxu0 0.0
    %639 = vmatpush1.msra.mxu0 0.0
    %640 = vmatprep.subr.mxu0 0.0
    %641 = vmatpush1.msra.mxu0 0.0
    %642 = vmatprep.subr.mxu0 0.0
    %643 = vmatpush1.msra.mxu0 0.0
    %644 = vmatprep.subr.mxu0 0.0
    %645 = vmatpush1.msra.mxu0 0.0
    %646 = vmatprep.subr.mxu0 0.0
    %647 = vmatpush1.msra.mxu0 0.0
    %648 = vmatprep.subr.mxu0 0.0
    %649 = vmatpush1.msra.mxu0 0.0
    %650 = vmatprep.subr.mxu0 0.0
    %651 = vmatpush1.msra.mxu0 0.0
    %652 = vmatprep.subr.mxu0 0.0
    %653 = vmatpush1.msra.mxu0 0.0
    %654 = vmatprep.subr.mxu0 0.0
    %655 = vmatpush1.msra.mxu0 0.0
    %656 = vmatprep.mubr.f32.mxu0 0.0
    %v657 = vand.u32 %v123, 4294901760
    %v658 = vsub.f32 %v123, %v657
    %v659 = vand.u32 %v658, 4294901760
    %v660 = vsub.f32 %v658, %v659
    %v661 = vand.u32 %v660, 4294901760
    %662 = vmatmul.mubr.f32.gmra.mrb[0].mxu0 %v661
    %v663 = vpop.f32.mrb[0].mxu0
    %v664 = vadd.f32 %v120, %v663
    %v665 = vpop.f32.mrb[0].mxu0
    %v666 = vadd.f32 %v120, %v665
    %667 = vdwg.mxu0
    %v668 = vand.u32 %v104, 4294901760
    %v669 = vsub.f32 %v104, %v668
    %v670 = vand.u32 %v669, 4294901760
    %v671 = vsub.f32 %v669, %v670
    %v672 = vand.u32 %v671, 4294901760
    %673 = vmatprep.subr.mxu0 %v672
    %v674 = vand.u32 %v103, 4294901760
    %v675 = vsub.f32 %v103, %v674
    %v676 = vand.u32 %v675, 4294901760
    %v677 = vsub.f32 %v675, %v676
    %v678 = vand.u32 %v677, 4294901760
    %679 = vmatpush1.msra.mxu0 %v678
    %680 = vmatprep.subr.mxu0 0.0
    %681 = vmatpush1.msra.mxu0 0.0
    %682 = vmatprep.subr.mxu0 0.0
    %683 = vmatpush1.msra.mxu0 0.0
    %684 = vmatprep.subr.mxu0 0.0
    %685 = vmatpush1.msra.mxu0 0.0
    %686 = vmatprep.subr.mxu0 0.0
    %687 = vmatpush1.msra.mxu0 0.0
    %688 = vmatprep.subr.mxu0 0.0
    %689 = vmatpush1.msra.mxu0 0.0
    %690 = vmatprep.subr.mxu0 0.0
    %691 = vmatpush1.msra.mxu0 0.0
    %692 = vmatprep.subr.mxu0 0.0
    %693 = vmatpush1.msra.mxu0 0.0
    %694 = vmatprep.subr.mxu0 0.0
    %695 = vmatpush1.msra.mxu0 0.0
    %696 = vmatprep.subr.mxu0 0.0
    %697 = vmatpush1.msra.mxu0 0.0
    %698 = vmatprep.subr.mxu0 0.0
    %699 = vmatpush1.msra.mxu0 0.0
    %700 = vmatprep.subr.mxu0 0.0
    %701 = vmatpush1.msra.mxu0 0.0
    %702 = vmatprep.subr.mxu0 0.0
    %703 = vmatpush1.msra.mxu0 0.0
    %704 = vmatprep.subr.mxu0 0.0
    %705 = vmatpush1.msra.mxu0 0.0
    %706 = vmatprep.subr.mxu0 0.0
    %707 = vmatpush1.msra.mxu0 0.0
    %708 = vmatprep.subr.mxu0 0.0
    %709 = vmatpush1.msra.mxu0 0.0
    %710 = vmatprep.subr.mxu0 0.0
    %711 = vmatpush1.msra.mxu0 0.0
    %712 = vmatprep.subr.mxu0 0.0
    %713 = vmatpush1.msra.mxu0 0.0
    %714 = vmatprep.subr.mxu0 0.0
    %715 = vmatpush1.msra.mxu0 0.0
    %716 = vmatprep.subr.mxu0 0.0
    %717 = vmatpush1.msra.mxu0 0.0
    %718 = vmatprep.subr.mxu0 0.0
    %719 = vmatpush1.msra.mxu0 0.0
    %720 = vmatprep.subr.mxu0 0.0
    %721 = vmatpush1.msra.mxu0 0.0
    %722 = vmatprep.subr.mxu0 0.0
    %723 = vmatpush1.msra.mxu0 0.0
    %724 = vmatprep.subr.mxu0 0.0
    %725 = vmatpush1.msra.mxu0 0.0
    %726 = vmatprep.subr.mxu0 0.0
    %727 = vmatpush1.msra.mxu0 0.0
    %728 = vmatprep.subr.mxu0 0.0
    %729 = vmatpush1.msra.mxu0 0.0
    %730 = vmatprep.subr.mxu0 0.0
    %731 = vmatpush1.msra.mxu0 0.0
    %732 = vmatprep.subr.mxu0 0.0
    %733 = vmatpush1.msra.mxu0 0.0
    %734 = vmatprep.subr.mxu0 0.0
    %735 = vmatpush1.msra.mxu0 0.0
    %736 = vmatprep.subr.mxu0 0.0
    %737 = vmatpush1.msra.mxu0 0.0
    %738 = vmatprep.subr.mxu0 0.0
    %739 = vmatpush1.msra.mxu0 0.0
    %740 = vmatprep.subr.mxu0 0.0
    %741 = vmatpush1.msra.mxu0 0.0
    %742 = vmatprep.mubr.f32.mxu0 0.0
    %v743 = vand.u32 %v123, 4294901760
    %744 = vmatmul.mubr.f32.gmra.mrb[0].mxu0 %v743
    %v745 = vpop.f32.mrb[0].mxu0
    %v746 = vadd.f32 %v664, %v745
    %v747 = vpop.f32.mrb[0].mxu0
    %v748 = vadd.f32 %v666, %v747
    %749 = vdwg.mxu0
    %v750 = vand.u32 %v104, 4294901760
    %v751 = vsub.f32 %v104, %v750
    %752 = vmatprep.subr.mxu0 %v751
    %v753 = vand.u32 %v103, 4294901760
    %v754 = vsub.f32 %v103, %v753
    %755 = vmatpush1.msra.mxu0 %v754
    %756 = vmatprep.subr.mxu0 0.0
    %757 = vmatpush1.msra.mxu0 0.0
    %758 = vmatprep.subr.mxu0 0.0
    %759 = vmatpush1.msra.mxu0 0.0
    %760 = vmatprep.subr.mxu0 0.0
    %761 = vmatpush1.msra.mxu0 0.0
    %762 = vmatprep.subr.mxu0 0.0
    %763 = vmatpush1.msra.mxu0 0.0
    %764 = vmatprep.subr.mxu0 0.0
    %765 = vmatpush1.msra.mxu0 0.0
    %766 = vmatprep.subr.mxu0 0.0
    %767 = vmatpush1.msra.mxu0 0.0
    %768 = vmatprep.subr.mxu0 0.0
    %769 = vmatpush1.msra.mxu0 0.0
    %770 = vmatprep.subr.mxu0 0.0
    %771 = vmatpush1.msra.mxu0 0.0
    %772 = vmatprep.subr.mxu0 0.0
    %773 = vmatpush1.msra.mxu0 0.0
    %774 = vmatprep.subr.mxu0 0.0
    %775 = vmatpush1.msra.mxu0 0.0
    %776 = vmatprep.subr.mxu0 0.0
    %777 = vmatpush1.msra.mxu0 0.0
    %778 = vmatprep.subr.mxu0 0.0
    %779 = vmatpush1.msra.mxu0 0.0
    %780 = vmatprep.subr.mxu0 0.0
    %781 = vmatpush1.msra.mxu0 0.0
    %782 = vmatprep.subr.mxu0 0.0
    %783 = vmatpush1.msra.mxu0 0.0
    %784 = vmatprep.subr.mxu0 0.0
    %785 = vmatpush1.msra.mxu0 0.0
    %786 = vmatprep.subr.mxu0 0.0
    %787 = vmatpush1.msra.mxu0 0.0
    %788 = vmatprep.subr.mxu0 0.0
    %789 = vmatpush1.msra.mxu0 0.0
    %790 = vmatprep.subr.mxu0 0.0
    %791 = vmatpush1.msra.mxu0 0.0
    %792 = vmatprep.subr.mxu0 0.0
    %793 = vmatpush1.msra.mxu0 0.0
    %794 = vmatprep.subr.mxu0 0.0
    %795 = vmatpush1.msra.mxu0 0.0
    %796 = vmatprep.subr.mxu0 0.0
    %797 = vmatpush1.msra.mxu0 0.0
    %798 = vmatprep.subr.mxu0 0.0
    %799 = vmatpush1.msra.mxu0 0.0
    %800 = vmatprep.subr.mxu0 0.0
    %801 = vmatpush1.msra.mxu0 0.0
    %802 = vmatprep.subr.mxu0 0.0
    %803 = vmatpush1.msra.mxu0 0.0
    %804 = vmatprep.subr.mxu0 0.0
    %805 = vmatpush1.msra.mxu0 0.0
    %806 = vmatprep.subr.mxu0 0.0
    %807 = vmatpush1.msra.mxu0 0.0
    %808 = vmatprep.subr.mxu0 0.0
    %809 = vmatpush1.msra.mxu0 0.0
    %810 = vmatprep.subr.mxu0 0.0
    %811 = vmatpush1.msra.mxu0 0.0
    %812 = vmatprep.subr.mxu0 0.0
    %813 = vmatpush1.msra.mxu0 0.0
    %814 = vmatprep.subr.mxu0 0.0
    %815 = vmatpush1.msra.mxu0 0.0
    %816 = vmatprep.subr.mxu0 0.0
    %817 = vmatpush1.msra.mxu0 0.0
    %818 = vmatprep.mubr.f32.mxu0 0.0
    %v819 = vand.u32 %v123, 4294901760
    %v820 = vsub.f32 %v123, %v819
    %821 = vmatmul.mubr.f32.gmra.mrb[0].mxu0 %v820
    %v822 = vpop.f32.mrb[0].mxu0
    %v823 = vadd.f32 %v746, %v822
    %v824 = vpop.f32.mrb[0].mxu0
    %v825 = vadd.f32 %v748, %v824
    %826 = vdwg.mxu0
    %v827 = vand.u32 %v104, 4294901760
    %828 = vmatprep.subr.mxu0 %v827
    %v829 = vand.u32 %v103, 4294901760
    %830 = vmatpush1.msra.mxu0 %v829
    %831 = vmatprep.subr.mxu0 0.0
    %832 = vmatpush1.msra.mxu0 0.0
    %833 = vmatprep.subr.mxu0 0.0
    %834 = vmatpush1.msra.mxu0 0.0
    %835 = vmatprep.subr.mxu0 0.0
    %836 = vmatpush1.msra.mxu0 0.0
    %837 = vmatprep.subr.mxu0 0.0
    %838 = vmatpush1.msra.mxu0 0.0
    %839 = vmatprep.subr.mxu0 0.0
    %840 = vmatpush1.msra.mxu0 0.0
    %841 = vmatprep.subr.mxu0 0.0
    %842 = vmatpush1.msra.mxu0 0.0
    %843 = vmatprep.subr.mxu0 0.0
    %844 = vmatpush1.msra.mxu0 0.0
    %845 = vmatprep.subr.mxu0 0.0
    %846 = vmatpush1.msra.mxu0 0.0
    %847 = vmatprep.subr.mxu0 0.0
    %848 = vmatpush1.msra.mxu0 0.0
    %849 = vmatprep.subr.mxu0 0.0
    %850 = vmatpush1.msra.mxu0 0.0
    %851 = vmatprep.subr.mxu0 0.0
    %852 = vmatpush1.msra.mxu0 0.0
    %853 = vmatprep.subr.mxu0 0.0
    %854 = vmatpush1.msra.mxu0 0.0
    %855 = vmatprep.subr.mxu0 0.0
    %856 = vmatpush1.msra.mxu0 0.0
    %857 = vmatprep.subr.mxu0 0.0
    %858 = vmatpush1.msra.mxu0 0.0
    %859 = vmatprep.subr.mxu0 0.0
    %860 = vmatpush1.msra.mxu0 0.0
    %861 = vmatprep.subr.mxu0 0.0
    %862 = vmatpush1.msra.mxu0 0.0
    %863 = vmatprep.subr.mxu0 0.0
    %864 = vmatpush1.msra.mxu0 0.0
    %865 = vmatprep.subr.mxu0 0.0
    %866 = vmatpush1.msra.mxu0 0.0
    %867 = vmatprep.subr.mxu0 0.0
    %868 = vmatpush1.msra.mxu0 0.0
    %869 = vmatprep.subr.mxu0 0.0
    %870 = vmatpush1.msra.mxu0 0.0
    %871 = vmatprep.subr.mxu0 0.0
    %872 = vmatpush1.msra.mxu0 0.0
    %873 = vmatprep.subr.mxu0 0.0
    %874 = vmatpush1.msra.mxu0 0.0
    %875 = vmatprep.subr.mxu0 0.0
    %876 = vmatpush1.msra.mxu0 0.0
    %877 = vmatprep.subr.mxu0 0.0
    %878 = vmatpush1.msra.mxu0 0.0
    %879 = vmatprep.subr.mxu0 0.0
    %880 = vmatpush1.msra.mxu0 0.0
    %881 = vmatprep.subr.mxu0 0.0
    %882 = vmatpush1.msra.mxu0 0.0
    %883 = vmatprep.subr.mxu0 0.0
    %884 = vmatpush1.msra.mxu0 0.0
    %885 = vmatprep.subr.mxu0 0.0
    %886 = vmatpush1.msra.mxu0 0.0
    %887 = vmatprep.subr.mxu0 0.0
    %888 = vmatpush1.msra.mxu0 0.0
    %889 = vmatprep.subr.mxu0 0.0
    %890 = vmatpush1.msra.mxu0 0.0
    %891 = vmatprep.subr.mxu0 0.0
    %892 = vmatpush1.msra.mxu0 0.0
    %893 = vmatprep.mubr.f32.mxu0 0.0
    %v894 = vand.u32 %v123, 4294901760
    %v895 = vsub.f32 %v123, %v894
    %v896 = vand.u32 %v895, 4294901760
    %897 = vmatmul.mubr.f32.gmra.mrb[0].mxu0 %v896
    %v898 = vpop.f32.mrb[0].mxu0
    %v899 = vadd.f32 %v823, %v898
    %v900 = vpop.f32.mrb[0].mxu0
    %v901 = vadd.f32 %v825, %v900
    %902 = vdwg.mxu0
    %v903 = vand.u32 %v104, 4294901760
    %v904 = vsub.f32 %v104, %v903
    %v905 = vand.u32 %v904, 4294901760
    %906 = vmatprep.subr.mxu0 %v905
    %v907 = vand.u32 %v103, 4294901760
    %v908 = vsub.f32 %v103, %v907
    %v909 = vand.u32 %v908, 4294901760
    %910 = vmatpush1.msra.mxu0 %v909
    %911 = vmatprep.subr.mxu0 0.0
    %912 = vmatpush1.msra.mxu0 0.0
    %913 = vmatprep.subr.mxu0 0.0
    %914 = vmatpush1.msra.mxu0 0.0
    %915 = vmatprep.subr.mxu0 0.0
    %916 = vmatpush1.msra.mxu0 0.0
    %917 = vmatprep.subr.mxu0 0.0
    %918 = vmatpush1.msra.mxu0 0.0
    %919 = vmatprep.subr.mxu0 0.0
    %920 = vmatpush1.msra.mxu0 0.0
    %921 = vmatprep.subr.mxu0 0.0
    %922 = vmatpush1.msra.mxu0 0.0
    %923 = vmatprep.subr.mxu0 0.0
    %924 = vmatpush1.msra.mxu0 0.0
    %925 = vmatprep.subr.mxu0 0.0
    %926 = vmatpush1.msra.mxu0 0.0
    %927 = vmatprep.subr.mxu0 0.0
    %928 = vmatpush1.msra.mxu0 0.0
    %929 = vmatprep.subr.mxu0 0.0
    %930 = vmatpush1.msra.mxu0 0.0
    %931 = vmatprep.subr.mxu0 0.0
    %932 = vmatpush1.msra.mxu0 0.0
    %933 = vmatprep.subr.mxu0 0.0
    %934 = vmatpush1.msra.mxu0 0.0
    %935 = vmatprep.subr.mxu0 0.0
    %936 = vmatpush1.msra.mxu0 0.0
    %937 = vmatprep.subr.mxu0 0.0
    %938 = vmatpush1.msra.mxu0 0.0
    %939 = vmatprep.subr.mxu0 0.0
    %940 = vmatpush1.msra.mxu0 0.0
    %941 = vmatprep.subr.mxu0 0.0
    %942 = vmatpush1.msra.mxu0 0.0
    %943 = vmatprep.subr.mxu0 0.0
    %944 = vmatpush1.msra.mxu0 0.0
    %945 = vmatprep.subr.mxu0 0.0
    %946 = vmatpush1.msra.mxu0 0.0
    %947 = vmatprep.subr.mxu0 0.0
    %948 = vmatpush1.msra.mxu0 0.0
    %949 = vmatprep.subr.mxu0 0.0
    %950 = vmatpush1.msra.mxu0 0.0
    %951 = vmatprep.subr.mxu0 0.0
    %952 = vmatpush1.msra.mxu0 0.0
    %953 = vmatprep.subr.mxu0 0.0
    %954 = vmatpush1.msra.mxu0 0.0
    %955 = vmatprep.subr.mxu0 0.0
    %956 = vmatpush1.msra.mxu0 0.0
    %957 = vmatprep.subr.mxu0 0.0
    %958 = vmatpush1.msra.mxu0 0.0
    %959 = vmatprep.subr.mxu0 0.0
    %960 = vmatpush1.msra.mxu0 0.0
    %961 = vmatprep.subr.mxu0 0.0
    %962 = vmatpush1.msra.mxu0 0.0
    %963 = vmatprep.subr.mxu0 0.0
    %964 = vmatpush1.msra.mxu0 0.0
    %965 = vmatprep.subr.mxu0 0.0
    %966 = vmatpush1.msra.mxu0 0.0
    %967 = vmatprep.subr.mxu0 0.0
    %968 = vmatpush1.msra.mxu0 0.0
    %969 = vmatprep.subr.mxu0 0.0
    %970 = vmatpush1.msra.mxu0 0.0
    %971 = vmatprep.subr.mxu0 0.0
    %972 = vmatpush1.msra.mxu0 0.0
    %973 = vmatprep.mubr.f32.mxu0 0.0
    %v974 = vand.u32 %v123, 4294901760
    %975 = vmatmul.mubr.f32.gmra.mrb[0].mxu0 %v974
    %v976 = vpop.f32.mrb[0].mxu0
    %v977 = vadd.f32 %v899, %v976
    %v978 = vpop.f32.mrb[0].mxu0
    %v979 = vadd.f32 %v901, %v978
    %980 = vdwg.mxu0
    %v981 = vand.u32 %v104, 4294901760
    %982 = vmatprep.subr.mxu0 %v981
    %v983 = vand.u32 %v103, 4294901760
    %984 = vmatpush1.msra.mxu0 %v983
    %985 = vmatprep.subr.mxu0 0.0
    %986 = vmatpush1.msra.mxu0 0.0
    %987 = vmatprep.subr.mxu0 0.0
    %988 = vmatpush1.msra.mxu0 0.0
    %989 = vmatprep.subr.mxu0 0.0
    %990 = vmatpush1.msra.mxu0 0.0
    %991 = vmatprep.subr.mxu0 0.0
    %992 = vmatpush1.msra.mxu0 0.0
    %993 = vmatprep.subr.mxu0 0.0
    %994 = vmatpush1.msra.mxu0 0.0
    %995 = vmatprep.subr.mxu0 0.0
    %996 = vmatpush1.msra.mxu0 0.0
    %997 = vmatprep.subr.mxu0 0.0
    %998 = vmatpush1.msra.mxu0 0.0
    %999 = vmatprep.subr.mxu0 0.0
    %1000 = vmatpush1.msra.mxu0 0.0
    %1001 = vmatprep.subr.mxu0 0.0
    %1002 = vmatpush1.msra.mxu0 0.0
    %1003 = vmatprep.subr.mxu0 0.0
    %1004 = vmatpush1.msra.mxu0 0.0
    %1005 = vmatprep.subr.mxu0 0.0
    %1006 = vmatpush1.msra.mxu0 0.0
    %1007 = vmatprep.subr.mxu0 0.0
    %1008 = vmatpush1.msra.mxu0 0.0
    %1009 = vmatprep.subr.mxu0 0.0
    %1010 = vmatpush1.msra.mxu0 0.0
    %1011 = vmatprep.subr.mxu0 0.0
    %1012 = vmatpush1.msra.mxu0 0.0
    %1013 = vmatprep.subr.mxu0 0.0
    %1014 = vmatpush1.msra.mxu0 0.0
    %1015 = vmatprep.subr.mxu0 0.0
    %1016 = vmatpush1.msra.mxu0 0.0
    %1017 = vmatprep.subr.mxu0 0.0
    %1018 = vmatpush1.msra.mxu0 0.0
    %1019 = vmatprep.subr.mxu0 0.0
    %1020 = vmatpush1.msra.mxu0 0.0
    %1021 = vmatprep.subr.mxu0 0.0
    %1022 = vmatpush1.msra.mxu0 0.0
    %1023 = vmatprep.subr.mxu0 0.0
    %1024 = vmatpush1.msra.mxu0 0.0
    %1025 = vmatprep.subr.mxu0 0.0
    %1026 = vmatpush1.msra.mxu0 0.0
    %1027 = vmatprep.subr.mxu0 0.0
    %1028 = vmatpush1.msra.mxu0 0.0
    %1029 = vmatprep.subr.mxu0 0.0
    %1030 = vmatpush1.msra.mxu0 0.0
    %1031 = vmatprep.subr.mxu0 0.0
    %1032 = vmatpush1.msra.mxu0 0.0
    %1033 = vmatprep.subr.mxu0 0.0
    %1034 = vmatpush1.msra.mxu0 0.0
    %1035 = vmatprep.subr.mxu0 0.0
    %1036 = vmatpush1.msra.mxu0 0.0
    %1037 = vmatprep.subr.mxu0 0.0
    %1038 = vmatpush1.msra.mxu0 0.0
    %1039 = vmatprep.subr.mxu0 0.0
    %1040 = vmatpush1.msra.mxu0 0.0
    %1041 = vmatprep.subr.mxu0 0.0
    %1042 = vmatpush1.msra.mxu0 0.0
    %1043 = vmatprep.subr.mxu0 0.0
    %1044 = vmatpush1.msra.mxu0 0.0
    %1045 = vmatprep.subr.mxu0 0.0
    %1046 = vmatpush1.msra.mxu0 0.0
    %1047 = vmatprep.mubr.f32.mxu0 0.0
    %v1048 = vand.u32 %v123, 4294901760
    %1049 = vmatmul.mubr.f32.gmra.mrb[0].mxu0 %v1048
    %v1050 = vpop.f32.mrb[0].mxu0
    %v1051 = vadd.f32 %v977, %v1050
    %v1052 = vpop.f32.mrb[0].mxu0
    %v1053 = vadd.f32 %v979, %v1052
    %1054 = vdwg.mxu0
    %v1055 = vand.u32 %v106, 4294901760
    %1056 = vmatprep.subr.mxu0 %v1055
    %v1057 = vand.u32 %v105, 4294901760
    %1058 = vmatpush1.msra.mxu0 %v1057
    %1059 = vmatprep.subr.mxu0 0.0
    %1060 = vmatpush1.msra.mxu0 0.0
    %1061 = vmatprep.subr.mxu0 0.0
    %1062 = vmatpush1.msra.mxu0 0.0
    %1063 = vmatprep.subr.mxu0 0.0
    %1064 = vmatpush1.msra.mxu0 0.0
    %1065 = vmatprep.subr.mxu0 0.0
    %1066 = vmatpush1.msra.mxu0 0.0
    %1067 = vmatprep.subr.mxu0 0.0
    %1068 = vmatpush1.msra.mxu0 0.0
    %1069 = vmatprep.subr.mxu0 0.0
    %1070 = vmatpush1.msra.mxu0 0.0
    %1071 = vmatprep.subr.mxu0 0.0
    %1072 = vmatpush1.msra.mxu0 0.0
    %1073 = vmatprep.subr.mxu0 0.0
    %1074 = vmatpush1.msra.mxu0 0.0
    %1075 = vmatprep.subr.mxu0 0.0
    %1076 = vmatpush1.msra.mxu0 0.0
    %1077 = vmatprep.subr.mxu0 0.0
    %1078 = vmatpush1.msra.mxu0 0.0
    %1079 = vmatprep.subr.mxu0 0.0
    %1080 = vmatpush1.msra.mxu0 0.0
    %1081 = vmatprep.subr.mxu0 0.0
    %1082 = vmatpush1.msra.mxu0 0.0
    %1083 = vmatprep.subr.mxu0 0.0
    %1084 = vmatpush1.msra.mxu0 0.0
    %1085 = vmatprep.subr.mxu0 0.0
    %1086 = vmatpush1.msra.mxu0 0.0
    %1087 = vmatprep.subr.mxu0 0.0
    %1088 = vmatpush1.msra.mxu0 0.0
    %1089 = vmatprep.subr.mxu0 0.0
    %1090 = vmatpush1.msra.mxu0 0.0
    %1091 = vmatprep.subr.mxu0 0.0
    %1092 = vmatpush1.msra.mxu0 0.0
    %1093 = vmatprep.subr.mxu0 0.0
    %1094 = vmatpush1.msra.mxu0 0.0
    %1095 = vmatprep.subr.mxu0 0.0
    %1096 = vmatpush1.msra.mxu0 0.0
    %1097 = vmatprep.subr.mxu0 0.0
    %1098 = vmatpush1.msra.mxu0 0.0
    %1099 = vmatprep.subr.mxu0 0.0
    %1100 = vmatpush1.msra.mxu0 0.0
    %1101 = vmatprep.subr.mxu0 0.0
    %1102 = vmatpush1.msra.mxu0 0.0
    %1103 = vmatprep.subr.mxu0 0.0
    %1104 = vmatpush1.msra.mxu0 0.0
    %1105 = vmatprep.subr.mxu0 0.0
    %1106 = vmatpush1.msra.mxu0 0.0
    %1107 = vmatprep.subr.mxu0 0.0
    %1108 = vmatpush1.msra.mxu0 0.0
    %1109 = vmatprep.subr.mxu0 0.0
    %1110 = vmatpush1.msra.mxu0 0.0
    %1111 = vmatprep.subr.mxu0 0.0
    %1112 = vmatpush1.msra.mxu0 0.0
    %1113 = vmatprep.subr.mxu0 0.0
    %1114 = vmatpush1.msra.mxu0 0.0
    %1115 = vmatprep.subr.mxu0 0.0
    %1116 = vmatpush1.msra.mxu0 0.0
    %1117 = vmatprep.subr.mxu0 0.0
    %1118 = vmatpush1.msra.mxu0 0.0
    %1119 = vmatprep.subr.mxu0 0.0
    %1120 = vmatpush1.msra.mxu0 0.0
    %1121 = vmatprep.mubr.f32.mxu0 0.0
    %v1122 = vand.u32 %v123, 4294901760
    %v1123 = vsub.f32 %v123, %v1122
    %v1124 = vand.u32 %v1123, 4294901760
    %v1125 = vsub.f32 %v1123, %v1124
    %v1126 = vand.u32 %v1125, 4294901760
    %1127 = vmatmul.mubr.f32.gmra.mrb[0].mxu0 %v1126
    %v1128 = vpop.f32.mrb[0].mxu0
    %v1129 = vadd.f32 %v120, %v1128
    %v1130 = vpop.f32.mrb[0].mxu0
    %v1131 = vadd.f32 %v120, %v1130
    %1132 = vdwg.mxu0
    %v1133 = vand.u32 %v106, 4294901760
    %v1134 = vsub.f32 %v106, %v1133
    %v1135 = vand.u32 %v1134, 4294901760
    %v1136 = vsub.f32 %v1134, %v1135
    %v1137 = vand.u32 %v1136, 4294901760
    %1138 = vmatprep.subr.mxu0 %v1137
    %v1139 = vand.u32 %v105, 4294901760
    %v1140 = vsub.f32 %v105, %v1139
    %v1141 = vand.u32 %v1140, 4294901760
    %v1142 = vsub.f32 %v1140, %v1141
    %v1143 = vand.u32 %v1142, 4294901760
    %1144 = vmatpush1.msra.mxu0 %v1143
    %1145 = vmatprep.subr.mxu0 0.0
    %1146 = vmatpush1.msra.mxu0 0.0
    %1147 = vmatprep.subr.mxu0 0.0
    %1148 = vmatpush1.msra.mxu0 0.0
    %1149 = vmatprep.subr.mxu0 0.0
    %1150 = vmatpush1.msra.mxu0 0.0
    %1151 = vmatprep.subr.mxu0 0.0
    %1152 = vmatpush1.msra.mxu0 0.0
    %1153 = vmatprep.subr.mxu0 0.0
    %1154 = vmatpush1.msra.mxu0 0.0
    %1155 = vmatprep.subr.mxu0 0.0
    %1156 = vmatpush1.msra.mxu0 0.0
    %1157 = vmatprep.subr.mxu0 0.0
    %1158 = vmatpush1.msra.mxu0 0.0
    %1159 = vmatprep.subr.mxu0 0.0
    %1160 = vmatpush1.msra.mxu0 0.0
    %1161 = vmatprep.subr.mxu0 0.0
    %1162 = vmatpush1.msra.mxu0 0.0
    %1163 = vmatprep.subr.mxu0 0.0
    %1164 = vmatpush1.msra.mxu0 0.0
    %1165 = vmatprep.subr.mxu0 0.0
    %1166 = vmatpush1.msra.mxu0 0.0
    %1167 = vmatprep.subr.mxu0 0.0
    %1168 = vmatpush1.msra.mxu0 0.0
    %1169 = vmatprep.subr.mxu0 0.0
    %1170 = vmatpush1.msra.mxu0 0.0
    %1171 = vmatprep.subr.mxu0 0.0
    %1172 = vmatpush1.msra.mxu0 0.0
    %1173 = vmatprep.subr.mxu0 0.0
    %1174 = vmatpush1.msra.mxu0 0.0
    %1175 = vmatprep.subr.mxu0 0.0
    %1176 = vmatpush1.msra.mxu0 0.0
    %1177 = vmatprep.subr.mxu0 0.0
    %1178 = vmatpush1.msra.mxu0 0.0
    %1179 = vmatprep.subr.mxu0 0.0
    %1180 = vmatpush1.msra.mxu0 0.0
    %1181 = vmatprep.subr.mxu0 0.0
    %1182 = vmatpush1.msra.mxu0 0.0
    %1183 = vmatprep.subr.mxu0 0.0
    %1184 = vmatpush1.msra.mxu0 0.0
    %1185 = vmatprep.subr.mxu0 0.0
    %1186 = vmatpush1.msra.mxu0 0.0
    %1187 = vmatprep.subr.mxu0 0.0
    %1188 = vmatpush1.msra.mxu0 0.0
    %1189 = vmatprep.subr.mxu0 0.0
    %1190 = vmatpush1.msra.mxu0 0.0
    %1191 = vmatprep.subr.mxu0 0.0
    %1192 = vmatpush1.msra.mxu0 0.0
    %1193 = vmatprep.subr.mxu0 0.0
    %1194 = vmatpush1.msra.mxu0 0.0
    %1195 = vmatprep.subr.mxu0 0.0
    %1196 = vmatpush1.msra.mxu0 0.0
    %1197 = vmatprep.subr.mxu0 0.0
    %1198 = vmatpush1.msra.mxu0 0.0
    %1199 = vmatprep.subr.mxu0 0.0
    %1200 = vmatpush1.msra.mxu0 0.0
    %1201 = vmatprep.subr.mxu0 0.0
    %1202 = vmatpush1.msra.mxu0 0.0
    %1203 = vmatprep.subr.mxu0 0.0
    %1204 = vmatpush1.msra.mxu0 0.0
    %1205 = vmatprep.subr.mxu0 0.0
    %1206 = vmatpush1.msra.mxu0 0.0
    %1207 = vmatprep.mubr.f32.mxu0 0.0
    %v1208 = vand.u32 %v123, 4294901760
    %1209 = vmatmul.mubr.f32.gmra.mrb[0].mxu0 %v1208
    %v1210 = vpop.f32.mrb[0].mxu0
    %v1211 = vadd.f32 %v1129, %v1210
    %v1212 = vpop.f32.mrb[0].mxu0
    %v1213 = vadd.f32 %v1131, %v1212
    %1214 = vdwg.mxu0
    %v1215 = vand.u32 %v106, 4294901760
    %v1216 = vsub.f32 %v106, %v1215
    %1217 = vmatprep.subr.mxu0 %v1216
    %v1218 = vand.u32 %v105, 4294901760
    %v1219 = vsub.f32 %v105, %v1218
    %1220 = vmatpush1.msra.mxu0 %v1219
    %1221 = vmatprep.subr.mxu0 0.0
    %1222 = vmatpush1.msra.mxu0 0.0
    %1223 = vmatprep.subr.mxu0 0.0
    %1224 = vmatpush1.msra.mxu0 0.0
    %1225 = vmatprep.subr.mxu0 0.0
    %1226 = vmatpush1.msra.mxu0 0.0
    %1227 = vmatprep.subr.mxu0 0.0
    %1228 = vmatpush1.msra.mxu0 0.0
    %1229 = vmatprep.subr.mxu0 0.0
    %1230 = vmatpush1.msra.mxu0 0.0
    %1231 = vmatprep.subr.mxu0 0.0
    %1232 = vmatpush1.msra.mxu0 0.0
    %1233 = vmatprep.subr.mxu0 0.0
    %1234 = vmatpush1.msra.mxu0 0.0
    %1235 = vmatprep.subr.mxu0 0.0
    %1236 = vmatpush1.msra.mxu0 0.0
    %1237 = vmatprep.subr.mxu0 0.0
    %1238 = vmatpush1.msra.mxu0 0.0
    %1239 = vmatprep.subr.mxu0 0.0
    %1240 = vmatpush1.msra.mxu0 0.0
    %1241 = vmatprep.subr.mxu0 0.0
    %1242 = vmatpush1.msra.mxu0 0.0
    %1243 = vmatprep.subr.mxu0 0.0
    %1244 = vmatpush1.msra.mxu0 0.0
    %1245 = vmatprep.subr.mxu0 0.0
    %1246 = vmatpush1.msra.mxu0 0.0
    %1247 = vmatprep.subr.mxu0 0.0
    %1248 = vmatpush1.msra.mxu0 0.0
    %1249 = vmatprep.subr.mxu0 0.0
    %1250 = vmatpush1.msra.mxu0 0.0
    %1251 = vmatprep.subr.mxu0 0.0
    %1252 = vmatpush1.msra.mxu0 0.0
    %1253 = vmatprep.subr.mxu0 0.0
    %1254 = vmatpush1.msra.mxu0 0.0
    %1255 = vmatprep.subr.mxu0 0.0
    %1256 = vmatpush1.msra.mxu0 0.0
    %1257 = vmatprep.subr.mxu0 0.0
    %1258 = vmatpush1.msra.mxu0 0.0
    %1259 = vmatprep.subr.mxu0 0.0
    %1260 = vmatpush1.msra.mxu0 0.0
    %1261 = vmatprep.subr.mxu0 0.0
    %1262 = vmatpush1.msra.mxu0 0.0
    %1263 = vmatprep.subr.mxu0 0.0
    %1264 = vmatpush1.msra.mxu0 0.0
    %1265 = vmatprep.subr.mxu0 0.0
    %1266 = vmatpush1.msra.mxu0 0.0
    %1267 = vmatprep.subr.mxu0 0.0
    %1268 = vmatpush1.msra.mxu0 0.0
    %1269 = vmatprep.subr.mxu0 0.0
    %1270 = vmatpush1.msra.mxu0 0.0
    %1271 = vmatprep.subr.mxu0 0.0
    %1272 = vmatpush1.msra.mxu0 0.0
    %1273 = vmatprep.subr.mxu0 0.0
    %1274 = vmatpush1.msra.mxu0 0.0
    %1275 = vmatprep.subr.mxu0 0.0
    %1276 = vmatpush1.msra.mxu0 0.0
    %1277 = vmatprep.subr.mxu0 0.0
    %1278 = vmatpush1.msra.mxu0 0.0
    %1279 = vmatprep.subr.mxu0 0.0
    %1280 = vmatpush1.msra.mxu0 0.0
    %1281 = vmatprep.subr.mxu0 0.0
    %1282 = vmatpush1.msra.mxu0 0.0
    %1283 = vmatprep.mubr.f32.mxu0 0.0
    %v1284 = vand.u32 %v123, 4294901760
    %v1285 = vsub.f32 %v123, %v1284
    %1286 = vmatmul.mubr.f32.gmra.mrb[0].mxu0 %v1285
    %v1287 = vpop.f32.mrb[0].mxu0
    %v1288 = vadd.f32 %v1211, %v1287
    %v1289 = vpop.f32.mrb[0].mxu0
    %v1290 = vadd.f32 %v1213, %v1289
    %1291 = vdwg.mxu0
    %v1292 = vand.u32 %v106, 4294901760
    %1293 = vmatprep.subr.mxu0 %v1292
    %v1294 = vand.u32 %v105, 4294901760
    %1295 = vmatpush1.msra.mxu0 %v1294
    %1296 = vmatprep.subr.mxu0 0.0
    %1297 = vmatpush1.msra.mxu0 0.0
    %1298 = vmatprep.subr.mxu0 0.0
    %1299 = vmatpush1.msra.mxu0 0.0
    %1300 = vmatprep.subr.mxu0 0.0
    %1301 = vmatpush1.msra.mxu0 0.0
    %1302 = vmatprep.subr.mxu0 0.0
    %1303 = vmatpush1.msra.mxu0 0.0
    %1304 = vmatprep.subr.mxu0 0.0
    %1305 = vmatpush1.msra.mxu0 0.0
    %1306 = vmatprep.subr.mxu0 0.0
    %1307 = vmatpush1.msra.mxu0 0.0
    %1308 = vmatprep.subr.mxu0 0.0
    %1309 = vmatpush1.msra.mxu0 0.0
    %1310 = vmatprep.subr.mxu0 0.0
    %1311 = vmatpush1.msra.mxu0 0.0
    %1312 = vmatprep.subr.mxu0 0.0
    %1313 = vmatpush1.msra.mxu0 0.0
    %1314 = vmatprep.subr.mxu0 0.0
    %1315 = vmatpush1.msra.mxu0 0.0
    %1316 = vmatprep.subr.mxu0 0.0
    %1317 = vmatpush1.msra.mxu0 0.0
    %1318 = vmatprep.subr.mxu0 0.0
    %1319 = vmatpush1.msra.mxu0 0.0
    %1320 = vmatprep.subr.mxu0 0.0
    %1321 = vmatpush1.msra.mxu0 0.0
    %1322 = vmatprep.subr.mxu0 0.0
    %1323 = vmatpush1.msra.mxu0 0.0
    %1324 = vmatprep.subr.mxu0 0.0
    %1325 = vmatpush1.msra.mxu0 0.0
    %1326 = vmatprep.subr.mxu0 0.0
    %1327 = vmatpush1.msra.mxu0 0.0
    %1328 = vmatprep.subr.mxu0 0.0
    %1329 = vmatpush1.msra.mxu0 0.0
    %1330 = vmatprep.subr.mxu0 0.0
    %1331 = vmatpush1.msra.mxu0 0.0
    %1332 = vmatprep.subr.mxu0 0.0
    %1333 = vmatpush1.msra.mxu0 0.0
    %1334 = vmatprep.subr.mxu0 0.0
    %1335 = vmatpush1.msra.mxu0 0.0
    %1336 = vmatprep.subr.mxu0 0.0
    %1337 = vmatpush1.msra.mxu0 0.0
    %1338 = vmatprep.subr.mxu0 0.0
    %1339 = vmatpush1.msra.mxu0 0.0
    %1340 = vmatprep.subr.mxu0 0.0
    %1341 = vmatpush1.msra.mxu0 0.0
    %1342 = vmatprep.subr.mxu0 0.0
    %1343 = vmatpush1.msra.mxu0 0.0
    %1344 = vmatprep.subr.mxu0 0.0
    %1345 = vmatpush1.msra.mxu0 0.0
    %1346 = vmatprep.subr.mxu0 0.0
    %1347 = vmatpush1.msra.mxu0 0.0
    %1348 = vmatprep.subr.mxu0 0.0
    %1349 = vmatpush1.msra.mxu0 0.0
    %1350 = vmatprep.subr.mxu0 0.0
    %1351 = vmatpush1.msra.mxu0 0.0
    %1352 = vmatprep.subr.mxu0 0.0
    %1353 = vmatpush1.msra.mxu0 0.0
    %1354 = vmatprep.subr.mxu0 0.0
    %1355 = vmatpush1.msra.mxu0 0.0
    %1356 = vmatprep.subr.mxu0 0.0
    %1357 = vmatpush1.msra.mxu0 0.0
    %1358 = vmatprep.mubr.f32.mxu0 0.0
    %v1359 = vand.u32 %v123, 4294901760
    %v1360 = vsub.f32 %v123, %v1359
    %v1361 = vand.u32 %v1360, 4294901760
    %1362 = vmatmul.mubr.f32.gmra.mrb[0].mxu0 %v1361
    %v1363 = vpop.f32.mrb[0].mxu0
    %v1364 = vadd.f32 %v1288, %v1363
    %v1365 = vpop.f32.mrb[0].mxu0
    %v1366 = vadd.f32 %v1290, %v1365
    %1367 = vdwg.mxu0
    %v1368 = vand.u32 %v106, 4294901760
    %v1369 = vsub.f32 %v106, %v1368
    %v1370 = vand.u32 %v1369, 4294901760
    %1371 = vmatprep.subr.mxu0 %v1370
    %v1372 = vand.u32 %v105, 4294901760
    %v1373 = vsub.f32 %v105, %v1372
    %v1374 = vand.u32 %v1373, 4294901760
    %1375 = vmatpush1.msra.mxu0 %v1374
    %1376 = vmatprep.subr.mxu0 0.0
    %1377 = vmatpush1.msra.mxu0 0.0
    %1378 = vmatprep.subr.mxu0 0.0
    %1379 = vmatpush1.msra.mxu0 0.0
    %1380 = vmatprep.subr.mxu0 0.0
    %1381 = vmatpush1.msra.mxu0 0.0
    %1382 = vmatprep.subr.mxu0 0.0
    %1383 = vmatpush1.msra.mxu0 0.0
    %1384 = vmatprep.subr.mxu0 0.0
    %1385 = vmatpush1.msra.mxu0 0.0
    %1386 = vmatprep.subr.mxu0 0.0
    %1387 = vmatpush1.msra.mxu0 0.0
    %1388 = vmatprep.subr.mxu0 0.0
    %1389 = vmatpush1.msra.mxu0 0.0
    %1390 = vmatprep.subr.mxu0 0.0
    %1391 = vmatpush1.msra.mxu0 0.0
    %1392 = vmatprep.subr.mxu0 0.0
    %1393 = vmatpush1.msra.mxu0 0.0
    %1394 = vmatprep.subr.mxu0 0.0
    %1395 = vmatpush1.msra.mxu0 0.0
    %1396 = vmatprep.subr.mxu0 0.0
    %1397 = vmatpush1.msra.mxu0 0.0
    %1398 = vmatprep.subr.mxu0 0.0
    %1399 = vmatpush1.msra.mxu0 0.0
    %1400 = vmatprep.subr.mxu0 0.0
    %1401 = vmatpush1.msra.mxu0 0.0
    %1402 = vmatprep.subr.mxu0 0.0
    %1403 = vmatpush1.msra.mxu0 0.0
    %1404 = vmatprep.subr.mxu0 0.0
    %1405 = vmatpush1.msra.mxu0 0.0
    %1406 = vmatprep.subr.mxu0 0.0
    %1407 = vmatpush1.msra.mxu0 0.0
    %1408 = vmatprep.subr.mxu0 0.0
    %1409 = vmatpush1.msra.mxu0 0.0
    %1410 = vmatprep.subr.mxu0 0.0
    %1411 = vmatpush1.msra.mxu0 0.0
    %1412 = vmatprep.subr.mxu0 0.0
    %1413 = vmatpush1.msra.mxu0 0.0
    %1414 = vmatprep.subr.mxu0 0.0
    %1415 = vmatpush1.msra.mxu0 0.0
    %1416 = vmatprep.subr.mxu0 0.0
    %1417 = vmatpush1.msra.mxu0 0.0
    %1418 = vmatprep.subr.mxu0 0.0
    %1419 = vmatpush1.msra.mxu0 0.0
    %1420 = vmatprep.subr.mxu0 0.0
    %1421 = vmatpush1.msra.mxu0 0.0
    %1422 = vmatprep.subr.mxu0 0.0
    %1423 = vmatpush1.msra.mxu0 0.0
    %1424 = vmatprep.subr.mxu0 0.0
    %1425 = vmatpush1.msra.mxu0 0.0
    %1426 = vmatprep.subr.mxu0 0.0
    %1427 = vmatpush1.msra.mxu0 0.0
    %1428 = vmatprep.subr.mxu0 0.0
    %1429 = vmatpush1.msra.mxu0 0.0
    %1430 = vmatprep.subr.mxu0 0.0
    %1431 = vmatpush1.msra.mxu0 0.0
    %1432 = vmatprep.subr.mxu0 0.0
    %1433 = vmatpush1.msra.mxu0 0.0
    %1434 = vmatprep.subr.mxu0 0.0
    %1435 = vmatpush1.msra.mxu0 0.0
    %1436 = vmatprep.subr.mxu0 0.0
    %1437 = vmatpush1.msra.mxu0 0.0
    %1438 = vmatprep.mubr.f32.mxu0 0.0
    %v1439 = vand.u32 %v123, 4294901760
    %1440 = vmatmul.mubr.f32.gmra.mrb[0].mxu0 %v1439
    %v1441 = vpop.f32.mrb[0].mxu0
    %v1442 = vadd.f32 %v1364, %v1441
    %v1443 = vpop.f32.mrb[0].mxu0
    %v1444 = vadd.f32 %v1366, %v1443
    %1445 = vdwg.mxu0
    %v1446 = vand.u32 %v106, 4294901760
    %1447 = vmatprep.subr.mxu0 %v1446
    %v1448 = vand.u32 %v105, 4294901760
    %1449 = vmatpush1.msra.mxu0 %v1448
    %1450 = vmatprep.subr.mxu0 0.0
    %1451 = vmatpush1.msra.mxu0 0.0
    %1452 = vmatprep.subr.mxu0 0.0
    %1453 = vmatpush1.msra.mxu0 0.0
    %1454 = vmatprep.subr.mxu0 0.0
    %1455 = vmatpush1.msra.mxu0 0.0
    %1456 = vmatprep.subr.mxu0 0.0
    %1457 = vmatpush1.msra.mxu0 0.0
    %1458 = vmatprep.subr.mxu0 0.0
    %1459 = vmatpush1.msra.mxu0 0.0
    %1460 = vmatprep.subr.mxu0 0.0
    %1461 = vmatpush1.msra.mxu0 0.0
    %1462 = vmatprep.subr.mxu0 0.0
    %1463 = vmatpush1.msra.mxu0 0.0
    %1464 = vmatprep.subr.mxu0 0.0
    %1465 = vmatpush1.msra.mxu0 0.0
    %1466 = vmatprep.subr.mxu0 0.0
    %1467 = vmatpush1.msra.mxu0 0.0
    %1468 = vmatprep.subr.mxu0 0.0
    %1469 = vmatpush1.msra.mxu0 0.0
    %1470 = vmatprep.subr.mxu0 0.0
    %1471 = vmatpush1.msra.mxu0 0.0
    %1472 = vmatprep.subr.mxu0 0.0
    %1473 = vmatpush1.msra.mxu0 0.0
    %1474 = vmatprep.subr.mxu0 0.0
    %1475 = vmatpush1.msra.mxu0 0.0
    %1476 = vmatprep.subr.mxu0 0.0
    %1477 = vmatpush1.msra.mxu0 0.0
    %1478 = vmatprep.subr.mxu0 0.0
    %1479 = vmatpush1.msra.mxu0 0.0
    %1480 = vmatprep.subr.mxu0 0.0
    %1481 = vmatpush1.msra.mxu0 0.0
    %1482 = vmatprep.subr.mxu0 0.0
    %1483 = vmatpush1.msra.mxu0 0.0
    %1484 = vmatprep.subr.mxu0 0.0
    %1485 = vmatpush1.msra.mxu0 0.0
    %1486 = vmatprep.subr.mxu0 0.0
    %1487 = vmatpush1.msra.mxu0 0.0
    %1488 = vmatprep.subr.mxu0 0.0
    %1489 = vmatpush1.msra.mxu0 0.0
    %1490 = vmatprep.subr.mxu0 0.0
    %1491 = vmatpush1.msra.mxu0 0.0
    %1492 = vmatprep.subr.mxu0 0.0
    %1493 = vmatpush1.msra.mxu0 0.0
    %1494 = vmatprep.subr.mxu0 0.0
    %1495 = vmatpush1.msra.mxu0 0.0
    %1496 = vmatprep.subr.mxu0 0.0
    %1497 = vmatpush1.msra.mxu0 0.0
    %1498 = vmatprep.subr.mxu0 0.0
    %1499 = vmatpush1.msra.mxu0 0.0
    %1500 = vmatprep.subr.mxu0 0.0
    %1501 = vmatpush1.msra.mxu0 0.0
    %1502 = vmatprep.subr.mxu0 0.0
    %1503 = vmatpush1.msra.mxu0 0.0
    %1504 = vmatprep.subr.mxu0 0.0
    %1505 = vmatpush1.msra.mxu0 0.0
    %1506 = vmatprep.subr.mxu0 0.0
    %1507 = vmatpush1.msra.mxu0 0.0
    %1508 = vmatprep.subr.mxu0 0.0
    %1509 = vmatpush1.msra.mxu0 0.0
    %1510 = vmatprep.subr.mxu0 0.0
    %1511 = vmatpush1.msra.mxu0 0.0
    %1512 = vmatprep.mubr.f32.mxu0 0.0
    %v1513 = vand.u32 %v123, 4294901760
    %1514 = vmatmul.mubr.f32.gmra.mrb[0].mxu0 %v1513
    %v1515 = vpop.f32.mrb[0].mxu0
    %v1516 = vadd.f32 %v1442, %v1515
    %v1517 = vpop.f32.mrb[0].mxu0
    %v1518 = vadd.f32 %v1444, %v1517
    %1519 = vdwg.mxu0
    %v1520 = vand.u32 %v108, 4294901760
    %1521 = vmatprep.subr.mxu0 %v1520
    %v1522 = vand.u32 %v107, 4294901760
    %1523 = vmatpush1.msra.mxu0 %v1522
    %1524 = vmatprep.subr.mxu0 0.0
    %1525 = vmatpush1.msra.mxu0 0.0
    %1526 = vmatprep.subr.mxu0 0.0
    %1527 = vmatpush1.msra.mxu0 0.0
    %1528 = vmatprep.subr.mxu0 0.0
    %1529 = vmatpush1.msra.mxu0 0.0
    %1530 = vmatprep.subr.mxu0 0.0
    %1531 = vmatpush1.msra.mxu0 0.0
    %1532 = vmatprep.subr.mxu0 0.0
    %1533 = vmatpush1.msra.mxu0 0.0
    %1534 = vmatprep.subr.mxu0 0.0
    %1535 = vmatpush1.msra.mxu0 0.0
    %1536 = vmatprep.subr.mxu0 0.0
    %1537 = vmatpush1.msra.mxu0 0.0
    %1538 = vmatprep.subr.mxu0 0.0
    %1539 = vmatpush1.msra.mxu0 0.0
    %1540 = vmatprep.subr.mxu0 0.0
    %1541 = vmatpush1.msra.mxu0 0.0
    %1542 = vmatprep.subr.mxu0 0.0
    %1543 = vmatpush1.msra.mxu0 0.0
    %1544 = vmatprep.subr.mxu0 0.0
    %1545 = vmatpush1.msra.mxu0 0.0
    %1546 = vmatprep.subr.mxu0 0.0
    %1547 = vmatpush1.msra.mxu0 0.0
    %1548 = vmatprep.subr.mxu0 0.0
    %1549 = vmatpush1.msra.mxu0 0.0
    %1550 = vmatprep.subr.mxu0 0.0
    %1551 = vmatpush1.msra.mxu0 0.0
    %1552 = vmatprep.subr.mxu0 0.0
    %1553 = vmatpush1.msra.mxu0 0.0
    %1554 = vmatprep.subr.mxu0 0.0
    %1555 = vmatpush1.msra.mxu0 0.0
    %1556 = vmatprep.subr.mxu0 0.0
    %1557 = vmatpush1.msra.mxu0 0.0
    %1558 = vmatprep.subr.mxu0 0.0
    %1559 = vmatpush1.msra.mxu0 0.0
    %1560 = vmatprep.subr.mxu0 0.0
    %1561 = vmatpush1.msra.mxu0 0.0
    %1562 = vmatprep.subr.mxu0 0.0
    %1563 = vmatpush1.msra.mxu0 0.0
    %1564 = vmatprep.subr.mxu0 0.0
    %1565 = vmatpush1.msra.mxu0 0.0
    %1566 = vmatprep.subr.mxu0 0.0
    %1567 = vmatpush1.msra.mxu0 0.0
    %1568 = vmatprep.subr.mxu0 0.0
    %1569 = vmatpush1.msra.mxu0 0.0
    %1570 = vmatprep.subr.mxu0 0.0
    %1571 = vmatpush1.msra.mxu0 0.0
    %1572 = vmatprep.subr.mxu0 0.0
    %1573 = vmatpush1.msra.mxu0 0.0
    %1574 = vmatprep.subr.mxu0 0.0
    %1575 = vmatpush1.msra.mxu0 0.0
    %1576 = vmatprep.subr.mxu0 0.0
    %1577 = vmatpush1.msra.mxu0 0.0
    %1578 = vmatprep.subr.mxu0 0.0
    %1579 = vmatpush1.msra.mxu0 0.0
    %1580 = vmatprep.subr.mxu0 0.0
    %1581 = vmatpush1.msra.mxu0 0.0
    %1582 = vmatprep.subr.mxu0 0.0
    %1583 = vmatpush1.msra.mxu0 0.0
    %1584 = vmatprep.subr.mxu0 0.0
    %1585 = vmatpush1.msra.mxu0 0.0
    %1586 = vmatprep.mubr.f32.mxu0 0.0
    %v1587 = vand.u32 %v123, 4294901760
    %v1588 = vsub.f32 %v123, %v1587
    %v1589 = vand.u32 %v1588, 4294901760
    %v1590 = vsub.f32 %v1588, %v1589
    %v1591 = vand.u32 %v1590, 4294901760
    %1592 = vmatmul.mubr.f32.gmra.mrb[0].mxu0 %v1591
    %v1593 = vpop.f32.mrb[0].mxu0
    %v1594 = vadd.f32 %v120, %v1593
    %v1595 = vpop.f32.mrb[0].mxu0
    %v1596 = vadd.f32 %v120, %v1595
    %1597 = vdwg.mxu0
    %v1598 = vand.u32 %v108, 4294901760
    %v1599 = vsub.f32 %v108, %v1598
    %v1600 = vand.u32 %v1599, 4294901760
    %v1601 = vsub.f32 %v1599, %v1600
    %v1602 = vand.u32 %v1601, 4294901760
    %1603 = vmatprep.subr.mxu0 %v1602
    %v1604 = vand.u32 %v107, 4294901760
    %v1605 = vsub.f32 %v107, %v1604
    %v1606 = vand.u32 %v1605, 4294901760
    %v1607 = vsub.f32 %v1605, %v1606
    %v1608 = vand.u32 %v1607, 4294901760
    %1609 = vmatpush1.msra.mxu0 %v1608
    %1610 = vmatprep.subr.mxu0 0.0
    %1611 = vmatpush1.msra.mxu0 0.0
    %1612 = vmatprep.subr.mxu0 0.0
    %1613 = vmatpush1.msra.mxu0 0.0
    %1614 = vmatprep.subr.mxu0 0.0
    %1615 = vmatpush1.msra.mxu0 0.0
    %1616 = vmatprep.subr.mxu0 0.0
    %1617 = vmatpush1.msra.mxu0 0.0
    %1618 = vmatprep.subr.mxu0 0.0
    %1619 = vmatpush1.msra.mxu0 0.0
    %1620 = vmatprep.subr.mxu0 0.0
    %1621 = vmatpush1.msra.mxu0 0.0
    %1622 = vmatprep.subr.mxu0 0.0
    %1623 = vmatpush1.msra.mxu0 0.0
    %1624 = vmatprep.subr.mxu0 0.0
    %1625 = vmatpush1.msra.mxu0 0.0
    %1626 = vmatprep.subr.mxu0 0.0
    %1627 = vmatpush1.msra.mxu0 0.0
    %1628 = vmatprep.subr.mxu0 0.0
    %1629 = vmatpush1.msra.mxu0 0.0
    %1630 = vmatprep.subr.mxu0 0.0
    %1631 = vmatpush1.msra.mxu0 0.0
    %1632 = vmatprep.subr.mxu0 0.0
    %1633 = vmatpush1.msra.mxu0 0.0
    %1634 = vmatprep.subr.mxu0 0.0
    %1635 = vmatpush1.msra.mxu0 0.0
    %1636 = vmatprep.subr.mxu0 0.0
    %1637 = vmatpush1.msra.mxu0 0.0
    %1638 = vmatprep.subr.mxu0 0.0
    %1639 = vmatpush1.msra.mxu0 0.0
    %1640 = vmatprep.subr.mxu0 0.0
    %1641 = vmatpush1.msra.mxu0 0.0
    %1642 = vmatprep.subr.mxu0 0.0
    %1643 = vmatpush1.msra.mxu0 0.0
    %1644 = vmatprep.subr.mxu0 0.0
    %1645 = vmatpush1.msra.mxu0 0.0
    %1646 = vmatprep.subr.mxu0 0.0
    %1647 = vmatpush1.msra.mxu0 0.0
    %1648 = vmatprep.subr.mxu0 0.0
    %1649 = vmatpush1.msra.mxu0 0.0
    %1650 = vmatprep.subr.mxu0 0.0
    %1651 = vmatpush1.msra.mxu0 0.0
    %1652 = vmatprep.subr.mxu0 0.0
    %1653 = vmatpush1.msra.mxu0 0.0
    %1654 = vmatprep.subr.mxu0 0.0
    %1655 = vmatpush1.msra.mxu0 0.0
    %1656 = vmatprep.subr.mxu0 0.0
    %1657 = vmatpush1.msra.mxu0 0.0
    %1658 = vmatprep.subr.mxu0 0.0
    %1659 = vmatpush1.msra.mxu0 0.0
    %1660 = vmatprep.subr.mxu0 0.0
    %1661 = vmatpush1.msra.mxu0 0.0
    %1662 = vmatprep.subr.mxu0 0.0
    %1663 = vmatpush1.msra.mxu0 0.0
    %1664 = vmatprep.subr.mxu0 0.0
    %1665 = vmatpush1.msra.mxu0 0.0
    %1666 = vmatprep.subr.mxu0 0.0
    %1667 = vmatpush1.msra.mxu0 0.0
    %1668 = vmatprep.subr.mxu0 0.0
    %1669 = vmatpush1.msra.mxu0 0.0
    %1670 = vmatprep.subr.mxu0 0.0
    %1671 = vmatpush1.msra.mxu0 0.0
    %1672 = vmatprep.mubr.f32.mxu0 0.0
    %v1673 = vand.u32 %v123, 4294901760
    %1674 = vmatmul.mubr.f32.gmra.mrb[0].mxu0 %v1673
    %v1675 = vpop.f32.mrb[0].mxu0
    %v1676 = vadd.f32 %v1594, %v1675
    %v1677 = vpop.f32.mrb[0].mxu0
    %v1678 = vadd.f32 %v1596, %v1677
    %1679 = vdwg.mxu0
    %v1680 = vand.u32 %v108, 4294901760
    %v1681 = vsub.f32 %v108, %v1680
    %1682 = vmatprep.subr.mxu0 %v1681
    %v1683 = vand.u32 %v107, 4294901760
    %v1684 = vsub.f32 %v107, %v1683
    %1685 = vmatpush1.msra.mxu0 %v1684
    %1686 = vmatprep.subr.mxu0 0.0
    %1687 = vmatpush1.msra.mxu0 0.0
    %1688 = vmatprep.subr.mxu0 0.0
    %1689 = vmatpush1.msra.mxu0 0.0
    %1690 = vmatprep.subr.mxu0 0.0
    %1691 = vmatpush1.msra.mxu0 0.0
    %1692 = vmatprep.subr.mxu0 0.0
    %1693 = vmatpush1.msra.mxu0 0.0
    %1694 = vmatprep.subr.mxu0 0.0
    %1695 = vmatpush1.msra.mxu0 0.0
    %1696 = vmatprep.subr.mxu0 0.0
    %1697 = vmatpush1.msra.mxu0 0.0
    %1698 = vmatprep.subr.mxu0 0.0
    %1699 = vmatpush1.msra.mxu0 0.0
    %1700 = vmatprep.subr.mxu0 0.0
    %1701 = vmatpush1.msra.mxu0 0.0
    %1702 = vmatprep.subr.mxu0 0.0
    %1703 = vmatpush1.msra.mxu0 0.0
    %1704 = vmatprep.subr.mxu0 0.0
    %1705 = vmatpush1.msra.mxu0 0.0
    %1706 = vmatprep.subr.mxu0 0.0
    %1707 = vmatpush1.msra.mxu0 0.0
    %1708 = vmatprep.subr.mxu0 0.0
    %1709 = vmatpush1.msra.mxu0 0.0
    %1710 = vmatprep.subr.mxu0 0.0
    %1711 = vmatpush1.msra.mxu0 0.0
    %1712 = vmatprep.subr.mxu0 0.0
    %1713 = vmatpush1.msra.mxu0 0.0
    %1714 = vmatprep.subr.mxu0 0.0
    %1715 = vmatpush1.msra.mxu0 0.0
    %1716 = vmatprep.subr.mxu0 0.0
    %1717 = vmatpush1.msra.mxu0 0.0
    %1718 = vmatprep.subr.mxu0 0.0
    %1719 = vmatpush1.msra.mxu0 0.0
    %1720 = vmatprep.subr.mxu0 0.0
    %1721 = vmatpush1.msra.mxu0 0.0
    %1722 = vmatprep.subr.mxu0 0.0
    %1723 = vmatpush1.msra.mxu0 0.0
    %1724 = vmatprep.subr.mxu0 0.0
    %1725 = vmatpush1.msra.mxu0 0.0
    %1726 = vmatprep.subr.mxu0 0.0
    %1727 = vmatpush1.msra.mxu0 0.0
    %1728 = vmatprep.subr.mxu0 0.0
    %1729 = vmatpush1.msra.mxu0 0.0
    %1730 = vmatprep.subr.mxu0 0.0
    %1731 = vmatpush1.msra.mxu0 0.0
    %1732 = vmatprep.subr.mxu0 0.0
    %1733 = vmatpush1.msra.mxu0 0.0
    %1734 = vmatprep.subr.mxu0 0.0
    %1735 = vmatpush1.msra.mxu0 0.0
    %1736 = vmatprep.subr.mxu0 0.0
    %1737 = vmatpush1.msra.mxu0 0.0
    %1738 = vmatprep.subr.mxu0 0.0
    %1739 = vmatpush1.msra.mxu0 0.0
    %1740 = vmatprep.subr.mxu0 0.0
    %1741 = vmatpush1.msra.mxu0 0.0
    %1742 = vmatprep.subr.mxu0 0.0
    %1743 = vmatpush1.msra.mxu0 0.0
    %1744 = vmatprep.subr.mxu0 0.0
    %1745 = vmatpush1.msra.mxu0 0.0
    %1746 = vmatprep.subr.mxu0 0.0
    %1747 = vmatpush1.msra.mxu0 0.0
    %1748 = vmatprep.mubr.f32.mxu0 0.0
    %v1749 = vand.u32 %v123, 4294901760
    %v1750 = vsub.f32 %v123, %v1749
    %1751 = vmatmul.mubr.f32.gmra.mrb[0].mxu0 %v1750
    %v1752 = vpop.f32.mrb[0].mxu0
    %v1753 = vadd.f32 %v1676, %v1752
    %v1754 = vpop.f32.mrb[0].mxu0
    %v1755 = vadd.f32 %v1678, %v1754
    %1756 = vdwg.mxu0
    %v1757 = vand.u32 %v108, 4294901760
    %1758 = vmatprep.subr.mxu0 %v1757
    %v1759 = vand.u32 %v107, 4294901760
    %1760 = vmatpush1.msra.mxu0 %v1759
    %1761 = vmatprep.subr.mxu0 0.0
    %1762 = vmatpush1.msra.mxu0 0.0
    %1763 = vmatprep.subr.mxu0 0.0
    %1764 = vmatpush1.msra.mxu0 0.0
    %1765 = vmatprep.subr.mxu0 0.0
    %1766 = vmatpush1.msra.mxu0 0.0
    %1767 = vmatprep.subr.mxu0 0.0
    %1768 = vmatpush1.msra.mxu0 0.0
    %1769 = vmatprep.subr.mxu0 0.0
    %1770 = vmatpush1.msra.mxu0 0.0
    %1771 = vmatprep.subr.mxu0 0.0
    %1772 = vmatpush1.msra.mxu0 0.0
    %1773 = vmatprep.subr.mxu0 0.0
    %1774 = vmatpush1.msra.mxu0 0.0
    %1775 = vmatprep.subr.mxu0 0.0
    %1776 = vmatpush1.msra.mxu0 0.0
    %1777 = vmatprep.subr.mxu0 0.0
    %1778 = vmatpush1.msra.mxu0 0.0
    %1779 = vmatprep.subr.mxu0 0.0
    %1780 = vmatpush1.msra.mxu0 0.0
    %1781 = vmatprep.subr.mxu0 0.0
    %1782 = vmatpush1.msra.mxu0 0.0
    %1783 = vmatprep.subr.mxu0 0.0
    %1784 = vmatpush1.msra.mxu0 0.0
    %1785 = vmatprep.subr.mxu0 0.0
    %1786 = vmatpush1.msra.mxu0 0.0
    %1787 = vmatprep.subr.mxu0 0.0
    %1788 = vmatpush1.msra.mxu0 0.0
    %1789 = vmatprep.subr.mxu0 0.0
    %1790 = vmatpush1.msra.mxu0 0.0
    %1791 = vmatprep.subr.mxu0 0.0
    %1792 = vmatpush1.msra.mxu0 0.0
    %1793 = vmatprep.subr.mxu0 0.0
    %1794 = vmatpush1.msra.mxu0 0.0
    %1795 = vmatprep.subr.mxu0 0.0
    %1796 = vmatpush1.msra.mxu0 0.0
    %1797 = vmatprep.subr.mxu0 0.0
    %1798 = vmatpush1.msra.mxu0 0.0
    %1799 = vmatprep.subr.mxu0 0.0
    %1800 = vmatpush1.msra.mxu0 0.0
    %1801 = vmatprep.subr.mxu0 0.0
    %1802 = vmatpush1.msra.mxu0 0.0
    %1803 = vmatprep.subr.mxu0 0.0
    %1804 = vmatpush1.msra.mxu0 0.0
    %1805 = vmatprep.subr.mxu0 0.0
    %1806 = vmatpush1.msra.mxu0 0.0
    %1807 = vmatprep.subr.mxu0 0.0
    %1808 = vmatpush1.msra.mxu0 0.0
    %1809 = vmatprep.subr.mxu0 0.0
    %1810 = vmatpush1.msra.mxu0 0.0
    %1811 = vmatprep.subr.mxu0 0.0
    %1812 = vmatpush1.msra.mxu0 0.0
    %1813 = vmatprep.subr.mxu0 0.0
    %1814 = vmatpush1.msra.mxu0 0.0
    %1815 = vmatprep.subr.mxu0 0.0
    %1816 = vmatpush1.msra.mxu0 0.0
    %1817 = vmatprep.subr.mxu0 0.0
    %1818 = vmatpush1.msra.mxu0 0.0
    %1819 = vmatprep.subr.mxu0 0.0
    %1820 = vmatpush1.msra.mxu0 0.0
    %1821 = vmatprep.subr.mxu0 0.0
    %1822 = vmatpush1.msra.mxu0 0.0
    %1823 = vmatprep.mubr.f32.mxu0 0.0
    %v1824 = vand.u32 %v123, 4294901760
    %v1825 = vsub.f32 %v123, %v1824
    %v1826 = vand.u32 %v1825, 4294901760
    %1827 = vmatmul.mubr.f32.gmra.mrb[0].mxu0 %v1826
    %v1828 = vpop.f32.mrb[0].mxu0
    %v1829 = vadd.f32 %v1753, %v1828
    %v1830 = vpop.f32.mrb[0].mxu0
    %v1831 = vadd.f32 %v1755, %v1830
    %1832 = vdwg.mxu0
    %v1833 = vand.u32 %v108, 4294901760
    %v1834 = vsub.f32 %v108, %v1833
    %v1835 = vand.u32 %v1834, 4294901760
    %1836 = vmatprep.subr.mxu0 %v1835
    %v1837 = vand.u32 %v107, 4294901760
    %v1838 = vsub.f32 %v107, %v1837
    %v1839 = vand.u32 %v1838, 4294901760
    %1840 = vmatpush1.msra.mxu0 %v1839
    %1841 = vmatprep.subr.mxu0 0.0
    %1842 = vmatpush1.msra.mxu0 0.0
    %1843 = vmatprep.subr.mxu0 0.0
    %1844 = vmatpush1.msra.mxu0 0.0
    %1845 = vmatprep.subr.mxu0 0.0
    %1846 = vmatpush1.msra.mxu0 0.0
    %1847 = vmatprep.subr.mxu0 0.0
    %1848 = vmatpush1.msra.mxu0 0.0
    %1849 = vmatprep.subr.mxu0 0.0
    %1850 = vmatpush1.msra.mxu0 0.0
    %1851 = vmatprep.subr.mxu0 0.0
    %1852 = vmatpush1.msra.mxu0 0.0
    %1853 = vmatprep.subr.mxu0 0.0
    %1854 = vmatpush1.msra.mxu0 0.0
    %1855 = vmatprep.subr.mxu0 0.0
    %1856 = vmatpush1.msra.mxu0 0.0
    %1857 = vmatprep.subr.mxu0 0.0
    %1858 = vmatpush1.msra.mxu0 0.0
    %1859 = vmatprep.subr.mxu0 0.0
    %1860 = vmatpush1.msra.mxu0 0.0
    %1861 = vmatprep.subr.mxu0 0.0
    %1862 = vmatpush1.msra.mxu0 0.0
    %1863 = vmatprep.subr.mxu0 0.0
    %1864 = vmatpush1.msra.mxu0 0.0
    %1865 = vmatprep.subr.mxu0 0.0
    %1866 = vmatpush1.msra.mxu0 0.0
    %1867 = vmatprep.subr.mxu0 0.0
    %1868 = vmatpush1.msra.mxu0 0.0
    %1869 = vmatprep.subr.mxu0 0.0
    %1870 = vmatpush1.msra.mxu0 0.0
    %1871 = vmatprep.subr.mxu0 0.0
    %1872 = vmatpush1.msra.mxu0 0.0
    %1873 = vmatprep.subr.mxu0 0.0
    %1874 = vmatpush1.msra.mxu0 0.0
    %1875 = vmatprep.subr.mxu0 0.0
    %1876 = vmatpush1.msra.mxu0 0.0
    %1877 = vmatprep.subr.mxu0 0.0
    %1878 = vmatpush1.msra.mxu0 0.0
    %1879 = vmatprep.subr.mxu0 0.0
    %1880 = vmatpush1.msra.mxu0 0.0
    %1881 = vmatprep.subr.mxu0 0.0
    %1882 = vmatpush1.msra.mxu0 0.0
    %1883 = vmatprep.subr.mxu0 0.0
    %1884 = vmatpush1.msra.mxu0 0.0
    %1885 = vmatprep.subr.mxu0 0.0
    %1886 = vmatpush1.msra.mxu0 0.0
    %1887 = vmatprep.subr.mxu0 0.0
    %1888 = vmatpush1.msra.mxu0 0.0
    %1889 = vmatprep.subr.mxu0 0.0
    %1890 = vmatpush1.msra.mxu0 0.0
    %1891 = vmatprep.subr.mxu0 0.0
    %1892 = vmatpush1.msra.mxu0 0.0
    %1893 = vmatprep.subr.mxu0 0.0
    %1894 = vmatpush1.msra.mxu0 0.0
    %1895 = vmatprep.subr.mxu0 0.0
    %1896 = vmatpush1.msra.mxu0 0.0
    %1897 = vmatprep.subr.mxu0 0.0
    %1898 = vmatpush1.msra.mxu0 0.0
    %1899 = vmatprep.subr.mxu0 0.0
    %1900 = vmatpush1.msra.mxu0 0.0
    %1901 = vmatprep.subr.mxu0 0.0
    %1902 = vmatpush1.msra.mxu0 0.0
    %1903 = vmatprep.mubr.f32.mxu0 0.0
    %v1904 = vand.u32 %v123, 4294901760
    %1905 = vmatmul.mubr.f32.gmra.mrb[0].mxu0 %v1904
    %v1906 = vpop.f32.mrb[0].mxu0
    %v1907 = vadd.f32 %v1829, %v1906
    %v1908 = vpop.f32.mrb[0].mxu0
    %v1909 = vadd.f32 %v1831, %v1908
    %1910 = vdwg.mxu0
    %v1911 = vand.u32 %v108, 4294901760
    %1912 = vmatprep.subr.mxu0 %v1911
    %v1913 = vand.u32 %v107, 4294901760
    %1914 = vmatpush1.msra.mxu0 %v1913
    %1915 = vmatprep.subr.mxu0 0.0
    %1916 = vmatpush1.msra.mxu0 0.0
    %1917 = vmatprep.subr.mxu0 0.0
    %1918 = vmatpush1.msra.mxu0 0.0
    %1919 = vmatprep.subr.mxu0 0.0
    %1920 = vmatpush1.msra.mxu0 0.0
    %1921 = vmatprep.subr.mxu0 0.0
    %1922 = vmatpush1.msra.mxu0 0.0
    %1923 = vmatprep.subr.mxu0 0.0
    %1924 = vmatpush1.msra.mxu0 0.0
    %1925 = vmatprep.subr.mxu0 0.0
    %1926 = vmatpush1.msra.mxu0 0.0
    %1927 = vmatprep.subr.mxu0 0.0
    %1928 = vmatpush1.msra.mxu0 0.0
    %1929 = vmatprep.subr.mxu0 0.0
    %1930 = vmatpush1.msra.mxu0 0.0
    %1931 = vmatprep.subr.mxu0 0.0
    %1932 = vmatpush1.msra.mxu0 0.0
    %1933 = vmatprep.subr.mxu0 0.0
    %1934 = vmatpush1.msra.mxu0 0.0
    %1935 = vmatprep.subr.mxu0 0.0
    %1936 = vmatpush1.msra.mxu0 0.0
    %1937 = vmatprep.subr.mxu0 0.0
    %1938 = vmatpush1.msra.mxu0 0.0
    %1939 = vmatprep.subr.mxu0 0.0
    %1940 = vmatpush1.msra.mxu0 0.0
    %1941 = vmatprep.subr.mxu0 0.0
    %1942 = vmatpush1.msra.mxu0 0.0
    %1943 = vmatprep.subr.mxu0 0.0
    %1944 = vmatpush1.msra.mxu0 0.0
    %1945 = vmatprep.subr.mxu0 0.0
    %1946 = vmatpush1.msra.mxu0 0.0
    %1947 = vmatprep.subr.mxu0 0.0
    %1948 = vmatpush1.msra.mxu0 0.0
    %1949 = vmatprep.subr.mxu0 0.0
    %1950 = vmatpush1.msra.mxu0 0.0
    %1951 = vmatprep.subr.mxu0 0.0
    %1952 = vmatpush1.msra.mxu0 0.0
    %1953 = vmatprep.subr.mxu0 0.0
    %1954 = vmatpush1.msra.mxu0 0.0
    %1955 = vmatprep.subr.mxu0 0.0
    %1956 = vmatpush1.msra.mxu0 0.0
    %1957 = vmatprep.subr.mxu0 0.0
    %1958 = vmatpush1.msra.mxu0 0.0
    %1959 = vmatprep.subr.mxu0 0.0
    %1960 = vmatpush1.msra.mxu0 0.0
    %1961 = vmatprep.subr.mxu0 0.0
    %1962 = vmatpush1.msra.mxu0 0.0
    %1963 = vmatprep.subr.mxu0 0.0
    %1964 = vmatpush1.msra.mxu0 0.0
    %1965 = vmatprep.subr.mxu0 0.0
    %1966 = vmatpush1.msra.mxu0 0.0
    %1967 = vmatprep.subr.mxu0 0.0
    %1968 = vmatpush1.msra.mxu0 0.0
    %1969 = vmatprep.subr.mxu0 0.0
    %1970 = vmatpush1.msra.mxu0 0.0
    %1971 = vmatprep.subr.mxu0 0.0
    %1972 = vmatpush1.msra.mxu0 0.0
    %1973 = vmatprep.subr.mxu0 0.0
    %1974 = vmatpush1.msra.mxu0 0.0
    %1975 = vmatprep.subr.mxu0 0.0
    %1976 = vmatpush1.msra.mxu0 0.0
    %1977 = vmatprep.mubr.f32.mxu0 0.0
    %v1978 = vand.u32 %v123, 4294901760
    %1979 = vmatmul.mubr.f32.gmra.mrb[0].mxu0 %v1978
    %v1980 = vpop.f32.mrb[0].mxu0
    %v1981 = vadd.f32 %v1907, %v1980
    %v1982 = vpop.f32.mrb[0].mxu0
    %v1983 = vadd.f32 %v1909, %v1982
    %1984 = vdwg.mxu0
    %v1985 = vand.u32 %v110, 4294901760
    %1986 = vmatprep.subr.mxu0 %v1985
    %v1987 = vand.u32 %v109, 4294901760
    %1988 = vmatpush1.msra.mxu0 %v1987
    %1989 = vmatprep.subr.mxu0 0.0
    %1990 = vmatpush1.msra.mxu0 0.0
    %1991 = vmatprep.subr.mxu0 0.0
    %1992 = vmatpush1.msra.mxu0 0.0
    %1993 = vmatprep.subr.mxu0 0.0
    %1994 = vmatpush1.msra.mxu0 0.0
    %1995 = vmatprep.subr.mxu0 0.0
    %1996 = vmatpush1.msra.mxu0 0.0
    %1997 = vmatprep.subr.mxu0 0.0
    %1998 = vmatpush1.msra.mxu0 0.0
    %1999 = vmatprep.subr.mxu0 0.0
    %2000 = vmatpush1.msra.mxu0 0.0
    %2001 = vmatprep.subr.mxu0 0.0
    %2002 = vmatpush1.msra.mxu0 0.0
    %2003 = vmatprep.subr.mxu0 0.0
    %2004 = vmatpush1.msra.mxu0 0.0
    %2005 = vmatprep.subr.mxu0 0.0
    %2006 = vmatpush1.msra.mxu0 0.0
    %2007 = vmatprep.subr.mxu0 0.0
    %2008 = vmatpush1.msra.mxu0 0.0
    %2009 = vmatprep.subr.mxu0 0.0
    %2010 = vmatpush1.msra.mxu0 0.0
    %2011 = vmatprep.subr.mxu0 0.0
    %2012 = vmatpush1.msra.mxu0 0.0
    %2013 = vmatprep.subr.mxu0 0.0
    %2014 = vmatpush1.msra.mxu0 0.0
    %2015 = vmatprep.subr.mxu0 0.0
    %2016 = vmatpush1.msra.mxu0 0.0
    %2017 = vmatprep.subr.mxu0 0.0
    %2018 = vmatpush1.msra.mxu0 0.0
    %2019 = vmatprep.subr.mxu0 0.0
    %2020 = vmatpush1.msra.mxu0 0.0
    %2021 = vmatprep.subr.mxu0 0.0
    %2022 = vmatpush1.msra.mxu0 0.0
    %2023 = vmatprep.subr.mxu0 0.0
    %2024 = vmatpush1.msra.mxu0 0.0
    %2025 = vmatprep.subr.mxu0 0.0
    %2026 = vmatpush1.msra.mxu0 0.0
    %2027 = vmatprep.subr.mxu0 0.0
    %2028 = vmatpush1.msra.mxu0 0.0
    %2029 = vmatprep.subr.mxu0 0.0
    %2030 = vmatpush1.msra.mxu0 0.0
    %2031 = vmatprep.subr.mxu0 0.0
    %2032 = vmatpush1.msra.mxu0 0.0
    %2033 = vmatprep.subr.mxu0 0.0
    %2034 = vmatpush1.msra.mxu0 0.0
    %2035 = vmatprep.subr.mxu0 0.0
    %2036 = vmatpush1.msra.mxu0 0.0
    %2037 = vmatprep.subr.mxu0 0.0
    %2038 = vmatpush1.msra.mxu0 0.0
    %2039 = vmatprep.subr.mxu0 0.0
    %2040 = vmatpush1.msra.mxu0 0.0
    %2041 = vmatprep.subr.mxu0 0.0
    %2042 = vmatpush1.msra.mxu0 0.0
    %2043 = vmatprep.subr.mxu0 0.0
    %2044 = vmatpush1.msra.mxu0 0.0
    %2045 = vmatprep.subr.mxu0 0.0
    %2046 = vmatpush1.msra.mxu0 0.0
    %2047 = vmatprep.subr.mxu0 0.0
    %2048 = vmatpush1.msra.mxu0 0.0
    %2049 = vmatprep.subr.mxu0 0.0
    %2050 = vmatpush1.msra.mxu0 0.0
    %2051 = vmatprep.mubr.f32.mxu0 0.0
    %v2052 = vand.u32 %v123, 4294901760
    %v2053 = vsub.f32 %v123, %v2052
    %v2054 = vand.u32 %v2053, 4294901760
    %v2055 = vsub.f32 %v2053, %v2054
    %v2056 = vand.u32 %v2055, 4294901760
    %2057 = vmatmul.mubr.f32.gmra.mrb[0].mxu0 %v2056
    %v2058 = vpop.f32.mrb[0].mxu0
    %v2059 = vadd.f32 %v120, %v2058
    %v2060 = vpop.f32.mrb[0].mxu0
    %v2061 = vadd.f32 %v120, %v2060
    %2062 = vdwg.mxu0
    %v2063 = vand.u32 %v110, 4294901760
    %v2064 = vsub.f32 %v110, %v2063
    %v2065 = vand.u32 %v2064, 4294901760
    %v2066 = vsub.f32 %v2064, %v2065
    %v2067 = vand.u32 %v2066, 4294901760
    %2068 = vmatprep.subr.mxu0 %v2067
    %v2069 = vand.u32 %v109, 4294901760
    %v2070 = vsub.f32 %v109, %v2069
    %v2071 = vand.u32 %v2070, 4294901760
    %v2072 = vsub.f32 %v2070, %v2071
    %v2073 = vand.u32 %v2072, 4294901760
    %2074 = vmatpush1.msra.mxu0 %v2073
    %2075 = vmatprep.subr.mxu0 0.0
    %2076 = vmatpush1.msra.mxu0 0.0
    %2077 = vmatprep.subr.mxu0 0.0
    %2078 = vmatpush1.msra.mxu0 0.0
    %2079 = vmatprep.subr.mxu0 0.0
    %2080 = vmatpush1.msra.mxu0 0.0
    %2081 = vmatprep.subr.mxu0 0.0
    %2082 = vmatpush1.msra.mxu0 0.0
    %2083 = vmatprep.subr.mxu0 0.0
    %2084 = vmatpush1.msra.mxu0 0.0
    %2085 = vmatprep.subr.mxu0 0.0
    %2086 = vmatpush1.msra.mxu0 0.0
    %2087 = vmatprep.subr.mxu0 0.0
    %2088 = vmatpush1.msra.mxu0 0.0
    %2089 = vmatprep.subr.mxu0 0.0
    %2090 = vmatpush1.msra.mxu0 0.0
    %2091 = vmatprep.subr.mxu0 0.0
    %2092 = vmatpush1.msra.mxu0 0.0
    %2093 = vmatprep.subr.mxu0 0.0
    %2094 = vmatpush1.msra.mxu0 0.0
    %2095 = vmatprep.subr.mxu0 0.0
    %2096 = vmatpush1.msra.mxu0 0.0
    %2097 = vmatprep.subr.mxu0 0.0
    %2098 = vmatpush1.msra.mxu0 0.0
    %2099 = vmatprep.subr.mxu0 0.0
    %2100 = vmatpush1.msra.mxu0 0.0
    %2101 = vmatprep.subr.mxu0 0.0
    %2102 = vmatpush1.msra.mxu0 0.0
    %2103 = vmatprep.subr.mxu0 0.0
    %2104 = vmatpush1.msra.mxu0 0.0
    %2105 = vmatprep.subr.mxu0 0.0
    %2106 = vmatpush1.msra.mxu0 0.0
    %2107 = vmatprep.subr.mxu0 0.0
    %2108 = vmatpush1.msra.mxu0 0.0
    %2109 = vmatprep.subr.mxu0 0.0
    %2110 = vmatpush1.msra.mxu0 0.0
    %2111 = vmatprep.subr.mxu0 0.0
    %2112 = vmatpush1.msra.mxu0 0.0
    %2113 = vmatprep.subr.mxu0 0.0
    %2114 = vmatpush1.msra.mxu0 0.0
    %2115 = vmatprep.subr.mxu0 0.0
    %2116 = vmatpush1.msra.mxu0 0.0
    %2117 = vmatprep.subr.mxu0 0.0
    %2118 = vmatpush1.msra.mxu0 0.0
    %2119 = vmatprep.subr.mxu0 0.0
    %2120 = vmatpush1.msra.mxu0 0.0
    %2121 = vmatprep.subr.mxu0 0.0
    %2122 = vmatpush1.msra.mxu0 0.0
    %2123 = vmatprep.subr.mxu0 0.0
    %2124 = vmatpush1.msra.mxu0 0.0
    %2125 = vmatprep.subr.mxu0 0.0
    %2126 = vmatpush1.msra.mxu0 0.0
    %2127 = vmatprep.subr.mxu0 0.0
    %2128 = vmatpush1.msra.mxu0 0.0
    %2129 = vmatprep.subr.mxu0 0.0
    %2130 = vmatpush1.msra.mxu0 0.0
    %2131 = vmatprep.subr.mxu0 0.0
    %2132 = vmatpush1.msra.mxu0 0.0
    %2133 = vmatprep.subr.mxu0 0.0
    %2134 = vmatpush1.msra.mxu0 0.0
    %2135 = vmatprep.subr.mxu0 0.0
    %2136 = vmatpush1.msra.mxu0 0.0
    %2137 = vmatprep.mubr.f32.mxu0 0.0
    %v2138 = vand.u32 %v123, 4294901760
    %2139 = vmatmul.mubr.f32.gmra.mrb[0].mxu0 %v2138
    %v2140 = vpop.f32.mrb[0].mxu0
    %v2141 = vadd.f32 %v2059, %v2140
    %v2142 = vpop.f32.mrb[0].mxu0
    %v2143 = vadd.f32 %v2061, %v2142
    %2144 = vdwg.mxu0
    %v2145 = vand.u32 %v110, 4294901760
    %v2146 = vsub.f32 %v110, %v2145
    %2147 = vmatprep.subr.mxu0 %v2146
    %v2148 = vand.u32 %v109, 4294901760
    %v2149 = vsub.f32 %v109, %v2148
    %2150 = vmatpush1.msra.mxu0 %v2149
    %2151 = vmatprep.subr.mxu0 0.0
    %2152 = vmatpush1.msra.mxu0 0.0
    %2153 = vmatprep.subr.mxu0 0.0
    %2154 = vmatpush1.msra.mxu0 0.0
    %2155 = vmatprep.subr.mxu0 0.0
    %2156 = vmatpush1.msra.mxu0 0.0
    %2157 = vmatprep.subr.mxu0 0.0
    %2158 = vmatpush1.msra.mxu0 0.0
    %2159 = vmatprep.subr.mxu0 0.0
    %2160 = vmatpush1.msra.mxu0 0.0
    %2161 = vmatprep.subr.mxu0 0.0
    %2162 = vmatpush1.msra.mxu0 0.0
    %2163 = vmatprep.subr.mxu0 0.0
    %2164 = vmatpush1.msra.mxu0 0.0
    %2165 = vmatprep.subr.mxu0 0.0
    %2166 = vmatpush1.msra.mxu0 0.0
    %2167 = vmatprep.subr.mxu0 0.0
    %2168 = vmatpush1.msra.mxu0 0.0
    %2169 = vmatprep.subr.mxu0 0.0
    %2170 = vmatpush1.msra.mxu0 0.0
    %2171 = vmatprep.subr.mxu0 0.0
    %2172 = vmatpush1.msra.mxu0 0.0
    %2173 = vmatprep.subr.mxu0 0.0
    %2174 = vmatpush1.msra.mxu0 0.0
    %2175 = vmatprep.subr.mxu0 0.0
    %2176 = vmatpush1.msra.mxu0 0.0
    %2177 = vmatprep.subr.mxu0 0.0
    %2178 = vmatpush1.msra.mxu0 0.0
    %2179 = vmatprep.subr.mxu0 0.0
    %2180 = vmatpush1.msra.mxu0 0.0
    %2181 = vmatprep.subr.mxu0 0.0
    %2182 = vmatpush1.msra.mxu0 0.0
    %2183 = vmatprep.subr.mxu0 0.0
    %2184 = vmatpush1.msra.mxu0 0.0
    %2185 = vmatprep.subr.mxu0 0.0
    %2186 = vmatpush1.msra.mxu0 0.0
    %2187 = vmatprep.subr.mxu0 0.0
    %2188 = vmatpush1.msra.mxu0 0.0
    %2189 = vmatprep.subr.mxu0 0.0
    %2190 = vmatpush1.msra.mxu0 0.0
    %2191 = vmatprep.subr.mxu0 0.0
    %2192 = vmatpush1.msra.mxu0 0.0
    %2193 = vmatprep.subr.mxu0 0.0
    %2194 = vmatpush1.msra.mxu0 0.0
    %2195 = vmatprep.subr.mxu0 0.0
    %2196 = vmatpush1.msra.mxu0 0.0
    %2197 = vmatprep.subr.mxu0 0.0
    %2198 = vmatpush1.msra.mxu0 0.0
    %2199 = vmatprep.subr.mxu0 0.0
    %2200 = vmatpush1.msra.mxu0 0.0
    %2201 = vmatprep.subr.mxu0 0.0
    %2202 = vmatpush1.msra.mxu0 0.0
    %2203 = vmatprep.subr.mxu0 0.0
    %2204 = vmatpush1.msra.mxu0 0.0
    %2205 = vmatprep.subr.mxu0 0.0
    %2206 = vmatpush1.msra.mxu0 0.0
    %2207 = vmatprep.subr.mxu0 0.0
    %2208 = vmatpush1.msra.mxu0 0.0
    %2209 = vmatprep.subr.mxu0 0.0
    %2210 = vmatpush1.msra.mxu0 0.0
    %2211 = vmatprep.subr.mxu0 0.0
    %2212 = vmatpush1.msra.mxu0 0.0
    %2213 = vmatprep.mubr.f32.mxu0 0.0
    %v2214 = vand.u32 %v123, 4294901760
    %v2215 = vsub.f32 %v123, %v2214
    %2216 = vmatmul.mubr.f32.gmra.mrb[0].mxu0 %v2215
    %v2217 = vpop.f32.mrb[0].mxu0
    %v2218 = vadd.f32 %v2141, %v2217
    %v2219 = vpop.f32.mrb[0].mxu0
    %v2220 = vadd.f32 %v2143, %v2219
    %2221 = vdwg.mxu0
    %v2222 = vand.u32 %v110, 4294901760
    %2223 = vmatprep.subr.mxu0 %v2222
    %v2224 = vand.u32 %v109, 4294901760
    %2225 = vmatpush1.msra.mxu0 %v2224
    %2226 = vmatprep.subr.mxu0 0.0
    %2227 = vmatpush1.msra.mxu0 0.0
    %2228 = vmatprep.subr.mxu0 0.0
    %2229 = vmatpush1.msra.mxu0 0.0
    %2230 = vmatprep.subr.mxu0 0.0
    %2231 = vmatpush1.msra.mxu0 0.0
    %2232 = vmatprep.subr.mxu0 0.0
    %2233 = vmatpush1.msra.mxu0 0.0
    %2234 = vmatprep.subr.mxu0 0.0
    %2235 = vmatpush1.msra.mxu0 0.0
    %2236 = vmatprep.subr.mxu0 0.0
    %2237 = vmatpush1.msra.mxu0 0.0
    %2238 = vmatprep.subr.mxu0 0.0
    %2239 = vmatpush1.msra.mxu0 0.0
    %2240 = vmatprep.subr.mxu0 0.0
    %2241 = vmatpush1.msra.mxu0 0.0
    %2242 = vmatprep.subr.mxu0 0.0
    %2243 = vmatpush1.msra.mxu0 0.0
    %2244 = vmatprep.subr.mxu0 0.0
    %2245 = vmatpush1.msra.mxu0 0.0
    %2246 = vmatprep.subr.mxu0 0.0
    %2247 = vmatpush1.msra.mxu0 0.0
    %2248 = vmatprep.subr.mxu0 0.0
    %2249 = vmatpush1.msra.mxu0 0.0
    %2250 = vmatprep.subr.mxu0 0.0
    %2251 = vmatpush1.msra.mxu0 0.0
    %2252 = vmatprep.subr.mxu0 0.0
    %2253 = vmatpush1.msra.mxu0 0.0
    %2254 = vmatprep.subr.mxu0 0.0
    %2255 = vmatpush1.msra.mxu0 0.0
    %2256 = vmatprep.subr.mxu0 0.0
    %2257 = vmatpush1.msra.mxu0 0.0
    %2258 = vmatprep.subr.mxu0 0.0
    %2259 = vmatpush1.msra.mxu0 0.0
    %2260 = vmatprep.subr.mxu0 0.0
    %2261 = vmatpush1.msra.mxu0 0.0
    %2262 = vmatprep.subr.mxu0 0.0
    %2263 = vmatpush1.msra.mxu0 0.0
    %2264 = vmatprep.subr.mxu0 0.0
    %2265 = vmatpush1.msra.mxu0 0.0
    %2266 = vmatprep.subr.mxu0 0.0
    %2267 = vmatpush1.msra.mxu0 0.0
    %2268 = vmatprep.subr.mxu0 0.0
    %2269 = vmatpush1.msra.mxu0 0.0
    %2270 = vmatprep.subr.mxu0 0.0
    %2271 = vmatpush1.msra.mxu0 0.0
    %2272 = vmatprep.subr.mxu0 0.0
    %2273 = vmatpush1.msra.mxu0 0.0
    %2274 = vmatprep.subr.mxu0 0.0
    %2275 = vmatpush1.msra.mxu0 0.0
    %2276 = vmatprep.subr.mxu0 0.0
    %2277 = vmatpush1.msra.mxu0 0.0
    %2278 = vmatprep.subr.mxu0 0.0
    %2279 = vmatpush1.msra.mxu0 0.0
    %2280 = vmatprep.subr.mxu0 0.0
    %2281 = vmatpush1.msra.mxu0 0.0
    %2282 = vmatprep.subr.mxu0 0.0
    %2283 = vmatpush1.msra.mxu0 0.0
    %2284 = vmatprep.subr.mxu0 0.0
    %2285 = vmatpush1.msra.mxu0 0.0
    %2286 = vmatprep.subr.mxu0 0.0
    %2287 = vmatpush1.msra.mxu0 0.0
    %2288 = vmatprep.mubr.f32.mxu0 0.0
    %v2289 = vand.u32 %v123, 4294901760
    %v2290 = vsub.f32 %v123, %v2289
    %v2291 = vand.u32 %v2290, 4294901760
    %2292 = vmatmul.mubr.f32.gmra.mrb[0].mxu0 %v2291
    %v2293 = vpop.f32.mrb[0].mxu0
    %v2294 = vadd.f32 %v2218, %v2293
    %v2295 = vpop.f32.mrb[0].mxu0
    %v2296 = vadd.f32 %v2220, %v2295
    %2297 = vdwg.mxu0
    %v2298 = vand.u32 %v110, 4294901760
    %v2299 = vsub.f32 %v110, %v2298
    %v2300 = vand.u32 %v2299, 4294901760
    %2301 = vmatprep.subr.mxu0 %v2300
    %v2302 = vand.u32 %v109, 4294901760
    %v2303 = vsub.f32 %v109, %v2302
    %v2304 = vand.u32 %v2303, 4294901760
    %2305 = vmatpush1.msra.mxu0 %v2304
    %2306 = vmatprep.subr.mxu0 0.0
    %2307 = vmatpush1.msra.mxu0 0.0
    %2308 = vmatprep.subr.mxu0 0.0
    %2309 = vmatpush1.msra.mxu0 0.0
    %2310 = vmatprep.subr.mxu0 0.0
    %2311 = vmatpush1.msra.mxu0 0.0
    %2312 = vmatprep.subr.mxu0 0.0
    %2313 = vmatpush1.msra.mxu0 0.0
    %2314 = vmatprep.subr.mxu0 0.0
    %2315 = vmatpush1.msra.mxu0 0.0
    %2316 = vmatprep.subr.mxu0 0.0
    %2317 = vmatpush1.msra.mxu0 0.0
    %2318 = vmatprep.subr.mxu0 0.0
    %2319 = vmatpush1.msra.mxu0 0.0
    %2320 = vmatprep.subr.mxu0 0.0
    %2321 = vmatpush1.msra.mxu0 0.0
    %2322 = vmatprep.subr.mxu0 0.0
    %2323 = vmatpush1.msra.mxu0 0.0
    %2324 = vmatprep.subr.mxu0 0.0
    %2325 = vmatpush1.msra.mxu0 0.0
    %2326 = vmatprep.subr.mxu0 0.0
    %2327 = vmatpush1.msra.mxu0 0.0
    %2328 = vmatprep.subr.mxu0 0.0
    %2329 = vmatpush1.msra.mxu0 0.0
    %2330 = vmatprep.subr.mxu0 0.0
    %2331 = vmatpush1.msra.mxu0 0.0
    %2332 = vmatprep.subr.mxu0 0.0
    %2333 = vmatpush1.msra.mxu0 0.0
    %2334 = vmatprep.subr.mxu0 0.0
    %2335 = vmatpush1.msra.mxu0 0.0
    %2336 = vmatprep.subr.mxu0 0.0
    %2337 = vmatpush1.msra.mxu0 0.0
    %2338 = vmatprep.subr.mxu0 0.0
    %2339 = vmatpush1.msra.mxu0 0.0
    %2340 = vmatprep.subr.mxu0 0.0
    %2341 = vmatpush1.msra.mxu0 0.0
    %2342 = vmatprep.subr.mxu0 0.0
    %2343 = vmatpush1.msra.mxu0 0.0
    %2344 = vmatprep.subr.mxu0 0.0
    %2345 = vmatpush1.msra.mxu0 0.0
    %2346 = vmatprep.subr.mxu0 0.0
    %2347 = vmatpush1.msra.mxu0 0.0
    %2348 = vmatprep.subr.mxu0 0.0
    %2349 = vmatpush1.msra.mxu0 0.0
    %2350 = vmatprep.subr.mxu0 0.0
    %2351 = vmatpush1.msra.mxu0 0.0
    %2352 = vmatprep.subr.mxu0 0.0
    %2353 = vmatpush1.msra.mxu0 0.0
    %2354 = vmatprep.subr.mxu0 0.0
    %2355 = vmatpush1.msra.mxu0 0.0
    %2356 = vmatprep.subr.mxu0 0.0
    %2357 = vmatpush1.msra.mxu0 0.0
    %2358 = vmatprep.subr.mxu0 0.0
    %2359 = vmatpush1.msra.mxu0 0.0
    %2360 = vmatprep.subr.mxu0 0.0
    %2361 = vmatpush1.msra.mxu0 0.0
    %2362 = vmatprep.subr.mxu0 0.0
    %2363 = vmatpush1.msra.mxu0 0.0
    %2364 = vmatprep.subr.mxu0 0.0
    %2365 = vmatpush1.msra.mxu0 0.0
    %2366 = vmatprep.subr.mxu0 0.0
    %2367 = vmatpush1.msra.mxu0 0.0
    %2368 = vmatprep.mubr.f32.mxu0 0.0
    %v2369 = vand.u32 %v123, 4294901760
    %2370 = vmatmul.mubr.f32.gmra.mrb[0].mxu0 %v2369
    %v2371 = vpop.f32.mrb[0].mxu0
    %v2372 = vadd.f32 %v2294, %v2371
    %v2373 = vpop.f32.mrb[0].mxu0
    %v2374 = vadd.f32 %v2296, %v2373
    %2375 = vdwg.mxu0
    %v2376 = vand.u32 %v110, 4294901760
    %2377 = vmatprep.subr.mxu0 %v2376
    %v2378 = vand.u32 %v109, 4294901760
    %2379 = vmatpush1.msra.mxu0 %v2378
    %2380 = vmatprep.subr.mxu0 0.0
    %2381 = vmatpush1.msra.mxu0 0.0
    %2382 = vmatprep.subr.mxu0 0.0
    %2383 = vmatpush1.msra.mxu0 0.0
    %2384 = vmatprep.subr.mxu0 0.0
    %2385 = vmatpush1.msra.mxu0 0.0
    %2386 = vmatprep.subr.mxu0 0.0
    %2387 = vmatpush1.msra.mxu0 0.0
    %2388 = vmatprep.subr.mxu0 0.0
    %2389 = vmatpush1.msra.mxu0 0.0
    %2390 = vmatprep.subr.mxu0 0.0
    %2391 = vmatpush1.msra.mxu0 0.0
    %2392 = vmatprep.subr.mxu0 0.0
    %2393 = vmatpush1.msra.mxu0 0.0
    %2394 = vmatprep.subr.mxu0 0.0
    %2395 = vmatpush1.msra.mxu0 0.0
    %2396 = vmatprep.subr.mxu0 0.0
    %2397 = vmatpush1.msra.mxu0 0.0
    %2398 = vmatprep.subr.mxu0 0.0
    %2399 = vmatpush1.msra.mxu0 0.0
    %2400 = vmatprep.subr.mxu0 0.0
    %2401 = vmatpush1.msra.mxu0 0.0
    %2402 = vmatprep.subr.mxu0 0.0
    %2403 = vmatpush1.msra.mxu0 0.0
    %2404 = vmatprep.subr.mxu0 0.0
    %2405 = vmatpush1.msra.mxu0 0.0
    %2406 = vmatprep.subr.mxu0 0.0
    %2407 = vmatpush1.msra.mxu0 0.0
    %2408 = vmatprep.subr.mxu0 0.0
    %2409 = vmatpush1.msra.mxu0 0.0
    %2410 = vmatprep.subr.mxu0 0.0
    %2411 = vmatpush1.msra.mxu0 0.0
    %2412 = vmatprep.subr.mxu0 0.0
    %2413 = vmatpush1.msra.mxu0 0.0
    %2414 = vmatprep.subr.mxu0 0.0
    %2415 = vmatpush1.msra.mxu0 0.0
    %2416 = vmatprep.subr.mxu0 0.0
    %2417 = vmatpush1.msra.mxu0 0.0
    %2418 = vmatprep.subr.mxu0 0.0
    %2419 = vmatpush1.msra.mxu0 0.0
    %2420 = vmatprep.subr.mxu0 0.0
    %2421 = vmatpush1.msra.mxu0 0.0
    %2422 = vmatprep.subr.mxu0 0.0
    %2423 = vmatpush1.msra.mxu0 0.0
    %2424 = vmatprep.subr.mxu0 0.0
    %2425 = vmatpush1.msra.mxu0 0.0
    %2426 = vmatprep.subr.mxu0 0.0
    %2427 = vmatpush1.msra.mxu0 0.0
    %2428 = vmatprep.subr.mxu0 0.0
    %2429 = vmatpush1.msra.mxu0 0.0
    %2430 = vmatprep.subr.mxu0 0.0
    %2431 = vmatpush1.msra.mxu0 0.0
    %2432 = vmatprep.subr.mxu0 0.0
    %2433 = vmatpush1.msra.mxu0 0.0
    %2434 = vmatprep.subr.mxu0 0.0
    %2435 = vmatpush1.msra.mxu0 0.0
    %2436 = vmatprep.subr.mxu0 0.0
    %2437 = vmatpush1.msra.mxu0 0.0
    %2438 = vmatprep.subr.mxu0 0.0
    %2439 = vmatpush1.msra.mxu0 0.0
    %2440 = vmatprep.subr.mxu0 0.0
    %2441 = vmatpush1.msra.mxu0 0.0
    %2442 = vmatprep.mubr.f32.mxu0 0.0
    %v2443 = vand.u32 %v123, 4294901760
    %2444 = vmatmul.mubr.f32.gmra.mrb[0].mxu0 %v2443
    %v2445 = vpop.f32.mrb[0].mxu0
    %v2446 = vadd.f32 %v2372, %v2445
    %v2447 = vpop.f32.mrb[0].mxu0
    %v2448 = vadd.f32 %v2374, %v2447
    %2449 = vdwg.mxu0
    %v2450 = vand.u32 %v112, 4294901760
    %2451 = vmatprep.subr.mxu0 %v2450
    %v2452 = vand.u32 %v111, 4294901760
    %2453 = vmatpush1.msra.mxu0 %v2452
    %2454 = vmatprep.subr.mxu0 0.0
    %2455 = vmatpush1.msra.mxu0 0.0
    %2456 = vmatprep.subr.mxu0 0.0
    %2457 = vmatpush1.msra.mxu0 0.0
    %2458 = vmatprep.subr.mxu0 0.0
    %2459 = vmatpush1.msra.mxu0 0.0
    %2460 = vmatprep.subr.mxu0 0.0
    %2461 = vmatpush1.msra.mxu0 0.0
    %2462 = vmatprep.subr.mxu0 0.0
    %2463 = vmatpush1.msra.mxu0 0.0
    %2464 = vmatprep.subr.mxu0 0.0
    %2465 = vmatpush1.msra.mxu0 0.0
    %2466 = vmatprep.subr.mxu0 0.0
    %2467 = vmatpush1.msra.mxu0 0.0
    %2468 = vmatprep.subr.mxu0 0.0
    %2469 = vmatpush1.msra.mxu0 0.0
    %2470 = vmatprep.subr.mxu0 0.0
    %2471 = vmatpush1.msra.mxu0 0.0
    %2472 = vmatprep.subr.mxu0 0.0
    %2473 = vmatpush1.msra.mxu0 0.0
    %2474 = vmatprep.subr.mxu0 0.0
    %2475 = vmatpush1.msra.mxu0 0.0
    %2476 = vmatprep.subr.mxu0 0.0
    %2477 = vmatpush1.msra.mxu0 0.0
    %2478 = vmatprep.subr.mxu0 0.0
    %2479 = vmatpush1.msra.mxu0 0.0
    %2480 = vmatprep.subr.mxu0 0.0
    %2481 = vmatpush1.msra.mxu0 0.0
    %2482 = vmatprep.subr.mxu0 0.0
    %2483 = vmatpush1.msra.mxu0 0.0
    %2484 = vmatprep.subr.mxu0 0.0
    %2485 = vmatpush1.msra.mxu0 0.0
    %2486 = vmatprep.subr.mxu0 0.0
    %2487 = vmatpush1.msra.mxu0 0.0
    %2488 = vmatprep.subr.mxu0 0.0
    %2489 = vmatpush1.msra.mxu0 0.0
    %2490 = vmatprep.subr.mxu0 0.0
    %2491 = vmatpush1.msra.mxu0 0.0
    %2492 = vmatprep.subr.mxu0 0.0
    %2493 = vmatpush1.msra.mxu0 0.0
    %2494 = vmatprep.subr.mxu0 0.0
    %2495 = vmatpush1.msra.mxu0 0.0
    %2496 = vmatprep.subr.mxu0 0.0
    %2497 = vmatpush1.msra.mxu0 0.0
    %2498 = vmatprep.subr.mxu0 0.0
    %2499 = vmatpush1.msra.mxu0 0.0
    %2500 = vmatprep.subr.mxu0 0.0
    %2501 = vmatpush1.msra.mxu0 0.0
    %2502 = vmatprep.subr.mxu0 0.0
    %2503 = vmatpush1.msra.mxu0 0.0
    %2504 = vmatprep.subr.mxu0 0.0
    %2505 = vmatpush1.msra.mxu0 0.0
    %2506 = vmatprep.subr.mxu0 0.0
    %2507 = vmatpush1.msra.mxu0 0.0
    %2508 = vmatprep.subr.mxu0 0.0
    %2509 = vmatpush1.msra.mxu0 0.0
    %2510 = vmatprep.subr.mxu0 0.0
    %2511 = vmatpush1.msra.mxu0 0.0
    %2512 = vmatprep.subr.mxu0 0.0
    %2513 = vmatpush1.msra.mxu0 0.0
    %2514 = vmatprep.subr.mxu0 0.0
    %2515 = vmatpush1.msra.mxu0 0.0
    %2516 = vmatprep.mubr.f32.mxu0 0.0
    %v2517 = vand.u32 %v123, 4294901760
    %v2518 = vsub.f32 %v123, %v2517
    %v2519 = vand.u32 %v2518, 4294901760
    %v2520 = vsub.f32 %v2518, %v2519
    %v2521 = vand.u32 %v2520, 4294901760
    %2522 = vmatmul.mubr.f32.gmra.mrb[0].mxu0 %v2521
    %v2523 = vpop.f32.mrb[0].mxu0
    %v2524 = vadd.f32 %v120, %v2523
    %v2525 = vpop.f32.mrb[0].mxu0
    %v2526 = vadd.f32 %v120, %v2525
    %2527 = vdwg.mxu0
    %v2528 = vand.u32 %v112, 4294901760
    %v2529 = vsub.f32 %v112, %v2528
    %v2530 = vand.u32 %v2529, 4294901760
    %v2531 = vsub.f32 %v2529, %v2530
    %v2532 = vand.u32 %v2531, 4294901760
    %2533 = vmatprep.subr.mxu0 %v2532
    %v2534 = vand.u32 %v111, 4294901760
    %v2535 = vsub.f32 %v111, %v2534
    %v2536 = vand.u32 %v2535, 4294901760
    %v2537 = vsub.f32 %v2535, %v2536
    %v2538 = vand.u32 %v2537, 4294901760
    %2539 = vmatpush1.msra.mxu0 %v2538
    %2540 = vmatprep.subr.mxu0 0.0
    %2541 = vmatpush1.msra.mxu0 0.0
    %2542 = vmatprep.subr.mxu0 0.0
    %2543 = vmatpush1.msra.mxu0 0.0
    %2544 = vmatprep.subr.mxu0 0.0
    %2545 = vmatpush1.msra.mxu0 0.0
    %2546 = vmatprep.subr.mxu0 0.0
    %2547 = vmatpush1.msra.mxu0 0.0
    %2548 = vmatprep.subr.mxu0 0.0
    %2549 = vmatpush1.msra.mxu0 0.0
    %2550 = vmatprep.subr.mxu0 0.0
    %2551 = vmatpush1.msra.mxu0 0.0
    %2552 = vmatprep.subr.mxu0 0.0
    %2553 = vmatpush1.msra.mxu0 0.0
    %2554 = vmatprep.subr.mxu0 0.0
    %2555 = vmatpush1.msra.mxu0 0.0
    %2556 = vmatprep.subr.mxu0 0.0
    %2557 = vmatpush1.msra.mxu0 0.0
    %2558 = vmatprep.subr.mxu0 0.0
    %2559 = vmatpush1.msra.mxu0 0.0
    %2560 = vmatprep.subr.mxu0 0.0
    %2561 = vmatpush1.msra.mxu0 0.0
    %2562 = vmatprep.subr.mxu0 0.0
    %2563 = vmatpush1.msra.mxu0 0.0
    %2564 = vmatprep.subr.mxu0 0.0
    %2565 = vmatpush1.msra.mxu0 0.0
    %2566 = vmatprep.subr.mxu0 0.0
    %2567 = vmatpush1.msra.mxu0 0.0
    %2568 = vmatprep.subr.mxu0 0.0
    %2569 = vmatpush1.msra.mxu0 0.0
    %2570 = vmatprep.subr.mxu0 0.0
    %2571 = vmatpush1.msra.mxu0 0.0
    %2572 = vmatprep.subr.mxu0 0.0
    %2573 = vmatpush1.msra.mxu0 0.0
    %2574 = vmatprep.subr.mxu0 0.0
    %2575 = vmatpush1.msra.mxu0 0.0
    %2576 = vmatprep.subr.mxu0 0.0
    %2577 = vmatpush1.msra.mxu0 0.0
    %2578 = vmatprep.subr.mxu0 0.0
    %2579 = vmatpush1.msra.mxu0 0.0
    %2580 = vmatprep.subr.mxu0 0.0
    %2581 = vmatpush1.msra.mxu0 0.0
    %2582 = vmatprep.subr.mxu0 0.0
    %2583 = vmatpush1.msra.mxu0 0.0
    %2584 = vmatprep.subr.mxu0 0.0
    %2585 = vmatpush1.msra.mxu0 0.0
    %2586 = vmatprep.subr.mxu0 0.0
    %2587 = vmatpush1.msra.mxu0 0.0
    %2588 = vmatprep.subr.mxu0 0.0
    %2589 = vmatpush1.msra.mxu0 0.0
    %2590 = vmatprep.subr.mxu0 0.0
    %2591 = vmatpush1.msra.mxu0 0.0
    %2592 = vmatprep.subr.mxu0 0.0
    %2593 = vmatpush1.msra.mxu0 0.0
    %2594 = vmatprep.subr.mxu0 0.0
    %2595 = vmatpush1.msra.mxu0 0.0
    %2596 = vmatprep.subr.mxu0 0.0
    %2597 = vmatpush1.msra.mxu0 0.0
    %2598 = vmatprep.subr.mxu0 0.0
    %2599 = vmatpush1.msra.mxu0 0.0
    %2600 = vmatprep.subr.mxu0 0.0
    %2601 = vmatpush1.msra.mxu0 0.0
    %2602 = vmatprep.mubr.f32.mxu0 0.0
    %v2603 = vand.u32 %v123, 4294901760
    %2604 = vmatmul.mubr.f32.gmra.mrb[0].mxu0 %v2603
    %v2605 = vpop.f32.mrb[0].mxu0
    %v2606 = vadd.f32 %v2524, %v2605
    %v2607 = vpop.f32.mrb[0].mxu0
    %v2608 = vadd.f32 %v2526, %v2607
    %2609 = vdwg.mxu0
    %v2610 = vand.u32 %v112, 4294901760
    %v2611 = vsub.f32 %v112, %v2610
    %2612 = vmatprep.subr.mxu0 %v2611
    %v2613 = vand.u32 %v111, 4294901760
    %v2614 = vsub.f32 %v111, %v2613
    %2615 = vmatpush1.msra.mxu0 %v2614
    %2616 = vmatprep.subr.mxu0 0.0
    %2617 = vmatpush1.msra.mxu0 0.0
    %2618 = vmatprep.subr.mxu0 0.0
    %2619 = vmatpush1.msra.mxu0 0.0
    %2620 = vmatprep.subr.mxu0 0.0
    %2621 = vmatpush1.msra.mxu0 0.0
    %2622 = vmatprep.subr.mxu0 0.0
    %2623 = vmatpush1.msra.mxu0 0.0
    %2624 = vmatprep.subr.mxu0 0.0
    %2625 = vmatpush1.msra.mxu0 0.0
    %2626 = vmatprep.subr.mxu0 0.0
    %2627 = vmatpush1.msra.mxu0 0.0
    %2628 = vmatprep.subr.mxu0 0.0
    %2629 = vmatpush1.msra.mxu0 0.0
    %2630 = vmatprep.subr.mxu0 0.0
    %2631 = vmatpush1.msra.mxu0 0.0
    %2632 = vmatprep.subr.mxu0 0.0
    %2633 = vmatpush1.msra.mxu0 0.0
    %2634 = vmatprep.subr.mxu0 0.0
    %2635 = vmatpush1.msra.mxu0 0.0
    %2636 = vmatprep.subr.mxu0 0.0
    %2637 = vmatpush1.msra.mxu0 0.0
    %2638 = vmatprep.subr.mxu0 0.0
    %2639 = vmatpush1.msra.mxu0 0.0
    %2640 = vmatprep.subr.mxu0 0.0
    %2641 = vmatpush1.msra.mxu0 0.0
    %2642 = vmatprep.subr.mxu0 0.0
    %2643 = vmatpush1.msra.mxu0 0.0
    %2644 = vmatprep.subr.mxu0 0.0
    %2645 = vmatpush1.msra.mxu0 0.0
    %2646 = vmatprep.subr.mxu0 0.0
    %2647 = vmatpush1.msra.mxu0 0.0
    %2648 = vmatprep.subr.mxu0 0.0
    %2649 = vmatpush1.msra.mxu0 0.0
    %2650 = vmatprep.subr.mxu0 0.0
    %2651 = vmatpush1.msra.mxu0 0.0
    %2652 = vmatprep.subr.mxu0 0.0
    %2653 = vmatpush1.msra.mxu0 0.0
    %2654 = vmatprep.subr.mxu0 0.0
    %2655 = vmatpush1.msra.mxu0 0.0
    %2656 = vmatprep.subr.mxu0 0.0
    %2657 = vmatpush1.msra.mxu0 0.0
    %2658 = vmatprep.subr.mxu0 0.0
    %2659 = vmatpush1.msra.mxu0 0.0
    %2660 = vmatprep.subr.mxu0 0.0
    %2661 = vmatpush1.msra.mxu0 0.0
    %2662 = vmatprep.subr.mxu0 0.0
    %2663 = vmatpush1.msra.mxu0 0.0
    %2664 = vmatprep.subr.mxu0 0.0
    %2665 = vmatpush1.msra.mxu0 0.0
    %2666 = vmatprep.subr.mxu0 0.0
    %2667 = vmatpush1.msra.mxu0 0.0
    %2668 = vmatprep.subr.mxu0 0.0
    %2669 = vmatpush1.msra.mxu0 0.0
    %2670 = vmatprep.subr.mxu0 0.0
    %2671 = vmatpush1.msra.mxu0 0.0
    %2672 = vmatprep.subr.mxu0 0.0
    %2673 = vmatpush1.msra.mxu0 0.0
    %2674 = vmatprep.subr.mxu0 0.0
    %2675 = vmatpush1.msra.mxu0 0.0
    %2676 = vmatprep.subr.mxu0 0.0
    %2677 = vmatpush1.msra.mxu0 0.0
    %2678 = vmatprep.mubr.f32.mxu0 0.0
    %v2679 = vand.u32 %v123, 4294901760
    %v2680 = vsub.f32 %v123, %v2679
    %2681 = vmatmul.mubr.f32.gmra.mrb[0].mxu0 %v2680
    %v2682 = vpop.f32.mrb[0].mxu0
    %v2683 = vadd.f32 %v2606, %v2682
    %v2684 = vpop.f32.mrb[0].mxu0
    %v2685 = vadd.f32 %v2608, %v2684
    %2686 = vdwg.mxu0
    %v2687 = vand.u32 %v112, 4294901760
    %2688 = vmatprep.subr.mxu0 %v2687
    %v2689 = vand.u32 %v111, 4294901760
    %2690 = vmatpush1.msra.mxu0 %v2689
    %2691 = vmatprep.subr.mxu0 0.0
    %2692 = vmatpush1.msra.mxu0 0.0
    %2693 = vmatprep.subr.mxu0 0.0
    %2694 = vmatpush1.msra.mxu0 0.0
    %2695 = vmatprep.subr.mxu0 0.0
    %2696 = vmatpush1.msra.mxu0 0.0
    %2697 = vmatprep.subr.mxu0 0.0
    %2698 = vmatpush1.msra.mxu0 0.0
    %2699 = vmatprep.subr.mxu0 0.0
    %2700 = vmatpush1.msra.mxu0 0.0
    %2701 = vmatprep.subr.mxu0 0.0
    %2702 = vmatpush1.msra.mxu0 0.0
    %2703 = vmatprep.subr.mxu0 0.0
    %2704 = vmatpush1.msra.mxu0 0.0
    %2705 = vmatprep.subr.mxu0 0.0
    %2706 = vmatpush1.msra.mxu0 0.0
    %2707 = vmatprep.subr.mxu0 0.0
    %2708 = vmatpush1.msra.mxu0 0.0
    %2709 = vmatprep.subr.mxu0 0.0
    %2710 = vmatpush1.msra.mxu0 0.0
    %2711 = vmatprep.subr.mxu0 0.0
    %2712 = vmatpush1.msra.mxu0 0.0
    %2713 = vmatprep.subr.mxu0 0.0
    %2714 = vmatpush1.msra.mxu0 0.0
    %2715 = vmatprep.subr.mxu0 0.0
    %2716 = vmatpush1.msra.mxu0 0.0
    %2717 = vmatprep.subr.mxu0 0.0
    %2718 = vmatpush1.msra.mxu0 0.0
    %2719 = vmatprep.subr.mxu0 0.0
    %2720 = vmatpush1.msra.mxu0 0.0
    %2721 = vmatprep.subr.mxu0 0.0
    %2722 = vmatpush1.msra.mxu0 0.0
    %2723 = vmatprep.subr.mxu0 0.0
    %2724 = vmatpush1.msra.mxu0 0.0
    %2725 = vmatprep.subr.mxu0 0.0
    %2726 = vmatpush1.msra.mxu0 0.0
    %2727 = vmatprep.subr.mxu0 0.0
    %2728 = vmatpush1.msra.mxu0 0.0
    %2729 = vmatprep.subr.mxu0 0.0
    %2730 = vmatpush1.msra.mxu0 0.0
    %2731 = vmatprep.subr.mxu0 0.0
    %2732 = vmatpush1.msra.mxu0 0.0
    %2733 = vmatprep.subr.mxu0 0.0
    %2734 = vmatpush1.msra.mxu0 0.0
    %2735 = vmatprep.subr.mxu0 0.0
    %2736 = vmatpush1.msra.mxu0 0.0
    %2737 = vmatprep.subr.mxu0 0.0
    %2738 = vmatpush1.msra.mxu0 0.0
    %2739 = vmatprep.subr.mxu0 0.0
    %2740 = vmatpush1.msra.mxu0 0.0
    %2741 = vmatprep.subr.mxu0 0.0
    %2742 = vmatpush1.msra.mxu0 0.0
    %2743 = vmatprep.subr.mxu0 0.0
    %2744 = vmatpush1.msra.mxu0 0.0
    %2745 = vmatprep.subr.mxu0 0.0
    %2746 = vmatpush1.msra.mxu0 0.0
    %2747 = vmatprep.subr.mxu0 0.0
    %2748 = vmatpush1.msra.mxu0 0.0
    %2749 = vmatprep.subr.mxu0 0.0
    %2750 = vmatpush1.msra.mxu0 0.0
    %2751 = vmatprep.subr.mxu0 0.0
    %2752 = vmatpush1.msra.mxu0 0.0
    %2753 = vmatprep.mubr.f32.mxu0 0.0
    %v2754 = vand.u32 %v123, 4294901760
    %v2755 = vsub.f32 %v123, %v2754
    %v2756 = vand.u32 %v2755, 4294901760
    %2757 = vmatmul.mubr.f32.gmra.mrb[0].mxu0 %v2756
    %v2758 = vpop.f32.mrb[0].mxu0
    %v2759 = vadd.f32 %v2683, %v2758
    %v2760 = vpop.f32.mrb[0].mxu0
    %v2761 = vadd.f32 %v2685, %v2760
    %2762 = vdwg.mxu0
    %v2763 = vand.u32 %v112, 4294901760
    %v2764 = vsub.f32 %v112, %v2763
    %v2765 = vand.u32 %v2764, 4294901760
    %2766 = vmatprep.subr.mxu0 %v2765
    %v2767 = vand.u32 %v111, 4294901760
    %v2768 = vsub.f32 %v111, %v2767
    %v2769 = vand.u32 %v2768, 4294901760
    %2770 = vmatpush1.msra.mxu0 %v2769
    %2771 = vmatprep.subr.mxu0 0.0
    %2772 = vmatpush1.msra.mxu0 0.0
    %2773 = vmatprep.subr.mxu0 0.0
    %2774 = vmatpush1.msra.mxu0 0.0
    %2775 = vmatprep.subr.mxu0 0.0
    %2776 = vmatpush1.msra.mxu0 0.0
    %2777 = vmatprep.subr.mxu0 0.0
    %2778 = vmatpush1.msra.mxu0 0.0
    %2779 = vmatprep.subr.mxu0 0.0
    %2780 = vmatpush1.msra.mxu0 0.0
    %2781 = vmatprep.subr.mxu0 0.0
    %2782 = vmatpush1.msra.mxu0 0.0
    %2783 = vmatprep.subr.mxu0 0.0
    %2784 = vmatpush1.msra.mxu0 0.0
    %2785 = vmatprep.subr.mxu0 0.0
    %2786 = vmatpush1.msra.mxu0 0.0
    %2787 = vmatprep.subr.mxu0 0.0
    %2788 = vmatpush1.msra.mxu0 0.0
    %2789 = vmatprep.subr.mxu0 0.0
    %2790 = vmatpush1.msra.mxu0 0.0
    %2791 = vmatprep.subr.mxu0 0.0
    %2792 = vmatpush1.msra.mxu0 0.0
    %2793 = vmatprep.subr.mxu0 0.0
    %2794 = vmatpush1.msra.mxu0 0.0
    %2795 = vmatprep.subr.mxu0 0.0
    %2796 = vmatpush1.msra.mxu0 0.0
    %2797 = vmatprep.subr.mxu0 0.0
    %2798 = vmatpush1.msra.mxu0 0.0
    %2799 = vmatprep.subr.mxu0 0.0
    %2800 = vmatpush1.msra.mxu0 0.0
    %2801 = vmatprep.subr.mxu0 0.0
    %2802 = vmatpush1.msra.mxu0 0.0
    %2803 = vmatprep.subr.mxu0 0.0
    %2804 = vmatpush1.msra.mxu0 0.0
    %2805 = vmatprep.subr.mxu0 0.0
    %2806 = vmatpush1.msra.mxu0 0.0
    %2807 = vmatprep.subr.mxu0 0.0
    %2808 = vmatpush1.msra.mxu0 0.0
    %2809 = vmatprep.subr.mxu0 0.0
    %2810 = vmatpush1.msra.mxu0 0.0
    %2811 = vmatprep.subr.mxu0 0.0
    %2812 = vmatpush1.msra.mxu0 0.0
    %2813 = vmatprep.subr.mxu0 0.0
    %2814 = vmatpush1.msra.mxu0 0.0
    %2815 = vmatprep.subr.mxu0 0.0
    %2816 = vmatpush1.msra.mxu0 0.0
    %2817 = vmatprep.subr.mxu0 0.0
    %2818 = vmatpush1.msra.mxu0 0.0
    %2819 = vmatprep.subr.mxu0 0.0
    %2820 = vmatpush1.msra.mxu0 0.0
    %2821 = vmatprep.subr.mxu0 0.0
    %2822 = vmatpush1.msra.mxu0 0.0
    %2823 = vmatprep.subr.mxu0 0.0
    %2824 = vmatpush1.msra.mxu0 0.0
    %2825 = vmatprep.subr.mxu0 0.0
    %2826 = vmatpush1.msra.mxu0 0.0
    %2827 = vmatprep.subr.mxu0 0.0
    %2828 = vmatpush1.msra.mxu0 0.0
    %2829 = vmatprep.subr.mxu0 0.0
    %2830 = vmatpush1.msra.mxu0 0.0
    %2831 = vmatprep.subr.mxu0 0.0
    %2832 = vmatpush1.msra.mxu0 0.0
    %2833 = vmatprep.mubr.f32.mxu0 0.0
    %v2834 = vand.u32 %v123, 4294901760
    %2835 = vmatmul.mubr.f32.gmra.mrb[0].mxu0 %v2834
    %v2836 = vpop.f32.mrb[0].mxu0
    %v2837 = vadd.f32 %v2759, %v2836
    %v2838 = vpop.f32.mrb[0].mxu0
    %v2839 = vadd.f32 %v2761, %v2838
    %2840 = vdwg.mxu0
    %v2841 = vand.u32 %v112, 4294901760
    %2842 = vmatprep.subr.mxu0 %v2841
    %v2843 = vand.u32 %v111, 4294901760
    %2844 = vmatpush1.msra.mxu0 %v2843
    %2845 = vmatprep.subr.mxu0 0.0
    %2846 = vmatpush1.msra.mxu0 0.0
    %2847 = vmatprep.subr.mxu0 0.0
    %2848 = vmatpush1.msra.mxu0 0.0
    %2849 = vmatprep.subr.mxu0 0.0
    %2850 = vmatpush1.msra.mxu0 0.0
    %2851 = vmatprep.subr.mxu0 0.0
    %2852 = vmatpush1.msra.mxu0 0.0
    %2853 = vmatprep.subr.mxu0 0.0
    %2854 = vmatpush1.msra.mxu0 0.0
    %2855 = vmatprep.subr.mxu0 0.0
    %2856 = vmatpush1.msra.mxu0 0.0
    %2857 = vmatprep.subr.mxu0 0.0
    %2858 = vmatpush1.msra.mxu0 0.0
    %2859 = vmatprep.subr.mxu0 0.0
    %2860 = vmatpush1.msra.mxu0 0.0
    %2861 = vmatprep.subr.mxu0 0.0
    %2862 = vmatpush1.msra.mxu0 0.0
    %2863 = vmatprep.subr.mxu0 0.0
    %2864 = vmatpush1.msra.mxu0 0.0
    %2865 = vmatprep.subr.mxu0 0.0
    %2866 = vmatpush1.msra.mxu0 0.0
    %2867 = vmatprep.subr.mxu0 0.0
    %2868 = vmatpush1.msra.mxu0 0.0
    %2869 = vmatprep.subr.mxu0 0.0
    %2870 = vmatpush1.msra.mxu0 0.0
    %2871 = vmatprep.subr.mxu0 0.0
    %2872 = vmatpush1.msra.mxu0 0.0
    %2873 = vmatprep.subr.mxu0 0.0
    %2874 = vmatpush1.msra.mxu0 0.0
    %2875 = vmatprep.subr.mxu0 0.0
    %2876 = vmatpush1.msra.mxu0 0.0
    %2877 = vmatprep.subr.mxu0 0.0
    %2878 = vmatpush1.msra.mxu0 0.0
    %2879 = vmatprep.subr.mxu0 0.0
    %2880 = vmatpush1.msra.mxu0 0.0
    %2881 = vmatprep.subr.mxu0 0.0
    %2882 = vmatpush1.msra.mxu0 0.0
    %2883 = vmatprep.subr.mxu0 0.0
    %2884 = vmatpush1.msra.mxu0 0.0
    %2885 = vmatprep.subr.mxu0 0.0
    %2886 = vmatpush1.msra.mxu0 0.0
    %2887 = vmatprep.subr.mxu0 0.0
    %2888 = vmatpush1.msra.mxu0 0.0
    %2889 = vmatprep.subr.mxu0 0.0
    %2890 = vmatpush1.msra.mxu0 0.0
    %2891 = vmatprep.subr.mxu0 0.0
    %2892 = vmatpush1.msra.mxu0 0.0
    %2893 = vmatprep.subr.mxu0 0.0
    %2894 = vmatpush1.msra.mxu0 0.0
    %2895 = vmatprep.subr.mxu0 0.0
    %2896 = vmatpush1.msra.mxu0 0.0
    %2897 = vmatprep.subr.mxu0 0.0
    %2898 = vmatpush1.msra.mxu0 0.0
    %2899 = vmatprep.subr.mxu0 0.0
    %2900 = vmatpush1.msra.mxu0 0.0
    %2901 = vmatprep.subr.mxu0 0.0
    %2902 = vmatpush1.msra.mxu0 0.0
    %2903 = vmatprep.subr.mxu0 0.0
    %2904 = vmatpush1.msra.mxu0 0.0
    %2905 = vmatprep.subr.mxu0 0.0
    %2906 = vmatpush1.msra.mxu0 0.0
    %2907 = vmatprep.mubr.f32.mxu0 0.0
    %v2908 = vand.u32 %v123, 4294901760
    %2909 = vmatmul.mubr.f32.gmra.mrb[0].mxu0 %v2908
    %v2910 = vpop.f32.mrb[0].mxu0
    %v2911 = vadd.f32 %v2837, %v2910
    %v2912 = vpop.f32.mrb[0].mxu0
    %v2913 = vadd.f32 %v2839, %v2912
    %2914 = vdwg.mxu0
    %v2915 = vand.u32 %v114, 4294901760
    %2916 = vmatprep.subr.mxu0 %v2915
    %v2917 = vand.u32 %v113, 4294901760
    %2918 = vmatpush1.msra.mxu0 %v2917
    %2919 = vmatprep.subr.mxu0 0.0
    %2920 = vmatpush1.msra.mxu0 0.0
    %2921 = vmatprep.subr.mxu0 0.0
    %2922 = vmatpush1.msra.mxu0 0.0
    %2923 = vmatprep.subr.mxu0 0.0
    %2924 = vmatpush1.msra.mxu0 0.0
    %2925 = vmatprep.subr.mxu0 0.0
    %2926 = vmatpush1.msra.mxu0 0.0
    %2927 = vmatprep.subr.mxu0 0.0
    %2928 = vmatpush1.msra.mxu0 0.0
    %2929 = vmatprep.subr.mxu0 0.0
    %2930 = vmatpush1.msra.mxu0 0.0
    %2931 = vmatprep.subr.mxu0 0.0
    %2932 = vmatpush1.msra.mxu0 0.0
    %2933 = vmatprep.subr.mxu0 0.0
    %2934 = vmatpush1.msra.mxu0 0.0
    %2935 = vmatprep.subr.mxu0 0.0
    %2936 = vmatpush1.msra.mxu0 0.0
    %2937 = vmatprep.subr.mxu0 0.0
    %2938 = vmatpush1.msra.mxu0 0.0
    %2939 = vmatprep.subr.mxu0 0.0
    %2940 = vmatpush1.msra.mxu0 0.0
    %2941 = vmatprep.subr.mxu0 0.0
    %2942 = vmatpush1.msra.mxu0 0.0
    %2943 = vmatprep.subr.mxu0 0.0
    %2944 = vmatpush1.msra.mxu0 0.0
    %2945 = vmatprep.subr.mxu0 0.0
    %2946 = vmatpush1.msra.mxu0 0.0
    %2947 = vmatprep.subr.mxu0 0.0
    %2948 = vmatpush1.msra.mxu0 0.0
    %2949 = vmatprep.subr.mxu0 0.0
    %2950 = vmatpush1.msra.mxu0 0.0
    %2951 = vmatprep.subr.mxu0 0.0
    %2952 = vmatpush1.msra.mxu0 0.0
    %2953 = vmatprep.subr.mxu0 0.0
    %2954 = vmatpush1.msra.mxu0 0.0
    %2955 = vmatprep.subr.mxu0 0.0
    %2956 = vmatpush1.msra.mxu0 0.0
    %2957 = vmatprep.subr.mxu0 0.0
    %2958 = vmatpush1.msra.mxu0 0.0
    %2959 = vmatprep.subr.mxu0 0.0
    %2960 = vmatpush1.msra.mxu0 0.0
    %2961 = vmatprep.subr.mxu0 0.0
    %2962 = vmatpush1.msra.mxu0 0.0
    %2963 = vmatprep.subr.mxu0 0.0
    %2964 = vmatpush1.msra.mxu0 0.0
    %2965 = vmatprep.subr.mxu0 0.0
    %2966 = vmatpush1.msra.mxu0 0.0
    %2967 = vmatprep.subr.mxu0 0.0
    %2968 = vmatpush1.msra.mxu0 0.0
    %2969 = vmatprep.subr.mxu0 0.0
    %2970 = vmatpush1.msra.mxu0 0.0
    %2971 = vmatprep.subr.mxu0 0.0
    %2972 = vmatpush1.msra.mxu0 0.0
    %2973 = vmatprep.subr.mxu0 0.0
    %2974 = vmatpush1.msra.mxu0 0.0
    %2975 = vmatprep.subr.mxu0 0.0
    %2976 = vmatpush1.msra.mxu0 0.0
    %2977 = vmatprep.subr.mxu0 0.0
    %2978 = vmatpush1.msra.mxu0 0.0
    %2979 = vmatprep.subr.mxu0 0.0
    %2980 = vmatpush1.msra.mxu0 0.0
    %2981 = vmatprep.mubr.f32.mxu0 0.0
    %v2982 = vand.u32 %v123, 4294901760
    %v2983 = vsub.f32 %v123, %v2982
    %v2984 = vand.u32 %v2983, 4294901760
    %v2985 = vsub.f32 %v2983, %v2984
    %v2986 = vand.u32 %v2985, 4294901760
    %2987 = vmatmul.mubr.f32.gmra.mrb[0].mxu0 %v2986
    %v2988 = vpop.f32.mrb[0].mxu0
    %v2989 = vadd.f32 %v120, %v2988
    %v2990 = vpop.f32.mrb[0].mxu0
    %v2991 = vadd.f32 %v120, %v2990
    %2992 = vdwg.mxu0
    %v2993 = vand.u32 %v114, 4294901760
    %v2994 = vsub.f32 %v114, %v2993
    %v2995 = vand.u32 %v2994, 4294901760
    %v2996 = vsub.f32 %v2994, %v2995
    %v2997 = vand.u32 %v2996, 4294901760
    %2998 = vmatprep.subr.mxu0 %v2997
    %v2999 = vand.u32 %v113, 4294901760
    %v3000 = vsub.f32 %v113, %v2999
    %v3001 = vand.u32 %v3000, 4294901760
    %v3002 = vsub.f32 %v3000, %v3001
    %v3003 = vand.u32 %v3002, 4294901760
    %3004 = vmatpush1.msra.mxu0 %v3003
    %3005 = vmatprep.subr.mxu0 0.0
    %3006 = vmatpush1.msra.mxu0 0.0
    %3007 = vmatprep.subr.mxu0 0.0
    %3008 = vmatpush1.msra.mxu0 0.0
    %3009 = vmatprep.subr.mxu0 0.0
    %3010 = vmatpush1.msra.mxu0 0.0
    %3011 = vmatprep.subr.mxu0 0.0
    %3012 = vmatpush1.msra.mxu0 0.0
    %3013 = vmatprep.subr.mxu0 0.0
    %3014 = vmatpush1.msra.mxu0 0.0
    %3015 = vmatprep.subr.mxu0 0.0
    %3016 = vmatpush1.msra.mxu0 0.0
    %3017 = vmatprep.subr.mxu0 0.0
    %3018 = vmatpush1.msra.mxu0 0.0
    %3019 = vmatprep.subr.mxu0 0.0
    %3020 = vmatpush1.msra.mxu0 0.0
    %3021 = vmatprep.subr.mxu0 0.0
    %3022 = vmatpush1.msra.mxu0 0.0
    %3023 = vmatprep.subr.mxu0 0.0
    %3024 = vmatpush1.msra.mxu0 0.0
    %3025 = vmatprep.subr.mxu0 0.0
    %3026 = vmatpush1.msra.mxu0 0.0
    %3027 = vmatprep.subr.mxu0 0.0
    %3028 = vmatpush1.msra.mxu0 0.0
    %3029 = vmatprep.subr.mxu0 0.0
    %3030 = vmatpush1.msra.mxu0 0.0
    %3031 = vmatprep.subr.mxu0 0.0
    %3032 = vmatpush1.msra.mxu0 0.0
    %3033 = vmatprep.subr.mxu0 0.0
    %3034 = vmatpush1.msra.mxu0 0.0
    %3035 = vmatprep.subr.mxu0 0.0
    %3036 = vmatpush1.msra.mxu0 0.0
    %3037 = vmatprep.subr.mxu0 0.0
    %3038 = vmatpush1.msra.mxu0 0.0
    %3039 = vmatprep.subr.mxu0 0.0
    %3040 = vmatpush1.msra.mxu0 0.0
    %3041 = vmatprep.subr.mxu0 0.0
    %3042 = vmatpush1.msra.mxu0 0.0
    %3043 = vmatprep.subr.mxu0 0.0
    %3044 = vmatpush1.msra.mxu0 0.0
    %3045 = vmatprep.subr.mxu0 0.0
    %3046 = vmatpush1.msra.mxu0 0.0
    %3047 = vmatprep.subr.mxu0 0.0
    %3048 = vmatpush1.msra.mxu0 0.0
    %3049 = vmatprep.subr.mxu0 0.0
    %3050 = vmatpush1.msra.mxu0 0.0
    %3051 = vmatprep.subr.mxu0 0.0
    %3052 = vmatpush1.msra.mxu0 0.0
    %3053 = vmatprep.subr.mxu0 0.0
    %3054 = vmatpush1.msra.mxu0 0.0
    %3055 = vmatprep.subr.mxu0 0.0
    %3056 = vmatpush1.msra.mxu0 0.0
    %3057 = vmatprep.subr.mxu0 0.0
    %3058 = vmatpush1.msra.mxu0 0.0
    %3059 = vmatprep.subr.mxu0 0.0
    %3060 = vmatpush1.msra.mxu0 0.0
    %3061 = vmatprep.subr.mxu0 0.0
    %3062 = vmatpush1.msra.mxu0 0.0
    %3063 = vmatprep.subr.mxu0 0.0
    %3064 = vmatpush1.msra.mxu0 0.0
    %3065 = vmatprep.subr.mxu0 0.0
    %3066 = vmatpush1.msra.mxu0 0.0
    %3067 = vmatprep.mubr.f32.mxu0 0.0
    %v3068 = vand.u32 %v123, 4294901760
    %3069 = vmatmul.mubr.f32.gmra.mrb[0].mxu0 %v3068
    %v3070 = vpop.f32.mrb[0].mxu0
    %v3071 = vadd.f32 %v2989, %v3070
    %v3072 = vpop.f32.mrb[0].mxu0
    %v3073 = vadd.f32 %v2991, %v3072
    %3074 = vdwg.mxu0
    %v3075 = vand.u32 %v114, 4294901760
    %v3076 = vsub.f32 %v114, %v3075
    %3077 = vmatprep.subr.mxu0 %v3076
    %v3078 = vand.u32 %v113, 4294901760
    %v3079 = vsub.f32 %v113, %v3078
    %3080 = vmatpush1.msra.mxu0 %v3079
    %3081 = vmatprep.subr.mxu0 0.0
    %3082 = vmatpush1.msra.mxu0 0.0
    %3083 = vmatprep.subr.mxu0 0.0
    %3084 = vmatpush1.msra.mxu0 0.0
    %3085 = vmatprep.subr.mxu0 0.0
    %3086 = vmatpush1.msra.mxu0 0.0
    %3087 = vmatprep.subr.mxu0 0.0
    %3088 = vmatpush1.msra.mxu0 0.0
    %3089 = vmatprep.subr.mxu0 0.0
    %3090 = vmatpush1.msra.mxu0 0.0
    %3091 = vmatprep.subr.mxu0 0.0
    %3092 = vmatpush1.msra.mxu0 0.0
    %3093 = vmatprep.subr.mxu0 0.0
    %3094 = vmatpush1.msra.mxu0 0.0
    %3095 = vmatprep.subr.mxu0 0.0
    %3096 = vmatpush1.msra.mxu0 0.0
    %3097 = vmatprep.subr.mxu0 0.0
    %3098 = vmatpush1.msra.mxu0 0.0
    %3099 = vmatprep.subr.mxu0 0.0
    %3100 = vmatpush1.msra.mxu0 0.0
    %3101 = vmatprep.subr.mxu0 0.0
    %3102 = vmatpush1.msra.mxu0 0.0
    %3103 = vmatprep.subr.mxu0 0.0
    %3104 = vmatpush1.msra.mxu0 0.0
    %3105 = vmatprep.subr.mxu0 0.0
    %3106 = vmatpush1.msra.mxu0 0.0
    %3107 = vmatprep.subr.mxu0 0.0
    %3108 = vmatpush1.msra.mxu0 0.0
    %3109 = vmatprep.subr.mxu0 0.0
    %3110 = vmatpush1.msra.mxu0 0.0
    %3111 = vmatprep.subr.mxu0 0.0
    %3112 = vmatpush1.msra.mxu0 0.0
    %3113 = vmatprep.subr.mxu0 0.0
    %3114 = vmatpush1.msra.mxu0 0.0
    %3115 = vmatprep.subr.mxu0 0.0
    %3116 = vmatpush1.msra.mxu0 0.0
    %3117 = vmatprep.subr.mxu0 0.0
    %3118 = vmatpush1.msra.mxu0 0.0
    %3119 = vmatprep.subr.mxu0 0.0
    %3120 = vmatpush1.msra.mxu0 0.0
    %3121 = vmatprep.subr.mxu0 0.0
    %3122 = vmatpush1.msra.mxu0 0.0
    %3123 = vmatprep.subr.mxu0 0.0
    %3124 = vmatpush1.msra.mxu0 0.0
    %3125 = vmatprep.subr.mxu0 0.0
    %3126 = vmatpush1.msra.mxu0 0.0
    %3127 = vmatprep.subr.mxu0 0.0
    %3128 = vmatpush1.msra.mxu0 0.0
    %3129 = vmatprep.subr.mxu0 0.0
    %3130 = vmatpush1.msra.mxu0 0.0
    %3131 = vmatprep.subr.mxu0 0.0
    %3132 = vmatpush1.msra.mxu0 0.0
    %3133 = vmatprep.subr.mxu0 0.0
    %3134 = vmatpush1.msra.mxu0 0.0
    %3135 = vmatprep.subr.mxu0 0.0
    %3136 = vmatpush1.msra.mxu0 0.0
    %3137 = vmatprep.subr.mxu0 0.0
    %3138 = vmatpush1.msra.mxu0 0.0
    %3139 = vmatprep.subr.mxu0 0.0
    %3140 = vmatpush1.msra.mxu0 0.0
    %3141 = vmatprep.subr.mxu0 0.0
    %3142 = vmatpush1.msra.mxu0 0.0
    %3143 = vmatprep.mubr.f32.mxu0 0.0
    %v3144 = vand.u32 %v123, 4294901760
    %v3145 = vsub.f32 %v123, %v3144
    %3146 = vmatmul.mubr.f32.gmra.mrb[0].mxu0 %v3145
    %v3147 = vpop.f32.mrb[0].mxu0
    %v3148 = vadd.f32 %v3071, %v3147
    %v3149 = vpop.f32.mrb[0].mxu0
    %v3150 = vadd.f32 %v3073, %v3149
    %3151 = vdwg.mxu0
    %v3152 = vand.u32 %v114, 4294901760
    %3153 = vmatprep.subr.mxu0 %v3152
    %v3154 = vand.u32 %v113, 4294901760
    %3155 = vmatpush1.msra.mxu0 %v3154
    %3156 = vmatprep.subr.mxu0 0.0
    %3157 = vmatpush1.msra.mxu0 0.0
    %3158 = vmatprep.subr.mxu0 0.0
    %3159 = vmatpush1.msra.mxu0 0.0
    %3160 = vmatprep.subr.mxu0 0.0
    %3161 = vmatpush1.msra.mxu0 0.0
    %3162 = vmatprep.subr.mxu0 0.0
    %3163 = vmatpush1.msra.mxu0 0.0
    %3164 = vmatprep.subr.mxu0 0.0
    %3165 = vmatpush1.msra.mxu0 0.0
    %3166 = vmatprep.subr.mxu0 0.0
    %3167 = vmatpush1.msra.mxu0 0.0
    %3168 = vmatprep.subr.mxu0 0.0
    %3169 = vmatpush1.msra.mxu0 0.0
    %3170 = vmatprep.subr.mxu0 0.0
    %3171 = vmatpush1.msra.mxu0 0.0
    %3172 = vmatprep.subr.mxu0 0.0
    %3173 = vmatpush1.msra.mxu0 0.0
    %3174 = vmatprep.subr.mxu0 0.0
    %3175 = vmatpush1.msra.mxu0 0.0
    %3176 = vmatprep.subr.mxu0 0.0
    %3177 = vmatpush1.msra.mxu0 0.0
    %3178 = vmatprep.subr.mxu0 0.0
    %3179 = vmatpush1.msra.mxu0 0.0
    %3180 = vmatprep.subr.mxu0 0.0
    %3181 = vmatpush1.msra.mxu0 0.0
    %3182 = vmatprep.subr.mxu0 0.0
    %3183 = vmatpush1.msra.mxu0 0.0
    %3184 = vmatprep.subr.mxu0 0.0
    %3185 = vmatpush1.msra.mxu0 0.0
    %3186 = vmatprep.subr.mxu0 0.0
    %3187 = vmatpush1.msra.mxu0 0.0
    %3188 = vmatprep.subr.mxu0 0.0
    %3189 = vmatpush1.msra.mxu0 0.0
    %3190 = vmatprep.subr.mxu0 0.0
    %3191 = vmatpush1.msra.mxu0 0.0
    %3192 = vmatprep.subr.mxu0 0.0
    %3193 = vmatpush1.msra.mxu0 0.0
    %3194 = vmatprep.subr.mxu0 0.0
    %3195 = vmatpush1.msra.mxu0 0.0
    %3196 = vmatprep.subr.mxu0 0.0
    %3197 = vmatpush1.msra.mxu0 0.0
    %3198 = vmatprep.subr.mxu0 0.0
    %3199 = vmatpush1.msra.mxu0 0.0
    %3200 = vmatprep.subr.mxu0 0.0
    %3201 = vmatpush1.msra.mxu0 0.0
    %3202 = vmatprep.subr.mxu0 0.0
    %3203 = vmatpush1.msra.mxu0 0.0
    %3204 = vmatprep.subr.mxu0 0.0
    %3205 = vmatpush1.msra.mxu0 0.0
    %3206 = vmatprep.subr.mxu0 0.0
    %3207 = vmatpush1.msra.mxu0 0.0
    %3208 = vmatprep.subr.mxu0 0.0
    %3209 = vmatpush1.msra.mxu0 0.0
    %3210 = vmatprep.subr.mxu0 0.0
    %3211 = vmatpush1.msra.mxu0 0.0
    %3212 = vmatprep.subr.mxu0 0.0
    %3213 = vmatpush1.msra.mxu0 0.0
    %3214 = vmatprep.subr.mxu0 0.0
    %3215 = vmatpush1.msra.mxu0 0.0
    %3216 = vmatprep.subr.mxu0 0.0
    %3217 = vmatpush1.msra.mxu0 0.0
    %3218 = vmatprep.mubr.f32.mxu0 0.0
    %v3219 = vand.u32 %v123, 4294901760
    %v3220 = vsub.f32 %v123, %v3219
    %v3221 = vand.u32 %v3220, 4294901760
    %3222 = vmatmul.mubr.f32.gmra.mrb[0].mxu0 %v3221
    %v3223 = vpop.f32.mrb[0].mxu0
    %v3224 = vadd.f32 %v3148, %v3223
    %v3225 = vpop.f32.mrb[0].mxu0
    %v3226 = vadd.f32 %v3150, %v3225
    %3227 = vdwg.mxu0
    %v3228 = vand.u32 %v114, 4294901760
    %v3229 = vsub.f32 %v114, %v3228
    %v3230 = vand.u32 %v3229, 4294901760
    %3231 = vmatprep.subr.mxu0 %v3230
    %v3232 = vand.u32 %v113, 4294901760
    %v3233 = vsub.f32 %v113, %v3232
    %v3234 = vand.u32 %v3233, 4294901760
    %3235 = vmatpush1.msra.mxu0 %v3234
    %3236 = vmatprep.subr.mxu0 0.0
    %3237 = vmatpush1.msra.mxu0 0.0
    %3238 = vmatprep.subr.mxu0 0.0
    %3239 = vmatpush1.msra.mxu0 0.0
    %3240 = vmatprep.subr.mxu0 0.0
    %3241 = vmatpush1.msra.mxu0 0.0
    %3242 = vmatprep.subr.mxu0 0.0
    %3243 = vmatpush1.msra.mxu0 0.0
    %3244 = vmatprep.subr.mxu0 0.0
    %3245 = vmatpush1.msra.mxu0 0.0
    %3246 = vmatprep.subr.mxu0 0.0
    %3247 = vmatpush1.msra.mxu0 0.0
    %3248 = vmatprep.subr.mxu0 0.0
    %3249 = vmatpush1.msra.mxu0 0.0
    %3250 = vmatprep.subr.mxu0 0.0
    %3251 = vmatpush1.msra.mxu0 0.0
    %3252 = vmatprep.subr.mxu0 0.0
    %3253 = vmatpush1.msra.mxu0 0.0
    %3254 = vmatprep.subr.mxu0 0.0
    %3255 = vmatpush1.msra.mxu0 0.0
    %3256 = vmatprep.subr.mxu0 0.0
    %3257 = vmatpush1.msra.mxu0 0.0
    %3258 = vmatprep.subr.mxu0 0.0
    %3259 = vmatpush1.msra.mxu0 0.0
    %3260 = vmatprep.subr.mxu0 0.0
    %3261 = vmatpush1.msra.mxu0 0.0
    %3262 = vmatprep.subr.mxu0 0.0
    %3263 = vmatpush1.msra.mxu0 0.0
    %3264 = vmatprep.subr.mxu0 0.0
    %3265 = vmatpush1.msra.mxu0 0.0
    %3266 = vmatprep.subr.mxu0 0.0
    %3267 = vmatpush1.msra.mxu0 0.0
    %3268 = vmatprep.subr.mxu0 0.0
    %3269 = vmatpush1.msra.mxu0 0.0
    %3270 = vmatprep.subr.mxu0 0.0
    %3271 = vmatpush1.msra.mxu0 0.0
    %3272 = vmatprep.subr.mxu0 0.0
    %3273 = vmatpush1.msra.mxu0 0.0
    %3274 = vmatprep.subr.mxu0 0.0
    %3275 = vmatpush1.msra.mxu0 0.0
    %3276 = vmatprep.subr.mxu0 0.0
    %3277 = vmatpush1.msra.mxu0 0.0
    %3278 = vmatprep.subr.mxu0 0.0
    %3279 = vmatpush1.msra.mxu0 0.0
    %3280 = vmatprep.subr.mxu0 0.0
    %3281 = vmatpush1.msra.mxu0 0.0
    %3282 = vmatprep.subr.mxu0 0.0
    %3283 = vmatpush1.msra.mxu0 0.0
    %3284 = vmatprep.subr.mxu0 0.0
    %3285 = vmatpush1.msra.mxu0 0.0
    %3286 = vmatprep.subr.mxu0 0.0
    %3287 = vmatpush1.msra.mxu0 0.0
    %3288 = vmatprep.subr.mxu0 0.0
    %3289 = vmatpush1.msra.mxu0 0.0
    %3290 = vmatprep.subr.mxu0 0.0
    %3291 = vmatpush1.msra.mxu0 0.0
    %3292 = vmatprep.subr.mxu0 0.0
    %3293 = vmatpush1.msra.mxu0 0.0
    %3294 = vmatprep.subr.mxu0 0.0
    %3295 = vmatpush1.msra.mxu0 0.0
    %3296 = vmatprep.subr.mxu0 0.0
    %3297 = vmatpush1.msra.mxu0 0.0
    %3298 = vmatprep.mubr.f32.mxu0 0.0
    %v3299 = vand.u32 %v123, 4294901760
    %3300 = vmatmul.mubr.f32.gmra.mrb[0].mxu0 %v3299
    %v3301 = vpop.f32.mrb[0].mxu0
    %v3302 = vadd.f32 %v3224, %v3301
    %v3303 = vpop.f32.mrb[0].mxu0
    %v3304 = vadd.f32 %v3226, %v3303
    %3305 = vdwg.mxu0
    %v3306 = vand.u32 %v114, 4294901760
    %3307 = vmatprep.subr.mxu0 %v3306
    %v3308 = vand.u32 %v113, 4294901760
    %3309 = vmatpush1.msra.mxu0 %v3308
    %3310 = vmatprep.subr.mxu0 0.0
    %3311 = vmatpush1.msra.mxu0 0.0
    %3312 = vmatprep.subr.mxu0 0.0
    %3313 = vmatpush1.msra.mxu0 0.0
    %3314 = vmatprep.subr.mxu0 0.0
    %3315 = vmatpush1.msra.mxu0 0.0
    %3316 = vmatprep.subr.mxu0 0.0
    %3317 = vmatpush1.msra.mxu0 0.0
    %3318 = vmatprep.subr.mxu0 0.0
    %3319 = vmatpush1.msra.mxu0 0.0
    %3320 = vmatprep.subr.mxu0 0.0
    %3321 = vmatpush1.msra.mxu0 0.0
    %3322 = vmatprep.subr.mxu0 0.0
    %3323 = vmatpush1.msra.mxu0 0.0
    %3324 = vmatprep.subr.mxu0 0.0
    %3325 = vmatpush1.msra.mxu0 0.0
    %3326 = vmatprep.subr.mxu0 0.0
    %3327 = vmatpush1.msra.mxu0 0.0
    %3328 = vmatprep.subr.mxu0 0.0
    %3329 = vmatpush1.msra.mxu0 0.0
    %3330 = vmatprep.subr.mxu0 0.0
    %3331 = vmatpush1.msra.mxu0 0.0
    %3332 = vmatprep.subr.mxu0 0.0
    %3333 = vmatpush1.msra.mxu0 0.0
    %3334 = vmatprep.subr.mxu0 0.0
    %3335 = vmatpush1.msra.mxu0 0.0
    %3336 = vmatprep.subr.mxu0 0.0
    %3337 = vmatpush1.msra.mxu0 0.0
    %3338 = vmatprep.subr.mxu0 0.0
    %3339 = vmatpush1.msra.mxu0 0.0
    %3340 = vmatprep.subr.mxu0 0.0
    %3341 = vmatpush1.msra.mxu0 0.0
    %3342 = vmatprep.subr.mxu0 0.0
    %3343 = vmatpush1.msra.mxu0 0.0
    %3344 = vmatprep.subr.mxu0 0.0
    %3345 = vmatpush1.msra.mxu0 0.0
    %3346 = vmatprep.subr.mxu0 0.0
    %3347 = vmatpush1.msra.mxu0 0.0
    %3348 = vmatprep.subr.mxu0 0.0
    %3349 = vmatpush1.msra.mxu0 0.0
    %3350 = vmatprep.subr.mxu0 0.0
    %3351 = vmatpush1.msra.mxu0 0.0
    %3352 = vmatprep.subr.mxu0 0.0
    %3353 = vmatpush1.msra.mxu0 0.0
    %3354 = vmatprep.subr.mxu0 0.0
    %3355 = vmatpush1.msra.mxu0 0.0
    %3356 = vmatprep.subr.mxu0 0.0
    %3357 = vmatpush1.msra.mxu0 0.0
    %3358 = vmatprep.subr.mxu0 0.0
    %3359 = vmatpush1.msra.mxu0 0.0
    %3360 = vmatprep.subr.mxu0 0.0
    %3361 = vmatpush1.msra.mxu0 0.0
    %3362 = vmatprep.subr.mxu0 0.0
    %3363 = vmatpush1.msra.mxu0 0.0
    %3364 = vmatprep.subr.mxu0 0.0
    %3365 = vmatpush1.msra.mxu0 0.0
    %3366 = vmatprep.subr.mxu0 0.0
    %3367 = vmatpush1.msra.mxu0 0.0
    %3368 = vmatprep.subr.mxu0 0.0
    %3369 = vmatpush1.msra.mxu0 0.0
    %3370 = vmatprep.subr.mxu0 0.0
    %3371 = vmatpush1.msra.mxu0 0.0
    %3372 = vmatprep.mubr.f32.mxu0 0.0
    %v3373 = vand.u32 %v123, 4294901760
    %3374 = vmatmul.mubr.f32.gmra.mrb[0].mxu0 %v3373
    %v3375 = vpop.f32.mrb[0].mxu0
    %v3376 = vadd.f32 %v3302, %v3375
    %v3377 = vpop.f32.mrb[0].mxu0
    %v3378 = vadd.f32 %v3304, %v3377
    %3379 = vdwg.mxu0
    %v3380 = vand.u32 %v116, 4294901760
    %3381 = vmatprep.subr.mxu0 %v3380
    %v3382 = vand.u32 %v115, 4294901760
    %3383 = vmatpush1.msra.mxu0 %v3382
    %3384 = vmatprep.subr.mxu0 0.0
    %3385 = vmatpush1.msra.mxu0 0.0
    %3386 = vmatprep.subr.mxu0 0.0
    %3387 = vmatpush1.msra.mxu0 0.0
    %3388 = vmatprep.subr.mxu0 0.0
    %3389 = vmatpush1.msra.mxu0 0.0
    %3390 = vmatprep.subr.mxu0 0.0
    %3391 = vmatpush1.msra.mxu0 0.0
    %3392 = vmatprep.subr.mxu0 0.0
    %3393 = vmatpush1.msra.mxu0 0.0
    %3394 = vmatprep.subr.mxu0 0.0
    %3395 = vmatpush1.msra.mxu0 0.0
    %3396 = vmatprep.subr.mxu0 0.0
    %3397 = vmatpush1.msra.mxu0 0.0
    %3398 = vmatprep.subr.mxu0 0.0
    %3399 = vmatpush1.msra.mxu0 0.0
    %3400 = vmatprep.subr.mxu0 0.0
    %3401 = vmatpush1.msra.mxu0 0.0
    %3402 = vmatprep.subr.mxu0 0.0
    %3403 = vmatpush1.msra.mxu0 0.0
    %3404 = vmatprep.subr.mxu0 0.0
    %3405 = vmatpush1.msra.mxu0 0.0
    %3406 = vmatprep.subr.mxu0 0.0
    %3407 = vmatpush1.msra.mxu0 0.0
    %3408 = vmatprep.subr.mxu0 0.0
    %3409 = vmatpush1.msra.mxu0 0.0
    %3410 = vmatprep.subr.mxu0 0.0
    %3411 = vmatpush1.msra.mxu0 0.0
    %3412 = vmatprep.subr.mxu0 0.0
    %3413 = vmatpush1.msra.mxu0 0.0
    %3414 = vmatprep.subr.mxu0 0.0
    %3415 = vmatpush1.msra.mxu0 0.0
    %3416 = vmatprep.subr.mxu0 0.0
    %3417 = vmatpush1.msra.mxu0 0.0
    %3418 = vmatprep.subr.mxu0 0.0
    %3419 = vmatpush1.msra.mxu0 0.0
    %3420 = vmatprep.subr.mxu0 0.0
    %3421 = vmatpush1.msra.mxu0 0.0
    %3422 = vmatprep.subr.mxu0 0.0
    %3423 = vmatpush1.msra.mxu0 0.0
    %3424 = vmatprep.subr.mxu0 0.0
    %3425 = vmatpush1.msra.mxu0 0.0
    %3426 = vmatprep.subr.mxu0 0.0
    %3427 = vmatpush1.msra.mxu0 0.0
    %3428 = vmatprep.subr.mxu0 0.0
    %3429 = vmatpush1.msra.mxu0 0.0
    %3430 = vmatprep.subr.mxu0 0.0
    %3431 = vmatpush1.msra.mxu0 0.0
    %3432 = vmatprep.subr.mxu0 0.0
    %3433 = vmatpush1.msra.mxu0 0.0
    %3434 = vmatprep.subr.mxu0 0.0
    %3435 = vmatpush1.msra.mxu0 0.0
    %3436 = vmatprep.subr.mxu0 0.0
    %3437 = vmatpush1.msra.mxu0 0.0
    %3438 = vmatprep.subr.mxu0 0.0
    %3439 = vmatpush1.msra.mxu0 0.0
    %3440 = vmatprep.subr.mxu0 0.0
    %3441 = vmatpush1.msra.mxu0 0.0
    %3442 = vmatprep.subr.mxu0 0.0
    %3443 = vmatpush1.msra.mxu0 0.0
    %3444 = vmatprep.subr.mxu0 0.0
    %3445 = vmatpush1.msra.mxu0 0.0
    %3446 = vmatprep.mubr.f32.mxu0 0.0
    %v3447 = vand.u32 %v123, 4294901760
    %v3448 = vsub.f32 %v123, %v3447
    %v3449 = vand.u32 %v3448, 4294901760
    %v3450 = vsub.f32 %v3448, %v3449
    %v3451 = vand.u32 %v3450, 4294901760
    %3452 = vmatmul.mubr.f32.gmra.mrb[0].mxu0 %v3451
    %v3453 = vpop.f32.mrb[0].mxu0
    %v3454 = vadd.f32 %v120, %v3453
    %v3455 = vpop.f32.mrb[0].mxu0
    %v3456 = vadd.f32 %v120, %v3455
    %3457 = vdwg.mxu0
    %v3458 = vand.u32 %v116, 4294901760
    %v3459 = vsub.f32 %v116, %v3458
    %v3460 = vand.u32 %v3459, 4294901760
    %v3461 = vsub.f32 %v3459, %v3460
    %v3462 = vand.u32 %v3461, 4294901760
    %3463 = vmatprep.subr.mxu0 %v3462
    %v3464 = vand.u32 %v115, 4294901760
    %v3465 = vsub.f32 %v115, %v3464
    %v3466 = vand.u32 %v3465, 4294901760
    %v3467 = vsub.f32 %v3465, %v3466
    %v3468 = vand.u32 %v3467, 4294901760
    %3469 = vmatpush1.msra.mxu0 %v3468
    %3470 = vmatprep.subr.mxu0 0.0
    %3471 = vmatpush1.msra.mxu0 0.0
    %3472 = vmatprep.subr.mxu0 0.0
    %3473 = vmatpush1.msra.mxu0 0.0
    %3474 = vmatprep.subr.mxu0 0.0
    %3475 = vmatpush1.msra.mxu0 0.0
    %3476 = vmatprep.subr.mxu0 0.0
    %3477 = vmatpush1.msra.mxu0 0.0
    %3478 = vmatprep.subr.mxu0 0.0
    %3479 = vmatpush1.msra.mxu0 0.0
    %3480 = vmatprep.subr.mxu0 0.0
    %3481 = vmatpush1.msra.mxu0 0.0
    %3482 = vmatprep.subr.mxu0 0.0
    %3483 = vmatpush1.msra.mxu0 0.0
    %3484 = vmatprep.subr.mxu0 0.0
    %3485 = vmatpush1.msra.mxu0 0.0
    %3486 = vmatprep.subr.mxu0 0.0
    %3487 = vmatpush1.msra.mxu0 0.0
    %3488 = vmatprep.subr.mxu0 0.0
    %3489 = vmatpush1.msra.mxu0 0.0
    %3490 = vmatprep.subr.mxu0 0.0
    %3491 = vmatpush1.msra.mxu0 0.0
    %3492 = vmatprep.subr.mxu0 0.0
    %3493 = vmatpush1.msra.mxu0 0.0
    %3494 = vmatprep.subr.mxu0 0.0
    %3495 = vmatpush1.msra.mxu0 0.0
    %3496 = vmatprep.subr.mxu0 0.0
    %3497 = vmatpush1.msra.mxu0 0.0
    %3498 = vmatprep.subr.mxu0 0.0
    %3499 = vmatpush1.msra.mxu0 0.0
    %3500 = vmatprep.subr.mxu0 0.0
    %3501 = vmatpush1.msra.mxu0 0.0
    %3502 = vmatprep.subr.mxu0 0.0
    %3503 = vmatpush1.msra.mxu0 0.0
    %3504 = vmatprep.subr.mxu0 0.0
    %3505 = vmatpush1.msra.mxu0 0.0
    %3506 = vmatprep.subr.mxu0 0.0
    %3507 = vmatpush1.msra.mxu0 0.0
    %3508 = vmatprep.subr.mxu0 0.0
    %3509 = vmatpush1.msra.mxu0 0.0
    %3510 = vmatprep.subr.mxu0 0.0
    %3511 = vmatpush1.msra.mxu0 0.0
    %3512 = vmatprep.subr.mxu0 0.0
    %3513 = vmatpush1.msra.mxu0 0.0
    %3514 = vmatprep.subr.mxu0 0.0
    %3515 = vmatpush1.msra.mxu0 0.0
    %3516 = vmatprep.subr.mxu0 0.0
    %3517 = vmatpush1.msra.mxu0 0.0
    %3518 = vmatprep.subr.mxu0 0.0
    %3519 = vmatpush1.msra.mxu0 0.0
    %3520 = vmatprep.subr.mxu0 0.0
    %3521 = vmatpush1.msra.mxu0 0.0
    %3522 = vmatprep.subr.mxu0 0.0
    %3523 = vmatpush1.msra.mxu0 0.0
    %3524 = vmatprep.subr.mxu0 0.0
    %3525 = vmatpush1.msra.mxu0 0.0
    %3526 = vmatprep.subr.mxu0 0.0
    %3527 = vmatpush1.msra.mxu0 0.0
    %3528 = vmatprep.subr.mxu0 0.0
    %3529 = vmatpush1.msra.mxu0 0.0
    %3530 = vmatprep.subr.mxu0 0.0
    %3531 = vmatpush1.msra.mxu0 0.0
    %3532 = vmatprep.mubr.f32.mxu0 0.0
    %v3533 = vand.u32 %v123, 4294901760
    %3534 = vmatmul.mubr.f32.gmra.mrb[0].mxu0 %v3533
    %v3535 = vpop.f32.mrb[0].mxu0
    %v3536 = vadd.f32 %v3454, %v3535
    %v3537 = vpop.f32.mrb[0].mxu0
    %v3538 = vadd.f32 %v3456, %v3537
    %3539 = vdwg.mxu0
    %v3540 = vand.u32 %v116, 4294901760
    %v3541 = vsub.f32 %v116, %v3540
    %3542 = vmatprep.subr.mxu0 %v3541
    %v3543 = vand.u32 %v115, 4294901760
    %v3544 = vsub.f32 %v115, %v3543
    %3545 = vmatpush1.msra.mxu0 %v3544
    %3546 = vmatprep.subr.mxu0 0.0
    %3547 = vmatpush1.msra.mxu0 0.0
    %3548 = vmatprep.subr.mxu0 0.0
    %3549 = vmatpush1.msra.mxu0 0.0
    %3550 = vmatprep.subr.mxu0 0.0
    %3551 = vmatpush1.msra.mxu0 0.0
    %3552 = vmatprep.subr.mxu0 0.0
    %3553 = vmatpush1.msra.mxu0 0.0
    %3554 = vmatprep.subr.mxu0 0.0
    %3555 = vmatpush1.msra.mxu0 0.0
    %3556 = vmatprep.subr.mxu0 0.0
    %3557 = vmatpush1.msra.mxu0 0.0
    %3558 = vmatprep.subr.mxu0 0.0
    %3559 = vmatpush1.msra.mxu0 0.0
    %3560 = vmatprep.subr.mxu0 0.0
    %3561 = vmatpush1.msra.mxu0 0.0
    %3562 = vmatprep.subr.mxu0 0.0
    %3563 = vmatpush1.msra.mxu0 0.0
    %3564 = vmatprep.subr.mxu0 0.0
    %3565 = vmatpush1.msra.mxu0 0.0
    %3566 = vmatprep.subr.mxu0 0.0
    %3567 = vmatpush1.msra.mxu0 0.0
    %3568 = vmatprep.subr.mxu0 0.0
    %3569 = vmatpush1.msra.mxu0 0.0
    %3570 = vmatprep.subr.mxu0 0.0
    %3571 = vmatpush1.msra.mxu0 0.0
    %3572 = vmatprep.subr.mxu0 0.0
    %3573 = vmatpush1.msra.mxu0 0.0
    %3574 = vmatprep.subr.mxu0 0.0
    %3575 = vmatpush1.msra.mxu0 0.0
    %3576 = vmatprep.subr.mxu0 0.0
    %3577 = vmatpush1.msra.mxu0 0.0
    %3578 = vmatprep.subr.mxu0 0.0
    %3579 = vmatpush1.msra.mxu0 0.0
    %3580 = vmatprep.subr.mxu0 0.0
    %3581 = vmatpush1.msra.mxu0 0.0
    %3582 = vmatprep.subr.mxu0 0.0
    %3583 = vmatpush1.msra.mxu0 0.0
    %3584 = vmatprep.subr.mxu0 0.0
    %3585 = vmatpush1.msra.mxu0 0.0
    %3586 = vmatprep.subr.mxu0 0.0
    %3587 = vmatpush1.msra.mxu0 0.0
    %3588 = vmatprep.subr.mxu0 0.0
    %3589 = vmatpush1.msra.mxu0 0.0
    %3590 = vmatprep.subr.mxu0 0.0
    %3591 = vmatpush1.msra.mxu0 0.0
    %3592 = vmatprep.subr.mxu0 0.0
    %3593 = vmatpush1.msra.mxu0 0.0
    %3594 = vmatprep.subr.mxu0 0.0
    %3595 = vmatpush1.msra.mxu0 0.0
    %3596 = vmatprep.subr.mxu0 0.0
    %3597 = vmatpush1.msra.mxu0 0.0
    %3598 = vmatprep.subr.mxu0 0.0
    %3599 = vmatpush1.msra.mxu0 0.0
    %3600 = vmatprep.subr.mxu0 0.0
    %3601 = vmatpush1.msra.mxu0 0.0
    %3602 = vmatprep.subr.mxu0 0.0
    %3603 = vmatpush1.msra.mxu0 0.0
    %3604 = vmatprep.subr.mxu0 0.0
    %3605 = vmatpush1.msra.mxu0 0.0
    %3606 = vmatprep.subr.mxu0 0.0
    %3607 = vmatpush1.msra.mxu0 0.0
    %3608 = vmatprep.mubr.f32.mxu0 0.0
    %v3609 = vand.u32 %v123, 4294901760
    %v3610 = vsub.f32 %v123, %v3609
    %3611 = vmatmul.mubr.f32.gmra.mrb[0].mxu0 %v3610
    %v3612 = vpop.f32.mrb[0].mxu0
    %v3613 = vadd.f32 %v3536, %v3612
    %v3614 = vpop.f32.mrb[0].mxu0
    %v3615 = vadd.f32 %v3538, %v3614
    %3616 = vdwg.mxu0
    %v3617 = vand.u32 %v116, 4294901760
    %3618 = vmatprep.subr.mxu0 %v3617
    %v3619 = vand.u32 %v115, 4294901760
    %3620 = vmatpush1.msra.mxu0 %v3619
    %3621 = vmatprep.subr.mxu0 0.0
    %3622 = vmatpush1.msra.mxu0 0.0
    %3623 = vmatprep.subr.mxu0 0.0
    %3624 = vmatpush1.msra.mxu0 0.0
    %3625 = vmatprep.subr.mxu0 0.0
    %3626 = vmatpush1.msra.mxu0 0.0
    %3627 = vmatprep.subr.mxu0 0.0
    %3628 = vmatpush1.msra.mxu0 0.0
    %3629 = vmatprep.subr.mxu0 0.0
    %3630 = vmatpush1.msra.mxu0 0.0
    %3631 = vmatprep.subr.mxu0 0.0
    %3632 = vmatpush1.msra.mxu0 0.0
    %3633 = vmatprep.subr.mxu0 0.0
    %3634 = vmatpush1.msra.mxu0 0.0
    %3635 = vmatprep.subr.mxu0 0.0
    %3636 = vmatpush1.msra.mxu0 0.0
    %3637 = vmatprep.subr.mxu0 0.0
    %3638 = vmatpush1.msra.mxu0 0.0
    %3639 = vmatprep.subr.mxu0 0.0
    %3640 = vmatpush1.msra.mxu0 0.0
    %3641 = vmatprep.subr.mxu0 0.0
    %3642 = vmatpush1.msra.mxu0 0.0
    %3643 = vmatprep.subr.mxu0 0.0
    %3644 = vmatpush1.msra.mxu0 0.0
    %3645 = vmatprep.subr.mxu0 0.0
    %3646 = vmatpush1.msra.mxu0 0.0
    %3647 = vmatprep.subr.mxu0 0.0
    %3648 = vmatpush1.msra.mxu0 0.0
    %3649 = vmatprep.subr.mxu0 0.0
    %3650 = vmatpush1.msra.mxu0 0.0
    %3651 = vmatprep.subr.mxu0 0.0
    %3652 = vmatpush1.msra.mxu0 0.0
    %3653 = vmatprep.subr.mxu0 0.0
    %3654 = vmatpush1.msra.mxu0 0.0
    %3655 = vmatprep.subr.mxu0 0.0
    %3656 = vmatpush1.msra.mxu0 0.0
    %3657 = vmatprep.subr.mxu0 0.0
    %3658 = vmatpush1.msra.mxu0 0.0
    %3659 = vmatprep.subr.mxu0 0.0
    %3660 = vmatpush1.msra.mxu0 0.0
    %3661 = vmatprep.subr.mxu0 0.0
    %3662 = vmatpush1.msra.mxu0 0.0
    %3663 = vmatprep.subr.mxu0 0.0
    %3664 = vmatpush1.msra.mxu0 0.0
    %3665 = vmatprep.subr.mxu0 0.0
    %3666 = vmatpush1.msra.mxu0 0.0
    %3667 = vmatprep.subr.mxu0 0.0
    %3668 = vmatpush1.msra.mxu0 0.0
    %3669 = vmatprep.subr.mxu0 0.0
    %3670 = vmatpush1.msra.mxu0 0.0
    %3671 = vmatprep.subr.mxu0 0.0
    %3672 = vmatpush1.msra.mxu0 0.0
    %3673 = vmatprep.subr.mxu0 0.0
    %3674 = vmatpush1.msra.mxu0 0.0
    %3675 = vmatprep.subr.mxu0 0.0
    %3676 = vmatpush1.msra.mxu0 0.0
    %3677 = vmatprep.subr.mxu0 0.0
    %3678 = vmatpush1.msra.mxu0 0.0
    %3679 = vmatprep.subr.mxu0 0.0
    %3680 = vmatpush1.msra.mxu0 0.0
    %3681 = vmatprep.subr.mxu0 0.0
    %3682 = vmatpush1.msra.mxu0 0.0
    %3683 = vmatprep.mubr.f32.mxu0 0.0
    %v3684 = vand.u32 %v123, 4294901760
    %v3685 = vsub.f32 %v123, %v3684
    %v3686 = vand.u32 %v3685, 4294901760
    %3687 = vmatmul.mubr.f32.gmra.mrb[0].mxu0 %v3686
    %v3688 = vpop.f32.mrb[0].mxu0
    %v3689 = vadd.f32 %v3613, %v3688
    %v3690 = vpop.f32.mrb[0].mxu0
    %v3691 = vadd.f32 %v3615, %v3690
    %3692 = vdwg.mxu0
    %v3693 = vand.u32 %v116, 4294901760
    %v3694 = vsub.f32 %v116, %v3693
    %v3695 = vand.u32 %v3694, 4294901760
    %3696 = vmatprep.subr.mxu0 %v3695
    %v3697 = vand.u32 %v115, 4294901760
    %v3698 = vsub.f32 %v115, %v3697
    %v3699 = vand.u32 %v3698, 4294901760
    %3700 = vmatpush1.msra.mxu0 %v3699
    %3701 = vmatprep.subr.mxu0 0.0
    %3702 = vmatpush1.msra.mxu0 0.0
    %3703 = vmatprep.subr.mxu0 0.0
    %3704 = vmatpush1.msra.mxu0 0.0
    %3705 = vmatprep.subr.mxu0 0.0
    %3706 = vmatpush1.msra.mxu0 0.0
    %3707 = vmatprep.subr.mxu0 0.0
    %3708 = vmatpush1.msra.mxu0 0.0
    %3709 = vmatprep.subr.mxu0 0.0
    %3710 = vmatpush1.msra.mxu0 0.0
    %3711 = vmatprep.subr.mxu0 0.0
    %3712 = vmatpush1.msra.mxu0 0.0
    %3713 = vmatprep.subr.mxu0 0.0
    %3714 = vmatpush1.msra.mxu0 0.0
    %3715 = vmatprep.subr.mxu0 0.0
    %3716 = vmatpush1.msra.mxu0 0.0
    %3717 = vmatprep.subr.mxu0 0.0
    %3718 = vmatpush1.msra.mxu0 0.0
    %3719 = vmatprep.subr.mxu0 0.0
    %3720 = vmatpush1.msra.mxu0 0.0
    %3721 = vmatprep.subr.mxu0 0.0
    %3722 = vmatpush1.msra.mxu0 0.0
    %3723 = vmatprep.subr.mxu0 0.0
    %3724 = vmatpush1.msra.mxu0 0.0
    %3725 = vmatprep.subr.mxu0 0.0
    %3726 = vmatpush1.msra.mxu0 0.0
    %3727 = vmatprep.subr.mxu0 0.0
    %3728 = vmatpush1.msra.mxu0 0.0
    %3729 = vmatprep.subr.mxu0 0.0
    %3730 = vmatpush1.msra.mxu0 0.0
    %3731 = vmatprep.subr.mxu0 0.0
    %3732 = vmatpush1.msra.mxu0 0.0
    %3733 = vmatprep.subr.mxu0 0.0
    %3734 = vmatpush1.msra.mxu0 0.0
    %3735 = vmatprep.subr.mxu0 0.0
    %3736 = vmatpush1.msra.mxu0 0.0
    %3737 = vmatprep.subr.mxu0 0.0
    %3738 = vmatpush1.msra.mxu0 0.0
    %3739 = vmatprep.subr.mxu0 0.0
    %3740 = vmatpush1.msra.mxu0 0.0
    %3741 = vmatprep.subr.mxu0 0.0
    %3742 = vmatpush1.msra.mxu0 0.0
    %3743 = vmatprep.subr.mxu0 0.0
    %3744 = vmatpush1.msra.mxu0 0.0
    %3745 = vmatprep.subr.mxu0 0.0
    %3746 = vmatpush1.msra.mxu0 0.0
    %3747 = vmatprep.subr.mxu0 0.0
    %3748 = vmatpush1.msra.mxu0 0.0
    %3749 = vmatprep.subr.mxu0 0.0
    %3750 = vmatpush1.msra.mxu0 0.0
    %3751 = vmatprep.subr.mxu0 0.0
    %3752 = vmatpush1.msra.mxu0 0.0
    %3753 = vmatprep.subr.mxu0 0.0
    %3754 = vmatpush1.msra.mxu0 0.0
    %3755 = vmatprep.subr.mxu0 0.0
    %3756 = vmatpush1.msra.mxu0 0.0
    %3757 = vmatprep.subr.mxu0 0.0
    %3758 = vmatpush1.msra.mxu0 0.0
    %3759 = vmatprep.subr.mxu0 0.0
    %3760 = vmatpush1.msra.mxu0 0.0
    %3761 = vmatprep.subr.mxu0 0.0
    %3762 = vmatpush1.msra.mxu0 0.0
    %3763 = vmatprep.mubr.f32.mxu0 0.0
    %v3764 = vand.u32 %v123, 4294901760
    %3765 = vmatmul.mubr.f32.gmra.mrb[0].mxu0 %v3764
    %v3766 = vpop.f32.mrb[0].mxu0
    %v3767 = vadd.f32 %v3689, %v3766
    %v3768 = vpop.f32.mrb[0].mxu0
    %v3769 = vadd.f32 %v3691, %v3768
    %3770 = vdwg.mxu0
    %v3771 = vand.u32 %v116, 4294901760
    %3772 = vmatprep.subr.mxu0 %v3771
    %v3773 = vand.u32 %v115, 4294901760
    %3774 = vmatpush1.msra.mxu0 %v3773
    %3775 = vmatprep.subr.mxu0 0.0
    %3776 = vmatpush1.msra.mxu0 0.0
    %3777 = vmatprep.subr.mxu0 0.0
    %3778 = vmatpush1.msra.mxu0 0.0
    %3779 = vmatprep.subr.mxu0 0.0
    %3780 = vmatpush1.msra.mxu0 0.0
    %3781 = vmatprep.subr.mxu0 0.0
    %3782 = vmatpush1.msra.mxu0 0.0
    %3783 = vmatprep.subr.mxu0 0.0
    %3784 = vmatpush1.msra.mxu0 0.0
    %3785 = vmatprep.subr.mxu0 0.0
    %3786 = vmatpush1.msra.mxu0 0.0
    %3787 = vmatprep.subr.mxu0 0.0
    %3788 = vmatpush1.msra.mxu0 0.0
    %3789 = vmatprep.subr.mxu0 0.0
    %3790 = vmatpush1.msra.mxu0 0.0
    %3791 = vmatprep.subr.mxu0 0.0
    %3792 = vmatpush1.msra.mxu0 0.0
    %3793 = vmatprep.subr.mxu0 0.0
    %3794 = vmatpush1.msra.mxu0 0.0
    %3795 = vmatprep.subr.mxu0 0.0
    %3796 = vmatpush1.msra.mxu0 0.0
    %3797 = vmatprep.subr.mxu0 0.0
    %3798 = vmatpush1.msra.mxu0 0.0
    %3799 = vmatprep.subr.mxu0 0.0
    %3800 = vmatpush1.msra.mxu0 0.0
    %3801 = vmatprep.subr.mxu0 0.0
    %3802 = vmatpush1.msra.mxu0 0.0
    %3803 = vmatprep.subr.mxu0 0.0
    %3804 = vmatpush1.msra.mxu0 0.0
    %3805 = vmatprep.subr.mxu0 0.0
    %3806 = vmatpush1.msra.mxu0 0.0
    %3807 = vmatprep.subr.mxu0 0.0
    %3808 = vmatpush1.msra.mxu0 0.0
    %3809 = vmatprep.subr.mxu0 0.0
    %3810 = vmatpush1.msra.mxu0 0.0
    %3811 = vmatprep.subr.mxu0 0.0
    %3812 = vmatpush1.msra.mxu0 0.0
    %3813 = vmatprep.subr.mxu0 0.0
    %3814 = vmatpush1.msra.mxu0 0.0
    %3815 = vmatprep.subr.mxu0 0.0
    %3816 = vmatpush1.msra.mxu0 0.0
    %3817 = vmatprep.subr.mxu0 0.0
    %3818 = vmatpush1.msra.mxu0 0.0
    %3819 = vmatprep.subr.mxu0 0.0
    %3820 = vmatpush1.msra.mxu0 0.0
    %3821 = vmatprep.subr.mxu0 0.0
    %3822 = vmatpush1.msra.mxu0 0.0
    %3823 = vmatprep.subr.mxu0 0.0
    %3824 = vmatpush1.msra.mxu0 0.0
    %3825 = vmatprep.subr.mxu0 0.0
    %3826 = vmatpush1.msra.mxu0 0.0
    %3827 = vmatprep.subr.mxu0 0.0
    %3828 = vmatpush1.msra.mxu0 0.0
    %3829 = vmatprep.subr.mxu0 0.0
    %3830 = vmatpush1.msra.mxu0 0.0
    %3831 = vmatprep.subr.mxu0 0.0
    %3832 = vmatpush1.msra.mxu0 0.0
    %3833 = vmatprep.subr.mxu0 0.0
    %3834 = vmatpush1.msra.mxu0 0.0
    %3835 = vmatprep.subr.mxu0 0.0
    %3836 = vmatpush1.msra.mxu0 0.0
    %3837 = vmatprep.mubr.f32.mxu0 0.0
    %v3838 = vand.u32 %v123, 4294901760
    %3839 = vmatmul.mubr.f32.gmra.mrb[0].mxu0 %v3838
    %v3840 = vpop.f32.mrb[0].mxu0
    %v3841 = vadd.f32 %v3767, %v3840
    %v3842 = vpop.f32.mrb[0].mxu0
    %v3843 = vadd.f32 %v3769, %v3842
    %3844 = vdwg.mxu0
    %v3845 = vmax.f32 %v586, 0.0
    %v3846 = vmax.f32 %v588, 0.0
    %v3847 = vmax.f32 %v1051, 0.0
    %v3848 = vmax.f32 %v1053, 0.0
    %v3849 = vmax.f32 %v1516, 0.0
    %v3850 = vmax.f32 %v1518, 0.0
    %v3851 = vmax.f32 %v1981, 0.0
    %v3852 = vmax.f32 %v1983, 0.0
    %v3853 = vmax.f32 %v2446, 0.0
    %v3854 = vmax.f32 %v2448, 0.0
    %v3855 = vmax.f32 %v2911, 0.0
    %v3856 = vmax.f32 %v2913, 0.0
    %v3857 = vmax.f32 %v3376, 0.0
    %v3858 = vmax.f32 %v3378, 0.0
    %v3859 = vmax.f32 %v3841, 0.0
    %v3860 = vmax.f32 %v3843, 0.0
    %3861 = vrot.lane.b32.xlu0 %v36, 120
    %v3862 = vpop.permute.xlu0 %3861
    %v3863 = vsel %vm122, %v3862, 0
    %v3865 = vand.u32 %v3846, 4294901760
    %3866 = vmatprep.subr.mxu0 %v3865
    %v3867 = vand.u32 %v3845, 4294901760
    %3868 = vmatpush1.msra.mxu0 %v3867
    %3869 = vmatprep.subr.mxu0 0.0
    %3870 = vmatpush1.msra.mxu0 0.0
    %3871 = vmatprep.subr.mxu0 0.0
    %3872 = vmatpush1.msra.mxu0 0.0
    %3873 = vmatprep.subr.mxu0 0.0
    %3874 = vmatpush1.msra.mxu0 0.0
    %3875 = vmatprep.subr.mxu0 0.0
    %3876 = vmatpush1.msra.mxu0 0.0
    %3877 = vmatprep.subr.mxu0 0.0
    %3878 = vmatpush1.msra.mxu0 0.0
    %3879 = vmatprep.subr.mxu0 0.0
    %3880 = vmatpush1.msra.mxu0 0.0
    %3881 = vmatprep.subr.mxu0 0.0
    %3882 = vmatpush1.msra.mxu0 0.0
    %3883 = vmatprep.subr.mxu0 0.0
    %3884 = vmatpush1.msra.mxu0 0.0
    %3885 = vmatprep.subr.mxu0 0.0
    %3886 = vmatpush1.msra.mxu0 0.0
    %3887 = vmatprep.subr.mxu0 0.0
    %3888 = vmatpush1.msra.mxu0 0.0
    %3889 = vmatprep.subr.mxu0 0.0
    %3890 = vmatpush1.msra.mxu0 0.0
    %3891 = vmatprep.subr.mxu0 0.0
    %3892 = vmatpush1.msra.mxu0 0.0
    %3893 = vmatprep.subr.mxu0 0.0
    %3894 = vmatpush1.msra.mxu0 0.0
    %3895 = vmatprep.subr.mxu0 0.0
    %3896 = vmatpush1.msra.mxu0 0.0
    %3897 = vmatprep.subr.mxu0 0.0
    %3898 = vmatpush1.msra.mxu0 0.0
    %3899 = vmatprep.subr.mxu0 0.0
    %3900 = vmatpush1.msra.mxu0 0.0
    %3901 = vmatprep.subr.mxu0 0.0
    %3902 = vmatpush1.msra.mxu0 0.0
    %3903 = vmatprep.subr.mxu0 0.0
    %3904 = vmatpush1.msra.mxu0 0.0
    %3905 = vmatprep.subr.mxu0 0.0
    %3906 = vmatpush1.msra.mxu0 0.0
    %3907 = vmatprep.subr.mxu0 0.0
    %3908 = vmatpush1.msra.mxu0 0.0
    %3909 = vmatprep.subr.mxu0 0.0
    %3910 = vmatpush1.msra.mxu0 0.0
    %3911 = vmatprep.subr.mxu0 0.0
    %3912 = vmatpush1.msra.mxu0 0.0
    %3913 = vmatprep.subr.mxu0 0.0
    %3914 = vmatpush1.msra.mxu0 0.0
    %3915 = vmatprep.subr.mxu0 0.0
    %3916 = vmatpush1.msra.mxu0 0.0
    %3917 = vmatprep.subr.mxu0 0.0
    %3918 = vmatpush1.msra.mxu0 0.0
    %3919 = vmatprep.subr.mxu0 0.0
    %3920 = vmatpush1.msra.mxu0 0.0
    %3921 = vmatprep.subr.mxu0 0.0
    %3922 = vmatpush1.msra.mxu0 0.0
    %3923 = vmatprep.subr.mxu0 0.0
    %3924 = vmatpush1.msra.mxu0 0.0
    %3925 = vmatprep.subr.mxu0 0.0
    %3926 = vmatpush1.msra.mxu0 0.0
    %3927 = vmatprep.subr.mxu0 0.0
    %3928 = vmatpush1.msra.mxu0 0.0
    %3929 = vmatprep.subr.mxu0 0.0
    %3930 = vmatpush1.msra.mxu0 0.0
    %3931 = vmatprep.mubr.f32.mxu0 0.0
    %v3932 = vand.u32 %v3863, 4294901760
    %v3933 = vsub.f32 %v3863, %v3932
    %v3934 = vand.u32 %v3933, 4294901760
    %v3935 = vsub.f32 %v3933, %v3934
    %v3936 = vand.u32 %v3935, 4294901760
    %3937 = vmatmul.mubr.f32.gmra.mrb[0].mxu0 %v3936
    %v3938 = vpop.f32.mrb[0].mxu0
    %v3939 = vadd.f32 0.0, %v3938
    %v3940 = vpop.f32.mrb[0].mxu0
    %v3941 = vadd.f32 0.0, %v3940
    %3942 = vdwg.mxu0
    %v3943 = vand.u32 %v3846, 4294901760
    %v3944 = vsub.f32 %v3846, %v3943
    %v3945 = vand.u32 %v3944, 4294901760
    %v3946 = vsub.f32 %v3944, %v3945
    %v3947 = vand.u32 %v3946, 4294901760
    %3948 = vmatprep.subr.mxu0 %v3947
    %v3949 = vand.u32 %v3845, 4294901760
    %v3950 = vsub.f32 %v3845, %v3949
    %v3951 = vand.u32 %v3950, 4294901760
    %v3952 = vsub.f32 %v3950, %v3951
    %v3953 = vand.u32 %v3952, 4294901760
    %3954 = vmatpush1.msra.mxu0 %v3953
    %3955 = vmatprep.subr.mxu0 0.0
    %3956 = vmatpush1.msra.mxu0 0.0
    %3957 = vmatprep.subr.mxu0 0.0
    %3958 = vmatpush1.msra.mxu0 0.0
    %3959 = vmatprep.subr.mxu0 0.0
    %3960 = vmatpush1.msra.mxu0 0.0
    %3961 = vmatprep.subr.mxu0 0.0
    %3962 = vmatpush1.msra.mxu0 0.0
    %3963 = vmatprep.subr.mxu0 0.0
    %3964 = vmatpush1.msra.mxu0 0.0
    %3965 = vmatprep.subr.mxu0 0.0
    %3966 = vmatpush1.msra.mxu0 0.0
    %3967 = vmatprep.subr.mxu0 0.0
    %3968 = vmatpush1.msra.mxu0 0.0
    %3969 = vmatprep.subr.mxu0 0.0
    %3970 = vmatpush1.msra.mxu0 0.0
    %3971 = vmatprep.subr.mxu0 0.0
    %3972 = vmatpush1.msra.mxu0 0.0
    %3973 = vmatprep.subr.mxu0 0.0
    %3974 = vmatpush1.msra.mxu0 0.0
    %3975 = vmatprep.subr.mxu0 0.0
    %3976 = vmatpush1.msra.mxu0 0.0
    %3977 = vmatprep.subr.mxu0 0.0
    %3978 = vmatpush1.msra.mxu0 0.0
    %3979 = vmatprep.subr.mxu0 0.0
    %3980 = vmatpush1.msra.mxu0 0.0
    %3981 = vmatprep.subr.mxu0 0.0
    %3982 = vmatpush1.msra.mxu0 0.0
    %3983 = vmatprep.subr.mxu0 0.0
    %3984 = vmatpush1.msra.mxu0 0.0
    %3985 = vmatprep.subr.mxu0 0.0
    %3986 = vmatpush1.msra.mxu0 0.0
    %3987 = vmatprep.subr.mxu0 0.0
    %3988 = vmatpush1.msra.mxu0 0.0
    %3989 = vmatprep.subr.mxu0 0.0
    %3990 = vmatpush1.msra.mxu0 0.0
    %3991 = vmatprep.subr.mxu0 0.0
    %3992 = vmatpush1.msra.mxu0 0.0
    %3993 = vmatprep.subr.mxu0 0.0
    %3994 = vmatpush1.msra.mxu0 0.0
    %3995 = vmatprep.subr.mxu0 0.0
    %3996 = vmatpush1.msra.mxu0 0.0
    %3997 = vmatprep.subr.mxu0 0.0
    %3998 = vmatpush1.msra.mxu0 0.0
    %3999 = vmatprep.subr.mxu0 0.0
    %4000 = vmatpush1.msra.mxu0 0.0
    %4001 = vmatprep.subr.mxu0 0.0
    %4002 = vmatpush1.msra.mxu0 0.0
    %4003 = vmatprep.subr.mxu0 0.0
    %4004 = vmatpush1.msra.mxu0 0.0
    %4005 = vmatprep.subr.mxu0 0.0
    %4006 = vmatpush1.msra.mxu0 0.0
    %4007 = vmatprep.subr.mxu0 0.0
    %4008 = vmatpush1.msra.mxu0 0.0
    %4009 = vmatprep.subr.mxu0 0.0
    %4010 = vmatpush1.msra.mxu0 0.0
    %4011 = vmatprep.subr.mxu0 0.0
    %4012 = vmatpush1.msra.mxu0 0.0
    %4013 = vmatprep.subr.mxu0 0.0
    %4014 = vmatpush1.msra.mxu0 0.0
    %4015 = vmatprep.subr.mxu0 0.0
    %4016 = vmatpush1.msra.mxu0 0.0
    %4017 = vmatprep.mubr.f32.mxu0 0.0
    %v4018 = vand.u32 %v3863, 4294901760
    %4019 = vmatmul.mubr.f32.gmra.mrb[0].mxu0 %v4018
    %v4020 = vpop.f32.mrb[0].mxu0
    %v4021 = vadd.f32 %v3939, %v4020
    %v4022 = vpop.f32.mrb[0].mxu0
    %v4023 = vadd.f32 %v3941, %v4022
    %4024 = vdwg.mxu0
    %v4025 = vand.u32 %v3846, 4294901760
    %v4026 = vsub.f32 %v3846, %v4025
    %4027 = vmatprep.subr.mxu0 %v4026
    %v4028 = vand.u32 %v3845, 4294901760
    %v4029 = vsub.f32 %v3845, %v4028
    %4030 = vmatpush1.msra.mxu0 %v4029
    %4031 = vmatprep.subr.mxu0 0.0
    %4032 = vmatpush1.msra.mxu0 0.0
    %4033 = vmatprep.subr.mxu0 0.0
    %4034 = vmatpush1.msra.mxu0 0.0
    %4035 = vmatprep.subr.mxu0 0.0
    %4036 = vmatpush1.msra.mxu0 0.0
    %4037 = vmatprep.subr.mxu0 0.0
    %4038 = vmatpush1.msra.mxu0 0.0
    %4039 = vmatprep.subr.mxu0 0.0
    %4040 = vmatpush1.msra.mxu0 0.0
    %4041 = vmatprep.subr.mxu0 0.0
    %4042 = vmatpush1.msra.mxu0 0.0
    %4043 = vmatprep.subr.mxu0 0.0
    %4044 = vmatpush1.msra.mxu0 0.0
    %4045 = vmatprep.subr.mxu0 0.0
    %4046 = vmatpush1.msra.mxu0 0.0
    %4047 = vmatprep.subr.mxu0 0.0
    %4048 = vmatpush1.msra.mxu0 0.0
    %4049 = vmatprep.subr.mxu0 0.0
    %4050 = vmatpush1.msra.mxu0 0.0
    %4051 = vmatprep.subr.mxu0 0.0
    %4052 = vmatpush1.msra.mxu0 0.0
    %4053 = vmatprep.subr.mxu0 0.0
    %4054 = vmatpush1.msra.mxu0 0.0
    %4055 = vmatprep.subr.mxu0 0.0
    %4056 = vmatpush1.msra.mxu0 0.0
    %4057 = vmatprep.subr.mxu0 0.0
    %4058 = vmatpush1.msra.mxu0 0.0
    %4059 = vmatprep.subr.mxu0 0.0
    %4060 = vmatpush1.msra.mxu0 0.0
    %4061 = vmatprep.subr.mxu0 0.0
    %4062 = vmatpush1.msra.mxu0 0.0
    %4063 = vmatprep.subr.mxu0 0.0
    %4064 = vmatpush1.msra.mxu0 0.0
    %4065 = vmatprep.subr.mxu0 0.0
    %4066 = vmatpush1.msra.mxu0 0.0
    %4067 = vmatprep.subr.mxu0 0.0
    %4068 = vmatpush1.msra.mxu0 0.0
    %4069 = vmatprep.subr.mxu0 0.0
    %4070 = vmatpush1.msra.mxu0 0.0
    %4071 = vmatprep.subr.mxu0 0.0
    %4072 = vmatpush1.msra.mxu0 0.0
    %4073 = vmatprep.subr.mxu0 0.0
    %4074 = vmatpush1.msra.mxu0 0.0
    %4075 = vmatprep.subr.mxu0 0.0
    %4076 = vmatpush1.msra.mxu0 0.0
    %4077 = vmatprep.subr.mxu0 0.0
    %4078 = vmatpush1.msra.mxu0 0.0
    %4079 = vmatprep.subr.mxu0 0.0
    %4080 = vmatpush1.msra.mxu0 0.0
    %4081 = vmatprep.subr.mxu0 0.0
    %4082 = vmatpush1.msra.mxu0 0.0
    %4083 = vmatprep.subr.mxu0 0.0
    %4084 = vmatpush1.msra.mxu0 0.0
    %4085 = vmatprep.subr.mxu0 0.0
    %4086 = vmatpush1.msra.mxu0 0.0
    %4087 = vmatprep.subr.mxu0 0.0
    %4088 = vmatpush1.msra.mxu0 0.0
    %4089 = vmatprep.subr.mxu0 0.0
    %4090 = vmatpush1.msra.mxu0 0.0
    %4091 = vmatprep.subr.mxu0 0.0
    %4092 = vmatpush1.msra.mxu0 0.0
    %4093 = vmatprep.mubr.f32.mxu0 0.0
    %v4094 = vand.u32 %v3863, 4294901760
    %v4095 = vsub.f32 %v3863, %v4094
    %4096 = vmatmul.mubr.f32.gmra.mrb[0].mxu0 %v4095
    %v4097 = vpop.f32.mrb[0].mxu0
    %v4098 = vadd.f32 %v4021, %v4097
    %v4099 = vpop.f32.mrb[0].mxu0
    %v4100 = vadd.f32 %v4023, %v4099
    %4101 = vdwg.mxu0
    %v4102 = vand.u32 %v3846, 4294901760
    %4103 = vmatprep.subr.mxu0 %v4102
    %v4104 = vand.u32 %v3845, 4294901760
    %4105 = vmatpush1.msra.mxu0 %v4104
    %4106 = vmatprep.subr.mxu0 0.0
    %4107 = vmatpush1.msra.mxu0 0.0
    %4108 = vmatprep.subr.mxu0 0.0
    %4109 = vmatpush1.msra.mxu0 0.0
    %4110 = vmatprep.subr.mxu0 0.0
    %4111 = vmatpush1.msra.mxu0 0.0
    %4112 = vmatprep.subr.mxu0 0.0
    %4113 = vmatpush1.msra.mxu0 0.0
    %4114 = vmatprep.subr.mxu0 0.0
    %4115 = vmatpush1.msra.mxu0 0.0
    %4116 = vmatprep.subr.mxu0 0.0
    %4117 = vmatpush1.msra.mxu0 0.0
    %4118 = vmatprep.subr.mxu0 0.0
    %4119 = vmatpush1.msra.mxu0 0.0
    %4120 = vmatprep.subr.mxu0 0.0
    %4121 = vmatpush1.msra.mxu0 0.0
    %4122 = vmatprep.subr.mxu0 0.0
    %4123 = vmatpush1.msra.mxu0 0.0
    %4124 = vmatprep.subr.mxu0 0.0
    %4125 = vmatpush1.msra.mxu0 0.0
    %4126 = vmatprep.subr.mxu0 0.0
    %4127 = vmatpush1.msra.mxu0 0.0
    %4128 = vmatprep.subr.mxu0 0.0
    %4129 = vmatpush1.msra.mxu0 0.0
    %4130 = vmatprep.subr.mxu0 0.0
    %4131 = vmatpush1.msra.mxu0 0.0
    %4132 = vmatprep.subr.mxu0 0.0
    %4133 = vmatpush1.msra.mxu0 0.0
    %4134 = vmatprep.subr.mxu0 0.0
    %4135 = vmatpush1.msra.mxu0 0.0
    %4136 = vmatprep.subr.mxu0 0.0
    %4137 = vmatpush1.msra.mxu0 0.0
    %4138 = vmatprep.subr.mxu0 0.0
    %4139 = vmatpush1.msra.mxu0 0.0
    %4140 = vmatprep.subr.mxu0 0.0
    %4141 = vmatpush1.msra.mxu0 0.0
    %4142 = vmatprep.subr.mxu0 0.0
    %4143 = vmatpush1.msra.mxu0 0.0
    %4144 = vmatprep.subr.mxu0 0.0
    %4145 = vmatpush1.msra.mxu0 0.0
    %4146 = vmatprep.subr.mxu0 0.0
    %4147 = vmatpush1.msra.mxu0 0.0
    %4148 = vmatprep.subr.mxu0 0.0
    %4149 = vmatpush1.msra.mxu0 0.0
    %4150 = vmatprep.subr.mxu0 0.0
    %4151 = vmatpush1.msra.mxu0 0.0
    %4152 = vmatprep.subr.mxu0 0.0
    %4153 = vmatpush1.msra.mxu0 0.0
    %4154 = vmatprep.subr.mxu0 0.0
    %4155 = vmatpush1.msra.mxu0 0.0
    %4156 = vmatprep.subr.mxu0 0.0
    %4157 = vmatpush1.msra.mxu0 0.0
    %4158 = vmatprep.subr.mxu0 0.0
    %4159 = vmatpush1.msra.mxu0 0.0
    %4160 = vmatprep.subr.mxu0 0.0
    %4161 = vmatpush1.msra.mxu0 0.0
    %4162 = vmatprep.subr.mxu0 0.0
    %4163 = vmatpush1.msra.mxu0 0.0
    %4164 = vmatprep.subr.mxu0 0.0
    %4165 = vmatpush1.msra.mxu0 0.0
    %4166 = vmatprep.subr.mxu0 0.0
    %4167 = vmatpush1.msra.mxu0 0.0
    %4168 = vmatprep.mubr.f32.mxu0 0.0
    %v4169 = vand.u32 %v3863, 4294901760
    %v4170 = vsub.f32 %v3863, %v4169
    %v4171 = vand.u32 %v4170, 4294901760
    %4172 = vmatmul.mubr.f32.gmra.mrb[0].mxu0 %v4171
    %v4173 = vpop.f32.mrb[0].mxu0
    %v4174 = vadd.f32 %v4098, %v4173
    %v4175 = vpop.f32.mrb[0].mxu0
    %v4176 = vadd.f32 %v4100, %v4175
    %4177 = vdwg.mxu0
    %v4178 = vand.u32 %v3846, 4294901760
    %v4179 = vsub.f32 %v3846, %v4178
    %v4180 = vand.u32 %v4179, 4294901760
    %4181 = vmatprep.subr.mxu0 %v4180
    %v4182 = vand.u32 %v3845, 4294901760
    %v4183 = vsub.f32 %v3845, %v4182
    %v4184 = vand.u32 %v4183, 4294901760
    %4185 = vmatpush1.msra.mxu0 %v4184
    %4186 = vmatprep.subr.mxu0 0.0
    %4187 = vmatpush1.msra.mxu0 0.0
    %4188 = vmatprep.subr.mxu0 0.0
    %4189 = vmatpush1.msra.mxu0 0.0
    %4190 = vmatprep.subr.mxu0 0.0
    %4191 = vmatpush1.msra.mxu0 0.0
    %4192 = vmatprep.subr.mxu0 0.0
    %4193 = vmatpush1.msra.mxu0 0.0
    %4194 = vmatprep.subr.mxu0 0.0
    %4195 = vmatpush1.msra.mxu0 0.0
    %4196 = vmatprep.subr.mxu0 0.0
    %4197 = vmatpush1.msra.mxu0 0.0
    %4198 = vmatprep.subr.mxu0 0.0
    %4199 = vmatpush1.msra.mxu0 0.0
    %4200 = vmatprep.subr.mxu0 0.0
    %4201 = vmatpush1.msra.mxu0 0.0
    %4202 = vmatprep.subr.mxu0 0.0
    %4203 = vmatpush1.msra.mxu0 0.0
    %4204 = vmatprep.subr.mxu0 0.0
    %4205 = vmatpush1.msra.mxu0 0.0
    %4206 = vmatprep.subr.mxu0 0.0
    %4207 = vmatpush1.msra.mxu0 0.0
    %4208 = vmatprep.subr.mxu0 0.0
    %4209 = vmatpush1.msra.mxu0 0.0
    %4210 = vmatprep.subr.mxu0 0.0
    %4211 = vmatpush1.msra.mxu0 0.0
    %4212 = vmatprep.subr.mxu0 0.0
    %4213 = vmatpush1.msra.mxu0 0.0
    %4214 = vmatprep.subr.mxu0 0.0
    %4215 = vmatpush1.msra.mxu0 0.0
    %4216 = vmatprep.subr.mxu0 0.0
    %4217 = vmatpush1.msra.mxu0 0.0
    %4218 = vmatprep.subr.mxu0 0.0
    %4219 = vmatpush1.msra.mxu0 0.0
    %4220 = vmatprep.subr.mxu0 0.0
    %4221 = vmatpush1.msra.mxu0 0.0
    %4222 = vmatprep.subr.mxu0 0.0
    %4223 = vmatpush1.msra.mxu0 0.0
    %4224 = vmatprep.subr.mxu0 0.0
    %4225 = vmatpush1.msra.mxu0 0.0
    %4226 = vmatprep.subr.mxu0 0.0
    %4227 = vmatpush1.msra.mxu0 0.0
    %4228 = vmatprep.subr.mxu0 0.0
    %4229 = vmatpush1.msra.mxu0 0.0
    %4230 = vmatprep.subr.mxu0 0.0
    %4231 = vmatpush1.msra.mxu0 0.0
    %4232 = vmatprep.subr.mxu0 0.0
    %4233 = vmatpush1.msra.mxu0 0.0
    %4234 = vmatprep.subr.mxu0 0.0
    %4235 = vmatpush1.msra.mxu0 0.0
    %4236 = vmatprep.subr.mxu0 0.0
    %4237 = vmatpush1.msra.mxu0 0.0
    %4238 = vmatprep.subr.mxu0 0.0
    %4239 = vmatpush1.msra.mxu0 0.0
    %4240 = vmatprep.subr.mxu0 0.0
    %4241 = vmatpush1.msra.mxu0 0.0
    %4242 = vmatprep.subr.mxu0 0.0
    %4243 = vmatpush1.msra.mxu0 0.0
    %4244 = vmatprep.subr.mxu0 0.0
    %4245 = vmatpush1.msra.mxu0 0.0
    %4246 = vmatprep.subr.mxu0 0.0
    %4247 = vmatpush1.msra.mxu0 0.0
    %4248 = vmatprep.mubr.f32.mxu0 0.0
    %v4249 = vand.u32 %v3863, 4294901760
    %4250 = vmatmul.mubr.f32.gmra.mrb[0].mxu0 %v4249
    %v4251 = vpop.f32.mrb[0].mxu0
    %v4252 = vadd.f32 %v4174, %v4251
    %v4253 = vpop.f32.mrb[0].mxu0
    %v4254 = vadd.f32 %v4176, %v4253
    %4255 = vdwg.mxu0
    %v4256 = vand.u32 %v3846, 4294901760
    %4257 = vmatprep.subr.mxu0 %v4256
    %v4258 = vand.u32 %v3845, 4294901760
    %4259 = vmatpush1.msra.mxu0 %v4258
    %4260 = vmatprep.subr.mxu0 0.0
    %4261 = vmatpush1.msra.mxu0 0.0
    %4262 = vmatprep.subr.mxu0 0.0
    %4263 = vmatpush1.msra.mxu0 0.0
    %4264 = vmatprep.subr.mxu0 0.0
    %4265 = vmatpush1.msra.mxu0 0.0
    %4266 = vmatprep.subr.mxu0 0.0
    %4267 = vmatpush1.msra.mxu0 0.0
    %4268 = vmatprep.subr.mxu0 0.0
    %4269 = vmatpush1.msra.mxu0 0.0
    %4270 = vmatprep.subr.mxu0 0.0
    %4271 = vmatpush1.msra.mxu0 0.0
    %4272 = vmatprep.subr.mxu0 0.0
    %4273 = vmatpush1.msra.mxu0 0.0
    %4274 = vmatprep.subr.mxu0 0.0
    %4275 = vmatpush1.msra.mxu0 0.0
    %4276 = vmatprep.subr.mxu0 0.0
    %4277 = vmatpush1.msra.mxu0 0.0
    %4278 = vmatprep.subr.mxu0 0.0
    %4279 = vmatpush1.msra.mxu0 0.0
    %4280 = vmatprep.subr.mxu0 0.0
    %4281 = vmatpush1.msra.mxu0 0.0
    %4282 = vmatprep.subr.mxu0 0.0
    %4283 = vmatpush1.msra.mxu0 0.0
    %4284 = vmatprep.subr.mxu0 0.0
    %4285 = vmatpush1.msra.mxu0 0.0
    %4286 = vmatprep.subr.mxu0 0.0
    %4287 = vmatpush1.msra.mxu0 0.0
    %4288 = vmatprep.subr.mxu0 0.0
    %4289 = vmatpush1.msra.mxu0 0.0
    %4290 = vmatprep.subr.mxu0 0.0
    %4291 = vmatpush1.msra.mxu0 0.0
    %4292 = vmatprep.subr.mxu0 0.0
    %4293 = vmatpush1.msra.mxu0 0.0
    %4294 = vmatprep.subr.mxu0 0.0
    %4295 = vmatpush1.msra.mxu0 0.0
    %4296 = vmatprep.subr.mxu0 0.0
    %4297 = vmatpush1.msra.mxu0 0.0
    %4298 = vmatprep.subr.mxu0 0.0
    %4299 = vmatpush1.msra.mxu0 0.0
    %4300 = vmatprep.subr.mxu0 0.0
    %4301 = vmatpush1.msra.mxu0 0.0
    %4302 = vmatprep.subr.mxu0 0.0
    %4303 = vmatpush1.msra.mxu0 0.0
    %4304 = vmatprep.subr.mxu0 0.0
    %4305 = vmatpush1.msra.mxu0 0.0
    %4306 = vmatprep.subr.mxu0 0.0
    %4307 = vmatpush1.msra.mxu0 0.0
    %4308 = vmatprep.subr.mxu0 0.0
    %4309 = vmatpush1.msra.mxu0 0.0
    %4310 = vmatprep.subr.mxu0 0.0
    %4311 = vmatpush1.msra.mxu0 0.0
    %4312 = vmatprep.subr.mxu0 0.0
    %4313 = vmatpush1.msra.mxu0 0.0
    %4314 = vmatprep.subr.mxu0 0.0
    %4315 = vmatpush1.msra.mxu0 0.0
    %4316 = vmatprep.subr.mxu0 0.0
    %4317 = vmatpush1.msra.mxu0 0.0
    %4318 = vmatprep.subr.mxu0 0.0
    %4319 = vmatpush1.msra.mxu0 0.0
    %4320 = vmatprep.subr.mxu0 0.0
    %4321 = vmatpush1.msra.mxu0 0.0
    %4322 = vmatprep.mubr.f32.mxu0 0.0
    %v4323 = vand.u32 %v3863, 4294901760
    %4324 = vmatmul.mubr.f32.gmra.mrb[0].mxu0 %v4323
    %v4325 = vpop.f32.mrb[0].mxu0
    %v4326 = vadd.f32 %v4252, %v4325
    %v4327 = vpop.f32.mrb[0].mxu0
    %v4328 = vadd.f32 %v4254, %v4327
    %4329 = vdwg.mxu0
    %v4330 = vand.u32 %v3848, 4294901760
    %4331 = vmatprep.subr.mxu0 %v4330
    %v4332 = vand.u32 %v3847, 4294901760
    %4333 = vmatpush1.msra.mxu0 %v4332
    %4334 = vmatprep.subr.mxu0 0.0
    %4335 = vmatpush1.msra.mxu0 0.0
    %4336 = vmatprep.subr.mxu0 0.0
    %4337 = vmatpush1.msra.mxu0 0.0
    %4338 = vmatprep.subr.mxu0 0.0
    %4339 = vmatpush1.msra.mxu0 0.0
    %4340 = vmatprep.subr.mxu0 0.0
    %4341 = vmatpush1.msra.mxu0 0.0
    %4342 = vmatprep.subr.mxu0 0.0
    %4343 = vmatpush1.msra.mxu0 0.0
    %4344 = vmatprep.subr.mxu0 0.0
    %4345 = vmatpush1.msra.mxu0 0.0
    %4346 = vmatprep.subr.mxu0 0.0
    %4347 = vmatpush1.msra.mxu0 0.0
    %4348 = vmatprep.subr.mxu0 0.0
    %4349 = vmatpush1.msra.mxu0 0.0
    %4350 = vmatprep.subr.mxu0 0.0
    %4351 = vmatpush1.msra.mxu0 0.0
    %4352 = vmatprep.subr.mxu0 0.0
    %4353 = vmatpush1.msra.mxu0 0.0
    %4354 = vmatprep.subr.mxu0 0.0
    %4355 = vmatpush1.msra.mxu0 0.0
    %4356 = vmatprep.subr.mxu0 0.0
    %4357 = vmatpush1.msra.mxu0 0.0
    %4358 = vmatprep.subr.mxu0 0.0
    %4359 = vmatpush1.msra.mxu0 0.0
    %4360 = vmatprep.subr.mxu0 0.0
    %4361 = vmatpush1.msra.mxu0 0.0
    %4362 = vmatprep.subr.mxu0 0.0
    %4363 = vmatpush1.msra.mxu0 0.0
    %4364 = vmatprep.subr.mxu0 0.0
    %4365 = vmatpush1.msra.mxu0 0.0
    %4366 = vmatprep.subr.mxu0 0.0
    %4367 = vmatpush1.msra.mxu0 0.0
    %4368 = vmatprep.subr.mxu0 0.0
    %4369 = vmatpush1.msra.mxu0 0.0
    %4370 = vmatprep.subr.mxu0 0.0
    %4371 = vmatpush1.msra.mxu0 0.0
    %4372 = vmatprep.subr.mxu0 0.0
    %4373 = vmatpush1.msra.mxu0 0.0
    %4374 = vmatprep.subr.mxu0 0.0
    %4375 = vmatpush1.msra.mxu0 0.0
    %4376 = vmatprep.subr.mxu0 0.0
    %4377 = vmatpush1.msra.mxu0 0.0
    %4378 = vmatprep.subr.mxu0 0.0
    %4379 = vmatpush1.msra.mxu0 0.0
    %4380 = vmatprep.subr.mxu0 0.0
    %4381 = vmatpush1.msra.mxu0 0.0
    %4382 = vmatprep.subr.mxu0 0.0
    %4383 = vmatpush1.msra.mxu0 0.0
    %4384 = vmatprep.subr.mxu0 0.0
    %4385 = vmatpush1.msra.mxu0 0.0
    %4386 = vmatprep.subr.mxu0 0.0
    %4387 = vmatpush1.msra.mxu0 0.0
    %4388 = vmatprep.subr.mxu0 0.0
    %4389 = vmatpush1.msra.mxu0 0.0
    %4390 = vmatprep.subr.mxu0 0.0
    %4391 = vmatpush1.msra.mxu0 0.0
    %4392 = vmatprep.subr.mxu0 0.0
    %4393 = vmatpush1.msra.mxu0 0.0
    %4394 = vmatprep.subr.mxu0 0.0
    %4395 = vmatpush1.msra.mxu0 0.0
    %4396 = vmatprep.mubr.f32.mxu0 0.0
    %v4397 = vand.u32 %v3863, 4294901760
    %v4398 = vsub.f32 %v3863, %v4397
    %v4399 = vand.u32 %v4398, 4294901760
    %v4400 = vsub.f32 %v4398, %v4399
    %v4401 = vand.u32 %v4400, 4294901760
    %4402 = vmatmul.mubr.f32.gmra.mrb[0].mxu0 %v4401
    %v4403 = vpop.f32.mrb[0].mxu0
    %v4404 = vadd.f32 0.0, %v4403
    %v4405 = vpop.f32.mrb[0].mxu0
    %v4406 = vadd.f32 0.0, %v4405
    %4407 = vdwg.mxu0
    %v4408 = vand.u32 %v3848, 4294901760
    %v4409 = vsub.f32 %v3848, %v4408
    %v4410 = vand.u32 %v4409, 4294901760
    %v4411 = vsub.f32 %v4409, %v4410
    %v4412 = vand.u32 %v4411, 4294901760
    %4413 = vmatprep.subr.mxu0 %v4412
    %v4414 = vand.u32 %v3847, 4294901760
    %v4415 = vsub.f32 %v3847, %v4414
    %v4416 = vand.u32 %v4415, 4294901760
    %v4417 = vsub.f32 %v4415, %v4416
    %v4418 = vand.u32 %v4417, 4294901760
    %4419 = vmatpush1.msra.mxu0 %v4418
    %4420 = vmatprep.subr.mxu0 0.0
    %4421 = vmatpush1.msra.mxu0 0.0
    %4422 = vmatprep.subr.mxu0 0.0
    %4423 = vmatpush1.msra.mxu0 0.0
    %4424 = vmatprep.subr.mxu0 0.0
    %4425 = vmatpush1.msra.mxu0 0.0
    %4426 = vmatprep.subr.mxu0 0.0
    %4427 = vmatpush1.msra.mxu0 0.0
    %4428 = vmatprep.subr.mxu0 0.0
    %4429 = vmatpush1.msra.mxu0 0.0
    %4430 = vmatprep.subr.mxu0 0.0
    %4431 = vmatpush1.msra.mxu0 0.0
    %4432 = vmatprep.subr.mxu0 0.0
    %4433 = vmatpush1.msra.mxu0 0.0
    %4434 = vmatprep.subr.mxu0 0.0
    %4435 = vmatpush1.msra.mxu0 0.0
    %4436 = vmatprep.subr.mxu0 0.0
    %4437 = vmatpush1.msra.mxu0 0.0
    %4438 = vmatprep.subr.mxu0 0.0
    %4439 = vmatpush1.msra.mxu0 0.0
    %4440 = vmatprep.subr.mxu0 0.0
    %4441 = vmatpush1.msra.mxu0 0.0
    %4442 = vmatprep.subr.mxu0 0.0
    %4443 = vmatpush1.msra.mxu0 0.0
    %4444 = vmatprep.subr.mxu0 0.0
    %4445 = vmatpush1.msra.mxu0 0.0
    %4446 = vmatprep.subr.mxu0 0.0
    %4447 = vmatpush1.msra.mxu0 0.0
    %4448 = vmatprep.subr.mxu0 0.0
    %4449 = vmatpush1.msra.mxu0 0.0
    %4450 = vmatprep.subr.mxu0 0.0
    %4451 = vmatpush1.msra.mxu0 0.0
    %4452 = vmatprep.subr.mxu0 0.0
    %4453 = vmatpush1.msra.mxu0 0.0
    %4454 = vmatprep.subr.mxu0 0.0
    %4455 = vmatpush1.msra.mxu0 0.0
    %4456 = vmatprep.subr.mxu0 0.0
    %4457 = vmatpush1.msra.mxu0 0.0
    %4458 = vmatprep.subr.mxu0 0.0
    %4459 = vmatpush1.msra.mxu0 0.0
    %4460 = vmatprep.subr.mxu0 0.0
    %4461 = vmatpush1.msra.mxu0 0.0
    %4462 = vmatprep.subr.mxu0 0.0
    %4463 = vmatpush1.msra.mxu0 0.0
    %4464 = vmatprep.subr.mxu0 0.0
    %4465 = vmatpush1.msra.mxu0 0.0
    %4466 = vmatprep.subr.mxu0 0.0
    %4467 = vmatpush1.msra.mxu0 0.0
    %4468 = vmatprep.subr.mxu0 0.0
    %4469 = vmatpush1.msra.mxu0 0.0
    %4470 = vmatprep.subr.mxu0 0.0
    %4471 = vmatpush1.msra.mxu0 0.0
    %4472 = vmatprep.subr.mxu0 0.0
    %4473 = vmatpush1.msra.mxu0 0.0
    %4474 = vmatprep.subr.mxu0 0.0
    %4475 = vmatpush1.msra.mxu0 0.0
    %4476 = vmatprep.subr.mxu0 0.0
    %4477 = vmatpush1.msra.mxu0 0.0
    %4478 = vmatprep.subr.mxu0 0.0
    %4479 = vmatpush1.msra.mxu0 0.0
    %4480 = vmatprep.subr.mxu0 0.0
    %4481 = vmatpush1.msra.mxu0 0.0
    %4482 = vmatprep.mubr.f32.mxu0 0.0
    %v4483 = vand.u32 %v3863, 4294901760
    %4484 = vmatmul.mubr.f32.gmra.mrb[0].mxu0 %v4483
    %v4485 = vpop.f32.mrb[0].mxu0
    %v4486 = vadd.f32 %v4404, %v4485
    %v4487 = vpop.f32.mrb[0].mxu0
    %v4488 = vadd.f32 %v4406, %v4487
    %4489 = vdwg.mxu0
    %v4490 = vand.u32 %v3848, 4294901760
    %v4491 = vsub.f32 %v3848, %v4490
    %4492 = vmatprep.subr.mxu0 %v4491
    %v4493 = vand.u32 %v3847, 4294901760
    %v4494 = vsub.f32 %v3847, %v4493
    %4495 = vmatpush1.msra.mxu0 %v4494
    %4496 = vmatprep.subr.mxu0 0.0
    %4497 = vmatpush1.msra.mxu0 0.0
    %4498 = vmatprep.subr.mxu0 0.0
    %4499 = vmatpush1.msra.mxu0 0.0
    %4500 = vmatprep.subr.mxu0 0.0
    %4501 = vmatpush1.msra.mxu0 0.0
    %4502 = vmatprep.subr.mxu0 0.0
    %4503 = vmatpush1.msra.mxu0 0.0
    %4504 = vmatprep.subr.mxu0 0.0
    %4505 = vmatpush1.msra.mxu0 0.0
    %4506 = vmatprep.subr.mxu0 0.0
    %4507 = vmatpush1.msra.mxu0 0.0
    %4508 = vmatprep.subr.mxu0 0.0
    %4509 = vmatpush1.msra.mxu0 0.0
    %4510 = vmatprep.subr.mxu0 0.0
    %4511 = vmatpush1.msra.mxu0 0.0
    %4512 = vmatprep.subr.mxu0 0.0
    %4513 = vmatpush1.msra.mxu0 0.0
    %4514 = vmatprep.subr.mxu0 0.0
    %4515 = vmatpush1.msra.mxu0 0.0
    %4516 = vmatprep.subr.mxu0 0.0
    %4517 = vmatpush1.msra.mxu0 0.0
    %4518 = vmatprep.subr.mxu0 0.0
    %4519 = vmatpush1.msra.mxu0 0.0
    %4520 = vmatprep.subr.mxu0 0.0
    %4521 = vmatpush1.msra.mxu0 0.0
    %4522 = vmatprep.subr.mxu0 0.0
    %4523 = vmatpush1.msra.mxu0 0.0
    %4524 = vmatprep.subr.mxu0 0.0
    %4525 = vmatpush1.msra.mxu0 0.0
    %4526 = vmatprep.subr.mxu0 0.0
    %4527 = vmatpush1.msra.mxu0 0.0
    %4528 = vmatprep.subr.mxu0 0.0
    %4529 = vmatpush1.msra.mxu0 0.0
    %4530 = vmatprep.subr.mxu0 0.0
    %4531 = vmatpush1.msra.mxu0 0.0
    %4532 = vmatprep.subr.mxu0 0.0
    %4533 = vmatpush1.msra.mxu0 0.0
    %4534 = vmatprep.subr.mxu0 0.0
    %4535 = vmatpush1.msra.mxu0 0.0
    %4536 = vmatprep.subr.mxu0 0.0
    %4537 = vmatpush1.msra.mxu0 0.0
    %4538 = vmatprep.subr.mxu0 0.0
    %4539 = vmatpush1.msra.mxu0 0.0
    %4540 = vmatprep.subr.mxu0 0.0
    %4541 = vmatpush1.msra.mxu0 0.0
    %4542 = vmatprep.subr.mxu0 0.0
    %4543 = vmatpush1.msra.mxu0 0.0
    %4544 = vmatprep.subr.mxu0 0.0
    %4545 = vmatpush1.msra.mxu0 0.0
    %4546 = vmatprep.subr.mxu0 0.0
    %4547 = vmatpush1.msra.mxu0 0.0
    %4548 = vmatprep.subr.mxu0 0.0
    %4549 = vmatpush1.msra.mxu0 0.0
    %4550 = vmatprep.subr.mxu0 0.0
    %4551 = vmatpush1.msra.mxu0 0.0
    %4552 = vmatprep.subr.mxu0 0.0
    %4553 = vmatpush1.msra.mxu0 0.0
    %4554 = vmatprep.subr.mxu0 0.0
    %4555 = vmatpush1.msra.mxu0 0.0
    %4556 = vmatprep.subr.mxu0 0.0
    %4557 = vmatpush1.msra.mxu0 0.0
    %4558 = vmatprep.mubr.f32.mxu0 0.0
    %v4559 = vand.u32 %v3863, 4294901760
    %v4560 = vsub.f32 %v3863, %v4559
    %4561 = vmatmul.mubr.f32.gmra.mrb[0].mxu0 %v4560
    %v4562 = vpop.f32.mrb[0].mxu0
    %v4563 = vadd.f32 %v4486, %v4562
    %v4564 = vpop.f32.mrb[0].mxu0
    %v4565 = vadd.f32 %v4488, %v4564
    %4566 = vdwg.mxu0
    %v4567 = vand.u32 %v3848, 4294901760
    %4568 = vmatprep.subr.mxu0 %v4567
    %v4569 = vand.u32 %v3847, 4294901760
    %4570 = vmatpush1.msra.mxu0 %v4569
    %4571 = vmatprep.subr.mxu0 0.0
    %4572 = vmatpush1.msra.mxu0 0.0
    %4573 = vmatprep.subr.mxu0 0.0
    %4574 = vmatpush1.msra.mxu0 0.0
    %4575 = vmatprep.subr.mxu0 0.0
    %4576 = vmatpush1.msra.mxu0 0.0
    %4577 = vmatprep.subr.mxu0 0.0
    %4578 = vmatpush1.msra.mxu0 0.0
    %4579 = vmatprep.subr.mxu0 0.0
    %4580 = vmatpush1.msra.mxu0 0.0
    %4581 = vmatprep.subr.mxu0 0.0
    %4582 = vmatpush1.msra.mxu0 0.0
    %4583 = vmatprep.subr.mxu0 0.0
    %4584 = vmatpush1.msra.mxu0 0.0
    %4585 = vmatprep.subr.mxu0 0.0
    %4586 = vmatpush1.msra.mxu0 0.0
    %4587 = vmatprep.subr.mxu0 0.0
    %4588 = vmatpush1.msra.mxu0 0.0
    %4589 = vmatprep.subr.mxu0 0.0
    %4590 = vmatpush1.msra.mxu0 0.0
    %4591 = vmatprep.subr.mxu0 0.0
    %4592 = vmatpush1.msra.mxu0 0.0
    %4593 = vmatprep.subr.mxu0 0.0
    %4594 = vmatpush1.msra.mxu0 0.0
    %4595 = vmatprep.subr.mxu0 0.0
    %4596 = vmatpush1.msra.mxu0 0.0
    %4597 = vmatprep.subr.mxu0 0.0
    %4598 = vmatpush1.msra.mxu0 0.0
    %4599 = vmatprep.subr.mxu0 0.0
    %4600 = vmatpush1.msra.mxu0 0.0
    %4601 = vmatprep.subr.mxu0 0.0
    %4602 = vmatpush1.msra.mxu0 0.0
    %4603 = vmatprep.subr.mxu0 0.0
    %4604 = vmatpush1.msra.mxu0 0.0
    %4605 = vmatprep.subr.mxu0 0.0
    %4606 = vmatpush1.msra.mxu0 0.0
    %4607 = vmatprep.subr.mxu0 0.0
    %4608 = vmatpush1.msra.mxu0 0.0
    %4609 = vmatprep.subr.mxu0 0.0
    %4610 = vmatpush1.msra.mxu0 0.0
    %4611 = vmatprep.subr.mxu0 0.0
    %4612 = vmatpush1.msra.mxu0 0.0
    %4613 = vmatprep.subr.mxu0 0.0
    %4614 = vmatpush1.msra.mxu0 0.0
    %4615 = vmatprep.subr.mxu0 0.0
    %4616 = vmatpush1.msra.mxu0 0.0
    %4617 = vmatprep.subr.mxu0 0.0
    %4618 = vmatpush1.msra.mxu0 0.0
    %4619 = vmatprep.subr.mxu0 0.0
    %4620 = vmatpush1.msra.mxu0 0.0
    %4621 = vmatprep.subr.mxu0 0.0
    %4622 = vmatpush1.msra.mxu0 0.0
    %4623 = vmatprep.subr.mxu0 0.0
    %4624 = vmatpush1.msra.mxu0 0.0
    %4625 = vmatprep.subr.mxu0 0.0
    %4626 = vmatpush1.msra.mxu0 0.0
    %4627 = vmatprep.subr.mxu0 0.0
    %4628 = vmatpush1.msra.mxu0 0.0
    %4629 = vmatprep.subr.mxu0 0.0
    %4630 = vmatpush1.msra.mxu0 0.0
    %4631 = vmatprep.subr.mxu0 0.0
    %4632 = vmatpush1.msra.mxu0 0.0
    %4633 = vmatprep.mubr.f32.mxu0 0.0
    %v4634 = vand.u32 %v3863, 4294901760
    %v4635 = vsub.f32 %v3863, %v4634
    %v4636 = vand.u32 %v4635, 4294901760
    %4637 = vmatmul.mubr.f32.gmra.mrb[0].mxu0 %v4636
    %v4638 = vpop.f32.mrb[0].mxu0
    %v4639 = vadd.f32 %v4563, %v4638
    %v4640 = vpop.f32.mrb[0].mxu0
    %v4641 = vadd.f32 %v4565, %v4640
    %4642 = vdwg.mxu0
    %v4643 = vand.u32 %v3848, 4294901760
    %v4644 = vsub.f32 %v3848, %v4643
    %v4645 = vand.u32 %v4644, 4294901760
    %4646 = vmatprep.subr.mxu0 %v4645
    %v4647 = vand.u32 %v3847, 4294901760
    %v4648 = vsub.f32 %v3847, %v4647
    %v4649 = vand.u32 %v4648, 4294901760
    %4650 = vmatpush1.msra.mxu0 %v4649
    %4651 = vmatprep.subr.mxu0 0.0
    %4652 = vmatpush1.msra.mxu0 0.0
    %4653 = vmatprep.subr.mxu0 0.0
    %4654 = vmatpush1.msra.mxu0 0.0
    %4655 = vmatprep.subr.mxu0 0.0
    %4656 = vmatpush1.msra.mxu0 0.0
    %4657 = vmatprep.subr.mxu0 0.0
    %4658 = vmatpush1.msra.mxu0 0.0
    %4659 = vmatprep.subr.mxu0 0.0
    %4660 = vmatpush1.msra.mxu0 0.0
    %4661 = vmatprep.subr.mxu0 0.0
    %4662 = vmatpush1.msra.mxu0 0.0
    %4663 = vmatprep.subr.mxu0 0.0
    %4664 = vmatpush1.msra.mxu0 0.0
    %4665 = vmatprep.subr.mxu0 0.0
    %4666 = vmatpush1.msra.mxu0 0.0
    %4667 = vmatprep.subr.mxu0 0.0
    %4668 = vmatpush1.msra.mxu0 0.0
    %4669 = vmatprep.subr.mxu0 0.0
    %4670 = vmatpush1.msra.mxu0 0.0
    %4671 = vmatprep.subr.mxu0 0.0
    %4672 = vmatpush1.msra.mxu0 0.0
    %4673 = vmatprep.subr.mxu0 0.0
    %4674 = vmatpush1.msra.mxu0 0.0
    %4675 = vmatprep.subr.mxu0 0.0
    %4676 = vmatpush1.msra.mxu0 0.0
    %4677 = vmatprep.subr.mxu0 0.0
    %4678 = vmatpush1.msra.mxu0 0.0
    %4679 = vmatprep.subr.mxu0 0.0
    %4680 = vmatpush1.msra.mxu0 0.0
    %4681 = vmatprep.subr.mxu0 0.0
    %4682 = vmatpush1.msra.mxu0 0.0
    %4683 = vmatprep.subr.mxu0 0.0
    %4684 = vmatpush1.msra.mxu0 0.0
    %4685 = vmatprep.subr.mxu0 0.0
    %4686 = vmatpush1.msra.mxu0 0.0
    %4687 = vmatprep.subr.mxu0 0.0
    %4688 = vmatpush1.msra.mxu0 0.0
    %4689 = vmatprep.subr.mxu0 0.0
    %4690 = vmatpush1.msra.mxu0 0.0
    %4691 = vmatprep.subr.mxu0 0.0
    %4692 = vmatpush1.msra.mxu0 0.0
    %4693 = vmatprep.subr.mxu0 0.0
    %4694 = vmatpush1.msra.mxu0 0.0
    %4695 = vmatprep.subr.mxu0 0.0
    %4696 = vmatpush1.msra.mxu0 0.0
    %4697 = vmatprep.subr.mxu0 0.0
    %4698 = vmatpush1.msra.mxu0 0.0
    %4699 = vmatprep.subr.mxu0 0.0
    %4700 = vmatpush1.msra.mxu0 0.0
    %4701 = vmatprep.subr.mxu0 0.0
    %4702 = vmatpush1.msra.mxu0 0.0
    %4703 = vmatprep.subr.mxu0 0.0
    %4704 = vmatpush1.msra.mxu0 0.0
    %4705 = vmatprep.subr.mxu0 0.0
    %4706 = vmatpush1.msra.mxu0 0.0
    %4707 = vmatprep.subr.mxu0 0.0
    %4708 = vmatpush1.msra.mxu0 0.0
    %4709 = vmatprep.subr.mxu0 0.0
    %4710 = vmatpush1.msra.mxu0 0.0
    %4711 = vmatprep.subr.mxu0 0.0
    %4712 = vmatpush1.msra.mxu0 0.0
    %4713 = vmatprep.mubr.f32.mxu0 0.0
    %v4714 = vand.u32 %v3863, 4294901760
    %4715 = vmatmul.mubr.f32.gmra.mrb[0].mxu0 %v4714
    %v4716 = vpop.f32.mrb[0].mxu0
    %v4717 = vadd.f32 %v4639, %v4716
    %v4718 = vpop.f32.mrb[0].mxu0
    %v4719 = vadd.f32 %v4641, %v4718
    %4720 = vdwg.mxu0
    %v4721 = vand.u32 %v3848, 4294901760
    %4722 = vmatprep.subr.mxu0 %v4721
    %v4723 = vand.u32 %v3847, 4294901760
    %4724 = vmatpush1.msra.mxu0 %v4723
    %4725 = vmatprep.subr.mxu0 0.0
    %4726 = vmatpush1.msra.mxu0 0.0
    %4727 = vmatprep.subr.mxu0 0.0
    %4728 = vmatpush1.msra.mxu0 0.0
    %4729 = vmatprep.subr.mxu0 0.0
    %4730 = vmatpush1.msra.mxu0 0.0
    %4731 = vmatprep.subr.mxu0 0.0
    %4732 = vmatpush1.msra.mxu0 0.0
    %4733 = vmatprep.subr.mxu0 0.0
    %4734 = vmatpush1.msra.mxu0 0.0
    %4735 = vmatprep.subr.mxu0 0.0
    %4736 = vmatpush1.msra.mxu0 0.0
    %4737 = vmatprep.subr.mxu0 0.0
    %4738 = vmatpush1.msra.mxu0 0.0
    %4739 = vmatprep.subr.mxu0 0.0
    %4740 = vmatpush1.msra.mxu0 0.0
    %4741 = vmatprep.subr.mxu0 0.0
    %4742 = vmatpush1.msra.mxu0 0.0
    %4743 = vmatprep.subr.mxu0 0.0
    %4744 = vmatpush1.msra.mxu0 0.0
    %4745 = vmatprep.subr.mxu0 0.0
    %4746 = vmatpush1.msra.mxu0 0.0
    %4747 = vmatprep.subr.mxu0 0.0
    %4748 = vmatpush1.msra.mxu0 0.0
    %4749 = vmatprep.subr.mxu0 0.0
    %4750 = vmatpush1.msra.mxu0 0.0
    %4751 = vmatprep.subr.mxu0 0.0
    %4752 = vmatpush1.msra.mxu0 0.0
    %4753 = vmatprep.subr.mxu0 0.0
    %4754 = vmatpush1.msra.mxu0 0.0
    %4755 = vmatprep.subr.mxu0 0.0
    %4756 = vmatpush1.msra.mxu0 0.0
    %4757 = vmatprep.subr.mxu0 0.0
    %4758 = vmatpush1.msra.mxu0 0.0
    %4759 = vmatprep.subr.mxu0 0.0
    %4760 = vmatpush1.msra.mxu0 0.0
    %4761 = vmatprep.subr.mxu0 0.0
    %4762 = vmatpush1.msra.mxu0 0.0
    %4763 = vmatprep.subr.mxu0 0.0
    %4764 = vmatpush1.msra.mxu0 0.0
    %4765 = vmatprep.subr.mxu0 0.0
    %4766 = vmatpush1.msra.mxu0 0.0
    %4767 = vmatprep.subr.mxu0 0.0
    %4768 = vmatpush1.msra.mxu0 0.0
    %4769 = vmatprep.subr.mxu0 0.0
    %4770 = vmatpush1.msra.mxu0 0.0
    %4771 = vmatprep.subr.mxu0 0.0
    %4772 = vmatpush1.msra.mxu0 0.0
    %4773 = vmatprep.subr.mxu0 0.0
    %4774 = vmatpush1.msra.mxu0 0.0
    %4775 = vmatprep.subr.mxu0 0.0
    %4776 = vmatpush1.msra.mxu0 0.0
    %4777 = vmatprep.subr.mxu0 0.0
    %4778 = vmatpush1.msra.mxu0 0.0
    %4779 = vmatprep.subr.mxu0 0.0
    %4780 = vmatpush1.msra.mxu0 0.0
    %4781 = vmatprep.subr.mxu0 0.0
    %4782 = vmatpush1.msra.mxu0 0.0
    %4783 = vmatprep.subr.mxu0 0.0
    %4784 = vmatpush1.msra.mxu0 0.0
    %4785 = vmatprep.subr.mxu0 0.0
    %4786 = vmatpush1.msra.mxu0 0.0
    %4787 = vmatprep.mubr.f32.mxu0 0.0
    %v4788 = vand.u32 %v3863, 4294901760
    %4789 = vmatmul.mubr.f32.gmra.mrb[0].mxu0 %v4788
    %v4790 = vpop.f32.mrb[0].mxu0
    %v4791 = vadd.f32 %v4717, %v4790
    %v4792 = vpop.f32.mrb[0].mxu0
    %v4793 = vadd.f32 %v4719, %v4792
    %4794 = vdwg.mxu0
    %v4795 = vand.u32 %v3850, 4294901760
    %4796 = vmatprep.subr.mxu0 %v4795
    %v4797 = vand.u32 %v3849, 4294901760
    %4798 = vmatpush1.msra.mxu0 %v4797
    %4799 = vmatprep.subr.mxu0 0.0
    %4800 = vmatpush1.msra.mxu0 0.0
    %4801 = vmatprep.subr.mxu0 0.0
    %4802 = vmatpush1.msra.mxu0 0.0
    %4803 = vmatprep.subr.mxu0 0.0
    %4804 = vmatpush1.msra.mxu0 0.0
    %4805 = vmatprep.subr.mxu0 0.0
    %4806 = vmatpush1.msra.mxu0 0.0
    %4807 = vmatprep.subr.mxu0 0.0
    %4808 = vmatpush1.msra.mxu0 0.0
    %4809 = vmatprep.subr.mxu0 0.0
    %4810 = vmatpush1.msra.mxu0 0.0
    %4811 = vmatprep.subr.mxu0 0.0
    %4812 = vmatpush1.msra.mxu0 0.0
    %4813 = vmatprep.subr.mxu0 0.0
    %4814 = vmatpush1.msra.mxu0 0.0
    %4815 = vmatprep.subr.mxu0 0.0
    %4816 = vmatpush1.msra.mxu0 0.0
    %4817 = vmatprep.subr.mxu0 0.0
    %4818 = vmatpush1.msra.mxu0 0.0
    %4819 = vmatprep.subr.mxu0 0.0
    %4820 = vmatpush1.msra.mxu0 0.0
    %4821 = vmatprep.subr.mxu0 0.0
    %4822 = vmatpush1.msra.mxu0 0.0
    %4823 = vmatprep.subr.mxu0 0.0
    %4824 = vmatpush1.msra.mxu0 0.0
    %4825 = vmatprep.subr.mxu0 0.0
    %4826 = vmatpush1.msra.mxu0 0.0
    %4827 = vmatprep.subr.mxu0 0.0
    %4828 = vmatpush1.msra.mxu0 0.0
    %4829 = vmatprep.subr.mxu0 0.0
    %4830 = vmatpush1.msra.mxu0 0.0
    %4831 = vmatprep.subr.mxu0 0.0
    %4832 = vmatpush1.msra.mxu0 0.0
    %4833 = vmatprep.subr.mxu0 0.0
    %4834 = vmatpush1.msra.mxu0 0.0
    %4835 = vmatprep.subr.mxu0 0.0
    %4836 = vmatpush1.msra.mxu0 0.0
    %4837 = vmatprep.subr.mxu0 0.0
    %4838 = vmatpush1.msra.mxu0 0.0
    %4839 = vmatprep.subr.mxu0 0.0
    %4840 = vmatpush1.msra.mxu0 0.0
    %4841 = vmatprep.subr.mxu0 0.0
    %4842 = vmatpush1.msra.mxu0 0.0
    %4843 = vmatprep.subr.mxu0 0.0
    %4844 = vmatpush1.msra.mxu0 0.0
    %4845 = vmatprep.subr.mxu0 0.0
    %4846 = vmatpush1.msra.mxu0 0.0
    %4847 = vmatprep.subr.mxu0 0.0
    %4848 = vmatpush1.msra.mxu0 0.0
    %4849 = vmatprep.subr.mxu0 0.0
    %4850 = vmatpush1.msra.mxu0 0.0
    %4851 = vmatprep.subr.mxu0 0.0
    %4852 = vmatpush1.msra.mxu0 0.0
    %4853 = vmatprep.subr.mxu0 0.0
    %4854 = vmatpush1.msra.mxu0 0.0
    %4855 = vmatprep.subr.mxu0 0.0
    %4856 = vmatpush1.msra.mxu0 0.0
    %4857 = vmatprep.subr.mxu0 0.0
    %4858 = vmatpush1.msra.mxu0 0.0
    %4859 = vmatprep.subr.mxu0 0.0
    %4860 = vmatpush1.msra.mxu0 0.0
    %4861 = vmatprep.mubr.f32.mxu0 0.0
    %v4862 = vand.u32 %v3863, 4294901760
    %v4863 = vsub.f32 %v3863, %v4862
    %v4864 = vand.u32 %v4863, 4294901760
    %v4865 = vsub.f32 %v4863, %v4864
    %v4866 = vand.u32 %v4865, 4294901760
    %4867 = vmatmul.mubr.f32.gmra.mrb[0].mxu0 %v4866
    %v4868 = vpop.f32.mrb[0].mxu0
    %v4869 = vadd.f32 0.0, %v4868
    %v4870 = vpop.f32.mrb[0].mxu0
    %v4871 = vadd.f32 0.0, %v4870
    %4872 = vdwg.mxu0
    %v4873 = vand.u32 %v3850, 4294901760
    %v4874 = vsub.f32 %v3850, %v4873
    %v4875 = vand.u32 %v4874, 4294901760
    %v4876 = vsub.f32 %v4874, %v4875
    %v4877 = vand.u32 %v4876, 4294901760
    %4878 = vmatprep.subr.mxu0 %v4877
    %v4879 = vand.u32 %v3849, 4294901760
    %v4880 = vsub.f32 %v3849, %v4879
    %v4881 = vand.u32 %v4880, 4294901760
    %v4882 = vsub.f32 %v4880, %v4881
    %v4883 = vand.u32 %v4882, 4294901760
    %4884 = vmatpush1.msra.mxu0 %v4883
    %4885 = vmatprep.subr.mxu0 0.0
    %4886 = vmatpush1.msra.mxu0 0.0
    %4887 = vmatprep.subr.mxu0 0.0
    %4888 = vmatpush1.msra.mxu0 0.0
    %4889 = vmatprep.subr.mxu0 0.0
    %4890 = vmatpush1.msra.mxu0 0.0
    %4891 = vmatprep.subr.mxu0 0.0
    %4892 = vmatpush1.msra.mxu0 0.0
    %4893 = vmatprep.subr.mxu0 0.0
    %4894 = vmatpush1.msra.mxu0 0.0
    %4895 = vmatprep.subr.mxu0 0.0
    %4896 = vmatpush1.msra.mxu0 0.0
    %4897 = vmatprep.subr.mxu0 0.0
    %4898 = vmatpush1.msra.mxu0 0.0
    %4899 = vmatprep.subr.mxu0 0.0
    %4900 = vmatpush1.msra.mxu0 0.0
    %4901 = vmatprep.subr.mxu0 0.0
    %4902 = vmatpush1.msra.mxu0 0.0
    %4903 = vmatprep.subr.mxu0 0.0
    %4904 = vmatpush1.msra.mxu0 0.0
    %4905 = vmatprep.subr.mxu0 0.0
    %4906 = vmatpush1.msra.mxu0 0.0
    %4907 = vmatprep.subr.mxu0 0.0
    %4908 = vmatpush1.msra.mxu0 0.0
    %4909 = vmatprep.subr.mxu0 0.0
    %4910 = vmatpush1.msra.mxu0 0.0
    %4911 = vmatprep.subr.mxu0 0.0
    %4912 = vmatpush1.msra.mxu0 0.0
    %4913 = vmatprep.subr.mxu0 0.0
    %4914 = vmatpush1.msra.mxu0 0.0
    %4915 = vmatprep.subr.mxu0 0.0
    %4916 = vmatpush1.msra.mxu0 0.0
    %4917 = vmatprep.subr.mxu0 0.0
    %4918 = vmatpush1.msra.mxu0 0.0
    %4919 = vmatprep.subr.mxu0 0.0
    %4920 = vmatpush1.msra.mxu0 0.0
    %4921 = vmatprep.subr.mxu0 0.0
    %4922 = vmatpush1.msra.mxu0 0.0
    %4923 = vmatprep.subr.mxu0 0.0
    %4924 = vmatpush1.msra.mxu0 0.0
    %4925 = vmatprep.subr.mxu0 0.0
    %4926 = vmatpush1.msra.mxu0 0.0
    %4927 = vmatprep.subr.mxu0 0.0
    %4928 = vmatpush1.msra.mxu0 0.0
    %4929 = vmatprep.subr.mxu0 0.0
    %4930 = vmatpush1.msra.mxu0 0.0
    %4931 = vmatprep.subr.mxu0 0.0
    %4932 = vmatpush1.msra.mxu0 0.0
    %4933 = vmatprep.subr.mxu0 0.0
    %4934 = vmatpush1.msra.mxu0 0.0
    %4935 = vmatprep.subr.mxu0 0.0
    %4936 = vmatpush1.msra.mxu0 0.0
    %4937 = vmatprep.subr.mxu0 0.0
    %4938 = vmatpush1.msra.mxu0 0.0
    %4939 = vmatprep.subr.mxu0 0.0
    %4940 = vmatpush1.msra.mxu0 0.0
    %4941 = vmatprep.subr.mxu0 0.0
    %4942 = vmatpush1.msra.mxu0 0.0
    %4943 = vmatprep.subr.mxu0 0.0
    %4944 = vmatpush1.msra.mxu0 0.0
    %4945 = vmatprep.subr.mxu0 0.0
    %4946 = vmatpush1.msra.mxu0 0.0
    %4947 = vmatprep.mubr.f32.mxu0 0.0
    %v4948 = vand.u32 %v3863, 4294901760
    %4949 = vmatmul.mubr.f32.gmra.mrb[0].mxu0 %v4948
    %v4950 = vpop.f32.mrb[0].mxu0
    %v4951 = vadd.f32 %v4869, %v4950
    %v4952 = vpop.f32.mrb[0].mxu0
    %v4953 = vadd.f32 %v4871, %v4952
    %4954 = vdwg.mxu0
    %v4955 = vand.u32 %v3850, 4294901760
    %v4956 = vsub.f32 %v3850, %v4955
    %4957 = vmatprep.subr.mxu0 %v4956
    %v4958 = vand.u32 %v3849, 4294901760
    %v4959 = vsub.f32 %v3849, %v4958
    %4960 = vmatpush1.msra.mxu0 %v4959
    %4961 = vmatprep.subr.mxu0 0.0
    %4962 = vmatpush1.msra.mxu0 0.0
    %4963 = vmatprep.subr.mxu0 0.0
    %4964 = vmatpush1.msra.mxu0 0.0
    %4965 = vmatprep.subr.mxu0 0.0
    %4966 = vmatpush1.msra.mxu0 0.0
    %4967 = vmatprep.subr.mxu0 0.0
    %4968 = vmatpush1.msra.mxu0 0.0
    %4969 = vmatprep.subr.mxu0 0.0
    %4970 = vmatpush1.msra.mxu0 0.0
    %4971 = vmatprep.subr.mxu0 0.0
    %4972 = vmatpush1.msra.mxu0 0.0
    %4973 = vmatprep.subr.mxu0 0.0
    %4974 = vmatpush1.msra.mxu0 0.0
    %4975 = vmatprep.subr.mxu0 0.0
    %4976 = vmatpush1.msra.mxu0 0.0
    %4977 = vmatprep.subr.mxu0 0.0
    %4978 = vmatpush1.msra.mxu0 0.0
    %4979 = vmatprep.subr.mxu0 0.0
    %4980 = vmatpush1.msra.mxu0 0.0
    %4981 = vmatprep.subr.mxu0 0.0
    %4982 = vmatpush1.msra.mxu0 0.0
    %4983 = vmatprep.subr.mxu0 0.0
    %4984 = vmatpush1.msra.mxu0 0.0
    %4985 = vmatprep.subr.mxu0 0.0
    %4986 = vmatpush1.msra.mxu0 0.0
    %4987 = vmatprep.subr.mxu0 0.0
    %4988 = vmatpush1.msra.mxu0 0.0
    %4989 = vmatprep.subr.mxu0 0.0
    %4990 = vmatpush1.msra.mxu0 0.0
    %4991 = vmatprep.subr.mxu0 0.0
    %4992 = vmatpush1.msra.mxu0 0.0
    %4993 = vmatprep.subr.mxu0 0.0
    %4994 = vmatpush1.msra.mxu0 0.0
    %4995 = vmatprep.subr.mxu0 0.0
    %4996 = vmatpush1.msra.mxu0 0.0
    %4997 = vmatprep.subr.mxu0 0.0
    %4998 = vmatpush1.msra.mxu0 0.0
    %4999 = vmatprep.subr.mxu0 0.0
    %5000 = vmatpush1.msra.mxu0 0.0
    %5001 = vmatprep.subr.mxu0 0.0
    %5002 = vmatpush1.msra.mxu0 0.0
    %5003 = vmatprep.subr.mxu0 0.0
    %5004 = vmatpush1.msra.mxu0 0.0
    %5005 = vmatprep.subr.mxu0 0.0
    %5006 = vmatpush1.msra.mxu0 0.0
    %5007 = vmatprep.subr.mxu0 0.0
    %5008 = vmatpush1.msra.mxu0 0.0
    %5009 = vmatprep.subr.mxu0 0.0
    %5010 = vmatpush1.msra.mxu0 0.0
    %5011 = vmatprep.subr.mxu0 0.0
    %5012 = vmatpush1.msra.mxu0 0.0
    %5013 = vmatprep.subr.mxu0 0.0
    %5014 = vmatpush1.msra.mxu0 0.0
    %5015 = vmatprep.subr.mxu0 0.0
    %5016 = vmatpush1.msra.mxu0 0.0
    %5017 = vmatprep.subr.mxu0 0.0
    %5018 = vmatpush1.msra.mxu0 0.0
    %5019 = vmatprep.subr.mxu0 0.0
    %5020 = vmatpush1.msra.mxu0 0.0
    %5021 = vmatprep.subr.mxu0 0.0
    %5022 = vmatpush1.msra.mxu0 0.0
    %5023 = vmatprep.mubr.f32.mxu0 0.0
    %v5024 = vand.u32 %v3863, 4294901760
    %v5025 = vsub.f32 %v3863, %v5024
    %5026 = vmatmul.mubr.f32.gmra.mrb[0].mxu0 %v5025
    %v5027 = vpop.f32.mrb[0].mxu0
    %v5028 = vadd.f32 %v4951, %v5027
    %v5029 = vpop.f32.mrb[0].mxu0
    %v5030 = vadd.f32 %v4953, %v5029
    %5031 = vdwg.mxu0
    %v5032 = vand.u32 %v3850, 4294901760
    %5033 = vmatprep.subr.mxu0 %v5032
    %v5034 = vand.u32 %v3849, 4294901760
    %5035 = vmatpush1.msra.mxu0 %v5034
    %5036 = vmatprep.subr.mxu0 0.0
    %5037 = vmatpush1.msra.mxu0 0.0
    %5038 = vmatprep.subr.mxu0 0.0
    %5039 = vmatpush1.msra.mxu0 0.0
    %5040 = vmatprep.subr.mxu0 0.0
    %5041 = vmatpush1.msra.mxu0 0.0
    %5042 = vmatprep.subr.mxu0 0.0
    %5043 = vmatpush1.msra.mxu0 0.0
    %5044 = vmatprep.subr.mxu0 0.0
    %5045 = vmatpush1.msra.mxu0 0.0
    %5046 = vmatprep.subr.mxu0 0.0
    %5047 = vmatpush1.msra.mxu0 0.0
    %5048 = vmatprep.subr.mxu0 0.0
    %5049 = vmatpush1.msra.mxu0 0.0
    %5050 = vmatprep.subr.mxu0 0.0
    %5051 = vmatpush1.msra.mxu0 0.0
    %5052 = vmatprep.subr.mxu0 0.0
    %5053 = vmatpush1.msra.mxu0 0.0
    %5054 = vmatprep.subr.mxu0 0.0
    %5055 = vmatpush1.msra.mxu0 0.0
    %5056 = vmatprep.subr.mxu0 0.0
    %5057 = vmatpush1.msra.mxu0 0.0
    %5058 = vmatprep.subr.mxu0 0.0
    %5059 = vmatpush1.msra.mxu0 0.0
    %5060 = vmatprep.subr.mxu0 0.0
    %5061 = vmatpush1.msra.mxu0 0.0
    %5062 = vmatprep.subr.mxu0 0.0
    %5063 = vmatpush1.msra.mxu0 0.0
    %5064 = vmatprep.subr.mxu0 0.0
    %5065 = vmatpush1.msra.mxu0 0.0
    %5066 = vmatprep.subr.mxu0 0.0
    %5067 = vmatpush1.msra.mxu0 0.0
    %5068 = vmatprep.subr.mxu0 0.0
    %5069 = vmatpush1.msra.mxu0 0.0
    %5070 = vmatprep.subr.mxu0 0.0
    %5071 = vmatpush1.msra.mxu0 0.0
    %5072 = vmatprep.subr.mxu0 0.0
    %5073 = vmatpush1.msra.mxu0 0.0
    %5074 = vmatprep.subr.mxu0 0.0
    %5075 = vmatpush1.msra.mxu0 0.0
    %5076 = vmatprep.subr.mxu0 0.0
    %5077 = vmatpush1.msra.mxu0 0.0
    %5078 = vmatprep.subr.mxu0 0.0
    %5079 = vmatpush1.msra.mxu0 0.0
    %5080 = vmatprep.subr.mxu0 0.0
    %5081 = vmatpush1.msra.mxu0 0.0
    %5082 = vmatprep.subr.mxu0 0.0
    %5083 = vmatpush1.msra.mxu0 0.0
    %5084 = vmatprep.subr.mxu0 0.0
    %5085 = vmatpush1.msra.mxu0 0.0
    %5086 = vmatprep.subr.mxu0 0.0
    %5087 = vmatpush1.msra.mxu0 0.0
    %5088 = vmatprep.subr.mxu0 0.0
    %5089 = vmatpush1.msra.mxu0 0.0
    %5090 = vmatprep.subr.mxu0 0.0
    %5091 = vmatpush1.msra.mxu0 0.0
    %5092 = vmatprep.subr.mxu0 0.0
    %5093 = vmatpush1.msra.mxu0 0.0
    %5094 = vmatprep.subr.mxu0 0.0
    %5095 = vmatpush1.msra.mxu0 0.0
    %5096 = vmatprep.subr.mxu0 0.0
    %5097 = vmatpush1.msra.mxu0 0.0
    %5098 = vmatprep.mubr.f32.mxu0 0.0
    %v5099 = vand.u32 %v3863, 4294901760
    %v5100 = vsub.f32 %v3863, %v5099
    %v5101 = vand.u32 %v5100, 4294901760
    %5102 = vmatmul.mubr.f32.gmra.mrb[0].mxu0 %v5101
    %v5103 = vpop.f32.mrb[0].mxu0
    %v5104 = vadd.f32 %v5028, %v5103
    %v5105 = vpop.f32.mrb[0].mxu0
    %v5106 = vadd.f32 %v5030, %v5105
    %5107 = vdwg.mxu0
    %v5108 = vand.u32 %v3850, 4294901760
    %v5109 = vsub.f32 %v3850, %v5108
    %v5110 = vand.u32 %v5109, 4294901760
    %5111 = vmatprep.subr.mxu0 %v5110
    %v5112 = vand.u32 %v3849, 4294901760
    %v5113 = vsub.f32 %v3849, %v5112
    %v5114 = vand.u32 %v5113, 4294901760
    %5115 = vmatpush1.msra.mxu0 %v5114
    %5116 = vmatprep.subr.mxu0 0.0
    %5117 = vmatpush1.msra.mxu0 0.0
    %5118 = vmatprep.subr.mxu0 0.0
    %5119 = vmatpush1.msra.mxu0 0.0
    %5120 = vmatprep.subr.mxu0 0.0
    %5121 = vmatpush1.msra.mxu0 0.0
    %5122 = vmatprep.subr.mxu0 0.0
    %5123 = vmatpush1.msra.mxu0 0.0
    %5124 = vmatprep.subr.mxu0 0.0
    %5125 = vmatpush1.msra.mxu0 0.0
    %5126 = vmatprep.subr.mxu0 0.0
    %5127 = vmatpush1.msra.mxu0 0.0
    %5128 = vmatprep.subr.mxu0 0.0
    %5129 = vmatpush1.msra.mxu0 0.0
    %5130 = vmatprep.subr.mxu0 0.0
    %5131 = vmatpush1.msra.mxu0 0.0
    %5132 = vmatprep.subr.mxu0 0.0
    %5133 = vmatpush1.msra.mxu0 0.0
    %5134 = vmatprep.subr.mxu0 0.0
    %5135 = vmatpush1.msra.mxu0 0.0
    %5136 = vmatprep.subr.mxu0 0.0
    %5137 = vmatpush1.msra.mxu0 0.0
    %5138 = vmatprep.subr.mxu0 0.0
    %5139 = vmatpush1.msra.mxu0 0.0
    %5140 = vmatprep.subr.mxu0 0.0
    %5141 = vmatpush1.msra.mxu0 0.0
    %5142 = vmatprep.subr.mxu0 0.0
    %5143 = vmatpush1.msra.mxu0 0.0
    %5144 = vmatprep.subr.mxu0 0.0
    %5145 = vmatpush1.msra.mxu0 0.0
    %5146 = vmatprep.subr.mxu0 0.0
    %5147 = vmatpush1.msra.mxu0 0.0
    %5148 = vmatprep.subr.mxu0 0.0
    %5149 = vmatpush1.msra.mxu0 0.0
    %5150 = vmatprep.subr.mxu0 0.0
    %5151 = vmatpush1.msra.mxu0 0.0
    %5152 = vmatprep.subr.mxu0 0.0
    %5153 = vmatpush1.msra.mxu0 0.0
    %5154 = vmatprep.subr.mxu0 0.0
    %5155 = vmatpush1.msra.mxu0 0.0
    %5156 = vmatprep.subr.mxu0 0.0
    %5157 = vmatpush1.msra.mxu0 0.0
    %5158 = vmatprep.subr.mxu0 0.0
    %5159 = vmatpush1.msra.mxu0 0.0
    %5160 = vmatprep.subr.mxu0 0.0
    %5161 = vmatpush1.msra.mxu0 0.0
    %5162 = vmatprep.subr.mxu0 0.0
    %5163 = vmatpush1.msra.mxu0 0.0
    %5164 = vmatprep.subr.mxu0 0.0
    %5165 = vmatpush1.msra.mxu0 0.0
    %5166 = vmatprep.subr.mxu0 0.0
    %5167 = vmatpush1.msra.mxu0 0.0
    %5168 = vmatprep.subr.mxu0 0.0
    %5169 = vmatpush1.msra.mxu0 0.0
    %5170 = vmatprep.subr.mxu0 0.0
    %5171 = vmatpush1.msra.mxu0 0.0
    %5172 = vmatprep.subr.mxu0 0.0
    %5173 = vmatpush1.msra.mxu0 0.0
    %5174 = vmatprep.subr.mxu0 0.0
    %5175 = vmatpush1.msra.mxu0 0.0
    %5176 = vmatprep.subr.mxu0 0.0
    %5177 = vmatpush1.msra.mxu0 0.0
    %5178 = vmatprep.mubr.f32.mxu0 0.0
    %v5179 = vand.u32 %v3863, 4294901760
    %5180 = vmatmul.mubr.f32.gmra.mrb[0].mxu0 %v5179
    %v5181 = vpop.f32.mrb[0].mxu0
    %v5182 = vadd.f32 %v5104, %v5181
    %v5183 = vpop.f32.mrb[0].mxu0
    %v5184 = vadd.f32 %v5106, %v5183
    %5185 = vdwg.mxu0
    %v5186 = vand.u32 %v3850, 4294901760
    %5187 = vmatprep.subr.mxu0 %v5186
    %v5188 = vand.u32 %v3849, 4294901760
    %5189 = vmatpush1.msra.mxu0 %v5188
    %5190 = vmatprep.subr.mxu0 0.0
    %5191 = vmatpush1.msra.mxu0 0.0
    %5192 = vmatprep.subr.mxu0 0.0
    %5193 = vmatpush1.msra.mxu0 0.0
    %5194 = vmatprep.subr.mxu0 0.0
    %5195 = vmatpush1.msra.mxu0 0.0
    %5196 = vmatprep.subr.mxu0 0.0
    %5197 = vmatpush1.msra.mxu0 0.0
    %5198 = vmatprep.subr.mxu0 0.0
    %5199 = vmatpush1.msra.mxu0 0.0
    %5200 = vmatprep.subr.mxu0 0.0
    %5201 = vmatpush1.msra.mxu0 0.0
    %5202 = vmatprep.subr.mxu0 0.0
    %5203 = vmatpush1.msra.mxu0 0.0
    %5204 = vmatprep.subr.mxu0 0.0
    %5205 = vmatpush1.msra.mxu0 0.0
    %5206 = vmatprep.subr.mxu0 0.0
    %5207 = vmatpush1.msra.mxu0 0.0
    %5208 = vmatprep.subr.mxu0 0.0
    %5209 = vmatpush1.msra.mxu0 0.0
    %5210 = vmatprep.subr.mxu0 0.0
    %5211 = vmatpush1.msra.mxu0 0.0
    %5212 = vmatprep.subr.mxu0 0.0
    %5213 = vmatpush1.msra.mxu0 0.0
    %5214 = vmatprep.subr.mxu0 0.0
    %5215 = vmatpush1.msra.mxu0 0.0
    %5216 = vmatprep.subr.mxu0 0.0
    %5217 = vmatpush1.msra.mxu0 0.0
    %5218 = vmatprep.subr.mxu0 0.0
    %5219 = vmatpush1.msra.mxu0 0.0
    %5220 = vmatprep.subr.mxu0 0.0
    %5221 = vmatpush1.msra.mxu0 0.0
    %5222 = vmatprep.subr.mxu0 0.0
    %5223 = vmatpush1.msra.mxu0 0.0
    %5224 = vmatprep.subr.mxu0 0.0
    %5225 = vmatpush1.msra.mxu0 0.0
    %5226 = vmatprep.subr.mxu0 0.0
    %5227 = vmatpush1.msra.mxu0 0.0
    %5228 = vmatprep.subr.mxu0 0.0
    %5229 = vmatpush1.msra.mxu0 0.0
    %5230 = vmatprep.subr.mxu0 0.0
    %5231 = vmatpush1.msra.mxu0 0.0
    %5232 = vmatprep.subr.mxu0 0.0
    %5233 = vmatpush1.msra.mxu0 0.0
    %5234 = vmatprep.subr.mxu0 0.0
    %5235 = vmatpush1.msra.mxu0 0.0
    %5236 = vmatprep.subr.mxu0 0.0
    %5237 = vmatpush1.msra.mxu0 0.0
    %5238 = vmatprep.subr.mxu0 0.0
    %5239 = vmatpush1.msra.mxu0 0.0
    %5240 = vmatprep.subr.mxu0 0.0
    %5241 = vmatpush1.msra.mxu0 0.0
    %5242 = vmatprep.subr.mxu0 0.0
    %5243 = vmatpush1.msra.mxu0 0.0
    %5244 = vmatprep.subr.mxu0 0.0
    %5245 = vmatpush1.msra.mxu0 0.0
    %5246 = vmatprep.subr.mxu0 0.0
    %5247 = vmatpush1.msra.mxu0 0.0
    %5248 = vmatprep.subr.mxu0 0.0
    %5249 = vmatpush1.msra.mxu0 0.0
    %5250 = vmatprep.subr.mxu0 0.0
    %5251 = vmatpush1.msra.mxu0 0.0
    %5252 = vmatprep.mubr.f32.mxu0 0.0
    %v5253 = vand.u32 %v3863, 4294901760
    %5254 = vmatmul.mubr.f32.gmra.mrb[0].mxu0 %v5253
    %v5255 = vpop.f32.mrb[0].mxu0
    %v5256 = vadd.f32 %v5182, %v5255
    %v5257 = vpop.f32.mrb[0].mxu0
    %v5258 = vadd.f32 %v5184, %v5257
    %5259 = vdwg.mxu0
    %v5260 = vand.u32 %v3852, 4294901760
    %5261 = vmatprep.subr.mxu0 %v5260
    %v5262 = vand.u32 %v3851, 4294901760
    %5263 = vmatpush1.msra.mxu0 %v5262
    %5264 = vmatprep.subr.mxu0 0.0
    %5265 = vmatpush1.msra.mxu0 0.0
    %5266 = vmatprep.subr.mxu0 0.0
    %5267 = vmatpush1.msra.mxu0 0.0
    %5268 = vmatprep.subr.mxu0 0.0
    %5269 = vmatpush1.msra.mxu0 0.0
    %5270 = vmatprep.subr.mxu0 0.0
    %5271 = vmatpush1.msra.mxu0 0.0
    %5272 = vmatprep.subr.mxu0 0.0
    %5273 = vmatpush1.msra.mxu0 0.0
    %5274 = vmatprep.subr.mxu0 0.0
    %5275 = vmatpush1.msra.mxu0 0.0
    %5276 = vmatprep.subr.mxu0 0.0
    %5277 = vmatpush1.msra.mxu0 0.0
    %5278 = vmatprep.subr.mxu0 0.0
    %5279 = vmatpush1.msra.mxu0 0.0
    %5280 = vmatprep.subr.mxu0 0.0
    %5281 = vmatpush1.msra.mxu0 0.0
    %5282 = vmatprep.subr.mxu0 0.0
    %5283 = vmatpush1.msra.mxu0 0.0
    %5284 = vmatprep.subr.mxu0 0.0
    %5285 = vmatpush1.msra.mxu0 0.0
    %5286 = vmatprep.subr.mxu0 0.0
    %5287 = vmatpush1.msra.mxu0 0.0
    %5288 = vmatprep.subr.mxu0 0.0
    %5289 = vmatpush1.msra.mxu0 0.0
    %5290 = vmatprep.subr.mxu0 0.0
    %5291 = vmatpush1.msra.mxu0 0.0
    %5292 = vmatprep.subr.mxu0 0.0
    %5293 = vmatpush1.msra.mxu0 0.0
    %5294 = vmatprep.subr.mxu0 0.0
    %5295 = vmatpush1.msra.mxu0 0.0
    %5296 = vmatprep.subr.mxu0 0.0
    %5297 = vmatpush1.msra.mxu0 0.0
    %5298 = vmatprep.subr.mxu0 0.0
    %5299 = vmatpush1.msra.mxu0 0.0
    %5300 = vmatprep.subr.mxu0 0.0
    %5301 = vmatpush1.msra.mxu0 0.0
    %5302 = vmatprep.subr.mxu0 0.0
    %5303 = vmatpush1.msra.mxu0 0.0
    %5304 = vmatprep.subr.mxu0 0.0
    %5305 = vmatpush1.msra.mxu0 0.0
    %5306 = vmatprep.subr.mxu0 0.0
    %5307 = vmatpush1.msra.mxu0 0.0
    %5308 = vmatprep.subr.mxu0 0.0
    %5309 = vmatpush1.msra.mxu0 0.0
    %5310 = vmatprep.subr.mxu0 0.0
    %5311 = vmatpush1.msra.mxu0 0.0
    %5312 = vmatprep.subr.mxu0 0.0
    %5313 = vmatpush1.msra.mxu0 0.0
    %5314 = vmatprep.subr.mxu0 0.0
    %5315 = vmatpush1.msra.mxu0 0.0
    %5316 = vmatprep.subr.mxu0 0.0
    %5317 = vmatpush1.msra.mxu0 0.0
    %5318 = vmatprep.subr.mxu0 0.0
    %5319 = vmatpush1.msra.mxu0 0.0
    %5320 = vmatprep.subr.mxu0 0.0
    %5321 = vmatpush1.msra.mxu0 0.0
    %5322 = vmatprep.subr.mxu0 0.0
    %5323 = vmatpush1.msra.mxu0 0.0
    %5324 = vmatprep.subr.mxu0 0.0
    %5325 = vmatpush1.msra.mxu0 0.0
    %5326 = vmatprep.mubr.f32.mxu0 0.0
    %v5327 = vand.u32 %v3863, 4294901760
    %v5328 = vsub.f32 %v3863, %v5327
    %v5329 = vand.u32 %v5328, 4294901760
    %v5330 = vsub.f32 %v5328, %v5329
    %v5331 = vand.u32 %v5330, 4294901760
    %5332 = vmatmul.mubr.f32.gmra.mrb[0].mxu0 %v5331
    %v5333 = vpop.f32.mrb[0].mxu0
    %v5334 = vadd.f32 0.0, %v5333
    %v5335 = vpop.f32.mrb[0].mxu0
    %v5336 = vadd.f32 0.0, %v5335
    %5337 = vdwg.mxu0
    %v5338 = vand.u32 %v3852, 4294901760
    %v5339 = vsub.f32 %v3852, %v5338
    %v5340 = vand.u32 %v5339, 4294901760
    %v5341 = vsub.f32 %v5339, %v5340
    %v5342 = vand.u32 %v5341, 4294901760
    %5343 = vmatprep.subr.mxu0 %v5342
    %v5344 = vand.u32 %v3851, 4294901760
    %v5345 = vsub.f32 %v3851, %v5344
    %v5346 = vand.u32 %v5345, 4294901760
    %v5347 = vsub.f32 %v5345, %v5346
    %v5348 = vand.u32 %v5347, 4294901760
    %5349 = vmatpush1.msra.mxu0 %v5348
    %5350 = vmatprep.subr.mxu0 0.0
    %5351 = vmatpush1.msra.mxu0 0.0
    %5352 = vmatprep.subr.mxu0 0.0
    %5353 = vmatpush1.msra.mxu0 0.0
    %5354 = vmatprep.subr.mxu0 0.0
    %5355 = vmatpush1.msra.mxu0 0.0
    %5356 = vmatprep.subr.mxu0 0.0
    %5357 = vmatpush1.msra.mxu0 0.0
    %5358 = vmatprep.subr.mxu0 0.0
    %5359 = vmatpush1.msra.mxu0 0.0
    %5360 = vmatprep.subr.mxu0 0.0
    %5361 = vmatpush1.msra.mxu0 0.0
    %5362 = vmatprep.subr.mxu0 0.0
    %5363 = vmatpush1.msra.mxu0 0.0
    %5364 = vmatprep.subr.mxu0 0.0
    %5365 = vmatpush1.msra.mxu0 0.0
    %5366 = vmatprep.subr.mxu0 0.0
    %5367 = vmatpush1.msra.mxu0 0.0
    %5368 = vmatprep.subr.mxu0 0.0
    %5369 = vmatpush1.msra.mxu0 0.0
    %5370 = vmatprep.subr.mxu0 0.0
    %5371 = vmatpush1.msra.mxu0 0.0
    %5372 = vmatprep.subr.mxu0 0.0
    %5373 = vmatpush1.msra.mxu0 0.0
    %5374 = vmatprep.subr.mxu0 0.0
    %5375 = vmatpush1.msra.mxu0 0.0
    %5376 = vmatprep.subr.mxu0 0.0
    %5377 = vmatpush1.msra.mxu0 0.0
    %5378 = vmatprep.subr.mxu0 0.0
    %5379 = vmatpush1.msra.mxu0 0.0
    %5380 = vmatprep.subr.mxu0 0.0
    %5381 = vmatpush1.msra.mxu0 0.0
    %5382 = vmatprep.subr.mxu0 0.0
    %5383 = vmatpush1.msra.mxu0 0.0
    %5384 = vmatprep.subr.mxu0 0.0
    %5385 = vmatpush1.msra.mxu0 0.0
    %5386 = vmatprep.subr.mxu0 0.0
    %5387 = vmatpush1.msra.mxu0 0.0
    %5388 = vmatprep.subr.mxu0 0.0
    %5389 = vmatpush1.msra.mxu0 0.0
    %5390 = vmatprep.subr.mxu0 0.0
    %5391 = vmatpush1.msra.mxu0 0.0
    %5392 = vmatprep.subr.mxu0 0.0
    %5393 = vmatpush1.msra.mxu0 0.0
    %5394 = vmatprep.subr.mxu0 0.0
    %5395 = vmatpush1.msra.mxu0 0.0
    %5396 = vmatprep.subr.mxu0 0.0
    %5397 = vmatpush1.msra.mxu0 0.0
    %5398 = vmatprep.subr.mxu0 0.0
    %5399 = vmatpush1.msra.mxu0 0.0
    %5400 = vmatprep.subr.mxu0 0.0
    %5401 = vmatpush1.msra.mxu0 0.0
    %5402 = vmatprep.subr.mxu0 0.0
    %5403 = vmatpush1.msra.mxu0 0.0
    %5404 = vmatprep.subr.mxu0 0.0
    %5405 = vmatpush1.msra.mxu0 0.0
    %5406 = vmatprep.subr.mxu0 0.0
    %5407 = vmatpush1.msra.mxu0 0.0
    %5408 = vmatprep.subr.mxu0 0.0
    %5409 = vmatpush1.msra.mxu0 0.0
    %5410 = vmatprep.subr.mxu0 0.0
    %5411 = vmatpush1.msra.mxu0 0.0
    %5412 = vmatprep.mubr.f32.mxu0 0.0
    %v5413 = vand.u32 %v3863, 4294901760
    %5414 = vmatmul.mubr.f32.gmra.mrb[0].mxu0 %v5413
    %v5415 = vpop.f32.mrb[0].mxu0
    %v5416 = vadd.f32 %v5334, %v5415
    %v5417 = vpop.f32.mrb[0].mxu0
    %v5418 = vadd.f32 %v5336, %v5417
    %5419 = vdwg.mxu0
    %v5420 = vand.u32 %v3852, 4294901760
    %v5421 = vsub.f32 %v3852, %v5420
    %5422 = vmatprep.subr.mxu0 %v5421
    %v5423 = vand.u32 %v3851, 4294901760
    %v5424 = vsub.f32 %v3851, %v5423
    %5425 = vmatpush1.msra.mxu0 %v5424
    %5426 = vmatprep.subr.mxu0 0.0
    %5427 = vmatpush1.msra.mxu0 0.0
    %5428 = vmatprep.subr.mxu0 0.0
    %5429 = vmatpush1.msra.mxu0 0.0
    %5430 = vmatprep.subr.mxu0 0.0
    %5431 = vmatpush1.msra.mxu0 0.0
    %5432 = vmatprep.subr.mxu0 0.0
    %5433 = vmatpush1.msra.mxu0 0.0
    %5434 = vmatprep.subr.mxu0 0.0
    %5435 = vmatpush1.msra.mxu0 0.0
    %5436 = vmatprep.subr.mxu0 0.0
    %5437 = vmatpush1.msra.mxu0 0.0
    %5438 = vmatprep.subr.mxu0 0.0
    %5439 = vmatpush1.msra.mxu0 0.0
    %5440 = vmatprep.subr.mxu0 0.0
    %5441 = vmatpush1.msra.mxu0 0.0
    %5442 = vmatprep.subr.mxu0 0.0
    %5443 = vmatpush1.msra.mxu0 0.0
    %5444 = vmatprep.subr.mxu0 0.0
    %5445 = vmatpush1.msra.mxu0 0.0
    %5446 = vmatprep.subr.mxu0 0.0
    %5447 = vmatpush1.msra.mxu0 0.0
    %5448 = vmatprep.subr.mxu0 0.0
    %5449 = vmatpush1.msra.mxu0 0.0
    %5450 = vmatprep.subr.mxu0 0.0
    %5451 = vmatpush1.msra.mxu0 0.0
    %5452 = vmatprep.subr.mxu0 0.0
    %5453 = vmatpush1.msra.mxu0 0.0
    %5454 = vmatprep.subr.mxu0 0.0
    %5455 = vmatpush1.msra.mxu0 0.0
    %5456 = vmatprep.subr.mxu0 0.0
    %5457 = vmatpush1.msra.mxu0 0.0
    %5458 = vmatprep.subr.mxu0 0.0
    %5459 = vmatpush1.msra.mxu0 0.0
    %5460 = vmatprep.subr.mxu0 0.0
    %5461 = vmatpush1.msra.mxu0 0.0
    %5462 = vmatprep.subr.mxu0 0.0
    %5463 = vmatpush1.msra.mxu0 0.0
    %5464 = vmatprep.subr.mxu0 0.0
    %5465 = vmatpush1.msra.mxu0 0.0
    %5466 = vmatprep.subr.mxu0 0.0
    %5467 = vmatpush1.msra.mxu0 0.0
    %5468 = vmatprep.subr.mxu0 0.0
    %5469 = vmatpush1.msra.mxu0 0.0
    %5470 = vmatprep.subr.mxu0 0.0
    %5471 = vmatpush1.msra.mxu0 0.0
    %5472 = vmatprep.subr.mxu0 0.0
    %5473 = vmatpush1.msra.mxu0 0.0
    %5474 = vmatprep.subr.mxu0 0.0
    %5475 = vmatpush1.msra.mxu0 0.0
    %5476 = vmatprep.subr.mxu0 0.0
    %5477 = vmatpush1.msra.mxu0 0.0
    %5478 = vmatprep.subr.mxu0 0.0
    %5479 = vmatpush1.msra.mxu0 0.0
    %5480 = vmatprep.subr.mxu0 0.0
    %5481 = vmatpush1.msra.mxu0 0.0
    %5482 = vmatprep.subr.mxu0 0.0
    %5483 = vmatpush1.msra.mxu0 0.0
    %5484 = vmatprep.subr.mxu0 0.0
    %5485 = vmatpush1.msra.mxu0 0.0
    %5486 = vmatprep.subr.mxu0 0.0
    %5487 = vmatpush1.msra.mxu0 0.0
    %5488 = vmatprep.mubr.f32.mxu0 0.0
    %v5489 = vand.u32 %v3863, 4294901760
    %v5490 = vsub.f32 %v3863, %v5489
    %5491 = vmatmul.mubr.f32.gmra.mrb[0].mxu0 %v5490
    %v5492 = vpop.f32.mrb[0].mxu0
    %v5493 = vadd.f32 %v5416, %v5492
    %v5494 = vpop.f32.mrb[0].mxu0
    %v5495 = vadd.f32 %v5418, %v5494
    %5496 = vdwg.mxu0
    %v5497 = vand.u32 %v3852, 4294901760
    %5498 = vmatprep.subr.mxu0 %v5497
    %v5499 = vand.u32 %v3851, 4294901760
    %5500 = vmatpush1.msra.mxu0 %v5499
    %5501 = vmatprep.subr.mxu0 0.0
    %5502 = vmatpush1.msra.mxu0 0.0
    %5503 = vmatprep.subr.mxu0 0.0
    %5504 = vmatpush1.msra.mxu0 0.0
    %5505 = vmatprep.subr.mxu0 0.0
    %5506 = vmatpush1.msra.mxu0 0.0
    %5507 = vmatprep.subr.mxu0 0.0
    %5508 = vmatpush1.msra.mxu0 0.0
    %5509 = vmatprep.subr.mxu0 0.0
    %5510 = vmatpush1.msra.mxu0 0.0
    %5511 = vmatprep.subr.mxu0 0.0
    %5512 = vmatpush1.msra.mxu0 0.0
    %5513 = vmatprep.subr.mxu0 0.0
    %5514 = vmatpush1.msra.mxu0 0.0
    %5515 = vmatprep.subr.mxu0 0.0
    %5516 = vmatpush1.msra.mxu0 0.0
    %5517 = vmatprep.subr.mxu0 0.0
    %5518 = vmatpush1.msra.mxu0 0.0
    %5519 = vmatprep.subr.mxu0 0.0
    %5520 = vmatpush1.msra.mxu0 0.0
    %5521 = vmatprep.subr.mxu0 0.0
    %5522 = vmatpush1.msra.mxu0 0.0
    %5523 = vmatprep.subr.mxu0 0.0
    %5524 = vmatpush1.msra.mxu0 0.0
    %5525 = vmatprep.subr.mxu0 0.0
    %5526 = vmatpush1.msra.mxu0 0.0
    %5527 = vmatprep.subr.mxu0 0.0
    %5528 = vmatpush1.msra.mxu0 0.0
    %5529 = vmatprep.subr.mxu0 0.0
    %5530 = vmatpush1.msra.mxu0 0.0
    %5531 = vmatprep.subr.mxu0 0.0
    %5532 = vmatpush1.msra.mxu0 0.0
    %5533 = vmatprep.subr.mxu0 0.0
    %5534 = vmatpush1.msra.mxu0 0.0
    %5535 = vmatprep.subr.mxu0 0.0
    %5536 = vmatpush1.msra.mxu0 0.0
    %5537 = vmatprep.subr.mxu0 0.0
    %5538 = vmatpush1.msra.mxu0 0.0
    %5539 = vmatprep.subr.mxu0 0.0
    %5540 = vmatpush1.msra.mxu0 0.0
    %5541 = vmatprep.subr.mxu0 0.0
    %5542 = vmatpush1.msra.mxu0 0.0
    %5543 = vmatprep.subr.mxu0 0.0
    %5544 = vmatpush1.msra.mxu0 0.0
    %5545 = vmatprep.subr.mxu0 0.0
    %5546 = vmatpush1.msra.mxu0 0.0
    %5547 = vmatprep.subr.mxu0 0.0
    %5548 = vmatpush1.msra.mxu0 0.0
    %5549 = vmatprep.subr.mxu0 0.0
    %5550 = vmatpush1.msra.mxu0 0.0
    %5551 = vmatprep.subr.mxu0 0.0
    %5552 = vmatpush1.msra.mxu0 0.0
    %5553 = vmatprep.subr.mxu0 0.0
    %5554 = vmatpush1.msra.mxu0 0.0
    %5555 = vmatprep.subr.mxu0 0.0
    %5556 = vmatpush1.msra.mxu0 0.0
    %5557 = vmatprep.subr.mxu0 0.0
    %5558 = vmatpush1.msra.mxu0 0.0
    %5559 = vmatprep.subr.mxu0 0.0
    %5560 = vmatpush1.msra.mxu0 0.0
    %5561 = vmatprep.subr.mxu0 0.0
    %5562 = vmatpush1.msra.mxu0 0.0
    %5563 = vmatprep.mubr.f32.mxu0 0.0
    %v5564 = vand.u32 %v3863, 4294901760
    %v5565 = vsub.f32 %v3863, %v5564
    %v5566 = vand.u32 %v5565, 4294901760
    %5567 = vmatmul.mubr.f32.gmra.mrb[0].mxu0 %v5566
    %v5568 = vpop.f32.mrb[0].mxu0
    %v5569 = vadd.f32 %v5493, %v5568
    %v5570 = vpop.f32.mrb[0].mxu0
    %v5571 = vadd.f32 %v5495, %v5570
    %5572 = vdwg.mxu0
    %v5573 = vand.u32 %v3852, 4294901760
    %v5574 = vsub.f32 %v3852, %v5573
    %v5575 = vand.u32 %v5574, 4294901760
    %5576 = vmatprep.subr.mxu0 %v5575
    %v5577 = vand.u32 %v3851, 4294901760
    %v5578 = vsub.f32 %v3851, %v5577
    %v5579 = vand.u32 %v5578, 4294901760
    %5580 = vmatpush1.msra.mxu0 %v5579
    %5581 = vmatprep.subr.mxu0 0.0
    %5582 = vmatpush1.msra.mxu0 0.0
    %5583 = vmatprep.subr.mxu0 0.0
    %5584 = vmatpush1.msra.mxu0 0.0
    %5585 = vmatprep.subr.mxu0 0.0
    %5586 = vmatpush1.msra.mxu0 0.0
    %5587 = vmatprep.subr.mxu0 0.0
    %5588 = vmatpush1.msra.mxu0 0.0
    %5589 = vmatprep.subr.mxu0 0.0
    %5590 = vmatpush1.msra.mxu0 0.0
    %5591 = vmatprep.subr.mxu0 0.0
    %5592 = vmatpush1.msra.mxu0 0.0
    %5593 = vmatprep.subr.mxu0 0.0
    %5594 = vmatpush1.msra.mxu0 0.0
    %5595 = vmatprep.subr.mxu0 0.0
    %5596 = vmatpush1.msra.mxu0 0.0
    %5597 = vmatprep.subr.mxu0 0.0
    %5598 = vmatpush1.msra.mxu0 0.0
    %5599 = vmatprep.subr.mxu0 0.0
    %5600 = vmatpush1.msra.mxu0 0.0
    %5601 = vmatprep.subr.mxu0 0.0
    %5602 = vmatpush1.msra.mxu0 0.0
    %5603 = vmatprep.subr.mxu0 0.0
    %5604 = vmatpush1.msra.mxu0 0.0
    %5605 = vmatprep.subr.mxu0 0.0
    %5606 = vmatpush1.msra.mxu0 0.0
    %5607 = vmatprep.subr.mxu0 0.0
    %5608 = vmatpush1.msra.mxu0 0.0
    %5609 = vmatprep.subr.mxu0 0.0
    %5610 = vmatpush1.msra.mxu0 0.0
    %5611 = vmatprep.subr.mxu0 0.0
    %5612 = vmatpush1.msra.mxu0 0.0
    %5613 = vmatprep.subr.mxu0 0.0
    %5614 = vmatpush1.msra.mxu0 0.0
    %5615 = vmatprep.subr.mxu0 0.0
    %5616 = vmatpush1.msra.mxu0 0.0
    %5617 = vmatprep.subr.mxu0 0.0
    %5618 = vmatpush1.msra.mxu0 0.0
    %5619 = vmatprep.subr.mxu0 0.0
    %5620 = vmatpush1.msra.mxu0 0.0
    %5621 = vmatprep.subr.mxu0 0.0
    %5622 = vmatpush1.msra.mxu0 0.0
    %5623 = vmatprep.subr.mxu0 0.0
    %5624 = vmatpush1.msra.mxu0 0.0
    %5625 = vmatprep.subr.mxu0 0.0
    %5626 = vmatpush1.msra.mxu0 0.0
    %5627 = vmatprep.subr.mxu0 0.0
    %5628 = vmatpush1.msra.mxu0 0.0
    %5629 = vmatprep.subr.mxu0 0.0
    %5630 = vmatpush1.msra.mxu0 0.0
    %5631 = vmatprep.subr.mxu0 0.0
    %5632 = vmatpush1.msra.mxu0 0.0
    %5633 = vmatprep.subr.mxu0 0.0
    %5634 = vmatpush1.msra.mxu0 0.0
    %5635 = vmatprep.subr.mxu0 0.0
    %5636 = vmatpush1.msra.mxu0 0.0
    %5637 = vmatprep.subr.mxu0 0.0
    %5638 = vmatpush1.msra.mxu0 0.0
    %5639 = vmatprep.subr.mxu0 0.0
    %5640 = vmatpush1.msra.mxu0 0.0
    %5641 = vmatprep.subr.mxu0 0.0
    %5642 = vmatpush1.msra.mxu0 0.0
    %5643 = vmatprep.mubr.f32.mxu0 0.0
    %v5644 = vand.u32 %v3863, 4294901760
    %5645 = vmatmul.mubr.f32.gmra.mrb[0].mxu0 %v5644
    %v5646 = vpop.f32.mrb[0].mxu0
    %v5647 = vadd.f32 %v5569, %v5646
    %v5648 = vpop.f32.mrb[0].mxu0
    %v5649 = vadd.f32 %v5571, %v5648
    %5650 = vdwg.mxu0
    %v5651 = vand.u32 %v3852, 4294901760
    %5652 = vmatprep.subr.mxu0 %v5651
    %v5653 = vand.u32 %v3851, 4294901760
    %5654 = vmatpush1.msra.mxu0 %v5653
    %5655 = vmatprep.subr.mxu0 0.0
    %5656 = vmatpush1.msra.mxu0 0.0
    %5657 = vmatprep.subr.mxu0 0.0
    %5658 = vmatpush1.msra.mxu0 0.0
    %5659 = vmatprep.subr.mxu0 0.0
    %5660 = vmatpush1.msra.mxu0 0.0
    %5661 = vmatprep.subr.mxu0 0.0
    %5662 = vmatpush1.msra.mxu0 0.0
    %5663 = vmatprep.subr.mxu0 0.0
    %5664 = vmatpush1.msra.mxu0 0.0
    %5665 = vmatprep.subr.mxu0 0.0
    %5666 = vmatpush1.msra.mxu0 0.0
    %5667 = vmatprep.subr.mxu0 0.0
    %5668 = vmatpush1.msra.mxu0 0.0
    %5669 = vmatprep.subr.mxu0 0.0
    %5670 = vmatpush1.msra.mxu0 0.0
    %5671 = vmatprep.subr.mxu0 0.0
    %5672 = vmatpush1.msra.mxu0 0.0
    %5673 = vmatprep.subr.mxu0 0.0
    %5674 = vmatpush1.msra.mxu0 0.0
    %5675 = vmatprep.subr.mxu0 0.0
    %5676 = vmatpush1.msra.mxu0 0.0
    %5677 = vmatprep.subr.mxu0 0.0
    %5678 = vmatpush1.msra.mxu0 0.0
    %5679 = vmatprep.subr.mxu0 0.0
    %5680 = vmatpush1.msra.mxu0 0.0
    %5681 = vmatprep.subr.mxu0 0.0
    %5682 = vmatpush1.msra.mxu0 0.0
    %5683 = vmatprep.subr.mxu0 0.0
    %5684 = vmatpush1.msra.mxu0 0.0
    %5685 = vmatprep.subr.mxu0 0.0
    %5686 = vmatpush1.msra.mxu0 0.0
    %5687 = vmatprep.subr.mxu0 0.0
    %5688 = vmatpush1.msra.mxu0 0.0
    %5689 = vmatprep.subr.mxu0 0.0
    %5690 = vmatpush1.msra.mxu0 0.0
    %5691 = vmatprep.subr.mxu0 0.0
    %5692 = vmatpush1.msra.mxu0 0.0
    %5693 = vmatprep.subr.mxu0 0.0
    %5694 = vmatpush1.msra.mxu0 0.0
    %5695 = vmatprep.subr.mxu0 0.0
    %5696 = vmatpush1.msra.mxu0 0.0
    %5697 = vmatprep.subr.mxu0 0.0
    %5698 = vmatpush1.msra.mxu0 0.0
    %5699 = vmatprep.subr.mxu0 0.0
    %5700 = vmatpush1.msra.mxu0 0.0
    %5701 = vmatprep.subr.mxu0 0.0
    %5702 = vmatpush1.msra.mxu0 0.0
    %5703 = vmatprep.subr.mxu0 0.0
    %5704 = vmatpush1.msra.mxu0 0.0
    %5705 = vmatprep.subr.mxu0 0.0
    %5706 = vmatpush1.msra.mxu0 0.0
    %5707 = vmatprep.subr.mxu0 0.0
    %5708 = vmatpush1.msra.mxu0 0.0
    %5709 = vmatprep.subr.mxu0 0.0
    %5710 = vmatpush1.msra.mxu0 0.0
    %5711 = vmatprep.subr.mxu0 0.0
    %5712 = vmatpush1.msra.mxu0 0.0
    %5713 = vmatprep.subr.mxu0 0.0
    %5714 = vmatpush1.msra.mxu0 0.0
    %5715 = vmatprep.subr.mxu0 0.0
    %5716 = vmatpush1.msra.mxu0 0.0
    %5717 = vmatprep.mubr.f32.mxu0 0.0
    %v5718 = vand.u32 %v3863, 4294901760
    %5719 = vmatmul.mubr.f32.gmra.mrb[0].mxu0 %v5718
    %v5720 = vpop.f32.mrb[0].mxu0
    %v5721 = vadd.f32 %v5647, %v5720
    %v5722 = vpop.f32.mrb[0].mxu0
    %v5723 = vadd.f32 %v5649, %v5722
    %5724 = vdwg.mxu0
    %v5725 = vand.u32 %v3854, 4294901760
    %5726 = vmatprep.subr.mxu0 %v5725
    %v5727 = vand.u32 %v3853, 4294901760
    %5728 = vmatpush1.msra.mxu0 %v5727
    %5729 = vmatprep.subr.mxu0 0.0
    %5730 = vmatpush1.msra.mxu0 0.0
    %5731 = vmatprep.subr.mxu0 0.0
    %5732 = vmatpush1.msra.mxu0 0.0
    %5733 = vmatprep.subr.mxu0 0.0
    %5734 = vmatpush1.msra.mxu0 0.0
    %5735 = vmatprep.subr.mxu0 0.0
    %5736 = vmatpush1.msra.mxu0 0.0
    %5737 = vmatprep.subr.mxu0 0.0
    %5738 = vmatpush1.msra.mxu0 0.0
    %5739 = vmatprep.subr.mxu0 0.0
    %5740 = vmatpush1.msra.mxu0 0.0
    %5741 = vmatprep.subr.mxu0 0.0
    %5742 = vmatpush1.msra.mxu0 0.0
    %5743 = vmatprep.subr.mxu0 0.0
    %5744 = vmatpush1.msra.mxu0 0.0
    %5745 = vmatprep.subr.mxu0 0.0
    %5746 = vmatpush1.msra.mxu0 0.0
    %5747 = vmatprep.subr.mxu0 0.0
    %5748 = vmatpush1.msra.mxu0 0.0
    %5749 = vmatprep.subr.mxu0 0.0
    %5750 = vmatpush1.msra.mxu0 0.0
    %5751 = vmatprep.subr.mxu0 0.0
    %5752 = vmatpush1.msra.mxu0 0.0
    %5753 = vmatprep.subr.mxu0 0.0
    %5754 = vmatpush1.msra.mxu0 0.0
    %5755 = vmatprep.subr.mxu0 0.0
    %5756 = vmatpush1.msra.mxu0 0.0
    %5757 = vmatprep.subr.mxu0 0.0
    %5758 = vmatpush1.msra.mxu0 0.0
    %5759 = vmatprep.subr.mxu0 0.0
    %5760 = vmatpush1.msra.mxu0 0.0
    %5761 = vmatprep.subr.mxu0 0.0
    %5762 = vmatpush1.msra.mxu0 0.0
    %5763 = vmatprep.subr.mxu0 0.0
    %5764 = vmatpush1.msra.mxu0 0.0
    %5765 = vmatprep.subr.mxu0 0.0
    %5766 = vmatpush1.msra.mxu0 0.0
    %5767 = vmatprep.subr.mxu0 0.0
    %5768 = vmatpush1.msra.mxu0 0.0
    %5769 = vmatprep.subr.mxu0 0.0
    %5770 = vmatpush1.msra.mxu0 0.0
    %5771 = vmatprep.subr.mxu0 0.0
    %5772 = vmatpush1.msra.mxu0 0.0
    %5773 = vmatprep.subr.mxu0 0.0
    %5774 = vmatpush1.msra.mxu0 0.0
    %5775 = vmatprep.subr.mxu0 0.0
    %5776 = vmatpush1.msra.mxu0 0.0
    %5777 = vmatprep.subr.mxu0 0.0
    %5778 = vmatpush1.msra.mxu0 0.0
    %5779 = vmatprep.subr.mxu0 0.0
    %5780 = vmatpush1.msra.mxu0 0.0
    %5781 = vmatprep.subr.mxu0 0.0
    %5782 = vmatpush1.msra.mxu0 0.0
    %5783 = vmatprep.subr.mxu0 0.0
    %5784 = vmatpush1.msra.mxu0 0.0
    %5785 = vmatprep.subr.mxu0 0.0
    %5786 = vmatpush1.msra.mxu0 0.0
    %5787 = vmatprep.subr.mxu0 0.0
    %5788 = vmatpush1.msra.mxu0 0.0
    %5789 = vmatprep.subr.mxu0 0.0
    %5790 = vmatpush1.msra.mxu0 0.0
    %5791 = vmatprep.mubr.f32.mxu0 0.0
    %v5792 = vand.u32 %v3863, 4294901760
    %v5793 = vsub.f32 %v3863, %v5792
    %v5794 = vand.u32 %v5793, 4294901760
    %v5795 = vsub.f32 %v5793, %v5794
    %v5796 = vand.u32 %v5795, 4294901760
    %5797 = vmatmul.mubr.f32.gmra.mrb[0].mxu0 %v5796
    %v5798 = vpop.f32.mrb[0].mxu0
    %v5799 = vadd.f32 0.0, %v5798
    %v5800 = vpop.f32.mrb[0].mxu0
    %v5801 = vadd.f32 0.0, %v5800
    %5802 = vdwg.mxu0
    %v5803 = vand.u32 %v3854, 4294901760
    %v5804 = vsub.f32 %v3854, %v5803
    %v5805 = vand.u32 %v5804, 4294901760
    %v5806 = vsub.f32 %v5804, %v5805
    %v5807 = vand.u32 %v5806, 4294901760
    %5808 = vmatprep.subr.mxu0 %v5807
    %v5809 = vand.u32 %v3853, 4294901760
    %v5810 = vsub.f32 %v3853, %v5809
    %v5811 = vand.u32 %v5810, 4294901760
    %v5812 = vsub.f32 %v5810, %v5811
    %v5813 = vand.u32 %v5812, 4294901760
    %5814 = vmatpush1.msra.mxu0 %v5813
    %5815 = vmatprep.subr.mxu0 0.0
    %5816 = vmatpush1.msra.mxu0 0.0
    %5817 = vmatprep.subr.mxu0 0.0
    %5818 = vmatpush1.msra.mxu0 0.0
    %5819 = vmatprep.subr.mxu0 0.0
    %5820 = vmatpush1.msra.mxu0 0.0
    %5821 = vmatprep.subr.mxu0 0.0
    %5822 = vmatpush1.msra.mxu0 0.0
    %5823 = vmatprep.subr.mxu0 0.0
    %5824 = vmatpush1.msra.mxu0 0.0
    %5825 = vmatprep.subr.mxu0 0.0
    %5826 = vmatpush1.msra.mxu0 0.0
    %5827 = vmatprep.subr.mxu0 0.0
    %5828 = vmatpush1.msra.mxu0 0.0
    %5829 = vmatprep.subr.mxu0 0.0
    %5830 = vmatpush1.msra.mxu0 0.0
    %5831 = vmatprep.subr.mxu0 0.0
    %5832 = vmatpush1.msra.mxu0 0.0
    %5833 = vmatprep.subr.mxu0 0.0
    %5834 = vmatpush1.msra.mxu0 0.0
    %5835 = vmatprep.subr.mxu0 0.0
    %5836 = vmatpush1.msra.mxu0 0.0
    %5837 = vmatprep.subr.mxu0 0.0
    %5838 = vmatpush1.msra.mxu0 0.0
    %5839 = vmatprep.subr.mxu0 0.0
    %5840 = vmatpush1.msra.mxu0 0.0
    %5841 = vmatprep.subr.mxu0 0.0
    %5842 = vmatpush1.msra.mxu0 0.0
    %5843 = vmatprep.subr.mxu0 0.0
    %5844 = vmatpush1.msra.mxu0 0.0
    %5845 = vmatprep.subr.mxu0 0.0
    %5846 = vmatpush1.msra.mxu0 0.0
    %5847 = vmatprep.subr.mxu0 0.0
    %5848 = vmatpush1.msra.mxu0 0.0
    %5849 = vmatprep.subr.mxu0 0.0
    %5850 = vmatpush1.msra.mxu0 0.0
    %5851 = vmatprep.subr.mxu0 0.0
    %5852 = vmatpush1.msra.mxu0 0.0
    %5853 = vmatprep.subr.mxu0 0.0
    %5854 = vmatpush1.msra.mxu0 0.0
    %5855 = vmatprep.subr.mxu0 0.0
    %5856 = vmatpush1.msra.mxu0 0.0
    %5857 = vmatprep.subr.mxu0 0.0
    %5858 = vmatpush1.msra.mxu0 0.0
    %5859 = vmatprep.subr.mxu0 0.0
    %5860 = vmatpush1.msra.mxu0 0.0
    %5861 = vmatprep.subr.mxu0 0.0
    %5862 = vmatpush1.msra.mxu0 0.0
    %5863 = vmatprep.subr.mxu0 0.0
    %5864 = vmatpush1.msra.mxu0 0.0
    %5865 = vmatprep.subr.mxu0 0.0
    %5866 = vmatpush1.msra.mxu0 0.0
    %5867 = vmatprep.subr.mxu0 0.0
    %5868 = vmatpush1.msra.mxu0 0.0
    %5869 = vmatprep.subr.mxu0 0.0
    %5870 = vmatpush1.msra.mxu0 0.0
    %5871 = vmatprep.subr.mxu0 0.0
    %5872 = vmatpush1.msra.mxu0 0.0
    %5873 = vmatprep.subr.mxu0 0.0
    %5874 = vmatpush1.msra.mxu0 0.0
    %5875 = vmatprep.subr.mxu0 0.0
    %5876 = vmatpush1.msra.mxu0 0.0
    %5877 = vmatprep.mubr.f32.mxu0 0.0
    %v5878 = vand.u32 %v3863, 4294901760
    %5879 = vmatmul.mubr.f32.gmra.mrb[0].mxu0 %v5878
    %v5880 = vpop.f32.mrb[0].mxu0
    %v5881 = vadd.f32 %v5799, %v5880
    %v5882 = vpop.f32.mrb[0].mxu0
    %v5883 = vadd.f32 %v5801, %v5882
    %5884 = vdwg.mxu0
    %v5885 = vand.u32 %v3854, 4294901760
    %v5886 = vsub.f32 %v3854, %v5885
    %5887 = vmatprep.subr.mxu0 %v5886
    %v5888 = vand.u32 %v3853, 4294901760
    %v5889 = vsub.f32 %v3853, %v5888
    %5890 = vmatpush1.msra.mxu0 %v5889
    %5891 = vmatprep.subr.mxu0 0.0
    %5892 = vmatpush1.msra.mxu0 0.0
    %5893 = vmatprep.subr.mxu0 0.0
    %5894 = vmatpush1.msra.mxu0 0.0
    %5895 = vmatprep.subr.mxu0 0.0
    %5896 = vmatpush1.msra.mxu0 0.0
    %5897 = vmatprep.subr.mxu0 0.0
    %5898 = vmatpush1.msra.mxu0 0.0
    %5899 = vmatprep.subr.mxu0 0.0
    %5900 = vmatpush1.msra.mxu0 0.0
    %5901 = vmatprep.subr.mxu0 0.0
    %5902 = vmatpush1.msra.mxu0 0.0
    %5903 = vmatprep.subr.mxu0 0.0
    %5904 = vmatpush1.msra.mxu0 0.0
    %5905 = vmatprep.subr.mxu0 0.0
    %5906 = vmatpush1.msra.mxu0 0.0
    %5907 = vmatprep.subr.mxu0 0.0
    %5908 = vmatpush1.msra.mxu0 0.0
    %5909 = vmatprep.subr.mxu0 0.0
    %5910 = vmatpush1.msra.mxu0 0.0
    %5911 = vmatprep.subr.mxu0 0.0
    %5912 = vmatpush1.msra.mxu0 0.0
    %5913 = vmatprep.subr.mxu0 0.0
    %5914 = vmatpush1.msra.mxu0 0.0
    %5915 = vmatprep.subr.mxu0 0.0
    %5916 = vmatpush1.msra.mxu0 0.0
    %5917 = vmatprep.subr.mxu0 0.0
    %5918 = vmatpush1.msra.mxu0 0.0
    %5919 = vmatprep.subr.mxu0 0.0
    %5920 = vmatpush1.msra.mxu0 0.0
    %5921 = vmatprep.subr.mxu0 0.0
    %5922 = vmatpush1.msra.mxu0 0.0
    %5923 = vmatprep.subr.mxu0 0.0
    %5924 = vmatpush1.msra.mxu0 0.0
    %5925 = vmatprep.subr.mxu0 0.0
    %5926 = vmatpush1.msra.mxu0 0.0
    %5927 = vmatprep.subr.mxu0 0.0
    %5928 = vmatpush1.msra.mxu0 0.0
    %5929 = vmatprep.subr.mxu0 0.0
    %5930 = vmatpush1.msra.mxu0 0.0
    %5931 = vmatprep.subr.mxu0 0.0
    %5932 = vmatpush1.msra.mxu0 0.0
    %5933 = vmatprep.subr.mxu0 0.0
    %5934 = vmatpush1.msra.mxu0 0.0
    %5935 = vmatprep.subr.mxu0 0.0
    %5936 = vmatpush1.msra.mxu0 0.0
    %5937 = vmatprep.subr.mxu0 0.0
    %5938 = vmatpush1.msra.mxu0 0.0
    %5939 = vmatprep.subr.mxu0 0.0
    %5940 = vmatpush1.msra.mxu0 0.0
    %5941 = vmatprep.subr.mxu0 0.0
    %5942 = vmatpush1.msra.mxu0 0.0
    %5943 = vmatprep.subr.mxu0 0.0
    %5944 = vmatpush1.msra.mxu0 0.0
    %5945 = vmatprep.subr.mxu0 0.0
    %5946 = vmatpush1.msra.mxu0 0.0
    %5947 = vmatprep.subr.mxu0 0.0
    %5948 = vmatpush1.msra.mxu0 0.0
    %5949 = vmatprep.subr.mxu0 0.0
    %5950 = vmatpush1.msra.mxu0 0.0
    %5951 = vmatprep.subr.mxu0 0.0
    %5952 = vmatpush1.msra.mxu0 0.0
    %5953 = vmatprep.mubr.f32.mxu0 0.0
    %v5954 = vand.u32 %v3863, 4294901760
    %v5955 = vsub.f32 %v3863, %v5954
    %5956 = vmatmul.mubr.f32.gmra.mrb[0].mxu0 %v5955
    %v5957 = vpop.f32.mrb[0].mxu0
    %v5958 = vadd.f32 %v5881, %v5957
    %v5959 = vpop.f32.mrb[0].mxu0
    %v5960 = vadd.f32 %v5883, %v5959
    %5961 = vdwg.mxu0
    %v5962 = vand.u32 %v3854, 4294901760
    %5963 = vmatprep.subr.mxu0 %v5962
    %v5964 = vand.u32 %v3853, 4294901760
    %5965 = vmatpush1.msra.mxu0 %v5964
    %5966 = vmatprep.subr.mxu0 0.0
    %5967 = vmatpush1.msra.mxu0 0.0
    %5968 = vmatprep.subr.mxu0 0.0
    %5969 = vmatpush1.msra.mxu0 0.0
    %5970 = vmatprep.subr.mxu0 0.0
    %5971 = vmatpush1.msra.mxu0 0.0
    %5972 = vmatprep.subr.mxu0 0.0
    %5973 = vmatpush1.msra.mxu0 0.0
    %5974 = vmatprep.subr.mxu0 0.0
    %5975 = vmatpush1.msra.mxu0 0.0
    %5976 = vmatprep.subr.mxu0 0.0
    %5977 = vmatpush1.msra.mxu0 0.0
    %5978 = vmatprep.subr.mxu0 0.0
    %5979 = vmatpush1.msra.mxu0 0.0
    %5980 = vmatprep.subr.mxu0 0.0
    %5981 = vmatpush1.msra.mxu0 0.0
    %5982 = vmatprep.subr.mxu0 0.0
    %5983 = vmatpush1.msra.mxu0 0.0
    %5984 = vmatprep.subr.mxu0 0.0
    %5985 = vmatpush1.msra.mxu0 0.0
    %5986 = vmatprep.subr.mxu0 0.0
    %5987 = vmatpush1.msra.mxu0 0.0
    %5988 = vmatprep.subr.mxu0 0.0
    %5989 = vmatpush1.msra.mxu0 0.0
    %5990 = vmatprep.subr.mxu0 0.0
    %5991 = vmatpush1.msra.mxu0 0.0
    %5992 = vmatprep.subr.mxu0 0.0
    %5993 = vmatpush1.msra.mxu0 0.0
    %5994 = vmatprep.subr.mxu0 0.0
    %5995 = vmatpush1.msra.mxu0 0.0
    %5996 = vmatprep.subr.mxu0 0.0
    %5997 = vmatpush1.msra.mxu0 0.0
    %5998 = vmatprep.subr.mxu0 0.0
    %5999 = vmatpush1.msra.mxu0 0.0
    %6000 = vmatprep.subr.mxu0 0.0
    %6001 = vmatpush1.msra.mxu0 0.0
    %6002 = vmatprep.subr.mxu0 0.0
    %6003 = vmatpush1.msra.mxu0 0.0
    %6004 = vmatprep.subr.mxu0 0.0
    %6005 = vmatpush1.msra.mxu0 0.0
    %6006 = vmatprep.subr.mxu0 0.0
    %6007 = vmatpush1.msra.mxu0 0.0
    %6008 = vmatprep.subr.mxu0 0.0
    %6009 = vmatpush1.msra.mxu0 0.0
    %6010 = vmatprep.subr.mxu0 0.0
    %6011 = vmatpush1.msra.mxu0 0.0
    %6012 = vmatprep.subr.mxu0 0.0
    %6013 = vmatpush1.msra.mxu0 0.0
    %6014 = vmatprep.subr.mxu0 0.0
    %6015 = vmatpush1.msra.mxu0 0.0
    %6016 = vmatprep.subr.mxu0 0.0
    %6017 = vmatpush1.msra.mxu0 0.0
    %6018 = vmatprep.subr.mxu0 0.0
    %6019 = vmatpush1.msra.mxu0 0.0
    %6020 = vmatprep.subr.mxu0 0.0
    %6021 = vmatpush1.msra.mxu0 0.0
    %6022 = vmatprep.subr.mxu0 0.0
    %6023 = vmatpush1.msra.mxu0 0.0
    %6024 = vmatprep.subr.mxu0 0.0
    %6025 = vmatpush1.msra.mxu0 0.0
    %6026 = vmatprep.subr.mxu0 0.0
    %6027 = vmatpush1.msra.mxu0 0.0
    %6028 = vmatprep.mubr.f32.mxu0 0.0
    %v6029 = vand.u32 %v3863, 4294901760
    %v6030 = vsub.f32 %v3863, %v6029
    %v6031 = vand.u32 %v6030, 4294901760
    %6032 = vmatmul.mubr.f32.gmra.mrb[0].mxu0 %v6031
    %v6033 = vpop.f32.mrb[0].mxu0
    %v6034 = vadd.f32 %v5958, %v6033
    %v6035 = vpop.f32.mrb[0].mxu0
    %v6036 = vadd.f32 %v5960, %v6035
    %6037 = vdwg.mxu0
    %v6038 = vand.u32 %v3854, 4294901760
    %v6039 = vsub.f32 %v3854, %v6038
    %v6040 = vand.u32 %v6039, 4294901760
    %6041 = vmatprep.subr.mxu0 %v6040
    %v6042 = vand.u32 %v3853, 4294901760
    %v6043 = vsub.f32 %v3853, %v6042
    %v6044 = vand.u32 %v6043, 4294901760
    %6045 = vmatpush1.msra.mxu0 %v6044
    %6046 = vmatprep.subr.mxu0 0.0
    %6047 = vmatpush1.msra.mxu0 0.0
    %6048 = vmatprep.subr.mxu0 0.0
    %6049 = vmatpush1.msra.mxu0 0.0
    %6050 = vmatprep.subr.mxu0 0.0
    %6051 = vmatpush1.msra.mxu0 0.0
    %6052 = vmatprep.subr.mxu0 0.0
    %6053 = vmatpush1.msra.mxu0 0.0
    %6054 = vmatprep.subr.mxu0 0.0
    %6055 = vmatpush1.msra.mxu0 0.0
    %6056 = vmatprep.subr.mxu0 0.0
    %6057 = vmatpush1.msra.mxu0 0.0
    %6058 = vmatprep.subr.mxu0 0.0
    %6059 = vmatpush1.msra.mxu0 0.0
    %6060 = vmatprep.subr.mxu0 0.0
    %6061 = vmatpush1.msra.mxu0 0.0
    %6062 = vmatprep.subr.mxu0 0.0
    %6063 = vmatpush1.msra.mxu0 0.0
    %6064 = vmatprep.subr.mxu0 0.0
    %6065 = vmatpush1.msra.mxu0 0.0
    %6066 = vmatprep.subr.mxu0 0.0
    %6067 = vmatpush1.msra.mxu0 0.0
    %6068 = vmatprep.subr.mxu0 0.0
    %6069 = vmatpush1.msra.mxu0 0.0
    %6070 = vmatprep.subr.mxu0 0.0
    %6071 = vmatpush1.msra.mxu0 0.0
    %6072 = vmatprep.subr.mxu0 0.0
    %6073 = vmatpush1.msra.mxu0 0.0
    %6074 = vmatprep.subr.mxu0 0.0
    %6075 = vmatpush1.msra.mxu0 0.0
    %6076 = vmatprep.subr.mxu0 0.0
    %6077 = vmatpush1.msra.mxu0 0.0
    %6078 = vmatprep.subr.mxu0 0.0
    %6079 = vmatpush1.msra.mxu0 0.0
    %6080 = vmatprep.subr.mxu0 0.0
    %6081 = vmatpush1.msra.mxu0 0.0
    %6082 = vmatprep.subr.mxu0 0.0
    %6083 = vmatpush1.msra.mxu0 0.0
    %6084 = vmatprep.subr.mxu0 0.0
    %6085 = vmatpush1.msra.mxu0 0.0
    %6086 = vmatprep.subr.mxu0 0.0
    %6087 = vmatpush1.msra.mxu0 0.0
    %6088 = vmatprep.subr.mxu0 0.0
    %6089 = vmatpush1.msra.mxu0 0.0
    %6090 = vmatprep.subr.mxu0 0.0
    %6091 = vmatpush1.msra.mxu0 0.0
    %6092 = vmatprep.subr.mxu0 0.0
    %6093 = vmatpush1.msra.mxu0 0.0
    %6094 = vmatprep.subr.mxu0 0.0
    %6095 = vmatpush1.msra.mxu0 0.0
    %6096 = vmatprep.subr.mxu0 0.0
    %6097 = vmatpush1.msra.mxu0 0.0
    %6098 = vmatprep.subr.mxu0 0.0
    %6099 = vmatpush1.msra.mxu0 0.0
    %6100 = vmatprep.subr.mxu0 0.0
    %6101 = vmatpush1.msra.mxu0 0.0
    %6102 = vmatprep.subr.mxu0 0.0
    %6103 = vmatpush1.msra.mxu0 0.0
    %6104 = vmatprep.subr.mxu0 0.0
    %6105 = vmatpush1.msra.mxu0 0.0
    %6106 = vmatprep.subr.mxu0 0.0
    %6107 = vmatpush1.msra.mxu0 0.0
    %6108 = vmatprep.mubr.f32.mxu0 0.0
    %v6109 = vand.u32 %v3863, 4294901760
    %6110 = vmatmul.mubr.f32.gmra.mrb[0].mxu0 %v6109
    %v6111 = vpop.f32.mrb[0].mxu0
    %v6112 = vadd.f32 %v6034, %v6111
    %v6113 = vpop.f32.mrb[0].mxu0
    %v6114 = vadd.f32 %v6036, %v6113
    %6115 = vdwg.mxu0
    %v6116 = vand.u32 %v3854, 4294901760
    %6117 = vmatprep.subr.mxu0 %v6116
    %v6118 = vand.u32 %v3853, 4294901760
    %6119 = vmatpush1.msra.mxu0 %v6118
    %6120 = vmatprep.subr.mxu0 0.0
    %6121 = vmatpush1.msra.mxu0 0.0
    %6122 = vmatprep.subr.mxu0 0.0
    %6123 = vmatpush1.msra.mxu0 0.0
    %6124 = vmatprep.subr.mxu0 0.0
    %6125 = vmatpush1.msra.mxu0 0.0
    %6126 = vmatprep.subr.mxu0 0.0
    %6127 = vmatpush1.msra.mxu0 0.0
    %6128 = vmatprep.subr.mxu0 0.0
    %6129 = vmatpush1.msra.mxu0 0.0
    %6130 = vmatprep.subr.mxu0 0.0
    %6131 = vmatpush1.msra.mxu0 0.0
    %6132 = vmatprep.subr.mxu0 0.0
    %6133 = vmatpush1.msra.mxu0 0.0
    %6134 = vmatprep.subr.mxu0 0.0
    %6135 = vmatpush1.msra.mxu0 0.0
    %6136 = vmatprep.subr.mxu0 0.0
    %6137 = vmatpush1.msra.mxu0 0.0
    %6138 = vmatprep.subr.mxu0 0.0
    %6139 = vmatpush1.msra.mxu0 0.0
    %6140 = vmatprep.subr.mxu0 0.0
    %6141 = vmatpush1.msra.mxu0 0.0
    %6142 = vmatprep.subr.mxu0 0.0
    %6143 = vmatpush1.msra.mxu0 0.0
    %6144 = vmatprep.subr.mxu0 0.0
    %6145 = vmatpush1.msra.mxu0 0.0
    %6146 = vmatprep.subr.mxu0 0.0
    %6147 = vmatpush1.msra.mxu0 0.0
    %6148 = vmatprep.subr.mxu0 0.0
    %6149 = vmatpush1.msra.mxu0 0.0
    %6150 = vmatprep.subr.mxu0 0.0
    %6151 = vmatpush1.msra.mxu0 0.0
    %6152 = vmatprep.subr.mxu0 0.0
    %6153 = vmatpush1.msra.mxu0 0.0
    %6154 = vmatprep.subr.mxu0 0.0
    %6155 = vmatpush1.msra.mxu0 0.0
    %6156 = vmatprep.subr.mxu0 0.0
    %6157 = vmatpush1.msra.mxu0 0.0
    %6158 = vmatprep.subr.mxu0 0.0
    %6159 = vmatpush1.msra.mxu0 0.0
    %6160 = vmatprep.subr.mxu0 0.0
    %6161 = vmatpush1.msra.mxu0 0.0
    %6162 = vmatprep.subr.mxu0 0.0
    %6163 = vmatpush1.msra.mxu0 0.0
    %6164 = vmatprep.subr.mxu0 0.0
    %6165 = vmatpush1.msra.mxu0 0.0
    %6166 = vmatprep.subr.mxu0 0.0
    %6167 = vmatpush1.msra.mxu0 0.0
    %6168 = vmatprep.subr.mxu0 0.0
    %6169 = vmatpush1.msra.mxu0 0.0
    %6170 = vmatprep.subr.mxu0 0.0
    %6171 = vmatpush1.msra.mxu0 0.0
    %6172 = vmatprep.subr.mxu0 0.0
    %6173 = vmatpush1.msra.mxu0 0.0
    %6174 = vmatprep.subr.mxu0 0.0
    %6175 = vmatpush1.msra.mxu0 0.0
    %6176 = vmatprep.subr.mxu0 0.0
    %6177 = vmatpush1.msra.mxu0 0.0
    %6178 = vmatprep.subr.mxu0 0.0
    %6179 = vmatpush1.msra.mxu0 0.0
    %6180 = vmatprep.subr.mxu0 0.0
    %6181 = vmatpush1.msra.mxu0 0.0
    %6182 = vmatprep.mubr.f32.mxu0 0.0
    %v6183 = vand.u32 %v3863, 4294901760
    %6184 = vmatmul.mubr.f32.gmra.mrb[0].mxu0 %v6183
    %v6185 = vpop.f32.mrb[0].mxu0
    %v6186 = vadd.f32 %v6112, %v6185
    %v6187 = vpop.f32.mrb[0].mxu0
    %v6188 = vadd.f32 %v6114, %v6187
    %6189 = vdwg.mxu0
    %v6190 = vand.u32 %v3856, 4294901760
    %6191 = vmatprep.subr.mxu0 %v6190
    %v6192 = vand.u32 %v3855, 4294901760
    %6193 = vmatpush1.msra.mxu0 %v6192
    %6194 = vmatprep.subr.mxu0 0.0
    %6195 = vmatpush1.msra.mxu0 0.0
    %6196 = vmatprep.subr.mxu0 0.0
    %6197 = vmatpush1.msra.mxu0 0.0
    %6198 = vmatprep.subr.mxu0 0.0
    %6199 = vmatpush1.msra.mxu0 0.0
    %6200 = vmatprep.subr.mxu0 0.0
    %6201 = vmatpush1.msra.mxu0 0.0
    %6202 = vmatprep.subr.mxu0 0.0
    %6203 = vmatpush1.msra.mxu0 0.0
    %6204 = vmatprep.subr.mxu0 0.0
    %6205 = vmatpush1.msra.mxu0 0.0
    %6206 = vmatprep.subr.mxu0 0.0
    %6207 = vmatpush1.msra.mxu0 0.0
    %6208 = vmatprep.subr.mxu0 0.0
    %6209 = vmatpush1.msra.mxu0 0.0
    %6210 = vmatprep.subr.mxu0 0.0
    %6211 = vmatpush1.msra.mxu0 0.0
    %6212 = vmatprep.subr.mxu0 0.0
    %6213 = vmatpush1.msra.mxu0 0.0
    %6214 = vmatprep.subr.mxu0 0.0
    %6215 = vmatpush1.msra.mxu0 0.0
    %6216 = vmatprep.subr.mxu0 0.0
    %6217 = vmatpush1.msra.mxu0 0.0
    %6218 = vmatprep.subr.mxu0 0.0
    %6219 = vmatpush1.msra.mxu0 0.0
    %6220 = vmatprep.subr.mxu0 0.0
    %6221 = vmatpush1.msra.mxu0 0.0
    %6222 = vmatprep.subr.mxu0 0.0
    %6223 = vmatpush1.msra.mxu0 0.0
    %6224 = vmatprep.subr.mxu0 0.0
    %6225 = vmatpush1.msra.mxu0 0.0
    %6226 = vmatprep.subr.mxu0 0.0
    %6227 = vmatpush1.msra.mxu0 0.0
    %6228 = vmatprep.subr.mxu0 0.0
    %6229 = vmatpush1.msra.mxu0 0.0
    %6230 = vmatprep.subr.mxu0 0.0
    %6231 = vmatpush1.msra.mxu0 0.0
    %6232 = vmatprep.subr.mxu0 0.0
    %6233 = vmatpush1.msra.mxu0 0.0
    %6234 = vmatprep.subr.mxu0 0.0
    %6235 = vmatpush1.msra.mxu0 0.0
    %6236 = vmatprep.subr.mxu0 0.0
    %6237 = vmatpush1.msra.mxu0 0.0
    %6238 = vmatprep.subr.mxu0 0.0
    %6239 = vmatpush1.msra.mxu0 0.0
    %6240 = vmatprep.subr.mxu0 0.0
    %6241 = vmatpush1.msra.mxu0 0.0
    %6242 = vmatprep.subr.mxu0 0.0
    %6243 = vmatpush1.msra.mxu0 0.0
    %6244 = vmatprep.subr.mxu0 0.0
    %6245 = vmatpush1.msra.mxu0 0.0
    %6246 = vmatprep.subr.mxu0 0.0
    %6247 = vmatpush1.msra.mxu0 0.0
    %6248 = vmatprep.subr.mxu0 0.0
    %6249 = vmatpush1.msra.mxu0 0.0
    %6250 = vmatprep.subr.mxu0 0.0
    %6251 = vmatpush1.msra.mxu0 0.0
    %6252 = vmatprep.subr.mxu0 0.0
    %6253 = vmatpush1.msra.mxu0 0.0
    %6254 = vmatprep.subr.mxu0 0.0
    %6255 = vmatpush1.msra.mxu0 0.0
    %6256 = vmatprep.mubr.f32.mxu0 0.0
    %v6257 = vand.u32 %v3863, 4294901760
    %v6258 = vsub.f32 %v3863, %v6257
    %v6259 = vand.u32 %v6258, 4294901760
    %v6260 = vsub.f32 %v6258, %v6259
    %v6261 = vand.u32 %v6260, 4294901760
    %6262 = vmatmul.mubr.f32.gmra.mrb[0].mxu0 %v6261
    %v6263 = vpop.f32.mrb[0].mxu0
    %v6264 = vadd.f32 0.0, %v6263
    %v6265 = vpop.f32.mrb[0].mxu0
    %v6266 = vadd.f32 0.0, %v6265
    %6267 = vdwg.mxu0
    %v6268 = vand.u32 %v3856, 4294901760
    %v6269 = vsub.f32 %v3856, %v6268
    %v6270 = vand.u32 %v6269, 4294901760
    %v6271 = vsub.f32 %v6269, %v6270
    %v6272 = vand.u32 %v6271, 4294901760
    %6273 = vmatprep.subr.mxu0 %v6272
    %v6274 = vand.u32 %v3855, 4294901760
    %v6275 = vsub.f32 %v3855, %v6274
    %v6276 = vand.u32 %v6275, 4294901760
    %v6277 = vsub.f32 %v6275, %v6276
    %v6278 = vand.u32 %v6277, 4294901760
    %6279 = vmatpush1.msra.mxu0 %v6278
    %6280 = vmatprep.subr.mxu0 0.0
    %6281 = vmatpush1.msra.mxu0 0.0
    %6282 = vmatprep.subr.mxu0 0.0
    %6283 = vmatpush1.msra.mxu0 0.0
    %6284 = vmatprep.subr.mxu0 0.0
    %6285 = vmatpush1.msra.mxu0 0.0
    %6286 = vmatprep.subr.mxu0 0.0
    %6287 = vmatpush1.msra.mxu0 0.0
    %6288 = vmatprep.subr.mxu0 0.0
    %6289 = vmatpush1.msra.mxu0 0.0
    %6290 = vmatprep.subr.mxu0 0.0
    %6291 = vmatpush1.msra.mxu0 0.0
    %6292 = vmatprep.subr.mxu0 0.0
    %6293 = vmatpush1.msra.mxu0 0.0
    %6294 = vmatprep.subr.mxu0 0.0
    %6295 = vmatpush1.msra.mxu0 0.0
    %6296 = vmatprep.subr.mxu0 0.0
    %6297 = vmatpush1.msra.mxu0 0.0
    %6298 = vmatprep.subr.mxu0 0.0
    %6299 = vmatpush1.msra.mxu0 0.0
    %6300 = vmatprep.subr.mxu0 0.0
    %6301 = vmatpush1.msra.mxu0 0.0
    %6302 = vmatprep.subr.mxu0 0.0
    %6303 = vmatpush1.msra.mxu0 0.0
    %6304 = vmatprep.subr.mxu0 0.0
    %6305 = vmatpush1.msra.mxu0 0.0
    %6306 = vmatprep.subr.mxu0 0.0
    %6307 = vmatpush1.msra.mxu0 0.0
    %6308 = vmatprep.subr.mxu0 0.0
    %6309 = vmatpush1.msra.mxu0 0.0
    %6310 = vmatprep.subr.mxu0 0.0
    %6311 = vmatpush1.msra.mxu0 0.0
    %6312 = vmatprep.subr.mxu0 0.0
    %6313 = vmatpush1.msra.mxu0 0.0
    %6314 = vmatprep.subr.mxu0 0.0
    %6315 = vmatpush1.msra.mxu0 0.0
    %6316 = vmatprep.subr.mxu0 0.0
    %6317 = vmatpush1.msra.mxu0 0.0
    %6318 = vmatprep.subr.mxu0 0.0
    %6319 = vmatpush1.msra.mxu0 0.0
    %6320 = vmatprep.subr.mxu0 0.0
    %6321 = vmatpush1.msra.mxu0 0.0
    %6322 = vmatprep.subr.mxu0 0.0
    %6323 = vmatpush1.msra.mxu0 0.0
    %6324 = vmatprep.subr.mxu0 0.0
    %6325 = vmatpush1.msra.mxu0 0.0
    %6326 = vmatprep.subr.mxu0 0.0
    %6327 = vmatpush1.msra.mxu0 0.0
    %6328 = vmatprep.subr.mxu0 0.0
    %6329 = vmatpush1.msra.mxu0 0.0
    %6330 = vmatprep.subr.mxu0 0.0
    %6331 = vmatpush1.msra.mxu0 0.0
    %6332 = vmatprep.subr.mxu0 0.0
    %6333 = vmatpush1.msra.mxu0 0.0
    %6334 = vmatprep.subr.mxu0 0.0
    %6335 = vmatpush1.msra.mxu0 0.0
    %6336 = vmatprep.subr.mxu0 0.0
    %6337 = vmatpush1.msra.mxu0 0.0
    %6338 = vmatprep.subr.mxu0 0.0
    %6339 = vmatpush1.msra.mxu0 0.0
    %6340 = vmatprep.subr.mxu0 0.0
    %6341 = vmatpush1.msra.mxu0 0.0
    %6342 = vmatprep.mubr.f32.mxu0 0.0
    %v6343 = vand.u32 %v3863, 4294901760
    %6344 = vmatmul.mubr.f32.gmra.mrb[0].mxu0 %v6343
    %v6345 = vpop.f32.mrb[0].mxu0
    %v6346 = vadd.f32 %v6264, %v6345
    %v6347 = vpop.f32.mrb[0].mxu0
    %v6348 = vadd.f32 %v6266, %v6347
    %6349 = vdwg.mxu0
    %v6350 = vand.u32 %v3856, 4294901760
    %v6351 = vsub.f32 %v3856, %v6350
    %6352 = vmatprep.subr.mxu0 %v6351
    %v6353 = vand.u32 %v3855, 4294901760
    %v6354 = vsub.f32 %v3855, %v6353
    %6355 = vmatpush1.msra.mxu0 %v6354
    %6356 = vmatprep.subr.mxu0 0.0
    %6357 = vmatpush1.msra.mxu0 0.0
    %6358 = vmatprep.subr.mxu0 0.0
    %6359 = vmatpush1.msra.mxu0 0.0
    %6360 = vmatprep.subr.mxu0 0.0
    %6361 = vmatpush1.msra.mxu0 0.0
    %6362 = vmatprep.subr.mxu0 0.0
    %6363 = vmatpush1.msra.mxu0 0.0
    %6364 = vmatprep.subr.mxu0 0.0
    %6365 = vmatpush1.msra.mxu0 0.0
    %6366 = vmatprep.subr.mxu0 0.0
    %6367 = vmatpush1.msra.mxu0 0.0
    %6368 = vmatprep.subr.mxu0 0.0
    %6369 = vmatpush1.msra.mxu0 0.0
    %6370 = vmatprep.subr.mxu0 0.0
    %6371 = vmatpush1.msra.mxu0 0.0
    %6372 = vmatprep.subr.mxu0 0.0
    %6373 = vmatpush1.msra.mxu0 0.0
    %6374 = vmatprep.subr.mxu0 0.0
    %6375 = vmatpush1.msra.mxu0 0.0
    %6376 = vmatprep.subr.mxu0 0.0
    %6377 = vmatpush1.msra.mxu0 0.0
    %6378 = vmatprep.subr.mxu0 0.0
    %6379 = vmatpush1.msra.mxu0 0.0
    %6380 = vmatprep.subr.mxu0 0.0
    %6381 = vmatpush1.msra.mxu0 0.0
    %6382 = vmatprep.subr.mxu0 0.0
    %6383 = vmatpush1.msra.mxu0 0.0
    %6384 = vmatprep.subr.mxu0 0.0
    %6385 = vmatpush1.msra.mxu0 0.0
    %6386 = vmatprep.subr.mxu0 0.0
    %6387 = vmatpush1.msra.mxu0 0.0
    %6388 = vmatprep.subr.mxu0 0.0
    %6389 = vmatpush1.msra.mxu0 0.0
    %6390 = vmatprep.subr.mxu0 0.0
    %6391 = vmatpush1.msra.mxu0 0.0
    %6392 = vmatprep.subr.mxu0 0.0
    %6393 = vmatpush1.msra.mxu0 0.0
    %6394 = vmatprep.subr.mxu0 0.0
    %6395 = vmatpush1.msra.mxu0 0.0
    %6396 = vmatprep.subr.mxu0 0.0
    %6397 = vmatpush1.msra.mxu0 0.0
    %6398 = vmatprep.subr.mxu0 0.0
    %6399 = vmatpush1.msra.mxu0 0.0
    %6400 = vmatprep.subr.mxu0 0.0
    %6401 = vmatpush1.msra.mxu0 0.0
    %6402 = vmatprep.subr.mxu0 0.0
    %6403 = vmatpush1.msra.mxu0 0.0
    %6404 = vmatprep.subr.mxu0 0.0
    %6405 = vmatpush1.msra.mxu0 0.0
    %6406 = vmatprep.subr.mxu0 0.0
    %6407 = vmatpush1.msra.mxu0 0.0
    %6408 = vmatprep.subr.mxu0 0.0
    %6409 = vmatpush1.msra.mxu0 0.0
    %6410 = vmatprep.subr.mxu0 0.0
    %6411 = vmatpush1.msra.mxu0 0.0
    %6412 = vmatprep.subr.mxu0 0.0
    %6413 = vmatpush1.msra.mxu0 0.0
    %6414 = vmatprep.subr.mxu0 0.0
    %6415 = vmatpush1.msra.mxu0 0.0
    %6416 = vmatprep.subr.mxu0 0.0
    %6417 = vmatpush1.msra.mxu0 0.0
    %6418 = vmatprep.mubr.f32.mxu0 0.0
    %v6419 = vand.u32 %v3863, 4294901760
    %v6420 = vsub.f32 %v3863, %v6419
    %6421 = vmatmul.mubr.f32.gmra.mrb[0].mxu0 %v6420
    %v6422 = vpop.f32.mrb[0].mxu0
    %v6423 = vadd.f32 %v6346, %v6422
    %v6424 = vpop.f32.mrb[0].mxu0
    %v6425 = vadd.f32 %v6348, %v6424
    %6426 = vdwg.mxu0
    %v6427 = vand.u32 %v3856, 4294901760
    %6428 = vmatprep.subr.mxu0 %v6427
    %v6429 = vand.u32 %v3855, 4294901760
    %6430 = vmatpush1.msra.mxu0 %v6429
    %6431 = vmatprep.subr.mxu0 0.0
    %6432 = vmatpush1.msra.mxu0 0.0
    %6433 = vmatprep.subr.mxu0 0.0
    %6434 = vmatpush1.msra.mxu0 0.0
    %6435 = vmatprep.subr.mxu0 0.0
    %6436 = vmatpush1.msra.mxu0 0.0
    %6437 = vmatprep.subr.mxu0 0.0
    %6438 = vmatpush1.msra.mxu0 0.0
    %6439 = vmatprep.subr.mxu0 0.0
    %6440 = vmatpush1.msra.mxu0 0.0
    %6441 = vmatprep.subr.mxu0 0.0
    %6442 = vmatpush1.msra.mxu0 0.0
    %6443 = vmatprep.subr.mxu0 0.0
    %6444 = vmatpush1.msra.mxu0 0.0
    %6445 = vmatprep.subr.mxu0 0.0
    %6446 = vmatpush1.msra.mxu0 0.0
    %6447 = vmatprep.subr.mxu0 0.0
    %6448 = vmatpush1.msra.mxu0 0.0
    %6449 = vmatprep.subr.mxu0 0.0
    %6450 = vmatpush1.msra.mxu0 0.0
    %6451 = vmatprep.subr.mxu0 0.0
    %6452 = vmatpush1.msra.mxu0 0.0
    %6453 = vmatprep.subr.mxu0 0.0
    %6454 = vmatpush1.msra.mxu0 0.0
    %6455 = vmatprep.subr.mxu0 0.0
    %6456 = vmatpush1.msra.mxu0 0.0
    %6457 = vmatprep.subr.mxu0 0.0
    %6458 = vmatpush1.msra.mxu0 0.0
    %6459 = vmatprep.subr.mxu0 0.0
    %6460 = vmatpush1.msra.mxu0 0.0
    %6461 = vmatprep.subr.mxu0 0.0
    %6462 = vmatpush1.msra.mxu0 0.0
    %6463 = vmatprep.subr.mxu0 0.0
    %6464 = vmatpush1.msra.mxu0 0.0
    %6465 = vmatprep.subr.mxu0 0.0
    %6466 = vmatpush1.msra.mxu0 0.0
    %6467 = vmatprep.subr.mxu0 0.0
    %6468 = vmatpush1.msra.mxu0 0.0
    %6469 = vmatprep.subr.mxu0 0.0
    %6470 = vmatpush1.msra.mxu0 0.0
    %6471 = vmatprep.subr.mxu0 0.0
    %6472 = vmatpush1.msra.mxu0 0.0
    %6473 = vmatprep.subr.mxu0 0.0
    %6474 = vmatpush1.msra.mxu0 0.0
    %6475 = vmatprep.subr.mxu0 0.0
    %6476 = vmatpush1.msra.mxu0 0.0
    %6477 = vmatprep.subr.mxu0 0.0
    %6478 = vmatpush1.msra.mxu0 0.0
    %6479 = vmatprep.subr.mxu0 0.0
    %6480 = vmatpush1.msra.mxu0 0.0
    %6481 = vmatprep.subr.mxu0 0.0
    %6482 = vmatpush1.msra.mxu0 0.0
    %6483 = vmatprep.subr.mxu0 0.0
    %6484 = vmatpush1.msra.mxu0 0.0
    %6485 = vmatprep.subr.mxu0 0.0
    %6486 = vmatpush1.msra.mxu0 0.0
    %6487 = vmatprep.subr.mxu0 0.0
    %6488 = vmatpush1.msra.mxu0 0.0
    %6489 = vmatprep.subr.mxu0 0.0
    %6490 = vmatpush1.msra.mxu0 0.0
    %6491 = vmatprep.subr.mxu0 0.0
    %6492 = vmatpush1.msra.mxu0 0.0
    %6493 = vmatprep.mubr.f32.mxu0 0.0
    %v6494 = vand.u32 %v3863, 4294901760
    %v6495 = vsub.f32 %v3863, %v6494
    %v6496 = vand.u32 %v6495, 4294901760
    %6497 = vmatmul.mubr.f32.gmra.mrb[0].mxu0 %v6496
    %v6498 = vpop.f32.mrb[0].mxu0
    %v6499 = vadd.f32 %v6423, %v6498
    %v6500 = vpop.f32.mrb[0].mxu0
    %v6501 = vadd.f32 %v6425, %v6500
    %6502 = vdwg.mxu0
    %v6503 = vand.u32 %v3856, 4294901760
    %v6504 = vsub.f32 %v3856, %v6503
    %v6505 = vand.u32 %v6504, 4294901760
    %6506 = vmatprep.subr.mxu0 %v6505
    %v6507 = vand.u32 %v3855, 4294901760
    %v6508 = vsub.f32 %v3855, %v6507
    %v6509 = vand.u32 %v6508, 4294901760
    %6510 = vmatpush1.msra.mxu0 %v6509
    %6511 = vmatprep.subr.mxu0 0.0
    %6512 = vmatpush1.msra.mxu0 0.0
    %6513 = vmatprep.subr.mxu0 0.0
    %6514 = vmatpush1.msra.mxu0 0.0
    %6515 = vmatprep.subr.mxu0 0.0
    %6516 = vmatpush1.msra.mxu0 0.0
    %6517 = vmatprep.subr.mxu0 0.0
    %6518 = vmatpush1.msra.mxu0 0.0
    %6519 = vmatprep.subr.mxu0 0.0
    %6520 = vmatpush1.msra.mxu0 0.0
    %6521 = vmatprep.subr.mxu0 0.0
    %6522 = vmatpush1.msra.mxu0 0.0
    %6523 = vmatprep.subr.mxu0 0.0
    %6524 = vmatpush1.msra.mxu0 0.0
    %6525 = vmatprep.subr.mxu0 0.0
    %6526 = vmatpush1.msra.mxu0 0.0
    %6527 = vmatprep.subr.mxu0 0.0
    %6528 = vmatpush1.msra.mxu0 0.0
    %6529 = vmatprep.subr.mxu0 0.0
    %6530 = vmatpush1.msra.mxu0 0.0
    %6531 = vmatprep.subr.mxu0 0.0
    %6532 = vmatpush1.msra.mxu0 0.0
    %6533 = vmatprep.subr.mxu0 0.0
    %6534 = vmatpush1.msra.mxu0 0.0
    %6535 = vmatprep.subr.mxu0 0.0
    %6536 = vmatpush1.msra.mxu0 0.0
    %6537 = vmatprep.subr.mxu0 0.0
    %6538 = vmatpush1.msra.mxu0 0.0
    %6539 = vmatprep.subr.mxu0 0.0
    %6540 = vmatpush1.msra.mxu0 0.0
    %6541 = vmatprep.subr.mxu0 0.0
    %6542 = vmatpush1.msra.mxu0 0.0
    %6543 = vmatprep.subr.mxu0 0.0
    %6544 = vmatpush1.msra.mxu0 0.0
    %6545 = vmatprep.subr.mxu0 0.0
    %6546 = vmatpush1.msra.mxu0 0.0
    %6547 = vmatprep.subr.mxu0 0.0
    %6548 = vmatpush1.msra.mxu0 0.0
    %6549 = vmatprep.subr.mxu0 0.0
    %6550 = vmatpush1.msra.mxu0 0.0
    %6551 = vmatprep.subr.mxu0 0.0
    %6552 = vmatpush1.msra.mxu0 0.0
    %6553 = vmatprep.subr.mxu0 0.0
    %6554 = vmatpush1.msra.mxu0 0.0
    %6555 = vmatprep.subr.mxu0 0.0
    %6556 = vmatpush1.msra.mxu0 0.0
    %6557 = vmatprep.subr.mxu0 0.0
    %6558 = vmatpush1.msra.mxu0 0.0
    %6559 = vmatprep.subr.mxu0 0.0
    %6560 = vmatpush1.msra.mxu0 0.0
    %6561 = vmatprep.subr.mxu0 0.0
    %6562 = vmatpush1.msra.mxu0 0.0
    %6563 = vmatprep.subr.mxu0 0.0
    %6564 = vmatpush1.msra.mxu0 0.0
    %6565 = vmatprep.subr.mxu0 0.0
    %6566 = vmatpush1.msra.mxu0 0.0
    %6567 = vmatprep.subr.mxu0 0.0
    %6568 = vmatpush1.msra.mxu0 0.0
    %6569 = vmatprep.subr.mxu0 0.0
    %6570 = vmatpush1.msra.mxu0 0.0
    %6571 = vmatprep.subr.mxu0 0.0
    %6572 = vmatpush1.msra.mxu0 0.0
    %6573 = vmatprep.mubr.f32.mxu0 0.0
    %v6574 = vand.u32 %v3863, 4294901760
    %6575 = vmatmul.mubr.f32.gmra.mrb[0].mxu0 %v6574
    %v6576 = vpop.f32.mrb[0].mxu0
    %v6577 = vadd.f32 %v6499, %v6576
    %v6578 = vpop.f32.mrb[0].mxu0
    %v6579 = vadd.f32 %v6501, %v6578
    %6580 = vdwg.mxu0
    %v6581 = vand.u32 %v3856, 4294901760
    %6582 = vmatprep.subr.mxu0 %v6581
    %v6583 = vand.u32 %v3855, 4294901760
    %6584 = vmatpush1.msra.mxu0 %v6583
    %6585 = vmatprep.subr.mxu0 0.0
    %6586 = vmatpush1.msra.mxu0 0.0
    %6587 = vmatprep.subr.mxu0 0.0
    %6588 = vmatpush1.msra.mxu0 0.0
    %6589 = vmatprep.subr.mxu0 0.0
    %6590 = vmatpush1.msra.mxu0 0.0
    %6591 = vmatprep.subr.mxu0 0.0
    %6592 = vmatpush1.msra.mxu0 0.0
    %6593 = vmatprep.subr.mxu0 0.0
    %6594 = vmatpush1.msra.mxu0 0.0
    %6595 = vmatprep.subr.mxu0 0.0
    %6596 = vmatpush1.msra.mxu0 0.0
    %6597 = vmatprep.subr.mxu0 0.0
    %6598 = vmatpush1.msra.mxu0 0.0
    %6599 = vmatprep.subr.mxu0 0.0
    %6600 = vmatpush1.msra.mxu0 0.0
    %6601 = vmatprep.subr.mxu0 0.0
    %6602 = vmatpush1.msra.mxu0 0.0
    %6603 = vmatprep.subr.mxu0 0.0
    %6604 = vmatpush1.msra.mxu0 0.0
    %6605 = vmatprep.subr.mxu0 0.0
    %6606 = vmatpush1.msra.mxu0 0.0
    %6607 = vmatprep.subr.mxu0 0.0
    %6608 = vmatpush1.msra.mxu0 0.0
    %6609 = vmatprep.subr.mxu0 0.0
    %6610 = vmatpush1.msra.mxu0 0.0
    %6611 = vmatprep.subr.mxu0 0.0
    %6612 = vmatpush1.msra.mxu0 0.0
    %6613 = vmatprep.subr.mxu0 0.0
    %6614 = vmatpush1.msra.mxu0 0.0
    %6615 = vmatprep.subr.mxu0 0.0
    %6616 = vmatpush1.msra.mxu0 0.0
    %6617 = vmatprep.subr.mxu0 0.0
    %6618 = vmatpush1.msra.mxu0 0.0
    %6619 = vmatprep.subr.mxu0 0.0
    %6620 = vmatpush1.msra.mxu0 0.0
    %6621 = vmatprep.subr.mxu0 0.0
    %6622 = vmatpush1.msra.mxu0 0.0
    %6623 = vmatprep.subr.mxu0 0.0
    %6624 = vmatpush1.msra.mxu0 0.0
    %6625 = vmatprep.subr.mxu0 0.0
    %6626 = vmatpush1.msra.mxu0 0.0
    %6627 = vmatprep.subr.mxu0 0.0
    %6628 = vmatpush1.msra.mxu0 0.0
    %6629 = vmatprep.subr.mxu0 0.0
    %6630 = vmatpush1.msra.mxu0 0.0
    %6631 = vmatprep.subr.mxu0 0.0
    %6632 = vmatpush1.msra.mxu0 0.0
    %6633 = vmatprep.subr.mxu0 0.0
    %6634 = vmatpush1.msra.mxu0 0.0
    %6635 = vmatprep.subr.mxu0 0.0
    %6636 = vmatpush1.msra.mxu0 0.0
    %6637 = vmatprep.subr.mxu0 0.0
    %6638 = vmatpush1.msra.mxu0 0.0
    %6639 = vmatprep.subr.mxu0 0.0
    %6640 = vmatpush1.msra.mxu0 0.0
    %6641 = vmatprep.subr.mxu0 0.0
    %6642 = vmatpush1.msra.mxu0 0.0
    %6643 = vmatprep.subr.mxu0 0.0
    %6644 = vmatpush1.msra.mxu0 0.0
    %6645 = vmatprep.subr.mxu0 0.0
    %6646 = vmatpush1.msra.mxu0 0.0
    %6647 = vmatprep.mubr.f32.mxu0 0.0
    %v6648 = vand.u32 %v3863, 4294901760
    %6649 = vmatmul.mubr.f32.gmra.mrb[0].mxu0 %v6648
    %v6650 = vpop.f32.mrb[0].mxu0
    %v6651 = vadd.f32 %v6577, %v6650
    %v6652 = vpop.f32.mrb[0].mxu0
    %v6653 = vadd.f32 %v6579, %v6652
    %6654 = vdwg.mxu0
    %v6655 = vand.u32 %v3858, 4294901760
    %6656 = vmatprep.subr.mxu0 %v6655
    %v6657 = vand.u32 %v3857, 4294901760
    %6658 = vmatpush1.msra.mxu0 %v6657
    %6659 = vmatprep.subr.mxu0 0.0
    %6660 = vmatpush1.msra.mxu0 0.0
    %6661 = vmatprep.subr.mxu0 0.0
    %6662 = vmatpush1.msra.mxu0 0.0
    %6663 = vmatprep.subr.mxu0 0.0
    %6664 = vmatpush1.msra.mxu0 0.0
    %6665 = vmatprep.subr.mxu0 0.0
    %6666 = vmatpush1.msra.mxu0 0.0
    %6667 = vmatprep.subr.mxu0 0.0
    %6668 = vmatpush1.msra.mxu0 0.0
    %6669 = vmatprep.subr.mxu0 0.0
    %6670 = vmatpush1.msra.mxu0 0.0
    %6671 = vmatprep.subr.mxu0 0.0
    %6672 = vmatpush1.msra.mxu0 0.0
    %6673 = vmatprep.subr.mxu0 0.0
    %6674 = vmatpush1.msra.mxu0 0.0
    %6675 = vmatprep.subr.mxu0 0.0
    %6676 = vmatpush1.msra.mxu0 0.0
    %6677 = vmatprep.subr.mxu0 0.0
    %6678 = vmatpush1.msra.mxu0 0.0
    %6679 = vmatprep.subr.mxu0 0.0
    %6680 = vmatpush1.msra.mxu0 0.0
    %6681 = vmatprep.subr.mxu0 0.0
    %6682 = vmatpush1.msra.mxu0 0.0
    %6683 = vmatprep.subr.mxu0 0.0
    %6684 = vmatpush1.msra.mxu0 0.0
    %6685 = vmatprep.subr.mxu0 0.0
    %6686 = vmatpush1.msra.mxu0 0.0
    %6687 = vmatprep.subr.mxu0 0.0
    %6688 = vmatpush1.msra.mxu0 0.0
    %6689 = vmatprep.subr.mxu0 0.0
    %6690 = vmatpush1.msra.mxu0 0.0
    %6691 = vmatprep.subr.mxu0 0.0
    %6692 = vmatpush1.msra.mxu0 0.0
    %6693 = vmatprep.subr.mxu0 0.0
    %6694 = vmatpush1.msra.mxu0 0.0
    %6695 = vmatprep.subr.mxu0 0.0
    %6696 = vmatpush1.msra.mxu0 0.0
    %6697 = vmatprep.subr.mxu0 0.0
    %6698 = vmatpush1.msra.mxu0 0.0
    %6699 = vmatprep.subr.mxu0 0.0
    %6700 = vmatpush1.msra.mxu0 0.0
    %6701 = vmatprep.subr.mxu0 0.0
    %6702 = vmatpush1.msra.mxu0 0.0
    %6703 = vmatprep.subr.mxu0 0.0
    %6704 = vmatpush1.msra.mxu0 0.0
    %6705 = vmatprep.subr.mxu0 0.0
    %6706 = vmatpush1.msra.mxu0 0.0
    %6707 = vmatprep.subr.mxu0 0.0
    %6708 = vmatpush1.msra.mxu0 0.0
    %6709 = vmatprep.subr.mxu0 0.0
    %6710 = vmatpush1.msra.mxu0 0.0
    %6711 = vmatprep.subr.mxu0 0.0
    %6712 = vmatpush1.msra.mxu0 0.0
    %6713 = vmatprep.subr.mxu0 0.0
    %6714 = vmatpush1.msra.mxu0 0.0
    %6715 = vmatprep.subr.mxu0 0.0
    %6716 = vmatpush1.msra.mxu0 0.0
    %6717 = vmatprep.subr.mxu0 0.0
    %6718 = vmatpush1.msra.mxu0 0.0
    %6719 = vmatprep.subr.mxu0 0.0
    %6720 = vmatpush1.msra.mxu0 0.0
    %6721 = vmatprep.mubr.f32.mxu0 0.0
    %v6722 = vand.u32 %v3863, 4294901760
    %v6723 = vsub.f32 %v3863, %v6722
    %v6724 = vand.u32 %v6723, 4294901760
    %v6725 = vsub.f32 %v6723, %v6724
    %v6726 = vand.u32 %v6725, 4294901760
    %6727 = vmatmul.mubr.f32.gmra.mrb[0].mxu0 %v6726
    %v6728 = vpop.f32.mrb[0].mxu0
    %v6729 = vadd.f32 0.0, %v6728
    %v6730 = vpop.f32.mrb[0].mxu0
    %v6731 = vadd.f32 0.0, %v6730
    %6732 = vdwg.mxu0
    %v6733 = vand.u32 %v3858, 4294901760
    %v6734 = vsub.f32 %v3858, %v6733
    %v6735 = vand.u32 %v6734, 4294901760
    %v6736 = vsub.f32 %v6734, %v6735
    %v6737 = vand.u32 %v6736, 4294901760
    %6738 = vmatprep.subr.mxu0 %v6737
    %v6739 = vand.u32 %v3857, 4294901760
    %v6740 = vsub.f32 %v3857, %v6739
    %v6741 = vand.u32 %v6740, 4294901760
    %v6742 = vsub.f32 %v6740, %v6741
    %v6743 = vand.u32 %v6742, 4294901760
    %6744 = vmatpush1.msra.mxu0 %v6743
    %6745 = vmatprep.subr.mxu0 0.0
    %6746 = vmatpush1.msra.mxu0 0.0
    %6747 = vmatprep.subr.mxu0 0.0
    %6748 = vmatpush1.msra.mxu0 0.0
    %6749 = vmatprep.subr.mxu0 0.0
    %6750 = vmatpush1.msra.mxu0 0.0
    %6751 = vmatprep.subr.mxu0 0.0
    %6752 = vmatpush1.msra.mxu0 0.0
    %6753 = vmatprep.subr.mxu0 0.0
    %6754 = vmatpush1.msra.mxu0 0.0
    %6755 = vmatprep.subr.mxu0 0.0
    %6756 = vmatpush1.msra.mxu0 0.0
    %6757 = vmatprep.subr.mxu0 0.0
    %6758 = vmatpush1.msra.mxu0 0.0
    %6759 = vmatprep.subr.mxu0 0.0
    %6760 = vmatpush1.msra.mxu0 0.0
    %6761 = vmatprep.subr.mxu0 0.0
    %6762 = vmatpush1.msra.mxu0 0.0
    %6763 = vmatprep.subr.mxu0 0.0
    %6764 = vmatpush1.msra.mxu0 0.0
    %6765 = vmatprep.subr.mxu0 0.0
    %6766 = vmatpush1.msra.mxu0 0.0
    %6767 = vmatprep.subr.mxu0 0.0
    %6768 = vmatpush1.msra.mxu0 0.0
    %6769 = vmatprep.subr.mxu0 0.0
    %6770 = vmatpush1.msra.mxu0 0.0
    %6771 = vmatprep.subr.mxu0 0.0
    %6772 = vmatpush1.msra.mxu0 0.0
    %6773 = vmatprep.subr.mxu0 0.0
    %6774 = vmatpush1.msra.mxu0 0.0
    %6775 = vmatprep.subr.mxu0 0.0
    %6776 = vmatpush1.msra.mxu0 0.0
    %6777 = vmatprep.subr.mxu0 0.0
    %6778 = vmatpush1.msra.mxu0 0.0
    %6779 = vmatprep.subr.mxu0 0.0
    %6780 = vmatpush1.msra.mxu0 0.0
    %6781 = vmatprep.subr.mxu0 0.0
    %6782 = vmatpush1.msra.mxu0 0.0
    %6783 = vmatprep.subr.mxu0 0.0
    %6784 = vmatpush1.msra.mxu0 0.0
    %6785 = vmatprep.subr.mxu0 0.0
    %6786 = vmatpush1.msra.mxu0 0.0
    %6787 = vmatprep.subr.mxu0 0.0
    %6788 = vmatpush1.msra.mxu0 0.0
    %6789 = vmatprep.subr.mxu0 0.0
    %6790 = vmatpush1.msra.mxu0 0.0
    %6791 = vmatprep.subr.mxu0 0.0
    %6792 = vmatpush1.msra.mxu0 0.0
    %6793 = vmatprep.subr.mxu0 0.0
    %6794 = vmatpush1.msra.mxu0 0.0
    %6795 = vmatprep.subr.mxu0 0.0
    %6796 = vmatpush1.msra.mxu0 0.0
    %6797 = vmatprep.subr.mxu0 0.0
    %6798 = vmatpush1.msra.mxu0 0.0
    %6799 = vmatprep.subr.mxu0 0.0
    %6800 = vmatpush1.msra.mxu0 0.0
    %6801 = vmatprep.subr.mxu0 0.0
    %6802 = vmatpush1.msra.mxu0 0.0
    %6803 = vmatprep.subr.mxu0 0.0
    %6804 = vmatpush1.msra.mxu0 0.0
    %6805 = vmatprep.subr.mxu0 0.0
    %6806 = vmatpush1.msra.mxu0 0.0
    %6807 = vmatprep.mubr.f32.mxu0 0.0
    %v6808 = vand.u32 %v3863, 4294901760
    %6809 = vmatmul.mubr.f32.gmra.mrb[0].mxu0 %v6808
    %v6810 = vpop.f32.mrb[0].mxu0
    %v6811 = vadd.f32 %v6729, %v6810
    %v6812 = vpop.f32.mrb[0].mxu0
    %v6813 = vadd.f32 %v6731, %v6812
    %6814 = vdwg.mxu0
    %v6815 = vand.u32 %v3858, 4294901760
    %v6816 = vsub.f32 %v3858, %v6815
    %6817 = vmatprep.subr.mxu0 %v6816
    %v6818 = vand.u32 %v3857, 4294901760
    %v6819 = vsub.f32 %v3857, %v6818
    %6820 = vmatpush1.msra.mxu0 %v6819
    %6821 = vmatprep.subr.mxu0 0.0
    %6822 = vmatpush1.msra.mxu0 0.0
    %6823 = vmatprep.subr.mxu0 0.0
    %6824 = vmatpush1.msra.mxu0 0.0
    %6825 = vmatprep.subr.mxu0 0.0
    %6826 = vmatpush1.msra.mxu0 0.0
    %6827 = vmatprep.subr.mxu0 0.0
    %6828 = vmatpush1.msra.mxu0 0.0
    %6829 = vmatprep.subr.mxu0 0.0
    %6830 = vmatpush1.msra.mxu0 0.0
    %6831 = vmatprep.subr.mxu0 0.0
    %6832 = vmatpush1.msra.mxu0 0.0
    %6833 = vmatprep.subr.mxu0 0.0
    %6834 = vmatpush1.msra.mxu0 0.0
    %6835 = vmatprep.subr.mxu0 0.0
    %6836 = vmatpush1.msra.mxu0 0.0
    %6837 = vmatprep.subr.mxu0 0.0
    %6838 = vmatpush1.msra.mxu0 0.0
    %6839 = vmatprep.subr.mxu0 0.0
    %6840 = vmatpush1.msra.mxu0 0.0
    %6841 = vmatprep.subr.mxu0 0.0
    %6842 = vmatpush1.msra.mxu0 0.0
    %6843 = vmatprep.subr.mxu0 0.0
    %6844 = vmatpush1.msra.mxu0 0.0
    %6845 = vmatprep.subr.mxu0 0.0
    %6846 = vmatpush1.msra.mxu0 0.0
    %6847 = vmatprep.subr.mxu0 0.0
    %6848 = vmatpush1.msra.mxu0 0.0
    %6849 = vmatprep.subr.mxu0 0.0
    %6850 = vmatpush1.msra.mxu0 0.0
    %6851 = vmatprep.subr.mxu0 0.0
    %6852 = vmatpush1.msra.mxu0 0.0
    %6853 = vmatprep.subr.mxu0 0.0
    %6854 = vmatpush1.msra.mxu0 0.0
    %6855 = vmatprep.subr.mxu0 0.0
    %6856 = vmatpush1.msra.mxu0 0.0
    %6857 = vmatprep.subr.mxu0 0.0
    %6858 = vmatpush1.msra.mxu0 0.0
    %6859 = vmatprep.subr.mxu0 0.0
    %6860 = vmatpush1.msra.mxu0 0.0
    %6861 = vmatprep.subr.mxu0 0.0
    %6862 = vmatpush1.msra.mxu0 0.0
    %6863 = vmatprep.subr.mxu0 0.0
    %6864 = vmatpush1.msra.mxu0 0.0
    %6865 = vmatprep.subr.mxu0 0.0
    %6866 = vmatpush1.msra.mxu0 0.0
    %6867 = vmatprep.subr.mxu0 0.0
    %6868 = vmatpush1.msra.mxu0 0.0
    %6869 = vmatprep.subr.mxu0 0.0
    %6870 = vmatpush1.msra.mxu0 0.0
    %6871 = vmatprep.subr.mxu0 0.0
    %6872 = vmatpush1.msra.mxu0 0.0
    %6873 = vmatprep.subr.mxu0 0.0
    %6874 = vmatpush1.msra.mxu0 0.0
    %6875 = vmatprep.subr.mxu0 0.0
    %6876 = vmatpush1.msra.mxu0 0.0
    %6877 = vmatprep.subr.mxu0 0.0
    %6878 = vmatpush1.msra.mxu0 0.0
    %6879 = vmatprep.subr.mxu0 0.0
    %6880 = vmatpush1.msra.mxu0 0.0
    %6881 = vmatprep.subr.mxu0 0.0
    %6882 = vmatpush1.msra.mxu0 0.0
    %6883 = vmatprep.mubr.f32.mxu0 0.0
    %v6884 = vand.u32 %v3863, 4294901760
    %v6885 = vsub.f32 %v3863, %v6884
    %6886 = vmatmul.mubr.f32.gmra.mrb[0].mxu0 %v6885
    %v6887 = vpop.f32.mrb[0].mxu0
    %v6888 = vadd.f32 %v6811, %v6887
    %v6889 = vpop.f32.mrb[0].mxu0
    %v6890 = vadd.f32 %v6813, %v6889
    %6891 = vdwg.mxu0
    %v6892 = vand.u32 %v3858, 4294901760
    %6893 = vmatprep.subr.mxu0 %v6892
    %v6894 = vand.u32 %v3857, 4294901760
    %6895 = vmatpush1.msra.mxu0 %v6894
    %6896 = vmatprep.subr.mxu0 0.0
    %6897 = vmatpush1.msra.mxu0 0.0
    %6898 = vmatprep.subr.mxu0 0.0
    %6899 = vmatpush1.msra.mxu0 0.0
    %6900 = vmatprep.subr.mxu0 0.0
    %6901 = vmatpush1.msra.mxu0 0.0
    %6902 = vmatprep.subr.mxu0 0.0
    %6903 = vmatpush1.msra.mxu0 0.0
    %6904 = vmatprep.subr.mxu0 0.0
    %6905 = vmatpush1.msra.mxu0 0.0
    %6906 = vmatprep.subr.mxu0 0.0
    %6907 = vmatpush1.msra.mxu0 0.0
    %6908 = vmatprep.subr.mxu0 0.0
    %6909 = vmatpush1.msra.mxu0 0.0
    %6910 = vmatprep.subr.mxu0 0.0
    %6911 = vmatpush1.msra.mxu0 0.0
    %6912 = vmatprep.subr.mxu0 0.0
    %6913 = vmatpush1.msra.mxu0 0.0
    %6914 = vmatprep.subr.mxu0 0.0
    %6915 = vmatpush1.msra.mxu0 0.0
    %6916 = vmatprep.subr.mxu0 0.0
    %6917 = vmatpush1.msra.mxu0 0.0
    %6918 = vmatprep.subr.mxu0 0.0
    %6919 = vmatpush1.msra.mxu0 0.0
    %6920 = vmatprep.subr.mxu0 0.0
    %6921 = vmatpush1.msra.mxu0 0.0
    %6922 = vmatprep.subr.mxu0 0.0
    %6923 = vmatpush1.msra.mxu0 0.0
    %6924 = vmatprep.subr.mxu0 0.0
    %6925 = vmatpush1.msra.mxu0 0.0
    %6926 = vmatprep.subr.mxu0 0.0
    %6927 = vmatpush1.msra.mxu0 0.0
    %6928 = vmatprep.subr.mxu0 0.0
    %6929 = vmatpush1.msra.mxu0 0.0
    %6930 = vmatprep.subr.mxu0 0.0
    %6931 = vmatpush1.msra.mxu0 0.0
    %6932 = vmatprep.subr.mxu0 0.0
    %6933 = vmatpush1.msra.mxu0 0.0
    %6934 = vmatprep.subr.mxu0 0.0
    %6935 = vmatpush1.msra.mxu0 0.0
    %6936 = vmatprep.subr.mxu0 0.0
    %6937 = vmatpush1.msra.mxu0 0.0
    %6938 = vmatprep.subr.mxu0 0.0
    %6939 = vmatpush1.msra.mxu0 0.0
    %6940 = vmatprep.subr.mxu0 0.0
    %6941 = vmatpush1.msra.mxu0 0.0
    %6942 = vmatprep.subr.mxu0 0.0
    %6943 = vmatpush1.msra.mxu0 0.0
    %6944 = vmatprep.subr.mxu0 0.0
    %6945 = vmatpush1.msra.mxu0 0.0
    %6946 = vmatprep.subr.mxu0 0.0
    %6947 = vmatpush1.msra.mxu0 0.0
    %6948 = vmatprep.subr.mxu0 0.0
    %6949 = vmatpush1.msra.mxu0 0.0
    %6950 = vmatprep.subr.mxu0 0.0
    %6951 = vmatpush1.msra.mxu0 0.0
    %6952 = vmatprep.subr.mxu0 0.0
    %6953 = vmatpush1.msra.mxu0 0.0
    %6954 = vmatprep.subr.mxu0 0.0
    %6955 = vmatpush1.msra.mxu0 0.0
    %6956 = vmatprep.subr.mxu0 0.0
    %6957 = vmatpush1.msra.mxu0 0.0
    %6958 = vmatprep.mubr.f32.mxu0 0.0
    %v6959 = vand.u32 %v3863, 4294901760
    %v6960 = vsub.f32 %v3863, %v6959
    %v6961 = vand.u32 %v6960, 4294901760
    %6962 = vmatmul.mubr.f32.gmra.mrb[0].mxu0 %v6961
    %v6963 = vpop.f32.mrb[0].mxu0
    %v6964 = vadd.f32 %v6888, %v6963
    %v6965 = vpop.f32.mrb[0].mxu0
    %v6966 = vadd.f32 %v6890, %v6965
    %6967 = vdwg.mxu0
    %v6968 = vand.u32 %v3858, 4294901760
    %v6969 = vsub.f32 %v3858, %v6968
    %v6970 = vand.u32 %v6969, 4294901760
    %6971 = vmatprep.subr.mxu0 %v6970
    %v6972 = vand.u32 %v3857, 4294901760
    %v6973 = vsub.f32 %v3857, %v6972
    %v6974 = vand.u32 %v6973, 4294901760
    %6975 = vmatpush1.msra.mxu0 %v6974
    %6976 = vmatprep.subr.mxu0 0.0
    %6977 = vmatpush1.msra.mxu0 0.0
    %6978 = vmatprep.subr.mxu0 0.0
    %6979 = vmatpush1.msra.mxu0 0.0
    %6980 = vmatprep.subr.mxu0 0.0
    %6981 = vmatpush1.msra.mxu0 0.0
    %6982 = vmatprep.subr.mxu0 0.0
    %6983 = vmatpush1.msra.mxu0 0.0
    %6984 = vmatprep.subr.mxu0 0.0
    %6985 = vmatpush1.msra.mxu0 0.0
    %6986 = vmatprep.subr.mxu0 0.0
    %6987 = vmatpush1.msra.mxu0 0.0
    %6988 = vmatprep.subr.mxu0 0.0
    %6989 = vmatpush1.msra.mxu0 0.0
    %6990 = vmatprep.subr.mxu0 0.0
    %6991 = vmatpush1.msra.mxu0 0.0
    %6992 = vmatprep.subr.mxu0 0.0
    %6993 = vmatpush1.msra.mxu0 0.0
    %6994 = vmatprep.subr.mxu0 0.0
    %6995 = vmatpush1.msra.mxu0 0.0
    %6996 = vmatprep.subr.mxu0 0.0
    %6997 = vmatpush1.msra.mxu0 0.0
    %6998 = vmatprep.subr.mxu0 0.0
    %6999 = vmatpush1.msra.mxu0 0.0
    %7000 = vmatprep.subr.mxu0 0.0
    %7001 = vmatpush1.msra.mxu0 0.0
    %7002 = vmatprep.subr.mxu0 0.0
    %7003 = vmatpush1.msra.mxu0 0.0
    %7004 = vmatprep.subr.mxu0 0.0
    %7005 = vmatpush1.msra.mxu0 0.0
    %7006 = vmatprep.subr.mxu0 0.0
    %7007 = vmatpush1.msra.mxu0 0.0
    %7008 = vmatprep.subr.mxu0 0.0
    %7009 = vmatpush1.msra.mxu0 0.0
    %7010 = vmatprep.subr.mxu0 0.0
    %7011 = vmatpush1.msra.mxu0 0.0
    %7012 = vmatprep.subr.mxu0 0.0
    %7013 = vmatpush1.msra.mxu0 0.0
    %7014 = vmatprep.subr.mxu0 0.0
    %7015 = vmatpush1.msra.mxu0 0.0
    %7016 = vmatprep.subr.mxu0 0.0
    %7017 = vmatpush1.msra.mxu0 0.0
    %7018 = vmatprep.subr.mxu0 0.0
    %7019 = vmatpush1.msra.mxu0 0.0
    %7020 = vmatprep.subr.mxu0 0.0
    %7021 = vmatpush1.msra.mxu0 0.0
    %7022 = vmatprep.subr.mxu0 0.0
    %7023 = vmatpush1.msra.mxu0 0.0
    %7024 = vmatprep.subr.mxu0 0.0
    %7025 = vmatpush1.msra.mxu0 0.0
    %7026 = vmatprep.subr.mxu0 0.0
    %7027 = vmatpush1.msra.mxu0 0.0
    %7028 = vmatprep.subr.mxu0 0.0
    %7029 = vmatpush1.msra.mxu0 0.0
    %7030 = vmatprep.subr.mxu0 0.0
    %7031 = vmatpush1.msra.mxu0 0.0
    %7032 = vmatprep.subr.mxu0 0.0
    %7033 = vmatpush1.msra.mxu0 0.0
    %7034 = vmatprep.subr.mxu0 0.0
    %7035 = vmatpush1.msra.mxu0 0.0
    %7036 = vmatprep.subr.mxu0 0.0
    %7037 = vmatpush1.msra.mxu0 0.0
    %7038 = vmatprep.mubr.f32.mxu0 0.0
    %v7039 = vand.u32 %v3863, 4294901760
    %7040 = vmatmul.mubr.f32.gmra.mrb[0].mxu0 %v7039
    %v7041 = vpop.f32.mrb[0].mxu0
    %v7042 = vadd.f32 %v6964, %v7041
    %v7043 = vpop.f32.mrb[0].mxu0
    %v7044 = vadd.f32 %v6966, %v7043
    %7045 = vdwg.mxu0
    %v7046 = vand.u32 %v3858, 4294901760
    %7047 = vmatprep.subr.mxu0 %v7046
    %v7048 = vand.u32 %v3857, 4294901760
    %7049 = vmatpush1.msra.mxu0 %v7048
    %7050 = vmatprep.subr.mxu0 0.0
    %7051 = vmatpush1.msra.mxu0 0.0
    %7052 = vmatprep.subr.mxu0 0.0
    %7053 = vmatpush1.msra.mxu0 0.0
    %7054 = vmatprep.subr.mxu0 0.0
    %7055 = vmatpush1.msra.mxu0 0.0
    %7056 = vmatprep.subr.mxu0 0.0
    %7057 = vmatpush1.msra.mxu0 0.0
    %7058 = vmatprep.subr.mxu0 0.0
    %7059 = vmatpush1.msra.mxu0 0.0
    %7060 = vmatprep.subr.mxu0 0.0
    %7061 = vmatpush1.msra.mxu0 0.0
    %7062 = vmatprep.subr.mxu0 0.0
    %7063 = vmatpush1.msra.mxu0 0.0
    %7064 = vmatprep.subr.mxu0 0.0
    %7065 = vmatpush1.msra.mxu0 0.0
    %7066 = vmatprep.subr.mxu0 0.0
    %7067 = vmatpush1.msra.mxu0 0.0
    %7068 = vmatprep.subr.mxu0 0.0
    %7069 = vmatpush1.msra.mxu0 0.0
    %7070 = vmatprep.subr.mxu0 0.0
    %7071 = vmatpush1.msra.mxu0 0.0
    %7072 = vmatprep.subr.mxu0 0.0
    %7073 = vmatpush1.msra.mxu0 0.0
    %7074 = vmatprep.subr.mxu0 0.0
    %7075 = vmatpush1.msra.mxu0 0.0
    %7076 = vmatprep.subr.mxu0 0.0
    %7077 = vmatpush1.msra.mxu0 0.0
    %7078 = vmatprep.subr.mxu0 0.0
    %7079 = vmatpush1.msra.mxu0 0.0
    %7080 = vmatprep.subr.mxu0 0.0
    %7081 = vmatpush1.msra.mxu0 0.0
    %7082 = vmatprep.subr.mxu0 0.0
    %7083 = vmatpush1.msra.mxu0 0.0
    %7084 = vmatprep.subr.mxu0 0.0
    %7085 = vmatpush1.msra.mxu0 0.0
    %7086 = vmatprep.subr.mxu0 0.0
    %7087 = vmatpush1.msra.mxu0 0.0
    %7088 = vmatprep.subr.mxu0 0.0
    %7089 = vmatpush1.msra.mxu0 0.0
    %7090 = vmatprep.subr.mxu0 0.0
    %7091 = vmatpush1.msra.mxu0 0.0
    %7092 = vmatprep.subr.mxu0 0.0
    %7093 = vmatpush1.msra.mxu0 0.0
    %7094 = vmatprep.subr.mxu0 0.0
    %7095 = vmatpush1.msra.mxu0 0.0
    %7096 = vmatprep.subr.mxu0 0.0
    %7097 = vmatpush1.msra.mxu0 0.0
    %7098 = vmatprep.subr.mxu0 0.0
    %7099 = vmatpush1.msra.mxu0 0.0
    %7100 = vmatprep.subr.mxu0 0.0
    %7101 = vmatpush1.msra.mxu0 0.0
    %7102 = vmatprep.subr.mxu0 0.0
    %7103 = vmatpush1.msra.mxu0 0.0
    %7104 = vmatprep.subr.mxu0 0.0
    %7105 = vmatpush1.msra.mxu0 0.0
    %7106 = vmatprep.subr.mxu0 0.0
    %7107 = vmatpush1.msra.mxu0 0.0
    %7108 = vmatprep.subr.mxu0 0.0
    %7109 = vmatpush1.msra.mxu0 0.0
    %7110 = vmatprep.subr.mxu0 0.0
    %7111 = vmatpush1.msra.mxu0 0.0
    %7112 = vmatprep.mubr.f32.mxu0 0.0
    %v7113 = vand.u32 %v3863, 4294901760
    %7114 = vmatmul.mubr.f32.gmra.mrb[0].mxu0 %v7113
    %v7115 = vpop.f32.mrb[0].mxu0
    %v7116 = vadd.f32 %v7042, %v7115
    %v7117 = vpop.f32.mrb[0].mxu0
    %v7118 = vadd.f32 %v7044, %v7117
    %7119 = vdwg.mxu0
    %v7120 = vand.u32 %v3860, 4294901760
    %7121 = vmatprep.subr.mxu0 %v7120
    %v7122 = vand.u32 %v3859, 4294901760
    %7123 = vmatpush1.msra.mxu0 %v7122
    %7124 = vmatprep.subr.mxu0 0.0
    %7125 = vmatpush1.msra.mxu0 0.0
    %7126 = vmatprep.subr.mxu0 0.0
    %7127 = vmatpush1.msra.mxu0 0.0
    %7128 = vmatprep.subr.mxu0 0.0
    %7129 = vmatpush1.msra.mxu0 0.0
    %7130 = vmatprep.subr.mxu0 0.0
    %7131 = vmatpush1.msra.mxu0 0.0
    %7132 = vmatprep.subr.mxu0 0.0
    %7133 = vmatpush1.msra.mxu0 0.0
    %7134 = vmatprep.subr.mxu0 0.0
    %7135 = vmatpush1.msra.mxu0 0.0
    %7136 = vmatprep.subr.mxu0 0.0
    %7137 = vmatpush1.msra.mxu0 0.0
    %7138 = vmatprep.subr.mxu0 0.0
    %7139 = vmatpush1.msra.mxu0 0.0
    %7140 = vmatprep.subr.mxu0 0.0
    %7141 = vmatpush1.msra.mxu0 0.0
    %7142 = vmatprep.subr.mxu0 0.0
    %7143 = vmatpush1.msra.mxu0 0.0
    %7144 = vmatprep.subr.mxu0 0.0
    %7145 = vmatpush1.msra.mxu0 0.0
    %7146 = vmatprep.subr.mxu0 0.0
    %7147 = vmatpush1.msra.mxu0 0.0
    %7148 = vmatprep.subr.mxu0 0.0
    %7149 = vmatpush1.msra.mxu0 0.0
    %7150 = vmatprep.subr.mxu0 0.0
    %7151 = vmatpush1.msra.mxu0 0.0
    %7152 = vmatprep.subr.mxu0 0.0
    %7153 = vmatpush1.msra.mxu0 0.0
    %7154 = vmatprep.subr.mxu0 0.0
    %7155 = vmatpush1.msra.mxu0 0.0
    %7156 = vmatprep.subr.mxu0 0.0
    %7157 = vmatpush1.msra.mxu0 0.0
    %7158 = vmatprep.subr.mxu0 0.0
    %7159 = vmatpush1.msra.mxu0 0.0
    %7160 = vmatprep.subr.mxu0 0.0
    %7161 = vmatpush1.msra.mxu0 0.0
    %7162 = vmatprep.subr.mxu0 0.0
    %7163 = vmatpush1.msra.mxu0 0.0
    %7164 = vmatprep.subr.mxu0 0.0
    %7165 = vmatpush1.msra.mxu0 0.0
    %7166 = vmatprep.subr.mxu0 0.0
    %7167 = vmatpush1.msra.mxu0 0.0
    %7168 = vmatprep.subr.mxu0 0.0
    %7169 = vmatpush1.msra.mxu0 0.0
    %7170 = vmatprep.subr.mxu0 0.0
    %7171 = vmatpush1.msra.mxu0 0.0
    %7172 = vmatprep.subr.mxu0 0.0
    %7173 = vmatpush1.msra.mxu0 0.0
    %7174 = vmatprep.subr.mxu0 0.0
    %7175 = vmatpush1.msra.mxu0 0.0
    %7176 = vmatprep.subr.mxu0 0.0
    %7177 = vmatpush1.msra.mxu0 0.0
    %7178 = vmatprep.subr.mxu0 0.0
    %7179 = vmatpush1.msra.mxu0 0.0
    %7180 = vmatprep.subr.mxu0 0.0
    %7181 = vmatpush1.msra.mxu0 0.0
    %7182 = vmatprep.subr.mxu0 0.0
    %7183 = vmatpush1.msra.mxu0 0.0
    %7184 = vmatprep.subr.mxu0 0.0
    %7185 = vmatpush1.msra.mxu0 0.0
    %7186 = vmatprep.mubr.f32.mxu0 0.0
    %v7187 = vand.u32 %v3863, 4294901760
    %v7188 = vsub.f32 %v3863, %v7187
    %v7189 = vand.u32 %v7188, 4294901760
    %v7190 = vsub.f32 %v7188, %v7189
    %v7191 = vand.u32 %v7190, 4294901760
    %7192 = vmatmul.mubr.f32.gmra.mrb[0].mxu0 %v7191
    %v7193 = vpop.f32.mrb[0].mxu0
    %v7194 = vadd.f32 0.0, %v7193
    %v7195 = vpop.f32.mrb[0].mxu0
    %v7196 = vadd.f32 0.0, %v7195
    %7197 = vdwg.mxu0
    %v7198 = vand.u32 %v3860, 4294901760
    %v7199 = vsub.f32 %v3860, %v7198
    %v7200 = vand.u32 %v7199, 4294901760
    %v7201 = vsub.f32 %v7199, %v7200
    %v7202 = vand.u32 %v7201, 4294901760
    %7203 = vmatprep.subr.mxu0 %v7202
    %v7204 = vand.u32 %v3859, 4294901760
    %v7205 = vsub.f32 %v3859, %v7204
    %v7206 = vand.u32 %v7205, 4294901760
    %v7207 = vsub.f32 %v7205, %v7206
    %v7208 = vand.u32 %v7207, 4294901760
    %7209 = vmatpush1.msra.mxu0 %v7208
    %7210 = vmatprep.subr.mxu0 0.0
    %7211 = vmatpush1.msra.mxu0 0.0
    %7212 = vmatprep.subr.mxu0 0.0
    %7213 = vmatpush1.msra.mxu0 0.0
    %7214 = vmatprep.subr.mxu0 0.0
    %7215 = vmatpush1.msra.mxu0 0.0
    %7216 = vmatprep.subr.mxu0 0.0
    %7217 = vmatpush1.msra.mxu0 0.0
    %7218 = vmatprep.subr.mxu0 0.0
    %7219 = vmatpush1.msra.mxu0 0.0
    %7220 = vmatprep.subr.mxu0 0.0
    %7221 = vmatpush1.msra.mxu0 0.0
    %7222 = vmatprep.subr.mxu0 0.0
    %7223 = vmatpush1.msra.mxu0 0.0
    %7224 = vmatprep.subr.mxu0 0.0
    %7225 = vmatpush1.msra.mxu0 0.0
    %7226 = vmatprep.subr.mxu0 0.0
    %7227 = vmatpush1.msra.mxu0 0.0
    %7228 = vmatprep.subr.mxu0 0.0
    %7229 = vmatpush1.msra.mxu0 0.0
    %7230 = vmatprep.subr.mxu0 0.0
    %7231 = vmatpush1.msra.mxu0 0.0
    %7232 = vmatprep.subr.mxu0 0.0
    %7233 = vmatpush1.msra.mxu0 0.0
    %7234 = vmatprep.subr.mxu0 0.0
    %7235 = vmatpush1.msra.mxu0 0.0
    %7236 = vmatprep.subr.mxu0 0.0
    %7237 = vmatpush1.msra.mxu0 0.0
    %7238 = vmatprep.subr.mxu0 0.0
    %7239 = vmatpush1.msra.mxu0 0.0
    %7240 = vmatprep.subr.mxu0 0.0
    %7241 = vmatpush1.msra.mxu0 0.0
    %7242 = vmatprep.subr.mxu0 0.0
    %7243 = vmatpush1.msra.mxu0 0.0
    %7244 = vmatprep.subr.mxu0 0.0
    %7245 = vmatpush1.msra.mxu0 0.0
    %7246 = vmatprep.subr.mxu0 0.0
    %7247 = vmatpush1.msra.mxu0 0.0
    %7248 = vmatprep.subr.mxu0 0.0
    %7249 = vmatpush1.msra.mxu0 0.0
    %7250 = vmatprep.subr.mxu0 0.0
    %7251 = vmatpush1.msra.mxu0 0.0
    %7252 = vmatprep.subr.mxu0 0.0
    %7253 = vmatpush1.msra.mxu0 0.0
    %7254 = vmatprep.subr.mxu0 0.0
    %7255 = vmatpush1.msra.mxu0 0.0
    %7256 = vmatprep.subr.mxu0 0.0
    %7257 = vmatpush1.msra.mxu0 0.0
    %7258 = vmatprep.subr.mxu0 0.0
    %7259 = vmatpush1.msra.mxu0 0.0
    %7260 = vmatprep.subr.mxu0 0.0
    %7261 = vmatpush1.msra.mxu0 0.0
    %7262 = vmatprep.subr.mxu0 0.0
    %7263 = vmatpush1.msra.mxu0 0.0
    %7264 = vmatprep.subr.mxu0 0.0
    %7265 = vmatpush1.msra.mxu0 0.0
    %7266 = vmatprep.subr.mxu0 0.0
    %7267 = vmatpush1.msra.mxu0 0.0
    %7268 = vmatprep.subr.mxu0 0.0
    %7269 = vmatpush1.msra.mxu0 0.0
    %7270 = vmatprep.subr.mxu0 0.0
    %7271 = vmatpush1.msra.mxu0 0.0
    %7272 = vmatprep.mubr.f32.mxu0 0.0
    %v7273 = vand.u32 %v3863, 4294901760
    %7274 = vmatmul.mubr.f32.gmra.mrb[0].mxu0 %v7273
    %v7275 = vpop.f32.mrb[0].mxu0
    %v7276 = vadd.f32 %v7194, %v7275
    %v7277 = vpop.f32.mrb[0].mxu0
    %v7278 = vadd.f32 %v7196, %v7277
    %7279 = vdwg.mxu0
    %v7280 = vand.u32 %v3860, 4294901760
    %v7281 = vsub.f32 %v3860, %v7280
    %7282 = vmatprep.subr.mxu0 %v7281
    %v7283 = vand.u32 %v3859, 4294901760
    %v7284 = vsub.f32 %v3859, %v7283
    %7285 = vmatpush1.msra.mxu0 %v7284
    %7286 = vmatprep.subr.mxu0 0.0
    %7287 = vmatpush1.msra.mxu0 0.0
    %7288 = vmatprep.subr.mxu0 0.0
    %7289 = vmatpush1.msra.mxu0 0.0
    %7290 = vmatprep.subr.mxu0 0.0
    %7291 = vmatpush1.msra.mxu0 0.0
    %7292 = vmatprep.subr.mxu0 0.0
    %7293 = vmatpush1.msra.mxu0 0.0
    %7294 = vmatprep.subr.mxu0 0.0
    %7295 = vmatpush1.msra.mxu0 0.0
    %7296 = vmatprep.subr.mxu0 0.0
    %7297 = vmatpush1.msra.mxu0 0.0
    %7298 = vmatprep.subr.mxu0 0.0
    %7299 = vmatpush1.msra.mxu0 0.0
    %7300 = vmatprep.subr.mxu0 0.0
    %7301 = vmatpush1.msra.mxu0 0.0
    %7302 = vmatprep.subr.mxu0 0.0
    %7303 = vmatpush1.msra.mxu0 0.0
    %7304 = vmatprep.subr.mxu0 0.0
    %7305 = vmatpush1.msra.mxu0 0.0
    %7306 = vmatprep.subr.mxu0 0.0
    %7307 = vmatpush1.msra.mxu0 0.0
    %7308 = vmatprep.subr.mxu0 0.0
    %7309 = vmatpush1.msra.mxu0 0.0
    %7310 = vmatprep.subr.mxu0 0.0
    %7311 = vmatpush1.msra.mxu0 0.0
    %7312 = vmatprep.subr.mxu0 0.0
    %7313 = vmatpush1.msra.mxu0 0.0
    %7314 = vmatprep.subr.mxu0 0.0
    %7315 = vmatpush1.msra.mxu0 0.0
    %7316 = vmatprep.subr.mxu0 0.0
    %7317 = vmatpush1.msra.mxu0 0.0
    %7318 = vmatprep.subr.mxu0 0.0
    %7319 = vmatpush1.msra.mxu0 0.0
    %7320 = vmatprep.subr.mxu0 0.0
    %7321 = vmatpush1.msra.mxu0 0.0
    %7322 = vmatprep.subr.mxu0 0.0
    %7323 = vmatpush1.msra.mxu0 0.0
    %7324 = vmatprep.subr.mxu0 0.0
    %7325 = vmatpush1.msra.mxu0 0.0
    %7326 = vmatprep.subr.mxu0 0.0
    %7327 = vmatpush1.msra.mxu0 0.0
    %7328 = vmatprep.subr.mxu0 0.0
    %7329 = vmatpush1.msra.mxu0 0.0
    %7330 = vmatprep.subr.mxu0 0.0
    %7331 = vmatpush1.msra.mxu0 0.0
    %7332 = vmatprep.subr.mxu0 0.0
    %7333 = vmatpush1.msra.mxu0 0.0
    %7334 = vmatprep.subr.mxu0 0.0
    %7335 = vmatpush1.msra.mxu0 0.0
    %7336 = vmatprep.subr.mxu0 0.0
    %7337 = vmatpush1.msra.mxu0 0.0
    %7338 = vmatprep.subr.mxu0 0.0
    %7339 = vmatpush1.msra.mxu0 0.0
    %7340 = vmatprep.subr.mxu0 0.0
    %7341 = vmatpush1.msra.mxu0 0.0
    %7342 = vmatprep.subr.mxu0 0.0
    %7343 = vmatpush1.msra.mxu0 0.0
    %7344 = vmatprep.subr.mxu0 0.0
    %7345 = vmatpush1.msra.mxu0 0.0
    %7346 = vmatprep.subr.mxu0 0.0
    %7347 = vmatpush1.msra.mxu0 0.0
    %7348 = vmatprep.mubr.f32.mxu0 0.0
    %v7349 = vand.u32 %v3863, 4294901760
    %v7350 = vsub.f32 %v3863, %v7349
    %7351 = vmatmul.mubr.f32.gmra.mrb[0].mxu0 %v7350
    %v7352 = vpop.f32.mrb[0].mxu0
    %v7353 = vadd.f32 %v7276, %v7352
    %v7354 = vpop.f32.mrb[0].mxu0
    %v7355 = vadd.f32 %v7278, %v7354
    %7356 = vdwg.mxu0
    %v7357 = vand.u32 %v3860, 4294901760
    %7358 = vmatprep.subr.mxu0 %v7357
    %v7359 = vand.u32 %v3859, 4294901760
    %7360 = vmatpush1.msra.mxu0 %v7359
    %7361 = vmatprep.subr.mxu0 0.0
    %7362 = vmatpush1.msra.mxu0 0.0
    %7363 = vmatprep.subr.mxu0 0.0
    %7364 = vmatpush1.msra.mxu0 0.0
    %7365 = vmatprep.subr.mxu0 0.0
    %7366 = vmatpush1.msra.mxu0 0.0
    %7367 = vmatprep.subr.mxu0 0.0
    %7368 = vmatpush1.msra.mxu0 0.0
    %7369 = vmatprep.subr.mxu0 0.0
    %7370 = vmatpush1.msra.mxu0 0.0
    %7371 = vmatprep.subr.mxu0 0.0
    %7372 = vmatpush1.msra.mxu0 0.0
    %7373 = vmatprep.subr.mxu0 0.0
    %7374 = vmatpush1.msra.mxu0 0.0
    %7375 = vmatprep.subr.mxu0 0.0
    %7376 = vmatpush1.msra.mxu0 0.0
    %7377 = vmatprep.subr.mxu0 0.0
    %7378 = vmatpush1.msra.mxu0 0.0
    %7379 = vmatprep.subr.mxu0 0.0
    %7380 = vmatpush1.msra.mxu0 0.0
    %7381 = vmatprep.subr.mxu0 0.0
    %7382 = vmatpush1.msra.mxu0 0.0
    %7383 = vmatprep.subr.mxu0 0.0
    %7384 = vmatpush1.msra.mxu0 0.0
    %7385 = vmatprep.subr.mxu0 0.0
    %7386 = vmatpush1.msra.mxu0 0.0
    %7387 = vmatprep.subr.mxu0 0.0
    %7388 = vmatpush1.msra.mxu0 0.0
    %7389 = vmatprep.subr.mxu0 0.0
    %7390 = vmatpush1.msra.mxu0 0.0
    %7391 = vmatprep.subr.mxu0 0.0
    %7392 = vmatpush1.msra.mxu0 0.0
    %7393 = vmatprep.subr.mxu0 0.0
    %7394 = vmatpush1.msra.mxu0 0.0
    %7395 = vmatprep.subr.mxu0 0.0
    %7396 = vmatpush1.msra.mxu0 0.0
    %7397 = vmatprep.subr.mxu0 0.0
    %7398 = vmatpush1.msra.mxu0 0.0
    %7399 = vmatprep.subr.mxu0 0.0
    %7400 = vmatpush1.msra.mxu0 0.0
    %7401 = vmatprep.subr.mxu0 0.0
    %7402 = vmatpush1.msra.mxu0 0.0
    %7403 = vmatprep.subr.mxu0 0.0
    %7404 = vmatpush1.msra.mxu0 0.0
    %7405 = vmatprep.subr.mxu0 0.0
    %7406 = vmatpush1.msra.mxu0 0.0
    %7407 = vmatprep.subr.mxu0 0.0
    %7408 = vmatpush1.msra.mxu0 0.0
    %7409 = vmatprep.subr.mxu0 0.0
    %7410 = vmatpush1.msra.mxu0 0.0
    %7411 = vmatprep.subr.mxu0 0.0
    %7412 = vmatpush1.msra.mxu0 0.0
    %7413 = vmatprep.subr.mxu0 0.0
    %7414 = vmatpush1.msra.mxu0 0.0
    %7415 = vmatprep.subr.mxu0 0.0
    %7416 = vmatpush1.msra.mxu0 0.0
    %7417 = vmatprep.subr.mxu0 0.0
    %7418 = vmatpush1.msra.mxu0 0.0
    %7419 = vmatprep.subr.mxu0 0.0
    %7420 = vmatpush1.msra.mxu0 0.0
    %7421 = vmatprep.subr.mxu0 0.0
    %7422 = vmatpush1.msra.mxu0 0.0
    %7423 = vmatprep.mubr.f32.mxu0 0.0
    %v7424 = vand.u32 %v3863, 4294901760
    %v7425 = vsub.f32 %v3863, %v7424
    %v7426 = vand.u32 %v7425, 4294901760
    %7427 = vmatmul.mubr.f32.gmra.mrb[0].mxu0 %v7426
    %v7428 = vpop.f32.mrb[0].mxu0
    %v7429 = vadd.f32 %v7353, %v7428
    %v7430 = vpop.f32.mrb[0].mxu0
    %v7431 = vadd.f32 %v7355, %v7430
    %7432 = vdwg.mxu0
    %v7433 = vand.u32 %v3860, 4294901760
    %v7434 = vsub.f32 %v3860, %v7433
    %v7435 = vand.u32 %v7434, 4294901760
    %7436 = vmatprep.subr.mxu0 %v7435
    %v7437 = vand.u32 %v3859, 4294901760
    %v7438 = vsub.f32 %v3859, %v7437
    %v7439 = vand.u32 %v7438, 4294901760
    %7440 = vmatpush1.msra.mxu0 %v7439
    %7441 = vmatprep.subr.mxu0 0.0
    %7442 = vmatpush1.msra.mxu0 0.0
    %7443 = vmatprep.subr.mxu0 0.0
    %7444 = vmatpush1.msra.mxu0 0.0
    %7445 = vmatprep.subr.mxu0 0.0
    %7446 = vmatpush1.msra.mxu0 0.0
    %7447 = vmatprep.subr.mxu0 0.0
    %7448 = vmatpush1.msra.mxu0 0.0
    %7449 = vmatprep.subr.mxu0 0.0
    %7450 = vmatpush1.msra.mxu0 0.0
    %7451 = vmatprep.subr.mxu0 0.0
    %7452 = vmatpush1.msra.mxu0 0.0
    %7453 = vmatprep.subr.mxu0 0.0
    %7454 = vmatpush1.msra.mxu0 0.0
    %7455 = vmatprep.subr.mxu0 0.0
    %7456 = vmatpush1.msra.mxu0 0.0
    %7457 = vmatprep.subr.mxu0 0.0
    %7458 = vmatpush1.msra.mxu0 0.0
    %7459 = vmatprep.subr.mxu0 0.0
    %7460 = vmatpush1.msra.mxu0 0.0
    %7461 = vmatprep.subr.mxu0 0.0
    %7462 = vmatpush1.msra.mxu0 0.0
    %7463 = vmatprep.subr.mxu0 0.0
    %7464 = vmatpush1.msra.mxu0 0.0
    %7465 = vmatprep.subr.mxu0 0.0
    %7466 = vmatpush1.msra.mxu0 0.0
    %7467 = vmatprep.subr.mxu0 0.0
    %7468 = vmatpush1.msra.mxu0 0.0
    %7469 = vmatprep.subr.mxu0 0.0
    %7470 = vmatpush1.msra.mxu0 0.0
    %7471 = vmatprep.subr.mxu0 0.0
    %7472 = vmatpush1.msra.mxu0 0.0
    %7473 = vmatprep.subr.mxu0 0.0
    %7474 = vmatpush1.msra.mxu0 0.0
    %7475 = vmatprep.subr.mxu0 0.0
    %7476 = vmatpush1.msra.mxu0 0.0
    %7477 = vmatprep.subr.mxu0 0.0
    %7478 = vmatpush1.msra.mxu0 0.0
    %7479 = vmatprep.subr.mxu0 0.0
    %7480 = vmatpush1.msra.mxu0 0.0
    %7481 = vmatprep.subr.mxu0 0.0
    %7482 = vmatpush1.msra.mxu0 0.0
    %7483 = vmatprep.subr.mxu0 0.0
    %7484 = vmatpush1.msra.mxu0 0.0
    %7485 = vmatprep.subr.mxu0 0.0
    %7486 = vmatpush1.msra.mxu0 0.0
    %7487 = vmatprep.subr.mxu0 0.0
    %7488 = vmatpush1.msra.mxu0 0.0
    %7489 = vmatprep.subr.mxu0 0.0
    %7490 = vmatpush1.msra.mxu0 0.0
    %7491 = vmatprep.subr.mxu0 0.0
    %7492 = vmatpush1.msra.mxu0 0.0
    %7493 = vmatprep.subr.mxu0 0.0
    %7494 = vmatpush1.msra.mxu0 0.0
    %7495 = vmatprep.subr.mxu0 0.0
    %7496 = vmatpush1.msra.mxu0 0.0
    %7497 = vmatprep.subr.mxu0 0.0
    %7498 = vmatpush1.msra.mxu0 0.0
    %7499 = vmatprep.subr.mxu0 0.0
    %7500 = vmatpush1.msra.mxu0 0.0
    %7501 = vmatprep.subr.mxu0 0.0
    %7502 = vmatpush1.msra.mxu0 0.0
    %7503 = vmatprep.mubr.f32.mxu0 0.0
    %v7504 = vand.u32 %v3863, 4294901760
    %7505 = vmatmul.mubr.f32.gmra.mrb[0].mxu0 %v7504
    %v7506 = vpop.f32.mrb[0].mxu0
    %v7507 = vadd.f32 %v7429, %v7506
    %v7508 = vpop.f32.mrb[0].mxu0
    %v7509 = vadd.f32 %v7431, %v7508
    %7510 = vdwg.mxu0
    %v7511 = vand.u32 %v3860, 4294901760
    %7512 = vmatprep.subr.mxu0 %v7511
    %v7513 = vand.u32 %v3859, 4294901760
    %7514 = vmatpush1.msra.mxu0 %v7513
    %7515 = vmatprep.subr.mxu0 0.0
    %7516 = vmatpush1.msra.mxu0 0.0
    %7517 = vmatprep.subr.mxu0 0.0
    %7518 = vmatpush1.msra.mxu0 0.0
    %7519 = vmatprep.subr.mxu0 0.0
    %7520 = vmatpush1.msra.mxu0 0.0
    %7521 = vmatprep.subr.mxu0 0.0
    %7522 = vmatpush1.msra.mxu0 0.0
    %7523 = vmatprep.subr.mxu0 0.0
    %7524 = vmatpush1.msra.mxu0 0.0
    %7525 = vmatprep.subr.mxu0 0.0
    %7526 = vmatpush1.msra.mxu0 0.0
    %7527 = vmatprep.subr.mxu0 0.0
    %7528 = vmatpush1.msra.mxu0 0.0
    %7529 = vmatprep.subr.mxu0 0.0
    %7530 = vmatpush1.msra.mxu0 0.0
    %7531 = vmatprep.subr.mxu0 0.0
    %7532 = vmatpush1.msra.mxu0 0.0
    %7533 = vmatprep.subr.mxu0 0.0
    %7534 = vmatpush1.msra.mxu0 0.0
    %7535 = vmatprep.subr.mxu0 0.0
    %7536 = vmatpush1.msra.mxu0 0.0
    %7537 = vmatprep.subr.mxu0 0.0
    %7538 = vmatpush1.msra.mxu0 0.0
    %7539 = vmatprep.subr.mxu0 0.0
    %7540 = vmatpush1.msra.mxu0 0.0
    %7541 = vmatprep.subr.mxu0 0.0
    %7542 = vmatpush1.msra.mxu0 0.0
    %7543 = vmatprep.subr.mxu0 0.0
    %7544 = vmatpush1.msra.mxu0 0.0
    %7545 = vmatprep.subr.mxu0 0.0
    %7546 = vmatpush1.msra.mxu0 0.0
    %7547 = vmatprep.subr.mxu0 0.0
    %7548 = vmatpush1.msra.mxu0 0.0
    %7549 = vmatprep.subr.mxu0 0.0
    %7550 = vmatpush1.msra.mxu0 0.0
    %7551 = vmatprep.subr.mxu0 0.0
    %7552 = vmatpush1.msra.mxu0 0.0
    %7553 = vmatprep.subr.mxu0 0.0
    %7554 = vmatpush1.msra.mxu0 0.0
    %7555 = vmatprep.subr.mxu0 0.0
    %7556 = vmatpush1.msra.mxu0 0.0
    %7557 = vmatprep.subr.mxu0 0.0
    %7558 = vmatpush1.msra.mxu0 0.0
    %7559 = vmatprep.subr.mxu0 0.0
    %7560 = vmatpush1.msra.mxu0 0.0
    %7561 = vmatprep.subr.mxu0 0.0
    %7562 = vmatpush1.msra.mxu0 0.0
    %7563 = vmatprep.subr.mxu0 0.0
    %7564 = vmatpush1.msra.mxu0 0.0
    %7565 = vmatprep.subr.mxu0 0.0
    %7566 = vmatpush1.msra.mxu0 0.0
    %7567 = vmatprep.subr.mxu0 0.0
    %7568 = vmatpush1.msra.mxu0 0.0
    %7569 = vmatprep.subr.mxu0 0.0
    %7570 = vmatpush1.msra.mxu0 0.0
    %7571 = vmatprep.subr.mxu0 0.0
    %7572 = vmatpush1.msra.mxu0 0.0
    %7573 = vmatprep.subr.mxu0 0.0
    %7574 = vmatpush1.msra.mxu0 0.0
    %7575 = vmatprep.subr.mxu0 0.0
    %7576 = vmatpush1.msra.mxu0 0.0
    %7577 = vmatprep.mubr.f32.mxu0 0.0
    %v7578 = vand.u32 %v3863, 4294901760
    %7579 = vmatmul.mubr.f32.gmra.mrb[0].mxu0 %v7578
    %v7580 = vpop.f32.mrb[0].mxu0
    %v7581 = vadd.f32 %v7507, %v7580
    %v7582 = vpop.f32.mrb[0].mxu0
    %v7583 = vadd.f32 %v7509, %v7582
    %7584 = vdwg.mxu0
    %7585 = vset.pattern.permute.xlu0 17
    %7586 = vperm.xlu0 %7585, %v36
    %v7587 = vpop.permute.xlu0 %7586
    %v7589 = vadd.f32 %v4326, %v7587
    %v7590 = vadd.f32 %v4328, %v7587
    %v7591 = vadd.f32 %v4791, %v7587
    %v7592 = vadd.f32 %v4793, %v7587
    %v7593 = vadd.f32 %v5256, %v7587
    %v7594 = vadd.f32 %v5258, %v7587
    %v7595 = vadd.f32 %v5721, %v7587
    %v7596 = vadd.f32 %v5723, %v7587
    %v7597 = vadd.f32 %v6186, %v7587
    %v7598 = vadd.f32 %v6188, %v7587
    %v7599 = vadd.f32 %v6651, %v7587
    %v7600 = vadd.f32 %v6653, %v7587
    %v7601 = vadd.f32 %v7116, %v7587
    %v7602 = vadd.f32 %v7118, %v7587
    %v7603 = vadd.f32 %v7581, %v7587
    %v7604 = vadd.f32 %v7583, %v7587
    %v7621 = vcombine.low %v7589, %v7590
    %v7622 = vcombine.low %v7591, %v7592
    %v7623 = vcombine.low %v7593, %v7594
    %v7624 = vcombine.low %v7595, %v7596
    %v7625 = vcombine.low %v7597, %v7598
    %v7626 = vcombine.low %v7599, %v7600
    %v7627 = vcombine.low %v7601, %v7602
    %v7628 = vcombine.low %v7603, %v7604
    %7637 = vst [vmem:[#allocation8] sm:$0x77] %v7621
    %7638 = vst [vmem:[#allocation8 + $0x8] sm:$0x77] %v7622
    %7639 = vst [vmem:[#allocation8 + $0x10] sm:$0x77] %v7623
    %7640 = vst [vmem:[#allocation8 + $0x18] sm:$0x77] %v7624
    %7641 = vst [vmem:[#allocation8 + $0x20] sm:$0x77] %v7625
    %7642 = vst [vmem:[#allocation8 + $0x28] sm:$0x77] %v7626
    %7643 = vst [vmem:[#allocation8 + $0x30] sm:$0x77] %v7627
    %7644 = vst [vmem:[#allocation8 + $0x38] sm:$0x77] %v7628
    // Predicated region
    $region18: #{tpu_custom_call.1} parent=1 // pred_check
      _
    $region19: #{tpu_custom_call.1} parent=1 // pred_check_branch
      %7646 = sbr.rel (0) target = $region21
    $region20: #{tpu_custom_call.1} parent=1 // pred_region
      %s7648 = ssub.s32 1024, 64
      %7649 = vsyncadd [#allocation5], %s7648
      %s7651 = sshll.u32 [#allocation8], 4
      %s7652 = int_to_ptr.vmem [resolvable:$true] %s7651
      %7654 = dma.vmem_to_hbm [thread:$0]  %s7652, 64, %s2, [#allocation5]
    $region21: #{tpu_custom_call.1} parent=1 // pred_fallthru
      _
    // Predicated region
    $region22: #{tpu_custom_call.1} parent=1 // pred_check
      _
    $region23: #{tpu_custom_call.1} parent=1 // pred_check_branch
      %7656 = sbr.rel (0) target = $region25
    $region24: #{tpu_custom_call.1} parent=1 // pred_region
      %7657 = dma.done [#allocation5], 1024
    $region25: #{tpu_custom_call.1} parent=1 // pred_fallthru
      _
    %7658 = vsyncpa [#allocation4], 1
    %7659 = vsyncpa [#allocation7], 1
    %7660 = vsyncpa [#allocation5], 1

</llo_original>
